<compile_context>
chip_gen: v7x
topology: tpu7x:2x2x1
jax: 0.10.0
libtpu: 0.0.40
codegen_flags: <defaults>
</compile_context>

<pallas_src>
import functools

import jax
import jax.numpy as jnp
from jax import lax
from jax.experimental import pallas as pl
from jax.experimental.pallas import tpu as pltpu

_VMEM_LIMIT_BYTES = 64 * 1024 * 1024


def _round_up(x, m):
    return ((x + m - 1) // m) * m


def _pick_block(dim, candidates):
    """Largest candidate that divides `dim`; fall back to the full dim."""
    for c in candidates:
        if c <= dim and dim % c == 0:
            return c
    return dim


# ----------------------------------------------------------------------------
# Generic tiled matmul + bias kernel (used for the hoisted input projection
# x @ W_ih^T + b  and for the decoder  h @ W_dec^T + b).
# Grid over (M, N); K kept whole (K = ninp/nhid, small enough for VMEM).
# ----------------------------------------------------------------------------
def _matmul_bias_kernel(x_ref, w_ref, b_ref, o_ref):
    o_ref[...] = (jnp.dot(x_ref[...], w_ref[...],
                          preferred_element_type=jnp.float32)
                  + b_ref[...]).astype(o_ref.dtype)


def matmul_bias(x, w, b):
    """x: (M, K); w: (K, N); b: (1, N) -> (M, N) f32."""
    M, K = x.shape
    N = w.shape[1]
    # v5e note: prefer 128-wide tiles there; 256/512 are fine on v6e/v7x and
    # harmless at small shapes since we fall back to the full dim.
    tm = _pick_block(M, (256, 128, 64, 32, 16, 8))
    tn = _pick_block(N, (512, 256, 128))
    grid = (M // tm, N // tn)
    return pl.pallas_call(
        _matmul_bias_kernel,
        grid=grid,
        in_specs=[
            pl.BlockSpec((tm, K), lambda i, j: (i, 0)),
            pl.BlockSpec((K, tn), lambda i, j: (0, j)),
            pl.BlockSpec((1, tn), lambda i, j: (0, j)),
        ],
        out_specs=pl.BlockSpec((tm, tn), lambda i, j: (i, j)),
        out_shape=jax.ShapeDtypeStruct((M, N), jnp.float32),
        compiler_params=pltpu.CompilerParams(
            dimension_semantics=("parallel", "parallel"),
            vmem_limit_bytes=_VMEM_LIMIT_BYTES),
    )(x, w, b)


# ----------------------------------------------------------------------------
# LSTM recurrence kernel. The input projection xz = x @ W_ih^T + b has already
# been computed for all timesteps; this kernel only does the serial part:
#   z_t = xz_t + h_{t-1} @ W_hh^T ; gates ; c_t, h_t.
# Grid: (batch_blocks ["parallel"], time_chunks ["arbitrary"]). h/c live in
# VMEM scratch and persist across time chunks. Gate order: i, f, g, o.
# ----------------------------------------------------------------------------
def _lstm_rec_kernel(xz_ref, whh_t_ref, h0_ref, c0_ref,
                     y_ref, hn_ref, cn_ref, h_scr, c_scr):
    tc = pl.program_id(1)
    nh = h_scr.shape[-1]

    @pl.when(tc == 0)
    def _():
        h_scr[...] = h0_ref[...]
        c_scr[...] = c0_ref[...]

    whh = whh_t_ref[...]                      # (H, 4H)

    def step(s, carry):
        h, c = carry
        z = xz_ref[s] + jnp.dot(h, whh, preferred_element_type=jnp.float32)
        i_g = jax.nn.sigmoid(z[:, 0:nh])
        f_g = jax.nn.sigmoid(z[:, nh:2 * nh])
        g_g = jnp.tanh(z[:, 2 * nh:3 * nh])
        o_g = jax.nn.sigmoid(z[:, 3 * nh:4 * nh])
        c_new = f_g * c + i_g * g_g
        h_new = o_g * jnp.tanh(c_new)
        y_ref[s] = h_new
        return h_new, c_new

    h_fin, c_fin = lax.fori_loop(0, y_ref.shape[0], step,
                                 (h_scr[...], c_scr[...]), unroll=True)
    h_scr[...] = h_fin
    c_scr[...] = c_fin

    @pl.when(tc == pl.num_programs(1) - 1)
    def _():
        hn_ref[...] = h_fin
        cn_ref[...] = c_fin


def lstm_layer_rec(xz, whh_t, h0, c0, *, single_buffer=True):
    """xz: (S, B, 4H); whh_t: (H, 4H); h0/c0: (B, H)."""
    S, B, G = xz.shape
    H = whh_t.shape[0]
    ts = _pick_block(S, (16, 8, 4, 2, 1))
    # Two batch blocks when batch is big enough -> lets v7x use both TensorCores.
    tb = B // 2 if (B >= 16 and (B // 2) % 8 == 0) else B
    grid = (B // tb, S // ts)

    if single_buffer:
        # Constant block index -> no need to double-buffer the big recurrent weight.
        whh_spec = pl.BlockSpec((H, G), lambda b, t: (0, 0),
                                pipeline_mode=pl.Buffered(1))
    else:
        whh_spec = pl.BlockSpec((H, G), lambda b, t: (0, 0))

    return pl.pallas_call(
        _lstm_rec_kernel,
        grid=grid,
        in_specs=[
            pl.BlockSpec((ts, tb, G), lambda b, t: (t, b, 0)),
            whh_spec,
            pl.BlockSpec((tb, H), lambda b, t: (b, 0)),
            pl.BlockSpec((tb, H), lambda b, t: (b, 0)),
        ],
        out_specs=[
            pl.BlockSpec((ts, tb, H), lambda b, t: (t, b, 0)),
            pl.BlockSpec((tb, H), lambda b, t: (b, 0)),
            pl.BlockSpec((tb, H), lambda b, t: (b, 0)),
        ],
        out_shape=[
            jax.ShapeDtypeStruct((S, B, H), jnp.float32),
            jax.ShapeDtypeStruct((B, H), jnp.float32),
            jax.ShapeDtypeStruct((B, H), jnp.float32),
        ],
        scratch_shapes=[
            pltpu.VMEM((tb, H), jnp.float32),
            pltpu.VMEM((tb, H), jnp.float32),
        ],
        compiler_params=pltpu.CompilerParams(
            dimension_semantics=("parallel", "arbitrary"),
            vmem_limit_bytes=_VMEM_LIMIT_BYTES),
    )(xz, whh_t, h0, c0)


# ----------------------------------------------------------------------------
# Parameters (eval-mode forward of RNNModel_t).
# ----------------------------------------------------------------------------
def init_params(key, ntoken, ninp, nhid, nlayers):
    keys = jax.random.split(key, 2 + 4 * nlayers)
    initrange = 0.1
    v_in = ntoken + 1                 # embedding rows (incl. pad-token row)
    v_out = ntoken                    # decoder columns actually returned
    v_pad = max(_round_up(v_out, 128), 128)

    # nn.Embedding(ntoken+1, ninp); init_weights() overwrites the padding row too.
    enc_w = jax.random.uniform(keys[0], (v_in, ninp), jnp.float32,
                               -initrange, initrange)
    # nn.Linear(nhid, ntoken+1): weight (ntoken+1, nhid), bias zero.
    # The "+1" logit column is dropped by the model, so store W^T pre-sliced to
    # ntoken columns and zero-padded to a lane multiple (fused last-column drop).
    dec_w = jax.random.uniform(keys[1], (v_in, nhid), jnp.float32,
                               -initrange, initrange)
    dec_w_t = jnp.zeros((nhid, v_pad), jnp.float32).at[:, :v_out].set(dec_w[:v_out].T)
    dec_b = jnp.zeros((1, v_pad), jnp.float32)

    params = {"enc_w": enc_w, "dec_w_t": dec_w_t, "dec_b": dec_b}
    # TODO(synk): store LSTM/decoder weights in bf16 (keep gates/state f32) to
    # halve HBM traffic and double MXU rate on v6e/v7x.
    for l in range(nlayers):
        in_sz = ninp if l == 0 else nhid
        bound = 1.0 / float(nhid) ** 0.5
        k = keys[2 + 4 * l: 2 + 4 * (l + 1)]
        wih = jax.random.uniform(k[0], (4 * nhid, in_sz), jnp.float32, -bound, bound)
        whh = jax.random.uniform(k[1], (4 * nhid, nhid), jnp.float32, -bound, bound)
        b_ih = jax.random.uniform(k[2], (4 * nhid,), jnp.float32, -bound, bound)
        b_hh = jax.random.uniform(k[3], (4 * nhid,), jnp.float32, -bound, bound)
        params[f"wih_t_{l}"] = wih.T                  # (in_sz, 4H)
        params[f"whh_t_{l}"] = whh.T                  # (H, 4H)
        params[f"b_{l}"] = (b_ih + b_hh)[None, :]     # (1, 4H)
    return params


# ----------------------------------------------------------------------------
# Model wrapper (eval-mode forward: dropout paths are identity).
# ----------------------------------------------------------------------------
@functools.partial(jax.jit, static_argnames=("nlayers", "single_buffer_weights"))
def rnn_model_forward(input_ids, hidden_flat, params, nlayers,
                      single_buffer_weights=True):
    """input_ids: (S, B) int32; hidden_flat: (h_0, c_0, h_1, c_1, ...), each (1, B, H).
    Returns (decoded (S, B, ntoken), new_hidden tuple)."""
    S, B = input_ids.shape
    ntoken = params["enc_w"].shape[0] - 1

    # Pad batch so every block's sublane dim is a multiple of 8.
    B_pad = max(_round_up(B, 8), 8)
    if B_pad != B:
        input_ids = jnp.pad(input_ids, ((0, 0), (0, B_pad - B)))
        hidden_flat = tuple(jnp.pad(h, ((0, 0), (0, B_pad - B), (0, 0)))
                            for h in hidden_flat)

    # Embedding lookup (LockedDropout is identity in eval mode).
    raw = jnp.take(params["enc_w"], input_ids, axis=0)      # (S, B_pad, ninp)

    new_hidden = []
    for l in range(nlayers):
        h0 = hidden_flat[2 * l][0]            # (B_pad, H)
        c0 = hidden_flat[2 * l + 1][0]
        wih_t = params[f"wih_t_{l}"]          # (I, 4H)
        whh_t = params[f"whh_t_{l}"]          # (H, 4H)
        # Hoisted input projection over ALL timesteps (one big MXU matmul).
        xz = matmul_bias(raw.reshape(S * B_pad, -1), wih_t, params[f"b_{l}"])
        xz = xz.reshape(S, B_pad, wih_t.shape[1])
        y, hn, cn = lstm_layer_rec(xz, whh_t, h0, c0,
                                   single_buffer=single_buffer_weights)
        new_hidden.extend([hn[None, :B], cn[None, :B]])
        raw = y

    H = raw.shape[-1]
    dec = matmul_bias(raw.reshape(S * B_pad, H), params["dec_w_t"], params["dec_b"])
    dec = dec.reshape(S, B_pad, -1)
    return dec[:, :B, :ntoken], tuple(new_hidden)


# ----------------------------------------------------------------------------
# Pure-JAX reference (correctness check).
# ----------------------------------------------------------------------------
def _lstm_ref(x, wih_t, whh_t, b, h0, c0):
    def step(carry, x_t):
        h, c = carry
        z = x_t @ wih_t + h @ whh_t + b
        H = h.shape[-1]
        i = jax.nn.sigmoid(z[:, :H])
        f = jax.nn.sigmoid(z[:, H:2 * H])
        g = jnp.tanh(z[:, 2 * H:3 * H])
        o = jax.nn.sigmoid(z[:, 3 * H:])
        c = f * c + i * g
        h = o * jnp.tanh(c)
        return (h, c), h
    (hn, cn), ys = lax.scan(step, (h0, c0), x)
    return ys, hn, cn


def _forward_ref(input_ids, hidden_flat, params, nlayers):
    ntoken = params["enc_w"].shape[0] - 1
    raw = jnp.take(params["enc_w"], input_ids, axis=0)
    new_hidden = []
    for l in range(nlayers):
        raw, hn, cn = _lstm_ref(raw, params[f"wih_t_{l}"], params[f"whh_t_{l}"],
                                params[f"b_{l}"], hidden_flat[2 * l][0],
                                hidden_flat[2 * l + 1][0])
        new_hidden.extend([hn[None], cn[None]])
    S, B, H = raw.shape
    dec = raw.reshape(S * B, H) @ params["dec_w_t"] + params["dec_b"]
    return dec.reshape(S, B, -1)[:, :, :ntoken], tuple(new_hidden)


if __name__ == "__main__":
    # Small, (8,128)-aligned deterministic config.
    ntoken, ninp, nhid, nlayers = 128, 128, 128, 2
    S, B = 16, 8

    key = jax.random.PRNGKey(0)
    k_par, k_ids, k_h = jax.random.split(key, 3)

    params = init_params(k_par, ntoken, ninp, nhid, nlayers)
    input_ids = jax.random.randint(k_ids, (S, B), 0, ntoken + 1, dtype=jnp.int32)

    # hidden: per layer (h, c), each (1, B, nhid) as in init_hidden (small random
    # values instead of zeros to exercise the recurrence).
    hkeys = jax.random.split(k_h, 2 * nlayers)
    hidden_flat = tuple(
        0.1 * jax.random.normal(hkeys[i], (1, B, nhid), jnp.float32)
        for i in range(2 * nlayers)
    )

    try:
        decoded, new_hidden = rnn_model_forward(
            input_ids, hidden_flat, params, nlayers=nlayers,
            single_buffer_weights=True)
        decoded = jax.block_until_ready(decoded)
    except Exception:
        # If this Pallas build rejects pipeline_mode=pl.Buffered(1), fall back to
        # default double-buffered weights (identical numerics).
        decoded, new_hidden = rnn_model_forward(
            input_ids, hidden_flat, params, nlayers=nlayers,
            single_buffer_weights=False)
        decoded = jax.block_until_ready(decoded)
    jax.block_until_ready(new_hidden)

    assert decoded.shape == (S, B, ntoken), decoded.shape
    ref_dec, ref_hidden = _forward_ref(input_ids, hidden_flat, params, nlayers)
    assert jnp.allclose(decoded, ref_dec, atol=1e-4, rtol=1e-3), "decoded mismatch"
    for got, want in zip(new_hidden, ref_hidden):
        assert jnp.allclose(got, want, atol=1e-4, rtol=1e-3), "hidden mismatch"

    # TODO(synk): training branch (CrossEntropyLoss ngram_pred) and dropout /
    # WeightDrop paths are training-only and not part of the eval-mode kernels.
    print("KERNEL_OK")
</pallas_src>

<mosaic_0001>
module attributes {stable_mosaic.version = 11 : i64} {
  func.func @_matmul_bias_kernel(%arg0: i32, %arg1: i32, %arg2: memref<128x128xf32, #tpu.memory_space<vmem>>, %arg3: memref<128x512xf32, #tpu.memory_space<vmem>>, %arg4: memref<1x512xf32, #tpu.memory_space<vmem>>, %arg5: memref<128x512xf32, #tpu.memory_space<vmem>>) attributes {dimension_semantics = [#tpu.dimension_semantics<parallel>, #tpu.dimension_semantics<parallel>], iteration_bounds = array<i64: 1, 1>, scalar_prefetch = 0 : i64, scratch_operands = 0 : i64, tpu.core_type = #tpu.core_type<tc>, window_params = [{transform_indices = @transform_0, window_bounds = array<i64: 128, 128>}, {transform_indices = @transform_1, window_bounds = array<i64: 128, 512>}, {transform_indices = @transform_2, window_bounds = array<i64: 1, 512>}, {transform_indices = @transform_3, window_bounds = array<i64: 128, 512>}]} {
    %c0 = arith.constant 0 : index
    %c0_0 = arith.constant 0 : index
    %0 = vector.load %arg2[%c0, %c0_0] : memref<128x128xf32, #tpu.memory_space<vmem>>, vector<128x128xf32>
    %c0_1 = arith.constant 0 : index
    %c0_2 = arith.constant 0 : index
    %1 = vector.load %arg3[%c0_1, %c0_2] : memref<128x512xf32, #tpu.memory_space<vmem>>, vector<128x512xf32>
    %cst = arith.constant dense<0.000000e+00> : vector<128x512xf32>
    %2 = tpu.matmul %0, %1, %cst {dimension_numbers = #tpu.dot_dimension_numbers<[1], [0], [0], [1], [0, 0, 1, 1], [], []>} : vector<128x128xf32>, vector<128x512xf32>, vector<128x512xf32> -> vector<128x512xf32>
    %c0_3 = arith.constant 0 : index
    %c0_4 = arith.constant 0 : index
    %3 = vector.load %arg4[%c0_3, %c0_4] : memref<1x512xf32, #tpu.memory_space<vmem>>, vector<1x512xf32>
    %4 = vector.broadcast %3 : vector<1x512xf32> to vector<128x512xf32>
    %5 = arith.addf %2, %4 : vector<128x512xf32>
    %c0_5 = arith.constant 0 : index
    %c0_6 = arith.constant 0 : index
    %6 = vector.load %arg5[%c0_5, %c0_6] : memref<128x512xf32, #tpu.memory_space<vmem>>, vector<128x512xf32>
    tpu.vector_store %arg5[%c0_5, %c0_6], %5 {strides = array<i32>} : memref<128x512xf32, #tpu.memory_space<vmem>>, vector<128x512xf32>,
    return
  }
  func.func @transform_0(%arg0: i32, %arg1: i32) -> (i32, i32) {
    %c0_i32 = arith.constant 0 : i32
    %c0_i32_0 = arith.constant 0 : i32
    return %arg0, %c0_i32 : i32, i32
  }
  func.func @transform_1(%arg0: i32, %arg1: i32) -> (i32, i32) {
    %c0_i32 = arith.constant 0 : i32
    %c0_i32_0 = arith.constant 0 : i32
    return %c0_i32, %arg1 : i32, i32
  }
  func.func @transform_2(%arg0: i32, %arg1: i32) -> (i32, i32) {
    %c0_i32 = arith.constant 0 : i32
    %c0_i32_0 = arith.constant 0 : i32
    return %c0_i32, %arg1 : i32, i32
  }
  func.func @transform_3(%arg0: i32, %arg1: i32) -> (i32, i32) {
    %c0_i32 = arith.constant 0 : i32
    return %arg0, %arg1 : i32, i32
  }
}

module attributes {stable_mosaic.version = 11 : i64} {
  func.func @_matmul_bias_kernel(%arg0: i32, %arg1: i32, %arg2: memref<128x128xf32, #tpu.memory_space<vmem>>, %arg3: memref<128x128xf32, #tpu.memory_space<vmem>>, %arg4: memref<1x128xf32, #tpu.memory_space<vmem>>, %arg5: memref<128x128xf32, #tpu.memory_space<vmem>>) attributes {dimension_semantics = [#tpu.dimension_semantics<parallel>, #tpu.dimension_semantics<parallel>], iteration_bounds = array<i64: 1, 1>, scalar_prefetch = 0 : i64, scratch_operands = 0 : i64, tpu.core_type = #tpu.core_type<tc>, window_params = [{transform_indices = @transform_0, window_bounds = array<i64: 128, 128>}, {transform_indices = @transform_1, window_bounds = array<i64: 128, 128>}, {transform_indices = @transform_2, window_bounds = array<i64: 1, 128>}, {transform_indices = @transform_3, window_bounds = array<i64: 128, 128>}]} {
    %c0 = arith.constant 0 : index
    %c0_0 = arith.constant 0 : index
    %0 = vector.load %arg2[%c0, %c0_0] : memref<128x128xf32, #tpu.memory_space<vmem>>, vector<128x128xf32>
    %c0_1 = arith.constant 0 : index
    %c0_2 = arith.constant 0 : index
    %1 = vector.load %arg3[%c0_1, %c0_2] : memref<128x128xf32, #tpu.memory_space<vmem>>, vector<128x128xf32>
    %cst = arith.constant dense<0.000000e+00> : vector<128x128xf32>
    %2 = tpu.matmul %0, %1, %cst {dimension_numbers = #tpu.dot_dimension_numbers<[1], [0], [0], [1], [0, 0, 1, 1], [], []>} : vector<128x128xf32>, vector<128x128xf32>, vector<128x128xf32> -> vector<128x128xf32>
    %c0_3 = arith.constant 0 : index
    %c0_4 = arith.constant 0 : index
    %3 = vector.load %arg4[%c0_3, %c0_4] : memref<1x128xf32, #tpu.memory_space<vmem>>, vector<1x128xf32>
    %4 = vector.broadcast %3 : vector<1x128xf32> to vector<128x128xf32>
    %5 = arith.addf %2, %4 : vector<128x128xf32>
    %c0_5 = arith.constant 0 : index
    %c0_6 = arith.constant 0 : index
    %6 = vector.load %arg5[%c0_5, %c0_6] : memref<128x128xf32, #tpu.memory_space<vmem>>, vector<128x128xf32>
    tpu.vector_store %arg5[%c0_5, %c0_6], %5 {strides = array<i32>} : memref<128x128xf32, #tpu.memory_space<vmem>>, vector<128x128xf32>,
    return
  }
  func.func @transform_0(%arg0: i32, %arg1: i32) -> (i32, i32) {
    %c0_i32 = arith.constant 0 : i32
    %c0_i32_0 = arith.constant 0 : i32
    return %arg0, %c0_i32 : i32, i32
  }
  func.func @transform_1(%arg0: i32, %arg1: i32) -> (i32, i32) {
    %c0_i32 = arith.constant 0 : i32
    %c0_i32_0 = arith.constant 0 : i32
    return %c0_i32, %arg1 : i32, i32
  }
  func.func @transform_2(%arg0: i32, %arg1: i32) -> (i32, i32) {
    %c0_i32 = arith.constant 0 : i32
    %c0_i32_0 = arith.constant 0 : i32
    return %c0_i32, %arg1 : i32, i32
  }
  func.func @transform_3(%arg0: i32, %arg1: i32) -> (i32, i32) {
    %c0_i32 = arith.constant 0 : i32
    return %arg0, %arg1 : i32, i32
  }
}

module attributes {stable_mosaic.version = 11 : i64} {
  func.func @_lstm_rec_kernel(%arg0: i32, %arg1: i32, %arg2: memref<16x8x512xf32, #tpu.memory_space<vmem>>, %arg3: memref<128x512xf32, #tpu.memory_space<vmem>>, %arg4: memref<8x128xf32, #tpu.memory_space<vmem>>, %arg5: memref<8x128xf32, #tpu.memory_space<vmem>>, %arg6: memref<16x8x128xf32, #tpu.memory_space<vmem>>, %arg7: memref<8x128xf32, #tpu.memory_space<vmem>>, %arg8: memref<8x128xf32, #tpu.memory_space<vmem>>, %arg9: memref<8x128xf32, #tpu.memory_space<vmem>>, %arg10: memref<8x128xf32, #tpu.memory_space<vmem>>) attributes {dimension_semantics = [#tpu.dimension_semantics<parallel>, #tpu.dimension_semantics<arbitrary>], iteration_bounds = array<i64: 1, 1>, scalar_prefetch = 0 : i64, scratch_operands = 2 : i64, tpu.core_type = #tpu.core_type<tc>, window_params = [{transform_indices = @transform_0, window_bounds = array<i64: 16, 8, 512>}, {pipeline_mode = #tpu.pipeline_mode<synchronous>, transform_indices = @transform_1, window_bounds = array<i64: 128, 512>}, {transform_indices = @transform_2, window_bounds = array<i64: 8, 128>}, {transform_indices = @transform_3, window_bounds = array<i64: 8, 128>}, {transform_indices = @transform_4, window_bounds = array<i64: 16, 8, 128>}, {transform_indices = @transform_5, window_bounds = array<i64: 8, 128>}, {transform_indices = @transform_6, window_bounds = array<i64: 8, 128>}]} {
    %c0_i32 = arith.constant 0 : i32
    %0 = arith.cmpi eq, %arg1, %c0_i32 : i32
    %1 = arith.extui %0 : i1 to i32
    %c0_i32_0 = arith.constant 0 : i32
    %2 = arith.cmpi ne, %1, %c0_i32_0 : i32
    scf.if %2 {
      %c0_140 = arith.constant 0 : index
      %c0_141 = arith.constant 0 : index
      %555 = vector.load %arg4[%c0_140, %c0_141] : memref<8x128xf32, #tpu.memory_space<vmem>>, vector<8x128xf32>
      %c0_142 = arith.constant 0 : index
      %c0_143 = arith.constant 0 : index
      %556 = vector.load %arg9[%c0_142, %c0_143] : memref<8x128xf32, #tpu.memory_space<vmem>>, vector<8x128xf32>
      tpu.vector_store %arg9[%c0_142, %c0_143], %555 {strides = array<i32>} : memref<8x128xf32, #tpu.memory_space<vmem>>, vector<8x128xf32>,
      %c0_144 = arith.constant 0 : index
      %c0_145 = arith.constant 0 : index
      %557 = vector.load %arg5[%c0_144, %c0_145] : memref<8x128xf32, #tpu.memory_space<vmem>>, vector<8x128xf32>
      %c0_146 = arith.constant 0 : index
      %c0_147 = arith.constant 0 : index
      %558 = vector.load %arg10[%c0_146, %c0_147] : memref<8x128xf32, #tpu.memory_space<vmem>>, vector<8x128xf32>
      tpu.vector_store %arg10[%c0_146, %c0_147], %557 {strides = array<i32>} : memref<8x128xf32, #tpu.memory_space<vmem>>, vector<8x128xf32>,
    } else {
    }
    %c0 = arith.constant 0 : index
    %c0_1 = arith.constant 0 : index
    %3 = vector.load %arg3[%c0, %c0_1] : memref<128x512xf32, #tpu.memory_space<vmem>>, vector<128x512xf32>
    %c0_2 = arith.constant 0 : index
    %c0_3 = arith.constant 0 : index
    %4 = vector.load %arg9[%c0_2, %c0_3] : memref<8x128xf32, #tpu.memory_space<vmem>>, vector<8x128xf32>
    %c0_4 = arith.constant 0 : index
    %c0_5 = arith.constant 0 : index
    %5 = vector.load %arg10[%c0_4, %c0_5] : memref<8x128xf32, #tpu.memory_space<vmem>>, vector<8x128xf32>
    %c0_i32_6 = arith.constant 0 : i32
    %6 = arith.index_cast %c0_i32_6 : i32 to index
    %c0_7 = arith.constant 0 : index
    %c0_8 = arith.constant 0 : index
    %7 = vector.load %arg2[%6, %c0_7, %c0_8] : memref<16x8x512xf32, #tpu.memory_space<vmem>>, vector<1x8x512xf32>
    %8 = vector.shape_cast %7 : vector<1x8x512xf32> to vector<8x512xf32>
    %cst = arith.constant dense<0.000000e+00> : vector<8x512xf32>
    %9 = tpu.matmul %4, %3, %cst {dimension_numbers = #tpu.dot_dimension_numbers<[1], [0], [0], [1], [0, 0, 1, 1], [], []>} : vector<8x128xf32>, vector<128x512xf32>, vector<8x512xf32> -> vector<8x512xf32>
    %10 = arith.addf %8, %9 : vector<8x512xf32>
    %11 = vector.extract_strided_slice %10 {offsets = [0, 0], sizes = [8, 128], strides = [1, 1]} : vector<8x512xf32> to vector<8x128xf32>
    %12 = arith.negf %11 : vector<8x128xf32>
    %13 = math.exp %12 : vector<8x128xf32>
    %cst_9 = arith.constant 1.000000e+00 : f32
    %14 = vector.broadcast %cst_9 : f32 to vector<8x128xf32>
    %15 = arith.addf %14, %13 : vector<8x128xf32>
    %16 = arith.divf %14, %15 : vector<8x128xf32>
    %17 = vector.extract_strided_slice %10 {offsets = [0, 128], sizes = [8, 128], strides = [1, 1]} : vector<8x512xf32> to vector<8x128xf32>
    %18 = arith.negf %17 : vector<8x128xf32>
    %19 = math.exp %18 : vector<8x128xf32>
    %cst_10 = arith.constant 1.000000e+00 : f32
    %20 = vector.broadcast %cst_10 : f32 to vector<8x128xf32>
    %21 = arith.addf %20, %19 : vector<8x128xf32>
    %22 = arith.divf %20, %21 : vector<8x128xf32>
    %23 = vector.extract_strided_slice %10 {offsets = [0, 256], sizes = [8, 128], strides = [1, 1]} : vector<8x512xf32> to vector<8x128xf32>
    %24 = math.tanh %23 : vector<8x128xf32>
    %25 = vector.extract_strided_slice %10 {offsets = [0, 384], sizes = [8, 128], strides = [1, 1]} : vector<8x512xf32> to vector<8x128xf32>
    %26 = arith.negf %25 : vector<8x128xf32>
    %27 = math.exp %26 : vector<8x128xf32>
    %cst_11 = arith.constant 1.000000e+00 : f32
    %28 = vector.broadcast %cst_11 : f32 to vector<8x128xf32>
    %29 = arith.addf %28, %27 : vector<8x128xf32>
    %30 = arith.divf %28, %29 : vector<8x128xf32>
    %31 = arith.mulf %22, %5 : vector<8x128xf32>
    %32 = arith.mulf %16, %24 : vector<8x128xf32>
    %33 = arith.addf %31, %32 : vector<8x128xf32>
    %34 = math.tanh %33 : vector<8x128xf32>
    %35 = arith.mulf %30, %34 : vector<8x128xf32>
    %36 = arith.index_cast %c0_i32_6 : i32 to index
    %c0_12 = arith.constant 0 : index
    %c0_13 = arith.constant 0 : index
    %37 = vector.load %arg6[%36, %c0_12, %c0_13] : memref<16x8x128xf32, #tpu.memory_space<vmem>>, vector<1x8x128xf32>
    %38 = vector.shape_cast %37 : vector<1x8x128xf32> to vector<8x128xf32>
    %39 = vector.shape_cast %35 : vector<8x128xf32> to vector<1x8x128xf32>
    tpu.vector_store %arg6[%36, %c0_12, %c0_13], %39 {strides = array<i32>} : memref<16x8x128xf32, #tpu.memory_space<vmem>>, vector<1x8x128xf32>,
    %c1_i32 = arith.constant 1 : i32
    %40 = arith.index_cast %c1_i32 : i32 to index
    %c0_14 = arith.constant 0 : index
    %c0_15 = arith.constant 0 : index
    %41 = vector.load %arg2[%40, %c0_14, %c0_15] : memref<16x8x512xf32, #tpu.memory_space<vmem>>, vector<1x8x512xf32>
    %42 = vector.shape_cast %41 : vector<1x8x512xf32> to vector<8x512xf32>
    %cst_16 = arith.constant dense<0.000000e+00> : vector<8x512xf32>
    %43 = tpu.matmul %35, %3, %cst_16 {dimension_numbers = #tpu.dot_dimension_numbers<[1], [0], [0], [1], [0, 0, 1, 1], [], []>} : vector<8x128xf32>, vector<128x512xf32>, vector<8x512xf32> -> vector<8x512xf32>
    %44 = arith.addf %42, %43 : vector<8x512xf32>
    %45 = vector.extract_strided_slice %44 {offsets = [0, 0], sizes = [8, 128], strides = [1, 1]} : vector<8x512xf32> to vector<8x128xf32>
    %46 = arith.negf %45 : vector<8x128xf32>
    %47 = math.exp %46 : vector<8x128xf32>
    %cst_17 = arith.constant 1.000000e+00 : f32
    %48 = vector.broadcast %cst_17 : f32 to vector<8x128xf32>
    %49 = arith.addf %48, %47 : vector<8x128xf32>
    %50 = arith.divf %48, %49 : vector<8x128xf32>
    %51 = vector.extract_strided_slice %44 {offsets = [0, 128], sizes = [8, 128], strides = [1, 1]} : vector<8x512xf32> to vector<8x128xf32>
    %52 = arith.negf %51 : vector<8x128xf32>
    %53 = math.exp %52 : vector<8x128xf32>
    %cst_18 = arith.constant 1.000000e+00 : f32
    %54 = vector.broadcast %cst_18 : f32 to vector<8x128xf32>
    %55 = arith.addf %54, %53 : vector<8x128xf32>
    %56 = arith.divf %54, %55 : vector<8x128xf32>
    %57 = vector.extract_strided_slice %44 {offsets = [0, 256], sizes = [8, 128], strides = [1, 1]} : vector<8x512xf32> to vector<8x128xf32>
    %58 = math.tanh %57 : vector<8x128xf32>
    %59 = vector.extract_strided_slice %44 {offsets = [0, 384], sizes = [8, 128], strides = [1, 1]} : vector<8x512xf32> to vector<8x128xf32>
    %60 = arith.negf %59 : vector<8x128xf32>
    %61 = math.exp %60 : vector<8x128xf32>
    %cst_19 = arith.constant 1.000000e+00 : f32
    %62 = vector.broadcast %cst_19 : f32 to vector<8x128xf32>
    %63 = arith.addf %62, %61 : vector<8x128xf32>
    %64 = arith.divf %62, %63 : vector<8x128xf32>
    %65 = arith.mulf %56, %33 : vector<8x128xf32>
    %66 = arith.mulf %50, %58 : vector<8x128xf32>
    %67 = arith.addf %65, %66 : vector<8x128xf32>
    %68 = math.tanh %67 : vector<8x128xf32>
    %69 = arith.mulf %64, %68 : vector<8x128xf32>
    %70 = arith.index_cast %c1_i32 : i32 to index
    %c0_20 = arith.constant 0 : index
    %c0_21 = arith.constant 0 : index
    %71 = vector.load %arg6[%70, %c0_20, %c0_21] : memref<16x8x128xf32, #tpu.memory_space<vmem>>, vector<1x8x128xf32>
    %72 = vector.shape_cast %71 : vector<1x8x128xf32> to vector<8x128xf32>
    %73 = vector.shape_cast %69 : vector<8x128xf32> to vector<1x8x128xf32>
    tpu.vector_store %arg6[%70, %c0_20, %c0_21], %73 {strides = array<i32>} : memref<16x8x128xf32, #tpu.memory_space<vmem>>, vector<1x8x128xf32>,
    %c2_i32 = arith.constant 2 : i32
    %74 = arith.index_cast %c2_i32 : i32 to index
    %c0_22 = arith.constant 0 : index
    %c0_23 = arith.constant 0 : index
    %75 = vector.load %arg2[%74, %c0_22, %c0_23] : memref<16x8x512xf32, #tpu.memory_space<vmem>>, vector<1x8x512xf32>
    %76 = vector.shape_cast %75 : vector<1x8x512xf32> to vector<8x512xf32>
    %cst_24 = arith.constant dense<0.000000e+00> : vector<8x512xf32>
    %77 = tpu.matmul %69, %3, %cst_24 {dimension_numbers = #tpu.dot_dimension_numbers<[1], [0], [0], [1], [0, 0, 1, 1], [], []>} : vector<8x128xf32>, vector<128x512xf32>, vector<8x512xf32> -> vector<8x512xf32>
    %78 = arith.addf %76, %77 : vector<8x512xf32>
    %79 = vector.extract_strided_slice %78 {offsets = [0, 0], sizes = [8, 128], strides = [1, 1]} : vector<8x512xf32> to vector<8x128xf32>
    %80 = arith.negf %79 : vector<8x128xf32>
    %81 = math.exp %80 : vector<8x128xf32>
    %cst_25 = arith.constant 1.000000e+00 : f32
    %82 = vector.broadcast %cst_25 : f32 to vector<8x128xf32>
    %83 = arith.addf %82, %81 : vector<8x128xf32>
    %84 = arith.divf %82, %83 : vector<8x128xf32>
    %85 = vector.extract_strided_slice %78 {offsets = [0, 128], sizes = [8, 128], strides = [1, 1]} : vector<8x512xf32> to vector<8x128xf32>
    %86 = arith.negf %85 : vector<8x128xf32>
    %87 = math.exp %86 : vector<8x128xf32>
    %cst_26 = arith.constant 1.000000e+00 : f32
    %88 = vector.broadcast %cst_26 : f32 to vector<8x128xf32>
    %89 = arith.addf %88, %87 : vector<8x128xf32>
    %90 = arith.divf %88, %89 : vector<8x128xf32>
    %91 = vector.extract_strided_slice %78 {offsets = [0, 256], sizes = [8, 128], strides = [1, 1]} : vector<8x512xf32> to vector<8x128xf32>
    %92 = math.tanh %91 : vector<8x128xf32>
    %93 = vector.extract_strided_slice %78 {offsets = [0, 384], sizes = [8, 128], strides = [1, 1]} : vector<8x512xf32> to vector<8x128xf32>
    %94 = arith.negf %93 : vector<8x128xf32>
    %95 = math.exp %94 : vector<8x128xf32>
    %cst_27 = arith.constant 1.000000e+00 : f32
    %96 = vector.broadcast %cst_27 : f32 to vector<8x128xf32>
    %97 = arith.addf %96, %95 : vector<8x128xf32>
    %98 = arith.divf %96, %97 : vector<8x128xf32>
    %99 = arith.mulf %90, %67 : vector<8x128xf32>
    %100 = arith.mulf %84, %92 : vector<8x128xf32>
    %101 = arith.addf %99, %100 : vector<8x128xf32>
    %102 = math.tanh %101 : vector<8x128xf32>
    %103 = arith.mulf %98, %102 : vector<8x128xf32>
    %104 = arith.index_cast %c2_i32 : i32 to index
    %c0_28 = arith.constant 0 : index
    %c0_29 = arith.constant 0 : index
    %105 = vector.load %arg6[%104, %c0_28, %c0_29] : memref<16x8x128xf32, #tpu.memory_space<vmem>>, vector<1x8x128xf32>
    %106 = vector.shape_cast %105 : vector<1x8x128xf32> to vector<8x128xf32>
    %107 = vector.shape_cast %103 : vector<8x128xf32> to vector<1x8x128xf32>
    tpu.vector_store %arg6[%104, %c0_28, %c0_29], %107 {strides = array<i32>} : memref<16x8x128xf32, #tpu.memory_space<vmem>>, vector<1x8x128xf32>,
    %c3_i32 = arith.constant 3 : i32
    %108 = arith.index_cast %c3_i32 : i32 to index
    %c0_30 = arith.constant 0 : index
    %c0_31 = arith.constant 0 : index
    %109 = vector.load %arg2[%108, %c0_30, %c0_31] : memref<16x8x512xf32, #tpu.memory_space<vmem>>, vector<1x8x512xf32>
    %110 = vector.shape_cast %109 : vector<1x8x512xf32> to vector<8x512xf32>
    %cst_32 = arith.constant dense<0.000000e+00> : vector<8x512xf32>
    %111 = tpu.matmul %103, %3, %cst_32 {dimension_numbers = #tpu.dot_dimension_numbers<[1], [0], [0], [1], [0, 0, 1, 1], [], []>} : vector<8x128xf32>, vector<128x512xf32>, vector<8x512xf32> -> vector<8x512xf32>
    %112 = arith.addf %110, %111 : vector<8x512xf32>
    %113 = vector.extract_strided_slice %112 {offsets = [0, 0], sizes = [8, 128], strides = [1, 1]} : vector<8x512xf32> to vector<8x128xf32>
    %114 = arith.negf %113 : vector<8x128xf32>
    %115 = math.exp %114 : vector<8x128xf32>
    %cst_33 = arith.constant 1.000000e+00 : f32
    %116 = vector.broadcast %cst_33 : f32 to vector<8x128xf32>
    %117 = arith.addf %116, %115 : vector<8x128xf32>
    %118 = arith.divf %116, %117 : vector<8x128xf32>
    %119 = vector.extract_strided_slice %112 {offsets = [0, 128], sizes = [8, 128], strides = [1, 1]} : vector<8x512xf32> to vector<8x128xf32>
    %120 = arith.negf %119 : vector<8x128xf32>
    %121 = math.exp %120 : vector<8x128xf32>
    %cst_34 = arith.constant 1.000000e+00 : f32
    %122 = vector.broadcast %cst_34 : f32 to vector<8x128xf32>
    %123 = arith.addf %122, %121 : vector<8x128xf32>
    %124 = arith.divf %122, %123 : vector<8x128xf32>
    %125 = vector.extract_strided_slice %112 {offsets = [0, 256], sizes = [8, 128], strides = [1, 1]} : vector<8x512xf32> to vector<8x128xf32>
    %126 = math.tanh %125 : vector<8x128xf32>
    %127 = vector.extract_strided_slice %112 {offsets = [0, 384], sizes = [8, 128], strides = [1, 1]} : vector<8x512xf32> to vector<8x128xf32>
    %128 = arith.negf %127 : vector<8x128xf32>
    %129 = math.exp %128 : vector<8x128xf32>
    %cst_35 = arith.constant 1.000000e+00 : f32
    %130 = vector.broadcast %cst_35 : f32 to vector<8x128xf32>
    %131 = arith.addf %130, %129 : vector<8x128xf32>
    %132 = arith.divf %130, %131 : vector<8x128xf32>
    %133 = arith.mulf %124, %101 : vector<8x128xf32>
    %134 = arith.mulf %118, %126 : vector<8x128xf32>
    %135 = arith.addf %133, %134 : vector<8x128xf32>
    %136 = math.tanh %135 : vector<8x128xf32>
    %137 = arith.mulf %132, %136 : vector<8x128xf32>
    %138 = arith.index_cast %c3_i32 : i32 to index
    %c0_36 = arith.constant 0 : index
    %c0_37 = arith.constant 0 : index
    %139 = vector.load %arg6[%138, %c0_36, %c0_37] : memref<16x8x128xf32, #tpu.memory_space<vmem>>, vector<1x8x128xf32>
    %140 = vector.shape_cast %139 : vector<1x8x128xf32> to vector<8x128xf32>
    %141 = vector.shape_cast %137 : vector<8x128xf32> to vector<1x8x128xf32>
    tpu.vector_store %arg6[%138, %c0_36, %c0_37], %141 {strides = array<i32>} : memref<16x8x128xf32, #tpu.memory_space<vmem>>, vector<1x8x128xf32>,
    %c4_i32 = arith.constant 4 : i32
    %142 = arith.index_cast %c4_i32 : i32 to index
    %c0_38 = arith.constant 0 : index
    %c0_39 = arith.constant 0 : index
    %143 = vector.load %arg2[%142, %c0_38, %c0_39] : memref<16x8x512xf32, #tpu.memory_space<vmem>>, vector<1x8x512xf32>
    %144 = vector.shape_cast %143 : vector<1x8x512xf32> to vector<8x512xf32>
    %cst_40 = arith.constant dense<0.000000e+00> : vector<8x512xf32>
    %145 = tpu.matmul %137, %3, %cst_40 {dimension_numbers = #tpu.dot_dimension_numbers<[1], [0], [0], [1], [0, 0, 1, 1], [], []>} : vector<8x128xf32>, vector<128x512xf32>, vector<8x512xf32> -> vector<8x512xf32>
    %146 = arith.addf %144, %145 : vector<8x512xf32>
    %147 = vector.extract_strided_slice %146 {offsets = [0, 0], sizes = [8, 128], strides = [1, 1]} : vector<8x512xf32> to vector<8x128xf32>
    %148 = arith.negf %147 : vector<8x128xf32>
    %149 = math.exp %148 : vector<8x128xf32>
    %cst_41 = arith.constant 1.000000e+00 : f32
    %150 = vector.broadcast %cst_41 : f32 to vector<8x128xf32>
    %151 = arith.addf %150, %149 : vector<8x128xf32>
    %152 = arith.divf %150, %151 : vector<8x128xf32>
    %153 = vector.extract_strided_slice %146 {offsets = [0, 128], sizes = [8, 128], strides = [1, 1]} : vector<8x512xf32> to vector<8x128xf32>
    %154 = arith.negf %153 : vector<8x128xf32>
    %155 = math.exp %154 : vector<8x128xf32>
    %cst_42 = arith.constant 1.000000e+00 : f32
    %156 = vector.broadcast %cst_42 : f32 to vector<8x128xf32>
    %157 = arith.addf %156, %155 : vector<8x128xf32>
    %158 = arith.divf %156, %157 : vector<8x128xf32>
    %159 = vector.extract_strided_slice %146 {offsets = [0, 256], sizes = [8, 128], strides = [1, 1]} : vector<8x512xf32> to vector<8x128xf32>
    %160 = math.tanh %159 : vector<8x128xf32>
    %161 = vector.extract_strided_slice %146 {offsets = [0, 384], sizes = [8, 128], strides = [1, 1]} : vector<8x512xf32> to vector<8x128xf32>
    %162 = arith.negf %161 : vector<8x128xf32>
    %163 = math.exp %162 : vector<8x128xf32>
    %cst_43 = arith.constant 1.000000e+00 : f32
    %164 = vector.broadcast %cst_43 : f32 to vector<8x128xf32>
    %165 = arith.addf %164, %163 : vector<8x128xf32>
    %166 = arith.divf %164, %165 : vector<8x128xf32>
    %167 = arith.mulf %158, %135 : vector<8x128xf32>
    %168 = arith.mulf %152, %160 : vector<8x128xf32>
    %169 = arith.addf %167, %168 : vector<8x128xf32>
    %170 = math.tanh %169 : vector<8x128xf32>
    %171 = arith.mulf %166, %170 : vector<8x128xf32>
    %172 = arith.index_cast %c4_i32 : i32 to index
    %c0_44 = arith.constant 0 : index
    %c0_45 = arith.constant 0 : index
    %173 = vector.load %arg6[%172, %c0_44, %c0_45] : memref<16x8x128xf32, #tpu.memory_space<vmem>>, vector<1x8x128xf32>
    %174 = vector.shape_cast %173 : vector<1x8x128xf32> to vector<8x128xf32>
    %175 = vector.shape_cast %171 : vector<8x128xf32> to vector<1x8x128xf32>
    tpu.vector_store %arg6[%172, %c0_44, %c0_45], %175 {strides = array<i32>} : memref<16x8x128xf32, #tpu.memory_space<vmem>>, vector<1x8x128xf32>,
    %c5_i32 = arith.constant 5 : i32
    %176 = arith.index_cast %c5_i32 : i32 to index
    %c0_46 = arith.constant 0 : index
    %c0_47 = arith.constant 0 : index
    %177 = vector.load %arg2[%176, %c0_46, %c0_47] : memref<16x8x512xf32, #tpu.memory_space<vmem>>, vector<1x8x512xf32>
    %178 = vector.shape_cast %177 : vector<1x8x512xf32> to vector<8x512xf32>
    %cst_48 = arith.constant dense<0.000000e+00> : vector<8x512xf32>
    %179 = tpu.matmul %171, %3, %cst_48 {dimension_numbers = #tpu.dot_dimension_numbers<[1], [0], [0], [1], [0, 0, 1, 1], [], []>} : vector<8x128xf32>, vector<128x512xf32>, vector<8x512xf32> -> vector<8x512xf32>
    %180 = arith.addf %178, %179 : vector<8x512xf32>
    %181 = vector.extract_strided_slice %180 {offsets = [0, 0], sizes = [8, 128], strides = [1, 1]} : vector<8x512xf32> to vector<8x128xf32>
    %182 = arith.negf %181 : vector<8x128xf32>
    %183 = math.exp %182 : vector<8x128xf32>
    %cst_49 = arith.constant 1.000000e+00 : f32
    %184 = vector.broadcast %cst_49 : f32 to vector<8x128xf32>
    %185 = arith.addf %184, %183 : vector<8x128xf32>
    %186 = arith.divf %184, %185 : vector<8x128xf32>
    %187 = vector.extract_strided_slice %180 {offsets = [0, 128], sizes = [8, 128], strides = [1, 1]} : vector<8x512xf32> to vector<8x128xf32>
    %188 = arith.negf %187 : vector<8x128xf32>
    %189 = math.exp %188 : vector<8x128xf32>
    %cst_50 = arith.constant 1.000000e+00 : f32
    %190 = vector.broadcast %cst_50 : f32 to vector<8x128xf32>
    %191 = arith.addf %190, %189 : vector<8x128xf32>
    %192 = arith.divf %190, %191 : vector<8x128xf32>
    %193 = vector.extract_strided_slice %180 {offsets = [0, 256], sizes = [8, 128], strides = [1, 1]} : vector<8x512xf32> to vector<8x128xf32>
    %194 = math.tanh %193 : vector<8x128xf32>
    %195 = vector.extract_strided_slice %180 {offsets = [0, 384], sizes = [8, 128], strides = [1, 1]} : vector<8x512xf32> to vector<8x128xf32>
    %196 = arith.negf %195 : vector<8x128xf32>
    %197 = math.exp %196 : vector<8x128xf32>
    %cst_51 = arith.constant 1.000000e+00 : f32
    %198 = vector.broadcast %cst_51 : f32 to vector<8x128xf32>
    %199 = arith.addf %198, %197 : vector<8x128xf32>
    %200 = arith.divf %198, %199 : vector<8x128xf32>
    %201 = arith.mulf %192, %169 : vector<8x128xf32>
    %202 = arith.mulf %186, %194 : vector<8x128xf32>
    %203 = arith.addf %201, %202 : vector<8x128xf32>
    %204 = math.tanh %203 : vector<8x128xf32>
    %205 = arith.mulf %200, %204 : vector<8x128xf32>
    %206 = arith.index_cast %c5_i32 : i32 to index
    %c0_52 = arith.constant 0 : index
    %c0_53 = arith.constant 0 : index
    %207 = vector.load %arg6[%206, %c0_52, %c0_53] : memref<16x8x128xf32, #tpu.memory_space<vmem>>, vector<1x8x128xf32>
    %208 = vector.shape_cast %207 : vector<1x8x128xf32> to vector<8x128xf32>
    %209 = vector.shape_cast %205 : vector<8x128xf32> to vector<1x8x128xf32>
    tpu.vector_store %arg6[%206, %c0_52, %c0_53], %209 {strides = array<i32>} : memref<16x8x128xf32, #tpu.memory_space<vmem>>, vector<1x8x128xf32>,
    %c6_i32 = arith.constant 6 : i32
    %210 = arith.index_cast %c6_i32 : i32 to index
    %c0_54 = arith.constant 0 : index
    %c0_55 = arith.constant 0 : index
    %211 = vector.load %arg2[%210, %c0_54, %c0_55] : memref<16x8x512xf32, #tpu.memory_space<vmem>>, vector<1x8x512xf32>
    %212 = vector.shape_cast %211 : vector<1x8x512xf32> to vector<8x512xf32>
    %cst_56 = arith.constant dense<0.000000e+00> : vector<8x512xf32>
    %213 = tpu.matmul %205, %3, %cst_56 {dimension_numbers = #tpu.dot_dimension_numbers<[1], [0], [0], [1], [0, 0, 1, 1], [], []>} : vector<8x128xf32>, vector<128x512xf32>, vector<8x512xf32> -> vector<8x512xf32>
    %214 = arith.addf %212, %213 : vector<8x512xf32>
    %215 = vector.extract_strided_slice %214 {offsets = [0, 0], sizes = [8, 128], strides = [1, 1]} : vector<8x512xf32> to vector<8x128xf32>
    %216 = arith.negf %215 : vector<8x128xf32>
    %217 = math.exp %216 : vector<8x128xf32>
    %cst_57 = arith.constant 1.000000e+00 : f32
    %218 = vector.broadcast %cst_57 : f32 to vector<8x128xf32>
    %219 = arith.addf %218, %217 : vector<8x128xf32>
    %220 = arith.divf %218, %219 : vector<8x128xf32>
    %221 = vector.extract_strided_slice %214 {offsets = [0, 128], sizes = [8, 128], strides = [1, 1]} : vector<8x512xf32> to vector<8x128xf32>
    %222 = arith.negf %221 : vector<8x128xf32>
    %223 = math.exp %222 : vector<8x128xf32>
    %cst_58 = arith.constant 1.000000e+00 : f32
    %224 = vector.broadcast %cst_58 : f32 to vector<8x128xf32>
    %225 = arith.addf %224, %223 : vector<8x128xf32>
    %226 = arith.divf %224, %225 : vector<8x128xf32>
    %227 = vector.extract_strided_slice %214 {offsets = [0, 256], sizes = [8, 128], strides = [1, 1]} : vector<8x512xf32> to vector<8x128xf32>
    %228 = math.tanh %227 : vector<8x128xf32>
    %229 = vector.extract_strided_slice %214 {offsets = [0, 384], sizes = [8, 128], strides = [1, 1]} : vector<8x512xf32> to vector<8x128xf32>
    %230 = arith.negf %229 : vector<8x128xf32>
    %231 = math.exp %230 : vector<8x128xf32>
    %cst_59 = arith.constant 1.000000e+00 : f32
    %232 = vector.broadcast %cst_59 : f32 to vector<8x128xf32>
    %233 = arith.addf %232, %231 : vector<8x128xf32>
    %234 = arith.divf %232, %233 : vector<8x128xf32>
    %235 = arith.mulf %226, %203 : vector<8x128xf32>
    %236 = arith.mulf %220, %228 : vector<8x128xf32>
    %237 = arith.addf %235, %236 : vector<8x128xf32>
    %238 = math.tanh %237 : vector<8x128xf32>
    %239 = arith.mulf %234, %238 : vector<8x128xf32>
    %240 = arith.index_cast %c6_i32 : i32 to index
    %c0_60 = arith.constant 0 : index
    %c0_61 = arith.constant 0 : index
    %241 = vector.load %arg6[%240, %c0_60, %c0_61] : memref<16x8x128xf32, #tpu.memory_space<vmem>>, vector<1x8x128xf32>
    %242 = vector.shape_cast %241 : vector<1x8x128xf32> to vector<8x128xf32>
    %243 = vector.shape_cast %239 : vector<8x128xf32> to vector<1x8x128xf32>
    tpu.vector_store %arg6[%240, %c0_60, %c0_61], %243 {strides = array<i32>} : memref<16x8x128xf32, #tpu.memory_space<vmem>>, vector<1x8x128xf32>,
    %c7_i32 = arith.constant 7 : i32
    %244 = arith.index_cast %c7_i32 : i32 to index
    %c0_62 = arith.constant 0 : index
    %c0_63 = arith.constant 0 : index
    %245 = vector.load %arg2[%244, %c0_62, %c0_63] : memref<16x8x512xf32, #tpu.memory_space<vmem>>, vector<1x8x512xf32>
    %246 = vector.shape_cast %245 : vector<1x8x512xf32> to vector<8x512xf32>
    %cst_64 = arith.constant dense<0.000000e+00> : vector<8x512xf32>
    %247 = tpu.matmul %239, %3, %cst_64 {dimension_numbers = #tpu.dot_dimension_numbers<[1], [0], [0], [1], [0, 0, 1, 1], [], []>} : vector<8x128xf32>, vector<128x512xf32>, vector<8x512xf32> -> vector<8x512xf32>
    %248 = arith.addf %246, %247 : vector<8x512xf32>
    %249 = vector.extract_strided_slice %248 {offsets = [0, 0], sizes = [8, 128], strides = [1, 1]} : vector<8x512xf32> to vector<8x128xf32>
    %250 = arith.negf %249 : vector<8x128xf32>
    %251 = math.exp %250 : vector<8x128xf32>
    %cst_65 = arith.constant 1.000000e+00 : f32
    %252 = vector.broadcast %cst_65 : f32 to vector<8x128xf32>
    %253 = arith.addf %252, %251 : vector<8x128xf32>
    %254 = arith.divf %252, %253 : vector<8x128xf32>
    %255 = vector.extract_strided_slice %248 {offsets = [0, 128], sizes = [8, 128], strides = [1, 1]} : vector<8x512xf32> to vector<8x128xf32>
    %256 = arith.negf %255 : vector<8x128xf32>
    %257 = math.exp %256 : vector<8x128xf32>
    %cst_66 = arith.constant 1.000000e+00 : f32
    %258 = vector.broadcast %cst_66 : f32 to vector<8x128xf32>
    %259 = arith.addf %258, %257 : vector<8x128xf32>
    %260 = arith.divf %258, %259 : vector<8x128xf32>
    %261 = vector.extract_strided_slice %248 {offsets = [0, 256], sizes = [8, 128], strides = [1, 1]} : vector<8x512xf32> to vector<8x128xf32>
    %262 = math.tanh %261 : vector<8x128xf32>
    %263 = vector.extract_strided_slice %248 {offsets = [0, 384], sizes = [8, 128], strides = [1, 1]} : vector<8x512xf32> to vector<8x128xf32>
    %264 = arith.negf %263 : vector<8x128xf32>
    %265 = math.exp %264 : vector<8x128xf32>
    %cst_67 = arith.constant 1.000000e+00 : f32
    %266 = vector.broadcast %cst_67 : f32 to vector<8x128xf32>
    %267 = arith.addf %266, %265 : vector<8x128xf32>
    %268 = arith.divf %266, %267 : vector<8x128xf32>
    %269 = arith.mulf %260, %237 : vector<8x128xf32>
    %270 = arith.mulf %254, %262 : vector<8x128xf32>
    %271 = arith.addf %269, %270 : vector<8x128xf32>
    %272 = math.tanh %271 : vector<8x128xf32>
    %273 = arith.mulf %268, %272 : vector<8x128xf32>
    %274 = arith.index_cast %c7_i32 : i32 to index
    %c0_68 = arith.constant 0 : index
    %c0_69 = arith.constant 0 : index
    %275 = vector.load %arg6[%274, %c0_68, %c0_69] : memref<16x8x128xf32, #tpu.memory_space<vmem>>, vector<1x8x128xf32>
    %276 = vector.shape_cast %275 : vector<1x8x128xf32> to vector<8x128xf32>
    %277 = vector.shape_cast %273 : vector<8x128xf32> to vector<1x8x128xf32>
    tpu.vector_store %arg6[%274, %c0_68, %c0_69], %277 {strides = array<i32>} : memref<16x8x128xf32, #tpu.memory_space<vmem>>, vector<1x8x128xf32>,
    %c8_i32 = arith.constant 8 : i32
    %278 = arith.index_cast %c8_i32 : i32 to index
    %c0_70 = arith.constant 0 : index
    %c0_71 = arith.constant 0 : index
    %279 = vector.load %arg2[%278, %c0_70, %c0_71] : memref<16x8x512xf32, #tpu.memory_space<vmem>>, vector<1x8x512xf32>
    %280 = vector.shape_cast %279 : vector<1x8x512xf32> to vector<8x512xf32>
    %cst_72 = arith.constant dense<0.000000e+00> : vector<8x512xf32>
    %281 = tpu.matmul %273, %3, %cst_72 {dimension_numbers = #tpu.dot_dimension_numbers<[1], [0], [0], [1], [0, 0, 1, 1], [], []>} : vector<8x128xf32>, vector<128x512xf32>, vector<8x512xf32> -> vector<8x512xf32>
    %282 = arith.addf %280, %281 : vector<8x512xf32>
    %283 = vector.extract_strided_slice %282 {offsets = [0, 0], sizes = [8, 128], strides = [1, 1]} : vector<8x512xf32> to vector<8x128xf32>
    %284 = arith.negf %283 : vector<8x128xf32>
    %285 = math.exp %284 : vector<8x128xf32>
    %cst_73 = arith.constant 1.000000e+00 : f32
    %286 = vector.broadcast %cst_73 : f32 to vector<8x128xf32>
    %287 = arith.addf %286, %285 : vector<8x128xf32>
    %288 = arith.divf %286, %287 : vector<8x128xf32>
    %289 = vector.extract_strided_slice %282 {offsets = [0, 128], sizes = [8, 128], strides = [1, 1]} : vector<8x512xf32> to vector<8x128xf32>
    %290 = arith.negf %289 : vector<8x128xf32>
    %291 = math.exp %290 : vector<8x128xf32>
    %cst_74 = arith.constant 1.000000e+00 : f32
    %292 = vector.broadcast %cst_74 : f32 to vector<8x128xf32>
    %293 = arith.addf %292, %291 : vector<8x128xf32>
    %294 = arith.divf %292, %293 : vector<8x128xf32>
    %295 = vector.extract_strided_slice %282 {offsets = [0, 256], sizes = [8, 128], strides = [1, 1]} : vector<8x512xf32> to vector<8x128xf32>
    %296 = math.tanh %295 : vector<8x128xf32>
    %297 = vector.extract_strided_slice %282 {offsets = [0, 384], sizes = [8, 128], strides = [1, 1]} : vector<8x512xf32> to vector<8x128xf32>
    %298 = arith.negf %297 : vector<8x128xf32>
    %299 = math.exp %298 : vector<8x128xf32>
    %cst_75 = arith.constant 1.000000e+00 : f32
    %300 = vector.broadcast %cst_75 : f32 to vector<8x128xf32>
    %301 = arith.addf %300, %299 : vector<8x128xf32>
    %302 = arith.divf %300, %301 : vector<8x128xf32>
    %303 = arith.mulf %294, %271 : vector<8x128xf32>
    %304 = arith.mulf %288, %296 : vector<8x128xf32>
    %305 = arith.addf %303, %304 : vector<8x128xf32>
    %306 = math.tanh %305 : vector<8x128xf32>
    %307 = arith.mulf %302, %306 : vector<8x128xf32>
    %308 = arith.index_cast %c8_i32 : i32 to index
    %c0_76 = arith.constant 0 : index
    %c0_77 = arith.constant 0 : index
    %309 = vector.load %arg6[%308, %c0_76, %c0_77] : memref<16x8x128xf32, #tpu.memory_space<vmem>>, vector<1x8x128xf32>
    %310 = vector.shape_cast %309 : vector<1x8x128xf32> to vector<8x128xf32>
    %311 = vector.shape_cast %307 : vector<8x128xf32> to vector<1x8x128xf32>
    tpu.vector_store %arg6[%308, %c0_76, %c0_77], %311 {strides = array<i32>} : memref<16x8x128xf32, #tpu.memory_space<vmem>>, vector<1x8x128xf32>,
    %c9_i32 = arith.constant 9 : i32
    %312 = arith.index_cast %c9_i32 : i32 to index
    %c0_78 = arith.constant 0 : index
    %c0_79 = arith.constant 0 : index
    %313 = vector.load %arg2[%312, %c0_78, %c0_79] : memref<16x8x512xf32, #tpu.memory_space<vmem>>, vector<1x8x512xf32>
    %314 = vector.shape_cast %313 : vector<1x8x512xf32> to vector<8x512xf32>
    %cst_80 = arith.constant dense<0.000000e+00> : vector<8x512xf32>
    %315 = tpu.matmul %307, %3, %cst_80 {dimension_numbers = #tpu.dot_dimension_numbers<[1], [0], [0], [1], [0, 0, 1, 1], [], []>} : vector<8x128xf32>, vector<128x512xf32>, vector<8x512xf32> -> vector<8x512xf32>
    %316 = arith.addf %314, %315 : vector<8x512xf32>
    %317 = vector.extract_strided_slice %316 {offsets = [0, 0], sizes = [8, 128], strides = [1, 1]} : vector<8x512xf32> to vector<8x128xf32>
    %318 = arith.negf %317 : vector<8x128xf32>
    %319 = math.exp %318 : vector<8x128xf32>
    %cst_81 = arith.constant 1.000000e+00 : f32
    %320 = vector.broadcast %cst_81 : f32 to vector<8x128xf32>
    %321 = arith.addf %320, %319 : vector<8x128xf32>
    %322 = arith.divf %320, %321 : vector<8x128xf32>
    %323 = vector.extract_strided_slice %316 {offsets = [0, 128], sizes = [8, 128], strides = [1, 1]} : vector<8x512xf32> to vector<8x128xf32>
    %324 = arith.negf %323 : vector<8x128xf32>
    %325 = math.exp %324 : vector<8x128xf32>
    %cst_82 = arith.constant 1.000000e+00 : f32
    %326 = vector.broadcast %cst_82 : f32 to vector<8x128xf32>
    %327 = arith.addf %326, %325 : vector<8x128xf32>
    %328 = arith.divf %326, %327 : vector<8x128xf32>
    %329 = vector.extract_strided_slice %316 {offsets = [0, 256], sizes = [8, 128], strides = [1, 1]} : vector<8x512xf32> to vector<8x128xf32>
    %330 = math.tanh %329 : vector<8x128xf32>
    %331 = vector.extract_strided_slice %316 {offsets = [0, 384], sizes = [8, 128], strides = [1, 1]} : vector<8x512xf32> to vector<8x128xf32>
    %332 = arith.negf %331 : vector<8x128xf32>
    %333 = math.exp %332 : vector<8x128xf32>
    %cst_83 = arith.constant 1.000000e+00 : f32
    %334 = vector.broadcast %cst_83 : f32 to vector<8x128xf32>
    %335 = arith.addf %334, %333 : vector<8x128xf32>
    %336 = arith.divf %334, %335 : vector<8x128xf32>
    %337 = arith.mulf %328, %305 : vector<8x128xf32>
    %338 = arith.mulf %322, %330 : vector<8x128xf32>
    %339 = arith.addf %337, %338 : vector<8x128xf32>
    %340 = math.tanh %339 : vector<8x128xf32>
    %341 = arith.mulf %336, %340 : vector<8x128xf32>
    %342 = arith.index_cast %c9_i32 : i32 to index
    %c0_84 = arith.constant 0 : index
    %c0_85 = arith.constant 0 : index
    %343 = vector.load %arg6[%342, %c0_84, %c0_85] : memref<16x8x128xf32, #tpu.memory_space<vmem>>, vector<1x8x128xf32>
    %344 = vector.shape_cast %343 : vector<1x8x128xf32> to vector<8x128xf32>
    %345 = vector.shape_cast %341 : vector<8x128xf32> to vector<1x8x128xf32>
    tpu.vector_store %arg6[%342, %c0_84, %c0_85], %345 {strides = array<i32>} : memref<16x8x128xf32, #tpu.memory_space<vmem>>, vector<1x8x128xf32>,
    %c10_i32 = arith.constant 10 : i32
    %346 = arith.index_cast %c10_i32 : i32 to index
    %c0_86 = arith.constant 0 : index
    %c0_87 = arith.constant 0 : index
    %347 = vector.load %arg2[%346, %c0_86, %c0_87] : memref<16x8x512xf32, #tpu.memory_space<vmem>>, vector<1x8x512xf32>
    %348 = vector.shape_cast %347 : vector<1x8x512xf32> to vector<8x512xf32>
    %cst_88 = arith.constant dense<0.000000e+00> : vector<8x512xf32>
    %349 = tpu.matmul %341, %3, %cst_88 {dimension_numbers = #tpu.dot_dimension_numbers<[1], [0], [0], [1], [0, 0, 1, 1], [], []>} : vector<8x128xf32>, vector<128x512xf32>, vector<8x512xf32> -> vector<8x512xf32>
    %350 = arith.addf %348, %349 : vector<8x512xf32>
    %351 = vector.extract_strided_slice %350 {offsets = [0, 0], sizes = [8, 128], strides = [1, 1]} : vector<8x512xf32> to vector<8x128xf32>
    %352 = arith.negf %351 : vector<8x128xf32>
    %353 = math.exp %352 : vector<8x128xf32>
    %cst_89 = arith.constant 1.000000e+00 : f32
    %354 = vector.broadcast %cst_89 : f32 to vector<8x128xf32>
    %355 = arith.addf %354, %353 : vector<8x128xf32>
    %356 = arith.divf %354, %355 : vector<8x128xf32>
    %357 = vector.extract_strided_slice %350 {offsets = [0, 128], sizes = [8, 128], strides = [1, 1]} : vector<8x512xf32> to vector<8x128xf32>
    %358 = arith.negf %357 : vector<8x128xf32>
    %359 = math.exp %358 : vector<8x128xf32>
    %cst_90 = arith.constant 1.000000e+00 : f32
    %360 = vector.broadcast %cst_90 : f32 to vector<8x128xf32>
    %361 = arith.addf %360, %359 : vector<8x128xf32>
    %362 = arith.divf %360, %361 : vector<8x128xf32>
    %363 = vector.extract_strided_slice %350 {offsets = [0, 256], sizes = [8, 128], strides = [1, 1]} : vector<8x512xf32> to vector<8x128xf32>
    %364 = math.tanh %363 : vector<8x128xf32>
    %365 = vector.extract_strided_slice %350 {offsets = [0, 384], sizes = [8, 128], strides = [1, 1]} : vector<8x512xf32> to vector<8x128xf32>
    %366 = arith.negf %365 : vector<8x128xf32>
    %367 = math.exp %366 : vector<8x128xf32>
    %cst_91 = arith.constant 1.000000e+00 : f32
    %368 = vector.broadcast %cst_91 : f32 to vector<8x128xf32>
    %369 = arith.addf %368, %367 : vector<8x128xf32>
    %370 = arith.divf %368, %369 : vector<8x128xf32>
    %371 = arith.mulf %362, %339 : vector<8x128xf32>
    %372 = arith.mulf %356, %364 : vector<8x128xf32>
    %373 = arith.addf %371, %372 : vector<8x128xf32>
    %374 = math.tanh %373 : vector<8x128xf32>
    %375 = arith.mulf %370, %374 : vector<8x128xf32>
    %376 = arith.index_cast %c10_i32 : i32 to index
    %c0_92 = arith.constant 0 : index
    %c0_93 = arith.constant 0 : index
    %377 = vector.load %arg6[%376, %c0_92, %c0_93] : memref<16x8x128xf32, #tpu.memory_space<vmem>>, vector<1x8x128xf32>
    %378 = vector.shape_cast %377 : vector<1x8x128xf32> to vector<8x128xf32>
    %379 = vector.shape_cast %375 : vector<8x128xf32> to vector<1x8x128xf32>
    tpu.vector_store %arg6[%376, %c0_92, %c0_93], %379 {strides = array<i32>} : memref<16x8x128xf32, #tpu.memory_space<vmem>>, vector<1x8x128xf32>,
    %c11_i32 = arith.constant 11 : i32
    %380 = arith.index_cast %c11_i32 : i32 to index
    %c0_94 = arith.constant 0 : index
    %c0_95 = arith.constant 0 : index
    %381 = vector.load %arg2[%380, %c0_94, %c0_95] : memref<16x8x512xf32, #tpu.memory_space<vmem>>, vector<1x8x512xf32>
    %382 = vector.shape_cast %381 : vector<1x8x512xf32> to vector<8x512xf32>
    %cst_96 = arith.constant dense<0.000000e+00> : vector<8x512xf32>
    %383 = tpu.matmul %375, %3, %cst_96 {dimension_numbers = #tpu.dot_dimension_numbers<[1], [0], [0], [1], [0, 0, 1, 1], [], []>} : vector<8x128xf32>, vector<128x512xf32>, vector<8x512xf32> -> vector<8x512xf32>
    %384 = arith.addf %382, %383 : vector<8x512xf32>
    %385 = vector.extract_strided_slice %384 {offsets = [0, 0], sizes = [8, 128], strides = [1, 1]} : vector<8x512xf32> to vector<8x128xf32>
    %386 = arith.negf %385 : vector<8x128xf32>
    %387 = math.exp %386 : vector<8x128xf32>
    %cst_97 = arith.constant 1.000000e+00 : f32
    %388 = vector.broadcast %cst_97 : f32 to vector<8x128xf32>
    %389 = arith.addf %388, %387 : vector<8x128xf32>
    %390 = arith.divf %388, %389 : vector<8x128xf32>
    %391 = vector.extract_strided_slice %384 {offsets = [0, 128], sizes = [8, 128], strides = [1, 1]} : vector<8x512xf32> to vector<8x128xf32>
    %392 = arith.negf %391 : vector<8x128xf32>
    %393 = math.exp %392 : vector<8x128xf32>
    %cst_98 = arith.constant 1.000000e+00 : f32
    %394 = vector.broadcast %cst_98 : f32 to vector<8x128xf32>
    %395 = arith.addf %394, %393 : vector<8x128xf32>
    %396 = arith.divf %394, %395 : vector<8x128xf32>
    %397 = vector.extract_strided_slice %384 {offsets = [0, 256], sizes = [8, 128], strides = [1, 1]} : vector<8x512xf32> to vector<8x128xf32>
    %398 = math.tanh %397 : vector<8x128xf32>
    %399 = vector.extract_strided_slice %384 {offsets = [0, 384], sizes = [8, 128], strides = [1, 1]} : vector<8x512xf32> to vector<8x128xf32>
    %400 = arith.negf %399 : vector<8x128xf32>
    %401 = math.exp %400 : vector<8x128xf32>
    %cst_99 = arith.constant 1.000000e+00 : f32
    %402 = vector.broadcast %cst_99 : f32 to vector<8x128xf32>
    %403 = arith.addf %402, %401 : vector<8x128xf32>
    %404 = arith.divf %402, %403 : vector<8x128xf32>
    %405 = arith.mulf %396, %373 : vector<8x128xf32>
    %406 = arith.mulf %390, %398 : vector<8x128xf32>
    %407 = arith.addf %405, %406 : vector<8x128xf32>
    %408 = math.tanh %407 : vector<8x128xf32>
    %409 = arith.mulf %404, %408 : vector<8x128xf32>
    %410 = arith.index_cast %c11_i32 : i32 to index
    %c0_100 = arith.constant 0 : index
    %c0_101 = arith.constant 0 : index
    %411 = vector.load %arg6[%410, %c0_100, %c0_101] : memref<16x8x128xf32, #tpu.memory_space<vmem>>, vector<1x8x128xf32>
    %412 = vector.shape_cast %411 : vector<1x8x128xf32> to vector<8x128xf32>
    %413 = vector.shape_cast %409 : vector<8x128xf32> to vector<1x8x128xf32>
    tpu.vector_store %arg6[%410, %c0_100, %c0_101], %413 {strides = array<i32>} : memref<16x8x128xf32, #tpu.memory_space<vmem>>, vector<1x8x128xf32>,
    %c12_i32 = arith.constant 12 : i32
    %414 = arith.index_cast %c12_i32 : i32 to index
    %c0_102 = arith.constant 0 : index
    %c0_103 = arith.constant 0 : index
    %415 = vector.load %arg2[%414, %c0_102, %c0_103] : memref<16x8x512xf32, #tpu.memory_space<vmem>>, vector<1x8x512xf32>
    %416 = vector.shape_cast %415 : vector<1x8x512xf32> to vector<8x512xf32>
    %cst_104 = arith.constant dense<0.000000e+00> : vector<8x512xf32>
    %417 = tpu.matmul %409, %3, %cst_104 {dimension_numbers = #tpu.dot_dimension_numbers<[1], [0], [0], [1], [0, 0, 1, 1], [], []>} : vector<8x128xf32>, vector<128x512xf32>, vector<8x512xf32> -> vector<8x512xf32>
    %418 = arith.addf %416, %417 : vector<8x512xf32>
    %419 = vector.extract_strided_slice %418 {offsets = [0, 0], sizes = [8, 128], strides = [1, 1]} : vector<8x512xf32> to vector<8x128xf32>
    %420 = arith.negf %419 : vector<8x128xf32>
    %421 = math.exp %420 : vector<8x128xf32>
    %cst_105 = arith.constant 1.000000e+00 : f32
    %422 = vector.broadcast %cst_105 : f32 to vector<8x128xf32>
    %423 = arith.addf %422, %421 : vector<8x128xf32>
    %424 = arith.divf %422, %423 : vector<8x128xf32>
    %425 = vector.extract_strided_slice %418 {offsets = [0, 128], sizes = [8, 128], strides = [1, 1]} : vector<8x512xf32> to vector<8x128xf32>
    %426 = arith.negf %425 : vector<8x128xf32>
    %427 = math.exp %426 : vector<8x128xf32>
    %cst_106 = arith.constant 1.000000e+00 : f32
    %428 = vector.broadcast %cst_106 : f32 to vector<8x128xf32>
    %429 = arith.addf %428, %427 : vector<8x128xf32>
    %430 = arith.divf %428, %429 : vector<8x128xf32>
    %431 = vector.extract_strided_slice %418 {offsets = [0, 256], sizes = [8, 128], strides = [1, 1]} : vector<8x512xf32> to vector<8x128xf32>
    %432 = math.tanh %431 : vector<8x128xf32>
    %433 = vector.extract_strided_slice %418 {offsets = [0, 384], sizes = [8, 128], strides = [1, 1]} : vector<8x512xf32> to vector<8x128xf32>
    %434 = arith.negf %433 : vector<8x128xf32>
    %435 = math.exp %434 : vector<8x128xf32>
    %cst_107 = arith.constant 1.000000e+00 : f32
    %436 = vector.broadcast %cst_107 : f32 to vector<8x128xf32>
    %437 = arith.addf %436, %435 : vector<8x128xf32>
    %438 = arith.divf %436, %437 : vector<8x128xf32>
    %439 = arith.mulf %430, %407 : vector<8x128xf32>
    %440 = arith.mulf %424, %432 : vector<8x128xf32>
    %441 = arith.addf %439, %440 : vector<8x128xf32>
    %442 = math.tanh %441 : vector<8x128xf32>
    %443 = arith.mulf %438, %442 : vector<8x128xf32>
    %444 = arith.index_cast %c12_i32 : i32 to index
    %c0_108 = arith.constant 0 : index
    %c0_109 = arith.constant 0 : index
    %445 = vector.load %arg6[%444, %c0_108, %c0_109] : memref<16x8x128xf32, #tpu.memory_space<vmem>>, vector<1x8x128xf32>
    %446 = vector.shape_cast %445 : vector<1x8x128xf32> to vector<8x128xf32>
    %447 = vector.shape_cast %443 : vector<8x128xf32> to vector<1x8x128xf32>
    tpu.vector_store %arg6[%444, %c0_108, %c0_109], %447 {strides = array<i32>} : memref<16x8x128xf32, #tpu.memory_space<vmem>>, vector<1x8x128xf32>,
    %c13_i32 = arith.constant 13 : i32
    %448 = arith.index_cast %c13_i32 : i32 to index
    %c0_110 = arith.constant 0 : index
    %c0_111 = arith.constant 0 : index
    %449 = vector.load %arg2[%448, %c0_110, %c0_111] : memref<16x8x512xf32, #tpu.memory_space<vmem>>, vector<1x8x512xf32>
    %450 = vector.shape_cast %449 : vector<1x8x512xf32> to vector<8x512xf32>
    %cst_112 = arith.constant dense<0.000000e+00> : vector<8x512xf32>
    %451 = tpu.matmul %443, %3, %cst_112 {dimension_numbers = #tpu.dot_dimension_numbers<[1], [0], [0], [1], [0, 0, 1, 1], [], []>} : vector<8x128xf32>, vector<128x512xf32>, vector<8x512xf32> -> vector<8x512xf32>
    %452 = arith.addf %450, %451 : vector<8x512xf32>
    %453 = vector.extract_strided_slice %452 {offsets = [0, 0], sizes = [8, 128], strides = [1, 1]} : vector<8x512xf32> to vector<8x128xf32>
    %454 = arith.negf %453 : vector<8x128xf32>
    %455 = math.exp %454 : vector<8x128xf32>
    %cst_113 = arith.constant 1.000000e+00 : f32
    %456 = vector.broadcast %cst_113 : f32 to vector<8x128xf32>
    %457 = arith.addf %456, %455 : vector<8x128xf32>
    %458 = arith.divf %456, %457 : vector<8x128xf32>
    %459 = vector.extract_strided_slice %452 {offsets = [0, 128], sizes = [8, 128], strides = [1, 1]} : vector<8x512xf32> to vector<8x128xf32>
    %460 = arith.negf %459 : vector<8x128xf32>
    %461 = math.exp %460 : vector<8x128xf32>
    %cst_114 = arith.constant 1.000000e+00 : f32
    %462 = vector.broadcast %cst_114 : f32 to vector<8x128xf32>
    %463 = arith.addf %462, %461 : vector<8x128xf32>
    %464 = arith.divf %462, %463 : vector<8x128xf32>
    %465 = vector.extract_strided_slice %452 {offsets = [0, 256], sizes = [8, 128], strides = [1, 1]} : vector<8x512xf32> to vector<8x128xf32>
    %466 = math.tanh %465 : vector<8x128xf32>
    %467 = vector.extract_strided_slice %452 {offsets = [0, 384], sizes = [8, 128], strides = [1, 1]} : vector<8x512xf32> to vector<8x128xf32>
    %468 = arith.negf %467 : vector<8x128xf32>
    %469 = math.exp %468 : vector<8x128xf32>
    %cst_115 = arith.constant 1.000000e+00 : f32
    %470 = vector.broadcast %cst_115 : f32 to vector<8x128xf32>
    %471 = arith.addf %470, %469 : vector<8x128xf32>
    %472 = arith.divf %470, %471 : vector<8x128xf32>
    %473 = arith.mulf %464, %441 : vector<8x128xf32>
    %474 = arith.mulf %458, %466 : vector<8x128xf32>
    %475 = arith.addf %473, %474 : vector<8x128xf32>
    %476 = math.tanh %475 : vector<8x128xf32>
    %477 = arith.mulf %472, %476 : vector<8x128xf32>
    %478 = arith.index_cast %c13_i32 : i32 to index
    %c0_116 = arith.constant 0 : index
    %c0_117 = arith.constant 0 : index
    %479 = vector.load %arg6[%478, %c0_116, %c0_117] : memref<16x8x128xf32, #tpu.memory_space<vmem>>, vector<1x8x128xf32>
    %480 = vector.shape_cast %479 : vector<1x8x128xf32> to vector<8x128xf32>
    %481 = vector.shape_cast %477 : vector<8x128xf32> to vector<1x8x128xf32>
    tpu.vector_store %arg6[%478, %c0_116, %c0_117], %481 {strides = array<i32>} : memref<16x8x128xf32, #tpu.memory_space<vmem>>, vector<1x8x128xf32>,
    %c14_i32 = arith.constant 14 : i32
    %482 = arith.index_cast %c14_i32 : i32 to index
    %c0_118 = arith.constant 0 : index
    %c0_119 = arith.constant 0 : index
    %483 = vector.load %arg2[%482, %c0_118, %c0_119] : memref<16x8x512xf32, #tpu.memory_space<vmem>>, vector<1x8x512xf32>
    %484 = vector.shape_cast %483 : vector<1x8x512xf32> to vector<8x512xf32>
    %cst_120 = arith.constant dense<0.000000e+00> : vector<8x512xf32>
    %485 = tpu.matmul %477, %3, %cst_120 {dimension_numbers = #tpu.dot_dimension_numbers<[1], [0], [0], [1], [0, 0, 1, 1], [], []>} : vector<8x128xf32>, vector<128x512xf32>, vector<8x512xf32> -> vector<8x512xf32>
    %486 = arith.addf %484, %485 : vector<8x512xf32>
    %487 = vector.extract_strided_slice %486 {offsets = [0, 0], sizes = [8, 128], strides = [1, 1]} : vector<8x512xf32> to vector<8x128xf32>
    %488 = arith.negf %487 : vector<8x128xf32>
    %489 = math.exp %488 : vector<8x128xf32>
    %cst_121 = arith.constant 1.000000e+00 : f32
    %490 = vector.broadcast %cst_121 : f32 to vector<8x128xf32>
    %491 = arith.addf %490, %489 : vector<8x128xf32>
    %492 = arith.divf %490, %491 : vector<8x128xf32>
    %493 = vector.extract_strided_slice %486 {offsets = [0, 128], sizes = [8, 128], strides = [1, 1]} : vector<8x512xf32> to vector<8x128xf32>
    %494 = arith.negf %493 : vector<8x128xf32>
    %495 = math.exp %494 : vector<8x128xf32>
    %cst_122 = arith.constant 1.000000e+00 : f32
    %496 = vector.broadcast %cst_122 : f32 to vector<8x128xf32>
    %497 = arith.addf %496, %495 : vector<8x128xf32>
    %498 = arith.divf %496, %497 : vector<8x128xf32>
    %499 = vector.extract_strided_slice %486 {offsets = [0, 256], sizes = [8, 128], strides = [1, 1]} : vector<8x512xf32> to vector<8x128xf32>
    %500 = math.tanh %499 : vector<8x128xf32>
    %501 = vector.extract_strided_slice %486 {offsets = [0, 384], sizes = [8, 128], strides = [1, 1]} : vector<8x512xf32> to vector<8x128xf32>
    %502 = arith.negf %501 : vector<8x128xf32>
    %503 = math.exp %502 : vector<8x128xf32>
    %cst_123 = arith.constant 1.000000e+00 : f32
    %504 = vector.broadcast %cst_123 : f32 to vector<8x128xf32>
    %505 = arith.addf %504, %503 : vector<8x128xf32>
    %506 = arith.divf %504, %505 : vector<8x128xf32>
    %507 = arith.mulf %498, %475 : vector<8x128xf32>
    %508 = arith.mulf %492, %500 : vector<8x128xf32>
    %509 = arith.addf %507, %508 : vector<8x128xf32>
    %510 = math.tanh %509 : vector<8x128xf32>
    %511 = arith.mulf %506, %510 : vector<8x128xf32>
    %512 = arith.index_cast %c14_i32 : i32 to index
    %c0_124 = arith.constant 0 : index
    %c0_125 = arith.constant 0 : index
    %513 = vector.load %arg6[%512, %c0_124, %c0_125] : memref<16x8x128xf32, #tpu.memory_space<vmem>>, vector<1x8x128xf32>
    %514 = vector.shape_cast %513 : vector<1x8x128xf32> to vector<8x128xf32>
    %515 = vector.shape_cast %511 : vector<8x128xf32> to vector<1x8x128xf32>
    tpu.vector_store %arg6[%512, %c0_124, %c0_125], %515 {strides = array<i32>} : memref<16x8x128xf32, #tpu.memory_space<vmem>>, vector<1x8x128xf32>,
    %c15_i32 = arith.constant 15 : i32
    %516 = arith.index_cast %c15_i32 : i32 to index
    %c0_126 = arith.constant 0 : index
    %c0_127 = arith.constant 0 : index
    %517 = vector.load %arg2[%516, %c0_126, %c0_127] : memref<16x8x512xf32, #tpu.memory_space<vmem>>, vector<1x8x512xf32>
    %518 = vector.shape_cast %517 : vector<1x8x512xf32> to vector<8x512xf32>
    %cst_128 = arith.constant dense<0.000000e+00> : vector<8x512xf32>
    %519 = tpu.matmul %511, %3, %cst_128 {dimension_numbers = #tpu.dot_dimension_numbers<[1], [0], [0], [1], [0, 0, 1, 1], [], []>} : vector<8x128xf32>, vector<128x512xf32>, vector<8x512xf32> -> vector<8x512xf32>
    %520 = arith.addf %518, %519 : vector<8x512xf32>
    %521 = vector.extract_strided_slice %520 {offsets = [0, 0], sizes = [8, 128], strides = [1, 1]} : vector<8x512xf32> to vector<8x128xf32>
    %522 = arith.negf %521 : vector<8x128xf32>
    %523 = math.exp %522 : vector<8x128xf32>
    %cst_129 = arith.constant 1.000000e+00 : f32
    %524 = vector.broadcast %cst_129 : f32 to vector<8x128xf32>
    %525 = arith.addf %524, %523 : vector<8x128xf32>
    %526 = arith.divf %524, %525 : vector<8x128xf32>
    %527 = vector.extract_strided_slice %520 {offsets = [0, 128], sizes = [8, 128], strides = [1, 1]} : vector<8x512xf32> to vector<8x128xf32>
    %528 = arith.negf %527 : vector<8x128xf32>
    %529 = math.exp %528 : vector<8x128xf32>
    %cst_130 = arith.constant 1.000000e+00 : f32
    %530 = vector.broadcast %cst_130 : f32 to vector<8x128xf32>
    %531 = arith.addf %530, %529 : vector<8x128xf32>
    %532 = arith.divf %530, %531 : vector<8x128xf32>
    %533 = vector.extract_strided_slice %520 {offsets = [0, 256], sizes = [8, 128], strides = [1, 1]} : vector<8x512xf32> to vector<8x128xf32>
    %534 = math.tanh %533 : vector<8x128xf32>
    %535 = vector.extract_strided_slice %520 {offsets = [0, 384], sizes = [8, 128], strides = [1, 1]} : vector<8x512xf32> to vector<8x128xf32>
    %536 = arith.negf %535 : vector<8x128xf32>
    %537 = math.exp %536 : vector<8x128xf32>
    %cst_131 = arith.constant 1.000000e+00 : f32
    %538 = vector.broadcast %cst_131 : f32 to vector<8x128xf32>
    %539 = arith.addf %538, %537 : vector<8x128xf32>
    %540 = arith.divf %538, %539 : vector<8x128xf32>
    %541 = arith.mulf %532, %509 : vector<8x128xf32>
    %542 = arith.mulf %526, %534 : vector<8x128xf32>
    %543 = arith.addf %541, %542 : vector<8x128xf32>
    %544 = math.tanh %543 : vector<8x128xf32>
    %545 = arith.mulf %540, %544 : vector<8x128xf32>
    %546 = arith.index_cast %c15_i32 : i32 to index
    %c0_132 = arith.constant 0 : index
    %c0_133 = arith.constant 0 : index
    %547 = vector.load %arg6[%546, %c0_132, %c0_133] : memref<16x8x128xf32, #tpu.memory_space<vmem>>, vector<1x8x128xf32>
    %548 = vector.shape_cast %547 : vector<1x8x128xf32> to vector<8x128xf32>
    %549 = vector.shape_cast %545 : vector<8x128xf32> to vector<1x8x128xf32>
    tpu.vector_store %arg6[%546, %c0_132, %c0_133], %549 {strides = array<i32>} : memref<16x8x128xf32, #tpu.memory_space<vmem>>, vector<1x8x128xf32>,
    %c16_i32 = arith.constant 16 : i32
    %c0_134 = arith.constant 0 : index
    %c0_135 = arith.constant 0 : index
    %550 = vector.load %arg9[%c0_134, %c0_135] : memref<8x128xf32, #tpu.memory_space<vmem>>, vector<8x128xf32>
    tpu.vector_store %arg9[%c0_134, %c0_135], %545 {strides = array<i32>} : memref<8x128xf32, #tpu.memory_space<vmem>>, vector<8x128xf32>,
    %c0_136 = arith.constant 0 : index
    %c0_137 = arith.constant 0 : index
    %551 = vector.load %arg10[%c0_136, %c0_137] : memref<8x128xf32, #tpu.memory_space<vmem>>, vector<8x128xf32>
    tpu.vector_store %arg10[%c0_136, %c0_137], %543 {strides = array<i32>} : memref<8x128xf32, #tpu.memory_space<vmem>>, vector<8x128xf32>,
    %c0_i32_138 = arith.constant 0 : i32
    %552 = arith.cmpi eq, %arg1, %c0_i32_138 : i32
    %553 = arith.extui %552 : i1 to i32
    %c0_i32_139 = arith.constant 0 : i32
    %554 = arith.cmpi ne, %553, %c0_i32_139 : i32
    scf.if %554 {
      %c0_140 = arith.constant 0 : index
      %c0_141 = arith.constant 0 : index
      %555 = vector.load %arg7[%c0_140, %c0_141] : memref<8x128xf32, #tpu.memory_space<vmem>>, vector<8x128xf32>
      tpu.vector_store %arg7[%c0_140, %c0_141], %545 {strides = array<i32>} : memref<8x128xf32, #tpu.memory_space<vmem>>, vector<8x128xf32>,
      %c0_142 = arith.constant 0 : index
      %c0_143 = arith.constant 0 : index
      %556 = vector.load %arg8[%c0_142, %c0_143] : memref<8x128xf32, #tpu.memory_space<vmem>>, vector<8x128xf32>
      tpu.vector_store %arg8[%c0_142, %c0_143], %543 {strides = array<i32>} : memref<8x128xf32, #tpu.memory_space<vmem>>, vector<8x128xf32>,
    } else {
    }
    return
  }
  func.func @transform_0(%arg0: i32, %arg1: i32) -> (i32, i32, i32) {
    %c0_i32 = arith.constant 0 : i32
    %c0_i32_0 = arith.constant 0 : i32
    return %arg1, %arg0, %c0_i32 : i32, i32, i32
  }
  func.func @transform_1(%arg0: i32, %arg1: i32) -> (i32, i32) {
    %c0_i32 = arith.constant 0 : i32
    %c0_i32_0 = arith.constant 0 : i32
    %c0_i32_1 = arith.constant 0 : i32
    return %c0_i32, %c0_i32_0 : i32, i32
  }
  func.func @transform_2(%arg0: i32, %arg1: i32) -> (i32, i32) {
    %c0_i32 = arith.constant 0 : i32
    %c0_i32_0 = arith.constant 0 : i32
    return %arg0, %c0_i32 : i32, i32
  }
  func.func @transform_3(%arg0: i32, %arg1: i32) -> (i32, i32) {
    %c0_i32 = arith.constant 0 : i32
    %c0_i32_0 = arith.constant 0 : i32
    return %arg0, %c0_i32 : i32, i32
  }
  func.func @transform_4(%arg0: i32, %arg1: i32) -> (i32, i32, i32) {
    %c0_i32 = arith.constant 0 : i32
    %c0_i32_0 = arith.constant 0 : i32
    return %arg1, %arg0, %c0_i32 : i32, i32, i32
  }
  func.func @transform_5(%arg0: i32, %arg1: i32) -> (i32, i32) {
    %c0_i32 = arith.constant 0 : i32
    %c0_i32_0 = arith.constant 0 : i32
    return %arg0, %c0_i32 : i32, i32
  }
  func.func @transform_6(%arg0: i32, %arg1: i32) -> (i32, i32) {
    %c0_i32 = arith.constant 0 : i32
    %c0_i32_0 = arith.constant 0 : i32
    return %arg0, %c0_i32 : i32, i32
  }
}

module attributes {stable_mosaic.version = 11 : i64} {
  func.func @_matmul_bias_kernel(%arg0: i32, %arg1: i32, %arg2: memref<128x128xf32, #tpu.memory_space<vmem>>, %arg3: memref<128x512xf32, #tpu.memory_space<vmem>>, %arg4: memref<1x512xf32, #tpu.memory_space<vmem>>, %arg5: memref<128x512xf32, #tpu.memory_space<vmem>>) attributes {dimension_semantics = [#tpu.dimension_semantics<parallel>, #tpu.dimension_semantics<parallel>], iteration_bounds = array<i64: 1, 1>, scalar_prefetch = 0 : i64, scratch_operands = 0 : i64, tpu.core_type = #tpu.core_type<tc>, window_params = [{transform_indices = @transform_0, window_bounds = array<i64: 128, 128>}, {transform_indices = @transform_1, window_bounds = array<i64: 128, 512>}, {transform_indices = @transform_2, window_bounds = array<i64: 1, 512>}, {transform_indices = @transform_3, window_bounds = array<i64: 128, 512>}]} {
    %c0 = arith.constant 0 : index
    %c0_0 = arith.constant 0 : index
    %0 = vector.load %arg2[%c0, %c0_0] : memref<128x128xf32, #tpu.memory_space<vmem>>, vector<128x128xf32>
    %c0_1 = arith.constant 0 : index
    %c0_2 = arith.constant 0 : index
    %1 = vector.load %arg3[%c0_1, %c0_2] : memref<128x512xf32, #tpu.memory_space<vmem>>, vector<128x512xf32>
    %cst = arith.constant dense<0.000000e+00> : vector<128x512xf32>
    %2 = tpu.matmul %0, %1, %cst {dimension_numbers = #tpu.dot_dimension_numbers<[1], [0], [0], [1], [0, 0, 1, 1], [], []>} : vector<128x128xf32>, vector<128x512xf32>, vector<128x512xf32> -> vector<128x512xf32>
    %c0_3 = arith.constant 0 : index
    %c0_4 = arith.constant 0 : index
    %3 = vector.load %arg4[%c0_3, %c0_4] : memref<1x512xf32, #tpu.memory_space<vmem>>, vector<1x512xf32>
    %4 = vector.broadcast %3 : vector<1x512xf32> to vector<128x512xf32>
    %5 = arith.addf %2, %4 : vector<128x512xf32>
    %c0_5 = arith.constant 0 : index
    %c0_6 = arith.constant 0 : index
    %6 = vector.load %arg5[%c0_5, %c0_6] : memref<128x512xf32, #tpu.memory_space<vmem>>, vector<128x512xf32>
    tpu.vector_store %arg5[%c0_5, %c0_6], %5 {strides = array<i32>} : memref<128x512xf32, #tpu.memory_space<vmem>>, vector<128x512xf32>,
    return
  }
  func.func @transform_0(%arg0: i32, %arg1: i32) -> (i32, i32) {
    %c0_i32 = arith.constant 0 : i32
    %c0_i32_0 = arith.constant 0 : i32
    return %arg0, %c0_i32 : i32, i32
  }
  func.func @transform_1(%arg0: i32, %arg1: i32) -> (i32, i32) {
    %c0_i32 = arith.constant 0 : i32
    %c0_i32_0 = arith.constant 0 : i32
    return %c0_i32, %arg1 : i32, i32
  }
  func.func @transform_2(%arg0: i32, %arg1: i32) -> (i32, i32) {
    %c0_i32 = arith.constant 0 : i32
    %c0_i32_0 = arith.constant 0 : i32
    return %c0_i32, %arg1 : i32, i32
  }
  func.func @transform_3(%arg0: i32, %arg1: i32) -> (i32, i32) {
    %c0_i32 = arith.constant 0 : i32
    return %arg0, %arg1 : i32, i32
  }
}

module attributes {stable_mosaic.version = 11 : i64} {
  func.func @_matmul_bias_kernel(%arg0: i32, %arg1: i32, %arg2: memref<128x128xf32, #tpu.memory_space<vmem>>, %arg3: memref<128x128xf32, #tpu.memory_space<vmem>>, %arg4: memref<1x128xf32, #tpu.memory_space<vmem>>, %arg5: memref<128x128xf32, #tpu.memory_space<vmem>>) attributes {dimension_semantics = [#tpu.dimension_semantics<parallel>, #tpu.dimension_semantics<parallel>], iteration_bounds = array<i64: 1, 1>, scalar_prefetch = 0 : i64, scratch_operands = 0 : i64, tpu.core_type = #tpu.core_type<tc>, window_params = [{transform_indices = @transform_0, window_bounds = array<i64: 128, 128>}, {transform_indices = @transform_1, window_bounds = array<i64: 128, 128>}, {transform_indices = @transform_2, window_bounds = array<i64: 1, 128>}, {transform_indices = @transform_3, window_bounds = array<i64: 128, 128>}]} {
    %c0 = arith.constant 0 : index
    %c0_0 = arith.constant 0 : index
    %0 = vector.load %arg2[%c0, %c0_0] : memref<128x128xf32, #tpu.memory_space<vmem>>, vector<128x128xf32>
    %c0_1 = arith.constant 0 : index
    %c0_2 = arith.constant 0 : index
    %1 = vector.load %arg3[%c0_1, %c0_2] : memref<128x128xf32, #tpu.memory_space<vmem>>, vector<128x128xf32>
    %cst = arith.constant dense<0.000000e+00> : vector<128x128xf32>
    %2 = tpu.matmul %0, %1, %cst {dimension_numbers = #tpu.dot_dimension_numbers<[1], [0], [0], [1], [0, 0, 1, 1], [], []>} : vector<128x128xf32>, vector<128x128xf32>, vector<128x128xf32> -> vector<128x128xf32>
    %c0_3 = arith.constant 0 : index
    %c0_4 = arith.constant 0 : index
    %3 = vector.load %arg4[%c0_3, %c0_4] : memref<1x128xf32, #tpu.memory_space<vmem>>, vector<1x128xf32>
    %4 = vector.broadcast %3 : vector<1x128xf32> to vector<128x128xf32>
    %5 = arith.addf %2, %4 : vector<128x128xf32>
    %c0_5 = arith.constant 0 : index
    %c0_6 = arith.constant 0 : index
    %6 = vector.load %arg5[%c0_5, %c0_6] : memref<128x128xf32, #tpu.memory_space<vmem>>, vector<128x128xf32>
    tpu.vector_store %arg5[%c0_5, %c0_6], %5 {strides = array<i32>} : memref<128x128xf32, #tpu.memory_space<vmem>>, vector<128x128xf32>,
    return
  }
  func.func @transform_0(%arg0: i32, %arg1: i32) -> (i32, i32) {
    %c0_i32 = arith.constant 0 : i32
    %c0_i32_0 = arith.constant 0 : i32
    return %arg0, %c0_i32 : i32, i32
  }
  func.func @transform_1(%arg0: i32, %arg1: i32) -> (i32, i32) {
    %c0_i32 = arith.constant 0 : i32
    %c0_i32_0 = arith.constant 0 : i32
    return %c0_i32, %arg1 : i32, i32
  }
  func.func @transform_2(%arg0: i32, %arg1: i32) -> (i32, i32) {
    %c0_i32 = arith.constant 0 : i32
    %c0_i32_0 = arith.constant 0 : i32
    return %c0_i32, %arg1 : i32, i32
  }
  func.func @transform_3(%arg0: i32, %arg1: i32) -> (i32, i32) {
    %c0_i32 = arith.constant 0 : i32
    return %arg0, %arg1 : i32, i32
  }
}

module attributes {stable_mosaic.version = 11 : i64} {
  func.func @_lstm_rec_kernel(%arg0: i32, %arg1: i32, %arg2: memref<16x8x512xf32, #tpu.memory_space<vmem>>, %arg3: memref<128x512xf32, #tpu.memory_space<vmem>>, %arg4: memref<8x128xf32, #tpu.memory_space<vmem>>, %arg5: memref<8x128xf32, #tpu.memory_space<vmem>>, %arg6: memref<16x8x128xf32, #tpu.memory_space<vmem>>, %arg7: memref<8x128xf32, #tpu.memory_space<vmem>>, %arg8: memref<8x128xf32, #tpu.memory_space<vmem>>, %arg9: memref<8x128xf32, #tpu.memory_space<vmem>>, %arg10: memref<8x128xf32, #tpu.memory_space<vmem>>) attributes {dimension_semantics = [#tpu.dimension_semantics<parallel>, #tpu.dimension_semantics<arbitrary>], iteration_bounds = array<i64: 1, 1>, scalar_prefetch = 0 : i64, scratch_operands = 2 : i64, tpu.core_type = #tpu.core_type<tc>, window_params = [{transform_indices = @transform_0, window_bounds = array<i64: 16, 8, 512>}, {pipeline_mode = #tpu.pipeline_mode<synchronous>, transform_indices = @transform_1, window_bounds = array<i64: 128, 512>}, {transform_indices = @transform_2, window_bounds = array<i64: 8, 128>}, {transform_indices = @transform_3, window_bounds = array<i64: 8, 128>}, {transform_indices = @transform_4, window_bounds = array<i64: 16, 8, 128>}, {transform_indices = @transform_5, window_bounds = array<i64: 8, 128>}, {transform_indices = @transform_6, window_bounds = array<i64: 8, 128>}]} {
    %c0_i32 = arith.constant 0 : i32
    %0 = arith.cmpi eq, %arg1, %c0_i32 : i32
    %1 = arith.extui %0 : i1 to i32
    %c0_i32_0 = arith.constant 0 : i32
    %2 = arith.cmpi ne, %1, %c0_i32_0 : i32
    scf.if %2 {
      %c0_140 = arith.constant 0 : index
      %c0_141 = arith.constant 0 : index
      %555 = vector.load %arg4[%c0_140, %c0_141] : memref<8x128xf32, #tpu.memory_space<vmem>>, vector<8x128xf32>
      %c0_142 = arith.constant 0 : index
      %c0_143 = arith.constant 0 : index
      %556 = vector.load %arg9[%c0_142, %c0_143] : memref<8x128xf32, #tpu.memory_space<vmem>>, vector<8x128xf32>
      tpu.vector_store %arg9[%c0_142, %c0_143], %555 {strides = array<i32>} : memref<8x128xf32, #tpu.memory_space<vmem>>, vector<8x128xf32>,
      %c0_144 = arith.constant 0 : index
      %c0_145 = arith.constant 0 : index
      %557 = vector.load %arg5[%c0_144, %c0_145] : memref<8x128xf32, #tpu.memory_space<vmem>>, vector<8x128xf32>
      %c0_146 = arith.constant 0 : index
      %c0_147 = arith.constant 0 : index
      %558 = vector.load %arg10[%c0_146, %c0_147] : memref<8x128xf32, #tpu.memory_space<vmem>>, vector<8x128xf32>
      tpu.vector_store %arg10[%c0_146, %c0_147], %557 {strides = array<i32>} : memref<8x128xf32, #tpu.memory_space<vmem>>, vector<8x128xf32>,
    } else {
    }
    %c0 = arith.constant 0 : index
    %c0_1 = arith.constant 0 : index
    %3 = vector.load %arg3[%c0, %c0_1] : memref<128x512xf32, #tpu.memory_space<vmem>>, vector<128x512xf32>
    %c0_2 = arith.constant 0 : index
    %c0_3 = arith.constant 0 : index
    %4 = vector.load %arg9[%c0_2, %c0_3] : memref<8x128xf32, #tpu.memory_space<vmem>>, vector<8x128xf32>
    %c0_4 = arith.constant 0 : index
    %c0_5 = arith.constant 0 : index
    %5 = vector.load %arg10[%c0_4, %c0_5] : memref<8x128xf32, #tpu.memory_space<vmem>>, vector<8x128xf32>
    %c0_i32_6 = arith.constant 0 : i32
    %6 = arith.index_cast %c0_i32_6 : i32 to index
    %c0_7 = arith.constant 0 : index
    %c0_8 = arith.constant 0 : index
    %7 = vector.load %arg2[%6, %c0_7, %c0_8] : memref<16x8x512xf32, #tpu.memory_space<vmem>>, vector<1x8x512xf32>
    %8 = vector.shape_cast %7 : vector<1x8x512xf32> to vector<8x512xf32>
    %cst = arith.constant dense<0.000000e+00> : vector<8x512xf32>
    %9 = tpu.matmul %4, %3, %cst {dimension_numbers = #tpu.dot_dimension_numbers<[1], [0], [0], [1], [0, 0, 1, 1], [], []>} : vector<8x128xf32>, vector<128x512xf32>, vector<8x512xf32> -> vector<8x512xf32>
    %10 = arith.addf %8, %9 : vector<8x512xf32>
    %11 = vector.extract_strided_slice %10 {offsets = [0, 0], sizes = [8, 128], strides = [1, 1]} : vector<8x512xf32> to vector<8x128xf32>
    %12 = arith.negf %11 : vector<8x128xf32>
    %13 = math.exp %12 : vector<8x128xf32>
    %cst_9 = arith.constant 1.000000e+00 : f32
    %14 = vector.broadcast %cst_9 : f32 to vector<8x128xf32>
    %15 = arith.addf %14, %13 : vector<8x128xf32>
    %16 = arith.divf %14, %15 : vector<8x128xf32>
    %17 = vector.extract_strided_slice %10 {offsets = [0, 128], sizes = [8, 128], strides = [1, 1]} : vector<8x512xf32> to vector<8x128xf32>
    %18 = arith.negf %17 : vector<8x128xf32>
    %19 = math.exp %18 : vector<8x128xf32>
    %cst_10 = arith.constant 1.000000e+00 : f32
    %20 = vector.broadcast %cst_10 : f32 to vector<8x128xf32>
    %21 = arith.addf %20, %19 : vector<8x128xf32>
    %22 = arith.divf %20, %21 : vector<8x128xf32>
    %23 = vector.extract_strided_slice %10 {offsets = [0, 256], sizes = [8, 128], strides = [1, 1]} : vector<8x512xf32> to vector<8x128xf32>
    %24 = math.tanh %23 : vector<8x128xf32>
    %25 = vector.extract_strided_slice %10 {offsets = [0, 384], sizes = [8, 128], strides = [1, 1]} : vector<8x512xf32> to vector<8x128xf32>
    %26 = arith.negf %25 : vector<8x128xf32>
    %27 = math.exp %26 : vector<8x128xf32>
    %cst_11 = arith.constant 1.000000e+00 : f32
    %28 = vector.broadcast %cst_11 : f32 to vector<8x128xf32>
    %29 = arith.addf %28, %27 : vector<8x128xf32>
    %30 = arith.divf %28, %29 : vector<8x128xf32>
    %31 = arith.mulf %22, %5 : vector<8x128xf32>
    %32 = arith.mulf %16, %24 : vector<8x128xf32>
    %33 = arith.addf %31, %32 : vector<8x128xf32>
    %34 = math.tanh %33 : vector<8x128xf32>
    %35 = arith.mulf %30, %34 : vector<8x128xf32>
    %36 = arith.index_cast %c0_i32_6 : i32 to index
    %c0_12 = arith.constant 0 : index
    %c0_13 = arith.constant 0 : index
    %37 = vector.load %arg6[%36, %c0_12, %c0_13] : memref<16x8x128xf32, #tpu.memory_space<vmem>>, vector<1x8x128xf32>
    %38 = vector.shape_cast %37 : vector<1x8x128xf32> to vector<8x128xf32>
    %39 = vector.shape_cast %35 : vector<8x128xf32> to vector<1x8x128xf32>
    tpu.vector_store %arg6[%36, %c0_12, %c0_13], %39 {strides = array<i32>} : memref<16x8x128xf32, #tpu.memory_space<vmem>>, vector<1x8x128xf32>,
    %c1_i32 = arith.constant 1 : i32
    %40 = arith.index_cast %c1_i32 : i32 to index
    %c0_14 = arith.constant 0 : index
    %c0_15 = arith.constant 0 : index
    %41 = vector.load %arg2[%40, %c0_14, %c0_15] : memref<16x8x512xf32, #tpu.memory_space<vmem>>, vector<1x8x512xf32>
    %42 = vector.shape_cast %41 : vector<1x8x512xf32> to vector<8x512xf32>
    %cst_16 = arith.constant dense<0.000000e+00> : vector<8x512xf32>
    %43 = tpu.matmul %35, %3, %cst_16 {dimension_numbers = #tpu.dot_dimension_numbers<[1], [0], [0], [1], [0, 0, 1, 1], [], []>} : vector<8x128xf32>, vector<128x512xf32>, vector<8x512xf32> -> vector<8x512xf32>
    %44 = arith.addf %42, %43 : vector<8x512xf32>
    %45 = vector.extract_strided_slice %44 {offsets = [0, 0], sizes = [8, 128], strides = [1, 1]} : vector<8x512xf32> to vector<8x128xf32>
    %46 = arith.negf %45 : vector<8x128xf32>
    %47 = math.exp %46 : vector<8x128xf32>
    %cst_17 = arith.constant 1.000000e+00 : f32
    %48 = vector.broadcast %cst_17 : f32 to vector<8x128xf32>
    %49 = arith.addf %48, %47 : vector<8x128xf32>
    %50 = arith.divf %48, %49 : vector<8x128xf32>
    %51 = vector.extract_strided_slice %44 {offsets = [0, 128], sizes = [8, 128], strides = [1, 1]} : vector<8x512xf32> to vector<8x128xf32>
    %52 = arith.negf %51 : vector<8x128xf32>
    %53 = math.exp %52 : vector<8x128xf32>
    %cst_18 = arith.constant 1.000000e+00 : f32
    %54 = vector.broadcast %cst_18 : f32 to vector<8x128xf32>
    %55 = arith.addf %54, %53 : vector<8x128xf32>
    %56 = arith.divf %54, %55 : vector<8x128xf32>
    %57 = vector.extract_strided_slice %44 {offsets = [0, 256], sizes = [8, 128], strides = [1, 1]} : vector<8x512xf32> to vector<8x128xf32>
    %58 = math.tanh %57 : vector<8x128xf32>
    %59 = vector.extract_strided_slice %44 {offsets = [0, 384], sizes = [8, 128], strides = [1, 1]} : vector<8x512xf32> to vector<8x128xf32>
    %60 = arith.negf %59 : vector<8x128xf32>
    %61 = math.exp %60 : vector<8x128xf32>
    %cst_19 = arith.constant 1.000000e+00 : f32
    %62 = vector.broadcast %cst_19 : f32 to vector<8x128xf32>
    %63 = arith.addf %62, %61 : vector<8x128xf32>
    %64 = arith.divf %62, %63 : vector<8x128xf32>
    %65 = arith.mulf %56, %33 : vector<8x128xf32>
    %66 = arith.mulf %50, %58 : vector<8x128xf32>
    %67 = arith.addf %65, %66 : vector<8x128xf32>
    %68 = math.tanh %67 : vector<8x128xf32>
    %69 = arith.mulf %64, %68 : vector<8x128xf32>
    %70 = arith.index_cast %c1_i32 : i32 to index
    %c0_20 = arith.constant 0 : index
    %c0_21 = arith.constant 0 : index
    %71 = vector.load %arg6[%70, %c0_20, %c0_21] : memref<16x8x128xf32, #tpu.memory_space<vmem>>, vector<1x8x128xf32>
    %72 = vector.shape_cast %71 : vector<1x8x128xf32> to vector<8x128xf32>
    %73 = vector.shape_cast %69 : vector<8x128xf32> to vector<1x8x128xf32>
    tpu.vector_store %arg6[%70, %c0_20, %c0_21], %73 {strides = array<i32>} : memref<16x8x128xf32, #tpu.memory_space<vmem>>, vector<1x8x128xf32>,
    %c2_i32 = arith.constant 2 : i32
    %74 = arith.index_cast %c2_i32 : i32 to index
    %c0_22 = arith.constant 0 : index
    %c0_23 = arith.constant 0 : index
    %75 = vector.load %arg2[%74, %c0_22, %c0_23] : memref<16x8x512xf32, #tpu.memory_space<vmem>>, vector<1x8x512xf32>
    %76 = vector.shape_cast %75 : vector<1x8x512xf32> to vector<8x512xf32>
    %cst_24 = arith.constant dense<0.000000e+00> : vector<8x512xf32>
    %77 = tpu.matmul %69, %3, %cst_24 {dimension_numbers = #tpu.dot_dimension_numbers<[1], [0], [0], [1], [0, 0, 1, 1], [], []>} : vector<8x128xf32>, vector<128x512xf32>, vector<8x512xf32> -> vector<8x512xf32>
    %78 = arith.addf %76, %77 : vector<8x512xf32>
    %79 = vector.extract_strided_slice %78 {offsets = [0, 0], sizes = [8, 128], strides = [1, 1]} : vector<8x512xf32> to vector<8x128xf32>
    %80 = arith.negf %79 : vector<8x128xf32>
    %81 = math.exp %80 : vector<8x128xf32>
    %cst_25 = arith.constant 1.000000e+00 : f32
    %82 = vector.broadcast %cst_25 : f32 to vector<8x128xf32>
    %83 = arith.addf %82, %81 : vector<8x128xf32>
    %84 = arith.divf %82, %83 : vector<8x128xf32>
    %85 = vector.extract_strided_slice %78 {offsets = [0, 128], sizes = [8, 128], strides = [1, 1]} : vector<8x512xf32> to vector<8x128xf32>
    %86 = arith.negf %85 : vector<8x128xf32>
    %87 = math.exp %86 : vector<8x128xf32>
    %cst_26 = arith.constant 1.000000e+00 : f32
    %88 = vector.broadcast %cst_26 : f32 to vector<8x128xf32>
    %89 = arith.addf %88, %87 : vector<8x128xf32>
    %90 = arith.divf %88, %89 : vector<8x128xf32>
    %91 = vector.extract_strided_slice %78 {offsets = [0, 256], sizes = [8, 128], strides = [1, 1]} : vector<8x512xf32> to vector<8x128xf32>
    %92 = math.tanh %91 : vector<8x128xf32>
    %93 = vector.extract_strided_slice %78 {offsets = [0, 384], sizes = [8, 128], strides = [1, 1]} : vector<8x512xf32> to vector<8x128xf32>
    %94 = arith.negf %93 : vector<8x128xf32>
    %95 = math.exp %94 : vector<8x128xf32>
    %cst_27 = arith.constant 1.000000e+00 : f32
    %96 = vector.broadcast %cst_27 : f32 to vector<8x128xf32>
    %97 = arith.addf %96, %95 : vector<8x128xf32>
    %98 = arith.divf %96, %97 : vector<8x128xf32>
    %99 = arith.mulf %90, %67 : vector<8x128xf32>
    %100 = arith.mulf %84, %92 : vector<8x128xf32>
    %101 = arith.addf %99, %100 : vector<8x128xf32>
    %102 = math.tanh %101 : vector<8x128xf32>
    %103 = arith.mulf %98, %102 : vector<8x128xf32>
    %104 = arith.index_cast %c2_i32 : i32 to index
    %c0_28 = arith.constant 0 : index
    %c0_29 = arith.constant 0 : index
    %105 = vector.load %arg6[%104, %c0_28, %c0_29] : memref<16x8x128xf32, #tpu.memory_space<vmem>>, vector<1x8x128xf32>
    %106 = vector.shape_cast %105 : vector<1x8x128xf32> to vector<8x128xf32>
    %107 = vector.shape_cast %103 : vector<8x128xf32> to vector<1x8x128xf32>
    tpu.vector_store %arg6[%104, %c0_28, %c0_29], %107 {strides = array<i32>} : memref<16x8x128xf32, #tpu.memory_space<vmem>>, vector<1x8x128xf32>,
    %c3_i32 = arith.constant 3 : i32
    %108 = arith.index_cast %c3_i32 : i32 to index
    %c0_30 = arith.constant 0 : index
    %c0_31 = arith.constant 0 : index
    %109 = vector.load %arg2[%108, %c0_30, %c0_31] : memref<16x8x512xf32, #tpu.memory_space<vmem>>, vector<1x8x512xf32>
    %110 = vector.shape_cast %109 : vector<1x8x512xf32> to vector<8x512xf32>
    %cst_32 = arith.constant dense<0.000000e+00> : vector<8x512xf32>
    %111 = tpu.matmul %103, %3, %cst_32 {dimension_numbers = #tpu.dot_dimension_numbers<[1], [0], [0], [1], [0, 0, 1, 1], [], []>} : vector<8x128xf32>, vector<128x512xf32>, vector<8x512xf32> -> vector<8x512xf32>
    %112 = arith.addf %110, %111 : vector<8x512xf32>
    %113 = vector.extract_strided_slice %112 {offsets = [0, 0], sizes = [8, 128], strides = [1, 1]} : vector<8x512xf32> to vector<8x128xf32>
    %114 = arith.negf %113 : vector<8x128xf32>
    %115 = math.exp %114 : vector<8x128xf32>
    %cst_33 = arith.constant 1.000000e+00 : f32
    %116 = vector.broadcast %cst_33 : f32 to vector<8x128xf32>
    %117 = arith.addf %116, %115 : vector<8x128xf32>
    %118 = arith.divf %116, %117 : vector<8x128xf32>
    %119 = vector.extract_strided_slice %112 {offsets = [0, 128], sizes = [8, 128], strides = [1, 1]} : vector<8x512xf32> to vector<8x128xf32>
    %120 = arith.negf %119 : vector<8x128xf32>
    %121 = math.exp %120 : vector<8x128xf32>
    %cst_34 = arith.constant 1.000000e+00 : f32
    %122 = vector.broadcast %cst_34 : f32 to vector<8x128xf32>
    %123 = arith.addf %122, %121 : vector<8x128xf32>
    %124 = arith.divf %122, %123 : vector<8x128xf32>
    %125 = vector.extract_strided_slice %112 {offsets = [0, 256], sizes = [8, 128], strides = [1, 1]} : vector<8x512xf32> to vector<8x128xf32>
    %126 = math.tanh %125 : vector<8x128xf32>
    %127 = vector.extract_strided_slice %112 {offsets = [0, 384], sizes = [8, 128], strides = [1, 1]} : vector<8x512xf32> to vector<8x128xf32>
    %128 = arith.negf %127 : vector<8x128xf32>
    %129 = math.exp %128 : vector<8x128xf32>
    %cst_35 = arith.constant 1.000000e+00 : f32
    %130 = vector.broadcast %cst_35 : f32 to vector<8x128xf32>
    %131 = arith.addf %130, %129 : vector<8x128xf32>
    %132 = arith.divf %130, %131 : vector<8x128xf32>
    %133 = arith.mulf %124, %101 : vector<8x128xf32>
    %134 = arith.mulf %118, %126 : vector<8x128xf32>
    %135 = arith.addf %133, %134 : vector<8x128xf32>
    %136 = math.tanh %135 : vector<8x128xf32>
    %137 = arith.mulf %132, %136 : vector<8x128xf32>
    %138 = arith.index_cast %c3_i32 : i32 to index
    %c0_36 = arith.constant 0 : index
    %c0_37 = arith.constant 0 : index
    %139 = vector.load %arg6[%138, %c0_36, %c0_37] : memref<16x8x128xf32, #tpu.memory_space<vmem>>, vector<1x8x128xf32>
    %140 = vector.shape_cast %139 : vector<1x8x128xf32> to vector<8x128xf32>
    %141 = vector.shape_cast %137 : vector<8x128xf32> to vector<1x8x128xf32>
    tpu.vector_store %arg6[%138, %c0_36, %c0_37], %141 {strides = array<i32>} : memref<16x8x128xf32, #tpu.memory_space<vmem>>, vector<1x8x128xf32>,
    %c4_i32 = arith.constant 4 : i32
    %142 = arith.index_cast %c4_i32 : i32 to index
    %c0_38 = arith.constant 0 : index
    %c0_39 = arith.constant 0 : index
    %143 = vector.load %arg2[%142, %c0_38, %c0_39] : memref<16x8x512xf32, #tpu.memory_space<vmem>>, vector<1x8x512xf32>
    %144 = vector.shape_cast %143 : vector<1x8x512xf32> to vector<8x512xf32>
    %cst_40 = arith.constant dense<0.000000e+00> : vector<8x512xf32>
    %145 = tpu.matmul %137, %3, %cst_40 {dimension_numbers = #tpu.dot_dimension_numbers<[1], [0], [0], [1], [0, 0, 1, 1], [], []>} : vector<8x128xf32>, vector<128x512xf32>, vector<8x512xf32> -> vector<8x512xf32>
    %146 = arith.addf %144, %145 : vector<8x512xf32>
    %147 = vector.extract_strided_slice %146 {offsets = [0, 0], sizes = [8, 128], strides = [1, 1]} : vector<8x512xf32> to vector<8x128xf32>
    %148 = arith.negf %147 : vector<8x128xf32>
    %149 = math.exp %148 : vector<8x128xf32>
    %cst_41 = arith.constant 1.000000e+00 : f32
    %150 = vector.broadcast %cst_41 : f32 to vector<8x128xf32>
    %151 = arith.addf %150, %149 : vector<8x128xf32>
    %152 = arith.divf %150, %151 : vector<8x128xf32>
    %153 = vector.extract_strided_slice %146 {offsets = [0, 128], sizes = [8, 128], strides = [1, 1]} : vector<8x512xf32> to vector<8x128xf32>
    %154 = arith.negf %153 : vector<8x128xf32>
    %155 = math.exp %154 : vector<8x128xf32>
    %cst_42 = arith.constant 1.000000e+00 : f32
    %156 = vector.broadcast %cst_42 : f32 to vector<8x128xf32>
    %157 = arith.addf %156, %155 : vector<8x128xf32>
    %158 = arith.divf %156, %157 : vector<8x128xf32>
    %159 = vector.extract_strided_slice %146 {offsets = [0, 256], sizes = [8, 128], strides = [1, 1]} : vector<8x512xf32> to vector<8x128xf32>
    %160 = math.tanh %159 : vector<8x128xf32>
    %161 = vector.extract_strided_slice %146 {offsets = [0, 384], sizes = [8, 128], strides = [1, 1]} : vector<8x512xf32> to vector<8x128xf32>
    %162 = arith.negf %161 : vector<8x128xf32>
    %163 = math.exp %162 : vector<8x128xf32>
    %cst_43 = arith.constant 1.000000e+00 : f32
    %164 = vector.broadcast %cst_43 : f32 to vector<8x128xf32>
    %165 = arith.addf %164, %163 : vector<8x128xf32>
    %166 = arith.divf %164, %165 : vector<8x128xf32>
    %167 = arith.mulf %158, %135 : vector<8x128xf32>
    %168 = arith.mulf %152, %160 : vector<8x128xf32>
    %169 = arith.addf %167, %168 : vector<8x128xf32>
    %170 = math.tanh %169 : vector<8x128xf32>
    %171 = arith.mulf %166, %170 : vector<8x128xf32>
    %172 = arith.index_cast %c4_i32 : i32 to index
    %c0_44 = arith.constant 0 : index
    %c0_45 = arith.constant 0 : index
    %173 = vector.load %arg6[%172, %c0_44, %c0_45] : memref<16x8x128xf32, #tpu.memory_space<vmem>>, vector<1x8x128xf32>
    %174 = vector.shape_cast %173 : vector<1x8x128xf32> to vector<8x128xf32>
    %175 = vector.shape_cast %171 : vector<8x128xf32> to vector<1x8x128xf32>
    tpu.vector_store %arg6[%172, %c0_44, %c0_45], %175 {strides = array<i32>} : memref<16x8x128xf32, #tpu.memory_space<vmem>>, vector<1x8x128xf32>,
    %c5_i32 = arith.constant 5 : i32
    %176 = arith.index_cast %c5_i32 : i32 to index
    %c0_46 = arith.constant 0 : index
    %c0_47 = arith.constant 0 : index
    %177 = vector.load %arg2[%176, %c0_46, %c0_47] : memref<16x8x512xf32, #tpu.memory_space<vmem>>, vector<1x8x512xf32>
    %178 = vector.shape_cast %177 : vector<1x8x512xf32> to vector<8x512xf32>
    %cst_48 = arith.constant dense<0.000000e+00> : vector<8x512xf32>
    %179 = tpu.matmul %171, %3, %cst_48 {dimension_numbers = #tpu.dot_dimension_numbers<[1], [0], [0], [1], [0, 0, 1, 1], [], []>} : vector<8x128xf32>, vector<128x512xf32>, vector<8x512xf32> -> vector<8x512xf32>
    %180 = arith.addf %178, %179 : vector<8x512xf32>
    %181 = vector.extract_strided_slice %180 {offsets = [0, 0], sizes = [8, 128], strides = [1, 1]} : vector<8x512xf32> to vector<8x128xf32>
    %182 = arith.negf %181 : vector<8x128xf32>
    %183 = math.exp %182 : vector<8x128xf32>
    %cst_49 = arith.constant 1.000000e+00 : f32
    %184 = vector.broadcast %cst_49 : f32 to vector<8x128xf32>
    %185 = arith.addf %184, %183 : vector<8x128xf32>
    %186 = arith.divf %184, %185 : vector<8x128xf32>
    %187 = vector.extract_strided_slice %180 {offsets = [0, 128], sizes = [8, 128], strides = [1, 1]} : vector<8x512xf32> to vector<8x128xf32>
    %188 = arith.negf %187 : vector<8x128xf32>
    %189 = math.exp %188 : vector<8x128xf32>
    %cst_50 = arith.constant 1.000000e+00 : f32
    %190 = vector.broadcast %cst_50 : f32 to vector<8x128xf32>
    %191 = arith.addf %190, %189 : vector<8x128xf32>
    %192 = arith.divf %190, %191 : vector<8x128xf32>
    %193 = vector.extract_strided_slice %180 {offsets = [0, 256], sizes = [8, 128], strides = [1, 1]} : vector<8x512xf32> to vector<8x128xf32>
    %194 = math.tanh %193 : vector<8x128xf32>
    %195 = vector.extract_strided_slice %180 {offsets = [0, 384], sizes = [8, 128], strides = [1, 1]} : vector<8x512xf32> to vector<8x128xf32>
    %196 = arith.negf %195 : vector<8x128xf32>
    %197 = math.exp %196 : vector<8x128xf32>
    %cst_51 = arith.constant 1.000000e+00 : f32
    %198 = vector.broadcast %cst_51 : f32 to vector<8x128xf32>
    %199 = arith.addf %198, %197 : vector<8x128xf32>
    %200 = arith.divf %198, %199 : vector<8x128xf32>
    %201 = arith.mulf %192, %169 : vector<8x128xf32>
    %202 = arith.mulf %186, %194 : vector<8x128xf32>
    %203 = arith.addf %201, %202 : vector<8x128xf32>
    %204 = math.tanh %203 : vector<8x128xf32>
    %205 = arith.mulf %200, %204 : vector<8x128xf32>
    %206 = arith.index_cast %c5_i32 : i32 to index
    %c0_52 = arith.constant 0 : index
    %c0_53 = arith.constant 0 : index
    %207 = vector.load %arg6[%206, %c0_52, %c0_53] : memref<16x8x128xf32, #tpu.memory_space<vmem>>, vector<1x8x128xf32>
    %208 = vector.shape_cast %207 : vector<1x8x128xf32> to vector<8x128xf32>
    %209 = vector.shape_cast %205 : vector<8x128xf32> to vector<1x8x128xf32>
    tpu.vector_store %arg6[%206, %c0_52, %c0_53], %209 {strides = array<i32>} : memref<16x8x128xf32, #tpu.memory_space<vmem>>, vector<1x8x128xf32>,
    %c6_i32 = arith.constant 6 : i32
    %210 = arith.index_cast %c6_i32 : i32 to index
    %c0_54 = arith.constant 0 : index
    %c0_55 = arith.constant 0 : index
    %211 = vector.load %arg2[%210, %c0_54, %c0_55] : memref<16x8x512xf32, #tpu.memory_space<vmem>>, vector<1x8x512xf32>
    %212 = vector.shape_cast %211 : vector<1x8x512xf32> to vector<8x512xf32>
    %cst_56 = arith.constant dense<0.000000e+00> : vector<8x512xf32>
    %213 = tpu.matmul %205, %3, %cst_56 {dimension_numbers = #tpu.dot_dimension_numbers<[1], [0], [0], [1], [0, 0, 1, 1], [], []>} : vector<8x128xf32>, vector<128x512xf32>, vector<8x512xf32> -> vector<8x512xf32>
    %214 = arith.addf %212, %213 : vector<8x512xf32>
    %215 = vector.extract_strided_slice %214 {offsets = [0, 0], sizes = [8, 128], strides = [1, 1]} : vector<8x512xf32> to vector<8x128xf32>
    %216 = arith.negf %215 : vector<8x128xf32>
    %217 = math.exp %216 : vector<8x128xf32>
    %cst_57 = arith.constant 1.000000e+00 : f32
    %218 = vector.broadcast %cst_57 : f32 to vector<8x128xf32>
    %219 = arith.addf %218, %217 : vector<8x128xf32>
    %220 = arith.divf %218, %219 : vector<8x128xf32>
    %221 = vector.extract_strided_slice %214 {offsets = [0, 128], sizes = [8, 128], strides = [1, 1]} : vector<8x512xf32> to vector<8x128xf32>
    %222 = arith.negf %221 : vector<8x128xf32>
    %223 = math.exp %222 : vector<8x128xf32>
    %cst_58 = arith.constant 1.000000e+00 : f32
    %224 = vector.broadcast %cst_58 : f32 to vector<8x128xf32>
    %225 = arith.addf %224, %223 : vector<8x128xf32>
    %226 = arith.divf %224, %225 : vector<8x128xf32>
    %227 = vector.extract_strided_slice %214 {offsets = [0, 256], sizes = [8, 128], strides = [1, 1]} : vector<8x512xf32> to vector<8x128xf32>
    %228 = math.tanh %227 : vector<8x128xf32>
    %229 = vector.extract_strided_slice %214 {offsets = [0, 384], sizes = [8, 128], strides = [1, 1]} : vector<8x512xf32> to vector<8x128xf32>
    %230 = arith.negf %229 : vector<8x128xf32>
    %231 = math.exp %230 : vector<8x128xf32>
    %cst_59 = arith.constant 1.000000e+00 : f32
    %232 = vector.broadcast %cst_59 : f32 to vector<8x128xf32>
    %233 = arith.addf %232, %231 : vector<8x128xf32>
    %234 = arith.divf %232, %233 : vector<8x128xf32>
    %235 = arith.mulf %226, %203 : vector<8x128xf32>
    %236 = arith.mulf %220, %228 : vector<8x128xf32>
    %237 = arith.addf %235, %236 : vector<8x128xf32>
    %238 = math.tanh %237 : vector<8x128xf32>
    %239 = arith.mulf %234, %238 : vector<8x128xf32>
    %240 = arith.index_cast %c6_i32 : i32 to index
    %c0_60 = arith.constant 0 : index
    %c0_61 = arith.constant 0 : index
    %241 = vector.load %arg6[%240, %c0_60, %c0_61] : memref<16x8x128xf32, #tpu.memory_space<vmem>>, vector<1x8x128xf32>
    %242 = vector.shape_cast %241 : vector<1x8x128xf32> to vector<8x128xf32>
    %243 = vector.shape_cast %239 : vector<8x128xf32> to vector<1x8x128xf32>
    tpu.vector_store %arg6[%240, %c0_60, %c0_61], %243 {strides = array<i32>} : memref<16x8x128xf32, #tpu.memory_space<vmem>>, vector<1x8x128xf32>,
    %c7_i32 = arith.constant 7 : i32
    %244 = arith.index_cast %c7_i32 : i32 to index
    %c0_62 = arith.constant 0 : index
    %c0_63 = arith.constant 0 : index
    %245 = vector.load %arg2[%244, %c0_62, %c0_63] : memref<16x8x512xf32, #tpu.memory_space<vmem>>, vector<1x8x512xf32>
    %246 = vector.shape_cast %245 : vector<1x8x512xf32> to vector<8x512xf32>
    %cst_64 = arith.constant dense<0.000000e+00> : vector<8x512xf32>
    %247 = tpu.matmul %239, %3, %cst_64 {dimension_numbers = #tpu.dot_dimension_numbers<[1], [0], [0], [1], [0, 0, 1, 1], [], []>} : vector<8x128xf32>, vector<128x512xf32>, vector<8x512xf32> -> vector<8x512xf32>
    %248 = arith.addf %246, %247 : vector<8x512xf32>
    %249 = vector.extract_strided_slice %248 {offsets = [0, 0], sizes = [8, 128], strides = [1, 1]} : vector<8x512xf32> to vector<8x128xf32>
    %250 = arith.negf %249 : vector<8x128xf32>
    %251 = math.exp %250 : vector<8x128xf32>
    %cst_65 = arith.constant 1.000000e+00 : f32
    %252 = vector.broadcast %cst_65 : f32 to vector<8x128xf32>
    %253 = arith.addf %252, %251 : vector<8x128xf32>
    %254 = arith.divf %252, %253 : vector<8x128xf32>
    %255 = vector.extract_strided_slice %248 {offsets = [0, 128], sizes = [8, 128], strides = [1, 1]} : vector<8x512xf32> to vector<8x128xf32>
    %256 = arith.negf %255 : vector<8x128xf32>
    %257 = math.exp %256 : vector<8x128xf32>
    %cst_66 = arith.constant 1.000000e+00 : f32
    %258 = vector.broadcast %cst_66 : f32 to vector<8x128xf32>
    %259 = arith.addf %258, %257 : vector<8x128xf32>
    %260 = arith.divf %258, %259 : vector<8x128xf32>
    %261 = vector.extract_strided_slice %248 {offsets = [0, 256], sizes = [8, 128], strides = [1, 1]} : vector<8x512xf32> to vector<8x128xf32>
    %262 = math.tanh %261 : vector<8x128xf32>
    %263 = vector.extract_strided_slice %248 {offsets = [0, 384], sizes = [8, 128], strides = [1, 1]} : vector<8x512xf32> to vector<8x128xf32>
    %264 = arith.negf %263 : vector<8x128xf32>
    %265 = math.exp %264 : vector<8x128xf32>
    %cst_67 = arith.constant 1.000000e+00 : f32
    %266 = vector.broadcast %cst_67 : f32 to vector<8x128xf32>
    %267 = arith.addf %266, %265 : vector<8x128xf32>
    %268 = arith.divf %266, %267 : vector<8x128xf32>
    %269 = arith.mulf %260, %237 : vector<8x128xf32>
    %270 = arith.mulf %254, %262 : vector<8x128xf32>
    %271 = arith.addf %269, %270 : vector<8x128xf32>
    %272 = math.tanh %271 : vector<8x128xf32>
    %273 = arith.mulf %268, %272 : vector<8x128xf32>
    %274 = arith.index_cast %c7_i32 : i32 to index
    %c0_68 = arith.constant 0 : index
    %c0_69 = arith.constant 0 : index
    %275 = vector.load %arg6[%274, %c0_68, %c0_69] : memref<16x8x128xf32, #tpu.memory_space<vmem>>, vector<1x8x128xf32>
    %276 = vector.shape_cast %275 : vector<1x8x128xf32> to vector<8x128xf32>
    %277 = vector.shape_cast %273 : vector<8x128xf32> to vector<1x8x128xf32>
    tpu.vector_store %arg6[%274, %c0_68, %c0_69], %277 {strides = array<i32>} : memref<16x8x128xf32, #tpu.memory_space<vmem>>, vector<1x8x128xf32>,
    %c8_i32 = arith.constant 8 : i32
    %278 = arith.index_cast %c8_i32 : i32 to index
    %c0_70 = arith.constant 0 : index
    %c0_71 = arith.constant 0 : index
    %279 = vector.load %arg2[%278, %c0_70, %c0_71] : memref<16x8x512xf32, #tpu.memory_space<vmem>>, vector<1x8x512xf32>
    %280 = vector.shape_cast %279 : vector<1x8x512xf32> to vector<8x512xf32>
    %cst_72 = arith.constant dense<0.000000e+00> : vector<8x512xf32>
    %281 = tpu.matmul %273, %3, %cst_72 {dimension_numbers = #tpu.dot_dimension_numbers<[1], [0], [0], [1], [0, 0, 1, 1], [], []>} : vector<8x128xf32>, vector<128x512xf32>, vector<8x512xf32> -> vector<8x512xf32>
    %282 = arith.addf %280, %281 : vector<8x512xf32>
    %283 = vector.extract_strided_slice %282 {offsets = [0, 0], sizes = [8, 128], strides = [1, 1]} : vector<8x512xf32> to vector<8x128xf32>
    %284 = arith.negf %283 : vector<8x128xf32>
    %285 = math.exp %284 : vector<8x128xf32>
    %cst_73 = arith.constant 1.000000e+00 : f32
    %286 = vector.broadcast %cst_73 : f32 to vector<8x128xf32>
    %287 = arith.addf %286, %285 : vector<8x128xf32>
    %288 = arith.divf %286, %287 : vector<8x128xf32>
    %289 = vector.extract_strided_slice %282 {offsets = [0, 128], sizes = [8, 128], strides = [1, 1]} : vector<8x512xf32> to vector<8x128xf32>
    %290 = arith.negf %289 : vector<8x128xf32>
    %291 = math.exp %290 : vector<8x128xf32>
    %cst_74 = arith.constant 1.000000e+00 : f32
    %292 = vector.broadcast %cst_74 : f32 to vector<8x128xf32>
    %293 = arith.addf %292, %291 : vector<8x128xf32>
    %294 = arith.divf %292, %293 : vector<8x128xf32>
    %295 = vector.extract_strided_slice %282 {offsets = [0, 256], sizes = [8, 128], strides = [1, 1]} : vector<8x512xf32> to vector<8x128xf32>
    %296 = math.tanh %295 : vector<8x128xf32>
    %297 = vector.extract_strided_slice %282 {offsets = [0, 384], sizes = [8, 128], strides = [1, 1]} : vector<8x512xf32> to vector<8x128xf32>
    %298 = arith.negf %297 : vector<8x128xf32>
    %299 = math.exp %298 : vector<8x128xf32>
    %cst_75 = arith.constant 1.000000e+00 : f32
    %300 = vector.broadcast %cst_75 : f32 to vector<8x128xf32>
    %301 = arith.addf %300, %299 : vector<8x128xf32>
    %302 = arith.divf %300, %301 : vector<8x128xf32>
    %303 = arith.mulf %294, %271 : vector<8x128xf32>
    %304 = arith.mulf %288, %296 : vector<8x128xf32>
    %305 = arith.addf %303, %304 : vector<8x128xf32>
    %306 = math.tanh %305 : vector<8x128xf32>
    %307 = arith.mulf %302, %306 : vector<8x128xf32>
    %308 = arith.index_cast %c8_i32 : i32 to index
    %c0_76 = arith.constant 0 : index
    %c0_77 = arith.constant 0 : index
    %309 = vector.load %arg6[%308, %c0_76, %c0_77] : memref<16x8x128xf32, #tpu.memory_space<vmem>>, vector<1x8x128xf32>
    %310 = vector.shape_cast %309 : vector<1x8x128xf32> to vector<8x128xf32>
    %311 = vector.shape_cast %307 : vector<8x128xf32> to vector<1x8x128xf32>
    tpu.vector_store %arg6[%308, %c0_76, %c0_77], %311 {strides = array<i32>} : memref<16x8x128xf32, #tpu.memory_space<vmem>>, vector<1x8x128xf32>,
    %c9_i32 = arith.constant 9 : i32
    %312 = arith.index_cast %c9_i32 : i32 to index
    %c0_78 = arith.constant 0 : index
    %c0_79 = arith.constant 0 : index
    %313 = vector.load %arg2[%312, %c0_78, %c0_79] : memref<16x8x512xf32, #tpu.memory_space<vmem>>, vector<1x8x512xf32>
    %314 = vector.shape_cast %313 : vector<1x8x512xf32> to vector<8x512xf32>
    %cst_80 = arith.constant dense<0.000000e+00> : vector<8x512xf32>
    %315 = tpu.matmul %307, %3, %cst_80 {dimension_numbers = #tpu.dot_dimension_numbers<[1], [0], [0], [1], [0, 0, 1, 1], [], []>} : vector<8x128xf32>, vector<128x512xf32>, vector<8x512xf32> -> vector<8x512xf32>
    %316 = arith.addf %314, %315 : vector<8x512xf32>
    %317 = vector.extract_strided_slice %316 {offsets = [0, 0], sizes = [8, 128], strides = [1, 1]} : vector<8x512xf32> to vector<8x128xf32>
    %318 = arith.negf %317 : vector<8x128xf32>
    %319 = math.exp %318 : vector<8x128xf32>
    %cst_81 = arith.constant 1.000000e+00 : f32
    %320 = vector.broadcast %cst_81 : f32 to vector<8x128xf32>
    %321 = arith.addf %320, %319 : vector<8x128xf32>
    %322 = arith.divf %320, %321 : vector<8x128xf32>
    %323 = vector.extract_strided_slice %316 {offsets = [0, 128], sizes = [8, 128], strides = [1, 1]} : vector<8x512xf32> to vector<8x128xf32>
    %324 = arith.negf %323 : vector<8x128xf32>
    %325 = math.exp %324 : vector<8x128xf32>
    %cst_82 = arith.constant 1.000000e+00 : f32
    %326 = vector.broadcast %cst_82 : f32 to vector<8x128xf32>
    %327 = arith.addf %326, %325 : vector<8x128xf32>
    %328 = arith.divf %326, %327 : vector<8x128xf32>
    %329 = vector.extract_strided_slice %316 {offsets = [0, 256], sizes = [8, 128], strides = [1, 1]} : vector<8x512xf32> to vector<8x128xf32>
    %330 = math.tanh %329 : vector<8x128xf32>
    %331 = vector.extract_strided_slice %316 {offsets = [0, 384], sizes = [8, 128], strides = [1, 1]} : vector<8x512xf32> to vector<8x128xf32>
    %332 = arith.negf %331 : vector<8x128xf32>
    %333 = math.exp %332 : vector<8x128xf32>
    %cst_83 = arith.constant 1.000000e+00 : f32
    %334 = vector.broadcast %cst_83 : f32 to vector<8x128xf32>
    %335 = arith.addf %334, %333 : vector<8x128xf32>
    %336 = arith.divf %334, %335 : vector<8x128xf32>
    %337 = arith.mulf %328, %305 : vector<8x128xf32>
    %338 = arith.mulf %322, %330 : vector<8x128xf32>
    %339 = arith.addf %337, %338 : vector<8x128xf32>
    %340 = math.tanh %339 : vector<8x128xf32>
    %341 = arith.mulf %336, %340 : vector<8x128xf32>
    %342 = arith.index_cast %c9_i32 : i32 to index
    %c0_84 = arith.constant 0 : index
    %c0_85 = arith.constant 0 : index
    %343 = vector.load %arg6[%342, %c0_84, %c0_85] : memref<16x8x128xf32, #tpu.memory_space<vmem>>, vector<1x8x128xf32>
    %344 = vector.shape_cast %343 : vector<1x8x128xf32> to vector<8x128xf32>
    %345 = vector.shape_cast %341 : vector<8x128xf32> to vector<1x8x128xf32>
    tpu.vector_store %arg6[%342, %c0_84, %c0_85], %345 {strides = array<i32>} : memref<16x8x128xf32, #tpu.memory_space<vmem>>, vector<1x8x128xf32>,
    %c10_i32 = arith.constant 10 : i32
    %346 = arith.index_cast %c10_i32 : i32 to index
    %c0_86 = arith.constant 0 : index
    %c0_87 = arith.constant 0 : index
    %347 = vector.load %arg2[%346, %c0_86, %c0_87] : memref<16x8x512xf32, #tpu.memory_space<vmem>>, vector<1x8x512xf32>
    %348 = vector.shape_cast %347 : vector<1x8x512xf32> to vector<8x512xf32>
    %cst_88 = arith.constant dense<0.000000e+00> : vector<8x512xf32>
    %349 = tpu.matmul %341, %3, %cst_88 {dimension_numbers = #tpu.dot_dimension_numbers<[1], [0], [0], [1], [0, 0, 1, 1], [], []>} : vector<8x128xf32>, vector<128x512xf32>, vector<8x512xf32> -> vector<8x512xf32>
    %350 = arith.addf %348, %349 : vector<8x512xf32>
    %351 = vector.extract_strided_slice %350 {offsets = [0, 0], sizes = [8, 128], strides = [1, 1]} : vector<8x512xf32> to vector<8x128xf32>
    %352 = arith.negf %351 : vector<8x128xf32>
    %353 = math.exp %352 : vector<8x128xf32>
    %cst_89 = arith.constant 1.000000e+00 : f32
    %354 = vector.broadcast %cst_89 : f32 to vector<8x128xf32>
    %355 = arith.addf %354, %353 : vector<8x128xf32>
    %356 = arith.divf %354, %355 : vector<8x128xf32>
    %357 = vector.extract_strided_slice %350 {offsets = [0, 128], sizes = [8, 128], strides = [1, 1]} : vector<8x512xf32> to vector<8x128xf32>
    %358 = arith.negf %357 : vector<8x128xf32>
    %359 = math.exp %358 : vector<8x128xf32>
    %cst_90 = arith.constant 1.000000e+00 : f32
    %360 = vector.broadcast %cst_90 : f32 to vector<8x128xf32>
    %361 = arith.addf %360, %359 : vector<8x128xf32>
    %362 = arith.divf %360, %361 : vector<8x128xf32>
    %363 = vector.extract_strided_slice %350 {offsets = [0, 256], sizes = [8, 128], strides = [1, 1]} : vector<8x512xf32> to vector<8x128xf32>
    %364 = math.tanh %363 : vector<8x128xf32>
    %365 = vector.extract_strided_slice %350 {offsets = [0, 384], sizes = [8, 128], strides = [1, 1]} : vector<8x512xf32> to vector<8x128xf32>
    %366 = arith.negf %365 : vector<8x128xf32>
    %367 = math.exp %366 : vector<8x128xf32>
    %cst_91 = arith.constant 1.000000e+00 : f32
    %368 = vector.broadcast %cst_91 : f32 to vector<8x128xf32>
    %369 = arith.addf %368, %367 : vector<8x128xf32>
    %370 = arith.divf %368, %369 : vector<8x128xf32>
    %371 = arith.mulf %362, %339 : vector<8x128xf32>
    %372 = arith.mulf %356, %364 : vector<8x128xf32>
    %373 = arith.addf %371, %372 : vector<8x128xf32>
    %374 = math.tanh %373 : vector<8x128xf32>
    %375 = arith.mulf %370, %374 : vector<8x128xf32>
    %376 = arith.index_cast %c10_i32 : i32 to index
    %c0_92 = arith.constant 0 : index
    %c0_93 = arith.constant 0 : index
    %377 = vector.load %arg6[%376, %c0_92, %c0_93] : memref<16x8x128xf32, #tpu.memory_space<vmem>>, vector<1x8x128xf32>
    %378 = vector.shape_cast %377 : vector<1x8x128xf32> to vector<8x128xf32>
    %379 = vector.shape_cast %375 : vector<8x128xf32> to vector<1x8x128xf32>
    tpu.vector_store %arg6[%376, %c0_92, %c0_93], %379 {strides = array<i32>} : memref<16x8x128xf32, #tpu.memory_space<vmem>>, vector<1x8x128xf32>,
    %c11_i32 = arith.constant 11 : i32
    %380 = arith.index_cast %c11_i32 : i32 to index
    %c0_94 = arith.constant 0 : index
    %c0_95 = arith.constant 0 : index
    %381 = vector.load %arg2[%380, %c0_94, %c0_95] : memref<16x8x512xf32, #tpu.memory_space<vmem>>, vector<1x8x512xf32>
    %382 = vector.shape_cast %381 : vector<1x8x512xf32> to vector<8x512xf32>
    %cst_96 = arith.constant dense<0.000000e+00> : vector<8x512xf32>
    %383 = tpu.matmul %375, %3, %cst_96 {dimension_numbers = #tpu.dot_dimension_numbers<[1], [0], [0], [1], [0, 0, 1, 1], [], []>} : vector<8x128xf32>, vector<128x512xf32>, vector<8x512xf32> -> vector<8x512xf32>
    %384 = arith.addf %382, %383 : vector<8x512xf32>
    %385 = vector.extract_strided_slice %384 {offsets = [0, 0], sizes = [8, 128], strides = [1, 1]} : vector<8x512xf32> to vector<8x128xf32>
    %386 = arith.negf %385 : vector<8x128xf32>
    %387 = math.exp %386 : vector<8x128xf32>
    %cst_97 = arith.constant 1.000000e+00 : f32
    %388 = vector.broadcast %cst_97 : f32 to vector<8x128xf32>
    %389 = arith.addf %388, %387 : vector<8x128xf32>
    %390 = arith.divf %388, %389 : vector<8x128xf32>
    %391 = vector.extract_strided_slice %384 {offsets = [0, 128], sizes = [8, 128], strides = [1, 1]} : vector<8x512xf32> to vector<8x128xf32>
    %392 = arith.negf %391 : vector<8x128xf32>
    %393 = math.exp %392 : vector<8x128xf32>
    %cst_98 = arith.constant 1.000000e+00 : f32
    %394 = vector.broadcast %cst_98 : f32 to vector<8x128xf32>
    %395 = arith.addf %394, %393 : vector<8x128xf32>
    %396 = arith.divf %394, %395 : vector<8x128xf32>
    %397 = vector.extract_strided_slice %384 {offsets = [0, 256], sizes = [8, 128], strides = [1, 1]} : vector<8x512xf32> to vector<8x128xf32>
    %398 = math.tanh %397 : vector<8x128xf32>
    %399 = vector.extract_strided_slice %384 {offsets = [0, 384], sizes = [8, 128], strides = [1, 1]} : vector<8x512xf32> to vector<8x128xf32>
    %400 = arith.negf %399 : vector<8x128xf32>
    %401 = math.exp %400 : vector<8x128xf32>
    %cst_99 = arith.constant 1.000000e+00 : f32
    %402 = vector.broadcast %cst_99 : f32 to vector<8x128xf32>
    %403 = arith.addf %402, %401 : vector<8x128xf32>
    %404 = arith.divf %402, %403 : vector<8x128xf32>
    %405 = arith.mulf %396, %373 : vector<8x128xf32>
    %406 = arith.mulf %390, %398 : vector<8x128xf32>
    %407 = arith.addf %405, %406 : vector<8x128xf32>
    %408 = math.tanh %407 : vector<8x128xf32>
    %409 = arith.mulf %404, %408 : vector<8x128xf32>
    %410 = arith.index_cast %c11_i32 : i32 to index
    %c0_100 = arith.constant 0 : index
    %c0_101 = arith.constant 0 : index
    %411 = vector.load %arg6[%410, %c0_100, %c0_101] : memref<16x8x128xf32, #tpu.memory_space<vmem>>, vector<1x8x128xf32>
    %412 = vector.shape_cast %411 : vector<1x8x128xf32> to vector<8x128xf32>
    %413 = vector.shape_cast %409 : vector<8x128xf32> to vector<1x8x128xf32>
    tpu.vector_store %arg6[%410, %c0_100, %c0_101], %413 {strides = array<i32>} : memref<16x8x128xf32, #tpu.memory_space<vmem>>, vector<1x8x128xf32>,
    %c12_i32 = arith.constant 12 : i32
    %414 = arith.index_cast %c12_i32 : i32 to index
    %c0_102 = arith.constant 0 : index
    %c0_103 = arith.constant 0 : index
    %415 = vector.load %arg2[%414, %c0_102, %c0_103] : memref<16x8x512xf32, #tpu.memory_space<vmem>>, vector<1x8x512xf32>
    %416 = vector.shape_cast %415 : vector<1x8x512xf32> to vector<8x512xf32>
    %cst_104 = arith.constant dense<0.000000e+00> : vector<8x512xf32>
    %417 = tpu.matmul %409, %3, %cst_104 {dimension_numbers = #tpu.dot_dimension_numbers<[1], [0], [0], [1], [0, 0, 1, 1], [], []>} : vector<8x128xf32>, vector<128x512xf32>, vector<8x512xf32> -> vector<8x512xf32>
    %418 = arith.addf %416, %417 : vector<8x512xf32>
    %419 = vector.extract_strided_slice %418 {offsets = [0, 0], sizes = [8, 128], strides = [1, 1]} : vector<8x512xf32> to vector<8x128xf32>
    %420 = arith.negf %419 : vector<8x128xf32>
    %421 = math.exp %420 : vector<8x128xf32>
    %cst_105 = arith.constant 1.000000e+00 : f32
    %422 = vector.broadcast %cst_105 : f32 to vector<8x128xf32>
    %423 = arith.addf %422, %421 : vector<8x128xf32>
    %424 = arith.divf %422, %423 : vector<8x128xf32>
    %425 = vector.extract_strided_slice %418 {offsets = [0, 128], sizes = [8, 128], strides = [1, 1]} : vector<8x512xf32> to vector<8x128xf32>
    %426 = arith.negf %425 : vector<8x128xf32>
    %427 = math.exp %426 : vector<8x128xf32>
    %cst_106 = arith.constant 1.000000e+00 : f32
    %428 = vector.broadcast %cst_106 : f32 to vector<8x128xf32>
    %429 = arith.addf %428, %427 : vector<8x128xf32>
    %430 = arith.divf %428, %429 : vector<8x128xf32>
    %431 = vector.extract_strided_slice %418 {offsets = [0, 256], sizes = [8, 128], strides = [1, 1]} : vector<8x512xf32> to vector<8x128xf32>
    %432 = math.tanh %431 : vector<8x128xf32>
    %433 = vector.extract_strided_slice %418 {offsets = [0, 384], sizes = [8, 128], strides = [1, 1]} : vector<8x512xf32> to vector<8x128xf32>
    %434 = arith.negf %433 : vector<8x128xf32>
    %435 = math.exp %434 : vector<8x128xf32>
    %cst_107 = arith.constant 1.000000e+00 : f32
    %436 = vector.broadcast %cst_107 : f32 to vector<8x128xf32>
    %437 = arith.addf %436, %435 : vector<8x128xf32>
    %438 = arith.divf %436, %437 : vector<8x128xf32>
    %439 = arith.mulf %430, %407 : vector<8x128xf32>
    %440 = arith.mulf %424, %432 : vector<8x128xf32>
    %441 = arith.addf %439, %440 : vector<8x128xf32>
    %442 = math.tanh %441 : vector<8x128xf32>
    %443 = arith.mulf %438, %442 : vector<8x128xf32>
    %444 = arith.index_cast %c12_i32 : i32 to index
    %c0_108 = arith.constant 0 : index
    %c0_109 = arith.constant 0 : index
    %445 = vector.load %arg6[%444, %c0_108, %c0_109] : memref<16x8x128xf32, #tpu.memory_space<vmem>>, vector<1x8x128xf32>
    %446 = vector.shape_cast %445 : vector<1x8x128xf32> to vector<8x128xf32>
    %447 = vector.shape_cast %443 : vector<8x128xf32> to vector<1x8x128xf32>
    tpu.vector_store %arg6[%444, %c0_108, %c0_109], %447 {strides = array<i32>} : memref<16x8x128xf32, #tpu.memory_space<vmem>>, vector<1x8x128xf32>,
    %c13_i32 = arith.constant 13 : i32
    %448 = arith.index_cast %c13_i32 : i32 to index
    %c0_110 = arith.constant 0 : index
    %c0_111 = arith.constant 0 : index
    %449 = vector.load %arg2[%448, %c0_110, %c0_111] : memref<16x8x512xf32, #tpu.memory_space<vmem>>, vector<1x8x512xf32>
    %450 = vector.shape_cast %449 : vector<1x8x512xf32> to vector<8x512xf32>
    %cst_112 = arith.constant dense<0.000000e+00> : vector<8x512xf32>
    %451 = tpu.matmul %443, %3, %cst_112 {dimension_numbers = #tpu.dot_dimension_numbers<[1], [0], [0], [1], [0, 0, 1, 1], [], []>} : vector<8x128xf32>, vector<128x512xf32>, vector<8x512xf32> -> vector<8x512xf32>
    %452 = arith.addf %450, %451 : vector<8x512xf32>
    %453 = vector.extract_strided_slice %452 {offsets = [0, 0], sizes = [8, 128], strides = [1, 1]} : vector<8x512xf32> to vector<8x128xf32>
    %454 = arith.negf %453 : vector<8x128xf32>
    %455 = math.exp %454 : vector<8x128xf32>
    %cst_113 = arith.constant 1.000000e+00 : f32
    %456 = vector.broadcast %cst_113 : f32 to vector<8x128xf32>
    %457 = arith.addf %456, %455 : vector<8x128xf32>
    %458 = arith.divf %456, %457 : vector<8x128xf32>
    %459 = vector.extract_strided_slice %452 {offsets = [0, 128], sizes = [8, 128], strides = [1, 1]} : vector<8x512xf32> to vector<8x128xf32>
    %460 = arith.negf %459 : vector<8x128xf32>
    %461 = math.exp %460 : vector<8x128xf32>
    %cst_114 = arith.constant 1.000000e+00 : f32
    %462 = vector.broadcast %cst_114 : f32 to vector<8x128xf32>
    %463 = arith.addf %462, %461 : vector<8x128xf32>
    %464 = arith.divf %462, %463 : vector<8x128xf32>
    %465 = vector.extract_strided_slice %452 {offsets = [0, 256], sizes = [8, 128], strides = [1, 1]} : vector<8x512xf32> to vector<8x128xf32>
    %466 = math.tanh %465 : vector<8x128xf32>
    %467 = vector.extract_strided_slice %452 {offsets = [0, 384], sizes = [8, 128], strides = [1, 1]} : vector<8x512xf32> to vector<8x128xf32>
    %468 = arith.negf %467 : vector<8x128xf32>
    %469 = math.exp %468 : vector<8x128xf32>
    %cst_115 = arith.constant 1.000000e+00 : f32
    %470 = vector.broadcast %cst_115 : f32 to vector<8x128xf32>
    %471 = arith.addf %470, %469 : vector<8x128xf32>
    %472 = arith.divf %470, %471 : vector<8x128xf32>
    %473 = arith.mulf %464, %441 : vector<8x128xf32>
    %474 = arith.mulf %458, %466 : vector<8x128xf32>
    %475 = arith.addf %473, %474 : vector<8x128xf32>
    %476 = math.tanh %475 : vector<8x128xf32>
    %477 = arith.mulf %472, %476 : vector<8x128xf32>
    %478 = arith.index_cast %c13_i32 : i32 to index
    %c0_116 = arith.constant 0 : index
    %c0_117 = arith.constant 0 : index
    %479 = vector.load %arg6[%478, %c0_116, %c0_117] : memref<16x8x128xf32, #tpu.memory_space<vmem>>, vector<1x8x128xf32>
    %480 = vector.shape_cast %479 : vector<1x8x128xf32> to vector<8x128xf32>
    %481 = vector.shape_cast %477 : vector<8x128xf32> to vector<1x8x128xf32>
    tpu.vector_store %arg6[%478, %c0_116, %c0_117], %481 {strides = array<i32>} : memref<16x8x128xf32, #tpu.memory_space<vmem>>, vector<1x8x128xf32>,
    %c14_i32 = arith.constant 14 : i32
    %482 = arith.index_cast %c14_i32 : i32 to index
    %c0_118 = arith.constant 0 : index
    %c0_119 = arith.constant 0 : index
    %483 = vector.load %arg2[%482, %c0_118, %c0_119] : memref<16x8x512xf32, #tpu.memory_space<vmem>>, vector<1x8x512xf32>
    %484 = vector.shape_cast %483 : vector<1x8x512xf32> to vector<8x512xf32>
    %cst_120 = arith.constant dense<0.000000e+00> : vector<8x512xf32>
    %485 = tpu.matmul %477, %3, %cst_120 {dimension_numbers = #tpu.dot_dimension_numbers<[1], [0], [0], [1], [0, 0, 1, 1], [], []>} : vector<8x128xf32>, vector<128x512xf32>, vector<8x512xf32> -> vector<8x512xf32>
    %486 = arith.addf %484, %485 : vector<8x512xf32>
    %487 = vector.extract_strided_slice %486 {offsets = [0, 0], sizes = [8, 128], strides = [1, 1]} : vector<8x512xf32> to vector<8x128xf32>
    %488 = arith.negf %487 : vector<8x128xf32>
    %489 = math.exp %488 : vector<8x128xf32>
    %cst_121 = arith.constant 1.000000e+00 : f32
    %490 = vector.broadcast %cst_121 : f32 to vector<8x128xf32>
    %491 = arith.addf %490, %489 : vector<8x128xf32>
    %492 = arith.divf %490, %491 : vector<8x128xf32>
    %493 = vector.extract_strided_slice %486 {offsets = [0, 128], sizes = [8, 128], strides = [1, 1]} : vector<8x512xf32> to vector<8x128xf32>
    %494 = arith.negf %493 : vector<8x128xf32>
    %495 = math.exp %494 : vector<8x128xf32>
    %cst_122 = arith.constant 1.000000e+00 : f32
    %496 = vector.broadcast %cst_122 : f32 to vector<8x128xf32>
    %497 = arith.addf %496, %495 : vector<8x128xf32>
    %498 = arith.divf %496, %497 : vector<8x128xf32>
    %499 = vector.extract_strided_slice %486 {offsets = [0, 256], sizes = [8, 128], strides = [1, 1]} : vector<8x512xf32> to vector<8x128xf32>
    %500 = math.tanh %499 : vector<8x128xf32>
    %501 = vector.extract_strided_slice %486 {offsets = [0, 384], sizes = [8, 128], strides = [1, 1]} : vector<8x512xf32> to vector<8x128xf32>
    %502 = arith.negf %501 : vector<8x128xf32>
    %503 = math.exp %502 : vector<8x128xf32>
    %cst_123 = arith.constant 1.000000e+00 : f32
    %504 = vector.broadcast %cst_123 : f32 to vector<8x128xf32>
    %505 = arith.addf %504, %503 : vector<8x128xf32>
    %506 = arith.divf %504, %505 : vector<8x128xf32>
    %507 = arith.mulf %498, %475 : vector<8x128xf32>
    %508 = arith.mulf %492, %500 : vector<8x128xf32>
    %509 = arith.addf %507, %508 : vector<8x128xf32>
    %510 = math.tanh %509 : vector<8x128xf32>
    %511 = arith.mulf %506, %510 : vector<8x128xf32>
    %512 = arith.index_cast %c14_i32 : i32 to index
    %c0_124 = arith.constant 0 : index
    %c0_125 = arith.constant 0 : index
    %513 = vector.load %arg6[%512, %c0_124, %c0_125] : memref<16x8x128xf32, #tpu.memory_space<vmem>>, vector<1x8x128xf32>
    %514 = vector.shape_cast %513 : vector<1x8x128xf32> to vector<8x128xf32>
    %515 = vector.shape_cast %511 : vector<8x128xf32> to vector<1x8x128xf32>
    tpu.vector_store %arg6[%512, %c0_124, %c0_125], %515 {strides = array<i32>} : memref<16x8x128xf32, #tpu.memory_space<vmem>>, vector<1x8x128xf32>,
    %c15_i32 = arith.constant 15 : i32
    %516 = arith.index_cast %c15_i32 : i32 to index
    %c0_126 = arith.constant 0 : index
    %c0_127 = arith.constant 0 : index
    %517 = vector.load %arg2[%516, %c0_126, %c0_127] : memref<16x8x512xf32, #tpu.memory_space<vmem>>, vector<1x8x512xf32>
    %518 = vector.shape_cast %517 : vector<1x8x512xf32> to vector<8x512xf32>
    %cst_128 = arith.constant dense<0.000000e+00> : vector<8x512xf32>
    %519 = tpu.matmul %511, %3, %cst_128 {dimension_numbers = #tpu.dot_dimension_numbers<[1], [0], [0], [1], [0, 0, 1, 1], [], []>} : vector<8x128xf32>, vector<128x512xf32>, vector<8x512xf32> -> vector<8x512xf32>
    %520 = arith.addf %518, %519 : vector<8x512xf32>
    %521 = vector.extract_strided_slice %520 {offsets = [0, 0], sizes = [8, 128], strides = [1, 1]} : vector<8x512xf32> to vector<8x128xf32>
    %522 = arith.negf %521 : vector<8x128xf32>
    %523 = math.exp %522 : vector<8x128xf32>
    %cst_129 = arith.constant 1.000000e+00 : f32
    %524 = vector.broadcast %cst_129 : f32 to vector<8x128xf32>
    %525 = arith.addf %524, %523 : vector<8x128xf32>
    %526 = arith.divf %524, %525 : vector<8x128xf32>
    %527 = vector.extract_strided_slice %520 {offsets = [0, 128], sizes = [8, 128], strides = [1, 1]} : vector<8x512xf32> to vector<8x128xf32>
    %528 = arith.negf %527 : vector<8x128xf32>
    %529 = math.exp %528 : vector<8x128xf32>
    %cst_130 = arith.constant 1.000000e+00 : f32
    %530 = vector.broadcast %cst_130 : f32 to vector<8x128xf32>
    %531 = arith.addf %530, %529 : vector<8x128xf32>
    %532 = arith.divf %530, %531 : vector<8x128xf32>
    %533 = vector.extract_strided_slice %520 {offsets = [0, 256], sizes = [8, 128], strides = [1, 1]} : vector<8x512xf32> to vector<8x128xf32>
    %534 = math.tanh %533 : vector<8x128xf32>
    %535 = vector.extract_strided_slice %520 {offsets = [0, 384], sizes = [8, 128], strides = [1, 1]} : vector<8x512xf32> to vector<8x128xf32>
    %536 = arith.negf %535 : vector<8x128xf32>
    %537 = math.exp %536 : vector<8x128xf32>
    %cst_131 = arith.constant 1.000000e+00 : f32
    %538 = vector.broadcast %cst_131 : f32 to vector<8x128xf32>
    %539 = arith.addf %538, %537 : vector<8x128xf32>
    %540 = arith.divf %538, %539 : vector<8x128xf32>
    %541 = arith.mulf %532, %509 : vector<8x128xf32>
    %542 = arith.mulf %526, %534 : vector<8x128xf32>
    %543 = arith.addf %541, %542 : vector<8x128xf32>
    %544 = math.tanh %543 : vector<8x128xf32>
    %545 = arith.mulf %540, %544 : vector<8x128xf32>
    %546 = arith.index_cast %c15_i32 : i32 to index
    %c0_132 = arith.constant 0 : index
    %c0_133 = arith.constant 0 : index
    %547 = vector.load %arg6[%546, %c0_132, %c0_133] : memref<16x8x128xf32, #tpu.memory_space<vmem>>, vector<1x8x128xf32>
    %548 = vector.shape_cast %547 : vector<1x8x128xf32> to vector<8x128xf32>
    %549 = vector.shape_cast %545 : vector<8x128xf32> to vector<1x8x128xf32>
    tpu.vector_store %arg6[%546, %c0_132, %c0_133], %549 {strides = array<i32>} : memref<16x8x128xf32, #tpu.memory_space<vmem>>, vector<1x8x128xf32>,
    %c16_i32 = arith.constant 16 : i32
    %c0_134 = arith.constant 0 : index
    %c0_135 = arith.constant 0 : index
    %550 = vector.load %arg9[%c0_134, %c0_135] : memref<8x128xf32, #tpu.memory_space<vmem>>, vector<8x128xf32>
    tpu.vector_store %arg9[%c0_134, %c0_135], %545 {strides = array<i32>} : memref<8x128xf32, #tpu.memory_space<vmem>>, vector<8x128xf32>,
    %c0_136 = arith.constant 0 : index
    %c0_137 = arith.constant 0 : index
    %551 = vector.load %arg10[%c0_136, %c0_137] : memref<8x128xf32, #tpu.memory_space<vmem>>, vector<8x128xf32>
    tpu.vector_store %arg10[%c0_136, %c0_137], %543 {strides = array<i32>} : memref<8x128xf32, #tpu.memory_space<vmem>>, vector<8x128xf32>,
    %c0_i32_138 = arith.constant 0 : i32
    %552 = arith.cmpi eq, %arg1, %c0_i32_138 : i32
    %553 = arith.extui %552 : i1 to i32
    %c0_i32_139 = arith.constant 0 : i32
    %554 = arith.cmpi ne, %553, %c0_i32_139 : i32
    scf.if %554 {
      %c0_140 = arith.constant 0 : index
      %c0_141 = arith.constant 0 : index
      %555 = vector.load %arg7[%c0_140, %c0_141] : memref<8x128xf32, #tpu.memory_space<vmem>>, vector<8x128xf32>
      tpu.vector_store %arg7[%c0_140, %c0_141], %545 {strides = array<i32>} : memref<8x128xf32, #tpu.memory_space<vmem>>, vector<8x128xf32>,
      %c0_142 = arith.constant 0 : index
      %c0_143 = arith.constant 0 : index
      %556 = vector.load %arg8[%c0_142, %c0_143] : memref<8x128xf32, #tpu.memory_space<vmem>>, vector<8x128xf32>
      tpu.vector_store %arg8[%c0_142, %c0_143], %543 {strides = array<i32>} : memref<8x128xf32, #tpu.memory_space<vmem>>, vector<8x128xf32>,
    } else {
    }
    return
  }
  func.func @transform_0(%arg0: i32, %arg1: i32) -> (i32, i32, i32) {
    %c0_i32 = arith.constant 0 : i32
    %c0_i32_0 = arith.constant 0 : i32
    return %arg1, %arg0, %c0_i32 : i32, i32, i32
  }
  func.func @transform_1(%arg0: i32, %arg1: i32) -> (i32, i32) {
    %c0_i32 = arith.constant 0 : i32
    %c0_i32_0 = arith.constant 0 : i32
    %c0_i32_1 = arith.constant 0 : i32
    return %c0_i32, %c0_i32_0 : i32, i32
  }
  func.func @transform_2(%arg0: i32, %arg1: i32) -> (i32, i32) {
    %c0_i32 = arith.constant 0 : i32
    %c0_i32_0 = arith.constant 0 : i32
    return %arg0, %c0_i32 : i32, i32
  }
  func.func @transform_3(%arg0: i32, %arg1: i32) -> (i32, i32) {
    %c0_i32 = arith.constant 0 : i32
    %c0_i32_0 = arith.constant 0 : i32
    return %arg0, %c0_i32 : i32, i32
  }
  func.func @transform_4(%arg0: i32, %arg1: i32) -> (i32, i32, i32) {
    %c0_i32 = arith.constant 0 : i32
    %c0_i32_0 = arith.constant 0 : i32
    return %arg1, %arg0, %c0_i32 : i32, i32, i32
  }
  func.func @transform_5(%arg0: i32, %arg1: i32) -> (i32, i32) {
    %c0_i32 = arith.constant 0 : i32
    %c0_i32_0 = arith.constant 0 : i32
    return %arg0, %c0_i32 : i32, i32
  }
  func.func @transform_6(%arg0: i32, %arg1: i32) -> (i32, i32) {
    %c0_i32 = arith.constant 0 : i32
    %c0_i32_0 = arith.constant 0 : i32
    return %arg0, %c0_i32 : i32, i32
  }
}

</mosaic_0001>

<llo_original>
// kernel: rnn_model_forward.9
$region0: #{rnn_model_forward.9}
  #allocation0 [shape = 'u32[]', space=smem, size = 0x4, offset = 0x4, fixed_abs, tag = 'smem constant byte address 0x4 - core index']
  #allocation1 [shape = 'u32[144,128]{1,0:T(1,128)}', space=vmem, size = 0x12000, scoped, tag = 'internal scratch']
  %s0 = inlined_call_operand.hbm [shape: f32[128,128], index: 0, kind: input, shape index: {}]
  %s1 = inlined_call_operand.hbm [shape: f32[128,128], index: 1, kind: input, shape index: {}]
  %s2 = inlined_call_operand.hbm [shape: f32[1,128], index: 2, kind: input, shape index: {}]
  %s3 = inlined_call_operand.hbm [shape: f32[128,128], index: 3, kind: output, shape index: {}]
  %s4 = sld [smem:[#allocation0]]
  $region34: #{rnn_model_forward.9} parent=0
    _
  %s6 = ssub.s32 1, %s4
  %s7 = scalar_select 0, %s6, %s4
  $region1: #{rnn_model_forward.9} parent=0
    #allocation2 [shape = 'u8[65536]{0}', space=vmem, size = 0x10000, scoped, tag = 'input window, operand 0, single buffered']
    #allocation3 [shape = 's32[1]{0}', space=sflag, size = 0x4, scoped, tag = 'scoped memory for rnn_model_forward.9']
    #allocation4 [shape = 's32[1]{0}', space=sflag, size = 0x4, scoped, tag = 'scoped memory for rnn_model_forward.9']
    #allocation5 [shape = 'u8[65536]{0}', space=vmem, size = 0x10000, scoped, tag = 'input window, operand 1, single buffered']
    #allocation6 [shape = 's32[1]{0}', space=sflag, size = 0x4, scoped, tag = 'scoped memory for rnn_model_forward.9']
    #allocation7 [shape = 'u8[512]{0}', space=vmem, size = 0x400, scoped, tag = 'input window, operand 2, single buffered']
    #allocation8 [shape = 'u8[65536]{0}', space=vmem, size = 0x10000, scoped, tag = 'output window, operand 0, single buffered']
    %8 = vsyncpa [#allocation3], 0
    %9 = vsyncpa [#allocation6], 0
    %10 = vsyncpa [#allocation4], 0
    // Predicated region
    $region2: #{rnn_model_forward.9} parent=1 // pred_check
      _
    $region3: #{rnn_model_forward.9} parent=1 // pred_check_branch
      %12 = sbr.rel (0) target = $region5
    $region4: #{rnn_model_forward.9} parent=1 // pred_region
      %s14 = ssub.s32 2048, 2048
      %15 = vsyncadd [#allocation3], %s14
      %s16 = sshll.u32 [#allocation2], 4
      %s17 = int_to_ptr.vmem [resolvable:$true] %s16
      %22 = dma.hbm_to_vmem [thread:$0]  %s0, 2048, %s17, [#allocation3], 128, 128, 8
    $region5: #{rnn_model_forward.9} parent=1 // pred_fallthru
      _
    // Predicated region
    $region6: #{rnn_model_forward.9} parent=1 // pred_check
      _
    $region7: #{rnn_model_forward.9} parent=1 // pred_check_branch
      %24 = sbr.rel (0) target = $region9
    $region8: #{rnn_model_forward.9} parent=1 // pred_region
      %s26 = ssub.s32 2048, 2048
      %27 = vsyncadd [#allocation6], %s26
      %s28 = sshll.u32 [#allocation5], 4
      %s29 = int_to_ptr.vmem [resolvable:$true] %s28
      %34 = dma.hbm_to_vmem [thread:$0]  %s1, 2048, %s29, [#allocation6], 128, 128, 8
    $region9: #{rnn_model_forward.9} parent=1 // pred_fallthru
      _
    // Predicated region
    $region10: #{rnn_model_forward.9} parent=1 // pred_check
      _
    $region11: #{rnn_model_forward.9} parent=1 // pred_check_branch
      %36 = sbr.rel (0) target = $region13
    $region12: #{rnn_model_forward.9} parent=1 // pred_region
      %s38 = ssub.s32 16, 16
      %39 = vsyncadd [#allocation6], %s38
      %s41 = sshll.u32 [#allocation7], 4
      %s42 = int_to_ptr.vmem [resolvable:$true] %s41
      %44 = dma.hbm_to_vmem [thread:$0]  %s2, 16, %s42, [#allocation6]
    $region13: #{rnn_model_forward.9} parent=1 // pred_fallthru
      _
    // Predicated region
    $region14: #{rnn_model_forward.9} parent=1 // pred_check
      _
    $region15: #{rnn_model_forward.9} parent=1 // pred_check_branch
      %46 = sbr.rel (0) target = $region17
    $region16: #{rnn_model_forward.9} parent=1 // pred_region
      %47 = dma.done [#allocation3], 2048
    $region17: #{rnn_model_forward.9} parent=1 // pred_fallthru
      _
    // Predicated region
    $region18: #{rnn_model_forward.9} parent=1 // pred_check
      _
    $region19: #{rnn_model_forward.9} parent=1 // pred_check_branch
      %49 = sbr.rel (0) target = $region21
    $region20: #{rnn_model_forward.9} parent=1 // pred_region
      %50 = dma.done [#allocation6], 2048
    $region21: #{rnn_model_forward.9} parent=1 // pred_fallthru
      _
    // Predicated region
    $region22: #{rnn_model_forward.9} parent=1 // pred_check
      _
    $region23: #{rnn_model_forward.9} parent=1 // pred_check_branch
      %52 = sbr.rel (0) target = $region25
    $region24: #{rnn_model_forward.9} parent=1 // pred_region
      %53 = dma.done [#allocation6], 16
    $region25: #{rnn_model_forward.9} parent=1 // pred_fallthru
      _
    %v54 = vld [vmem:[#allocation2] sm:$0xff]
    %v55 = vld [vmem:[#allocation2 + $0x8] sm:$0xff]
    %v56 = vld [vmem:[#allocation2 + $0x10] sm:$0xff]
    %v57 = vld [vmem:[#allocation2 + $0x18] sm:$0xff]
    %v58 = vld [vmem:[#allocation2 + $0x20] sm:$0xff]
    %v59 = vld [vmem:[#allocation2 + $0x28] sm:$0xff]
    %v60 = vld [vmem:[#allocation2 + $0x30] sm:$0xff]
    %v61 = vld [vmem:[#allocation2 + $0x38] sm:$0xff]
    %v62 = vld [vmem:[#allocation2 + $0x40] sm:$0xff]
    %v63 = vld [vmem:[#allocation2 + $0x48] sm:$0xff]
    %v64 = vld [vmem:[#allocation2 + $0x50] sm:$0xff]
    %v65 = vld [vmem:[#allocation2 + $0x58] sm:$0xff]
    %v66 = vld [vmem:[#allocation2 + $0x60] sm:$0xff]
    %v67 = vld [vmem:[#allocation2 + $0x68] sm:$0xff]
    %v68 = vld [vmem:[#allocation2 + $0x70] sm:$0xff]
    %v69 = vld [vmem:[#allocation2 + $0x78] sm:$0xff]
    %v70 = vld [vmem:[#allocation5] sm:$0xff]
    %v71 = vld [vmem:[#allocation5 + $0x8] sm:$0xff]
    %v72 = vld [vmem:[#allocation5 + $0x10] sm:$0xff]
    %v73 = vld [vmem:[#allocation5 + $0x18] sm:$0xff]
    %v74 = vld [vmem:[#allocation5 + $0x20] sm:$0xff]
    %v75 = vld [vmem:[#allocation5 + $0x28] sm:$0xff]
    %v76 = vld [vmem:[#allocation5 + $0x30] sm:$0xff]
    %v77 = vld [vmem:[#allocation5 + $0x38] sm:$0xff]
    %v78 = vld [vmem:[#allocation5 + $0x40] sm:$0xff]
    %v79 = vld [vmem:[#allocation5 + $0x48] sm:$0xff]
    %v80 = vld [vmem:[#allocation5 + $0x50] sm:$0xff]
    %v81 = vld [vmem:[#allocation5 + $0x58] sm:$0xff]
    %v82 = vld [vmem:[#allocation5 + $0x60] sm:$0xff]
    %v83 = vld [vmem:[#allocation5 + $0x68] sm:$0xff]
    %v84 = vld [vmem:[#allocation5 + $0x70] sm:$0xff]
    %v85 = vld [vmem:[#allocation5 + $0x78] sm:$0xff]
    %v86 = vld [vmem:[#allocation7] sm:$0x1]
    %v88 = vlaneseq
    %v89 = vshrl.u32 %v88, 7
    %v90 = vsub.s32 0, %v89
    %v91 = vrot.slane %v86, %v90
    %93 = vmatprep.subr.mxu0 0.0
    %94 = vmatpush1.msra.mxu0 %v70
    %95 = vmatprep.subr.mxu0 0.0
    %96 = vmatpush1.msra.mxu0 %v71
    %97 = vmatprep.subr.mxu0 0.0
    %98 = vmatpush1.msra.mxu0 %v72
    %99 = vmatprep.subr.mxu0 0.0
    %100 = vmatpush1.msra.mxu0 %v73
    %101 = vmatprep.subr.mxu0 0.0
    %102 = vmatpush1.msra.mxu0 %v74
    %103 = vmatprep.subr.mxu0 0.0
    %104 = vmatpush1.msra.mxu0 %v75
    %105 = vmatprep.subr.mxu0 0.0
    %106 = vmatpush1.msra.mxu0 %v76
    %107 = vmatprep.subr.mxu0 0.0
    %108 = vmatpush1.msra.mxu0 %v77
    %109 = vmatprep.subr.mxu0 0.0
    %110 = vmatpush1.msra.mxu0 %v78
    %111 = vmatprep.subr.mxu0 0.0
    %112 = vmatpush1.msra.mxu0 %v79
    %113 = vmatprep.subr.mxu0 0.0
    %114 = vmatpush1.msra.mxu0 %v80
    %115 = vmatprep.subr.mxu0 0.0
    %116 = vmatpush1.msra.mxu0 %v81
    %117 = vmatprep.subr.mxu0 0.0
    %118 = vmatpush1.msra.mxu0 %v82
    %119 = vmatprep.subr.mxu0 0.0
    %120 = vmatpush1.msra.mxu0 %v83
    %121 = vmatprep.subr.mxu0 0.0
    %122 = vmatpush1.msra.mxu0 %v84
    %123 = vmatprep.subr.mxu0 0.0
    %124 = vmatpush1.msra.mxu0 %v85
    %125 = vmatprep.subr.mxu0 0.0
    %126 = vmatpush1.msra.mxu0 0.0
    %127 = vmatprep.subr.mxu0 0.0
    %128 = vmatpush1.msra.mxu0 0.0
    %129 = vmatprep.subr.mxu0 0.0
    %130 = vmatpush1.msra.mxu0 0.0
    %131 = vmatprep.subr.mxu0 0.0
    %132 = vmatpush1.msra.mxu0 0.0
    %133 = vmatprep.subr.mxu0 0.0
    %134 = vmatpush1.msra.mxu0 0.0
    %135 = vmatprep.subr.mxu0 0.0
    %136 = vmatpush1.msra.mxu0 0.0
    %137 = vmatprep.subr.mxu0 0.0
    %138 = vmatpush1.msra.mxu0 0.0
    %139 = vmatprep.subr.mxu0 0.0
    %140 = vmatpush1.msra.mxu0 0.0
    %141 = vmatprep.subr.mxu0 0.0
    %142 = vmatpush1.msra.mxu0 0.0
    %143 = vmatprep.subr.mxu0 0.0
    %144 = vmatpush1.msra.mxu0 0.0
    %145 = vmatprep.subr.mxu0 0.0
    %146 = vmatpush1.msra.mxu0 0.0
    %147 = vmatprep.subr.mxu0 0.0
    %148 = vmatpush1.msra.mxu0 0.0
    %149 = vmatprep.subr.mxu0 0.0
    %150 = vmatpush1.msra.mxu0 0.0
    %151 = vmatprep.subr.mxu0 0.0
    %152 = vmatpush1.msra.mxu0 0.0
    %153 = vmatprep.subr.mxu0 0.0
    %154 = vmatpush1.msra.mxu0 0.0
    %155 = vmatprep.subr.mxu0 0.0
    %156 = vmatpush1.msra.mxu0 0.0
    %157 = vmatprep.mubr.f32.mxu0 0.0
    %158 = vmatmul.mubr.f32.gmra.mrb[0].mxu0 %v54
    %v159 = vpop.f32.mrb[0].mxu0
    %v160 = vadd.f32 %v91, %v159
    %v161 = vpop.f32.mrb[0].mxu0
    %162 = vmatprep.mubr.f32.mxu0 0.0
    %163 = vmatmul.mubr.f32.gmra.mrb[0].mxu0 %v55
    %v164 = vpop.f32.mrb[0].mxu0
    %v165 = vadd.f32 %v91, %v164
    %v166 = vpop.f32.mrb[0].mxu0
    %167 = vmatprep.mubr.f32.mxu0 0.0
    %168 = vmatmul.mubr.f32.gmra.mrb[0].mxu0 %v56
    %v169 = vpop.f32.mrb[0].mxu0
    %v170 = vadd.f32 %v91, %v169
    %v171 = vpop.f32.mrb[0].mxu0
    %172 = vmatprep.mubr.f32.mxu0 0.0
    %173 = vmatmul.mubr.f32.gmra.mrb[0].mxu0 %v57
    %v174 = vpop.f32.mrb[0].mxu0
    %v175 = vadd.f32 %v91, %v174
    %v176 = vpop.f32.mrb[0].mxu0
    %177 = vmatprep.mubr.f32.mxu0 0.0
    %178 = vmatmul.mubr.f32.gmra.mrb[0].mxu0 %v58
    %v179 = vpop.f32.mrb[0].mxu0
    %v180 = vadd.f32 %v91, %v179
    %v181 = vpop.f32.mrb[0].mxu0
    %182 = vmatprep.mubr.f32.mxu0 0.0
    %183 = vmatmul.mubr.f32.gmra.mrb[0].mxu0 %v59
    %v184 = vpop.f32.mrb[0].mxu0
    %v185 = vadd.f32 %v91, %v184
    %v186 = vpop.f32.mrb[0].mxu0
    %187 = vmatprep.mubr.f32.mxu0 0.0
    %188 = vmatmul.mubr.f32.gmra.mrb[0].mxu0 %v60
    %v189 = vpop.f32.mrb[0].mxu0
    %v190 = vadd.f32 %v91, %v189
    %v191 = vpop.f32.mrb[0].mxu0
    %192 = vmatprep.mubr.f32.mxu0 0.0
    %193 = vmatmul.mubr.f32.gmra.mrb[0].mxu0 %v61
    %v194 = vpop.f32.mrb[0].mxu0
    %v195 = vadd.f32 %v91, %v194
    %v196 = vpop.f32.mrb[0].mxu0
    %197 = vmatprep.mubr.f32.mxu0 0.0
    %198 = vmatmul.mubr.f32.gmra.mrb[0].mxu0 %v62
    %v199 = vpop.f32.mrb[0].mxu0
    %v200 = vadd.f32 %v91, %v199
    %v201 = vpop.f32.mrb[0].mxu0
    %202 = vmatprep.mubr.f32.mxu0 0.0
    %203 = vmatmul.mubr.f32.gmra.mrb[0].mxu0 %v63
    %v204 = vpop.f32.mrb[0].mxu0
    %v205 = vadd.f32 %v91, %v204
    %v206 = vpop.f32.mrb[0].mxu0
    %207 = vmatprep.mubr.f32.mxu0 0.0
    %208 = vmatmul.mubr.f32.gmra.mrb[0].mxu0 %v64
    %v209 = vpop.f32.mrb[0].mxu0
    %v210 = vadd.f32 %v91, %v209
    %v211 = vpop.f32.mrb[0].mxu0
    %212 = vmatprep.mubr.f32.mxu0 0.0
    %213 = vmatmul.mubr.f32.gmra.mrb[0].mxu0 %v65
    %v214 = vpop.f32.mrb[0].mxu0
    %v215 = vadd.f32 %v91, %v214
    %v216 = vpop.f32.mrb[0].mxu0
    %217 = vmatprep.mubr.f32.mxu0 0.0
    %218 = vmatmul.mubr.f32.gmra.mrb[0].mxu0 %v66
    %v219 = vpop.f32.mrb[0].mxu0
    %v220 = vadd.f32 %v91, %v219
    %v221 = vpop.f32.mrb[0].mxu0
    %222 = vmatprep.mubr.f32.mxu0 0.0
    %223 = vmatmul.mubr.f32.gmra.mrb[0].mxu0 %v67
    %v224 = vpop.f32.mrb[0].mxu0
    %v225 = vadd.f32 %v91, %v224
    %v226 = vpop.f32.mrb[0].mxu0
    %227 = vmatprep.mubr.f32.mxu0 0.0
    %228 = vmatmul.mubr.f32.gmra.mrb[0].mxu0 %v68
    %v229 = vpop.f32.mrb[0].mxu0
    %v230 = vadd.f32 %v91, %v229
    %v231 = vpop.f32.mrb[0].mxu0
    %232 = vmatprep.mubr.f32.mxu0 0.0
    %233 = vmatmul.mubr.f32.gmra.mrb[0].mxu0 %v69
    %v234 = vpop.f32.mrb[0].mxu0
    %v235 = vadd.f32 %v91, %v234
    %v236 = vpop.f32.mrb[0].mxu0
    %237 = vdwg.mxu0
    %238 = vst [vmem:[#allocation8] sm:$0xff] %v160
    %239 = vst [vmem:[#allocation8 + $0x8] sm:$0xff] %v165
    %240 = vst [vmem:[#allocation8 + $0x10] sm:$0xff] %v170
    %241 = vst [vmem:[#allocation8 + $0x18] sm:$0xff] %v175
    %242 = vst [vmem:[#allocation8 + $0x20] sm:$0xff] %v180
    %243 = vst [vmem:[#allocation8 + $0x28] sm:$0xff] %v185
    %244 = vst [vmem:[#allocation8 + $0x30] sm:$0xff] %v190
    %245 = vst [vmem:[#allocation8 + $0x38] sm:$0xff] %v195
    %246 = vst [vmem:[#allocation8 + $0x40] sm:$0xff] %v200
    %247 = vst [vmem:[#allocation8 + $0x48] sm:$0xff] %v205
    %248 = vst [vmem:[#allocation8 + $0x50] sm:$0xff] %v210
    %249 = vst [vmem:[#allocation8 + $0x58] sm:$0xff] %v215
    %250 = vst [vmem:[#allocation8 + $0x60] sm:$0xff] %v220
    %251 = vst [vmem:[#allocation8 + $0x68] sm:$0xff] %v225
    %252 = vst [vmem:[#allocation8 + $0x70] sm:$0xff] %v230
    %253 = vst [vmem:[#allocation8 + $0x78] sm:$0xff] %v235
    // Predicated region
    $region26: #{rnn_model_forward.9} parent=1 // pred_check
      _
    $region27: #{rnn_model_forward.9} parent=1 // pred_check_branch
      %255 = sbr.rel (0) target = $region29
    $region28: #{rnn_model_forward.9} parent=1 // pred_region
      %s257 = ssub.s32 2048, 2048
      %258 = vsyncadd [#allocation4], %s257
      %s259 = sshll.u32 [#allocation8], 4
      %s260 = int_to_ptr.vmem [resolvable:$true] %s259
      %265 = dma.vmem_to_hbm [thread:$0]  %s260, 2048, %s3, [#allocation4], 128, 128, 8
    $region29: #{rnn_model_forward.9} parent=1 // pred_fallthru
      _
    // Predicated region
    $region30: #{rnn_model_forward.9} parent=1 // pred_check
      _
    $region31: #{rnn_model_forward.9} parent=1 // pred_check_branch
      %267 = sbr.rel (0) target = $region33
    $region32: #{rnn_model_forward.9} parent=1 // pred_region
      %268 = dma.done [#allocation4], 2048
    $region33: #{rnn_model_forward.9} parent=1 // pred_fallthru
      _
    %269 = vsyncpa [#allocation3], 1
    %270 = vsyncpa [#allocation6], 1
    %271 = vsyncpa [#allocation4], 1

// kernel: rnn_model_forward.5
$region0: #{rnn_model_forward.5}
  #allocation0 [shape = 'u32[]', space=smem, size = 0x4, offset = 0x4, fixed_abs, tag = 'smem constant byte address 0x4 - core index']
  #allocation1 [shape = 'u32[144,128]{1,0:T(1,128)}', space=vmem, size = 0x12000, scoped, tag = 'internal scratch']
  %s0 = inlined_call_operand.hbm [shape: f32[128,128], index: 0, kind: input, shape index: {}]
  %s1 = inlined_call_operand.hbm [shape: f32[128,512], index: 1, kind: input, shape index: {}]
  %s2 = inlined_call_operand.hbm [shape: f32[1,512], index: 2, kind: input, shape index: {}]
  %s3 = inlined_call_operand.hbm [shape: f32[128,512], index: 3, kind: output, shape index: {}]
  %s4 = sld [smem:[#allocation0]]
  $region34: #{rnn_model_forward.5} parent=0
    _
  %s6 = ssub.s32 1, %s4
  %s7 = scalar_select 0, %s6, %s4
  $region1: #{rnn_model_forward.5} parent=0
    #allocation2 [shape = 'u8[65536]{0}', space=vmem, size = 0x10000, scoped, tag = 'input window, operand 0, single buffered']
    #allocation3 [shape = 's32[1]{0}', space=sflag, size = 0x4, scoped, tag = 'scoped memory for rnn_model_forward.5']
    #allocation4 [shape = 's32[1]{0}', space=sflag, size = 0x4, scoped, tag = 'scoped memory for rnn_model_forward.5']
    #allocation5 [shape = 'u8[262144]{0}', space=vmem, size = 0x40000, scoped, tag = 'input window, operand 1, single buffered']
    #allocation6 [shape = 's32[1]{0}', space=sflag, size = 0x4, scoped, tag = 'scoped memory for rnn_model_forward.5']
    #allocation7 [shape = 'u8[2048]{0}', space=vmem, size = 0x800, scoped, tag = 'input window, operand 2, single buffered']
    #allocation8 [shape = 'u8[262144]{0}', space=vmem, size = 0x40000, scoped, tag = 'output window, operand 0, single buffered']
    %8 = vsyncpa [#allocation3], 0
    %9 = vsyncpa [#allocation6], 0
    %10 = vsyncpa [#allocation4], 0
    // Predicated region
    $region2: #{rnn_model_forward.5} parent=1 // pred_check
      _
    $region3: #{rnn_model_forward.5} parent=1 // pred_check_branch
      %12 = sbr.rel (0) target = $region5
    $region4: #{rnn_model_forward.5} parent=1 // pred_region
      %s14 = ssub.s32 2048, 2048
      %15 = vsyncadd [#allocation3], %s14
      %s16 = sshll.u32 [#allocation2], 4
      %s17 = int_to_ptr.vmem [resolvable:$true] %s16
      %22 = dma.hbm_to_vmem [thread:$0]  %s0, 2048, %s17, [#allocation3], 128, 128, 8
    $region5: #{rnn_model_forward.5} parent=1 // pred_fallthru
      _
    // Predicated region
    $region6: #{rnn_model_forward.5} parent=1 // pred_check
      _
    $region7: #{rnn_model_forward.5} parent=1 // pred_check_branch
      %24 = sbr.rel (0) target = $region9
    $region8: #{rnn_model_forward.5} parent=1 // pred_region
      %s26 = ssub.s32 8192, 8192
      %27 = vsyncadd [#allocation6], %s26
      %s28 = sshll.u32 [#allocation5], 4
      %s29 = int_to_ptr.vmem [resolvable:$true] %s28
      %34 = dma.hbm_to_vmem [thread:$0]  %s1, 8192, %s29, [#allocation6], 512, 512, 32
    $region9: #{rnn_model_forward.5} parent=1 // pred_fallthru
      _
    // Predicated region
    $region10: #{rnn_model_forward.5} parent=1 // pred_check
      _
    $region11: #{rnn_model_forward.5} parent=1 // pred_check_branch
      %36 = sbr.rel (0) target = $region13
    $region12: #{rnn_model_forward.5} parent=1 // pred_region
      %s38 = ssub.s32 64, 64
      %39 = vsyncadd [#allocation6], %s38
      %s41 = sshll.u32 [#allocation7], 4
      %s42 = int_to_ptr.vmem [resolvable:$true] %s41
      %44 = dma.hbm_to_vmem [thread:$0]  %s2, 64, %s42, [#allocation6]
    $region13: #{rnn_model_forward.5} parent=1 // pred_fallthru
      _
    // Predicated region
    $region14: #{rnn_model_forward.5} parent=1 // pred_check
      _
    $region15: #{rnn_model_forward.5} parent=1 // pred_check_branch
      %46 = sbr.rel (0) target = $region17
    $region16: #{rnn_model_forward.5} parent=1 // pred_region
      %47 = dma.done [#allocation3], 2048
    $region17: #{rnn_model_forward.5} parent=1 // pred_fallthru
      _
    // Predicated region
    $region18: #{rnn_model_forward.5} parent=1 // pred_check
      _
    $region19: #{rnn_model_forward.5} parent=1 // pred_check_branch
      %49 = sbr.rel (0) target = $region21
    $region20: #{rnn_model_forward.5} parent=1 // pred_region
      %50 = dma.done [#allocation6], 8192
    $region21: #{rnn_model_forward.5} parent=1 // pred_fallthru
      _
    // Predicated region
    $region22: #{rnn_model_forward.5} parent=1 // pred_check
      _
    $region23: #{rnn_model_forward.5} parent=1 // pred_check_branch
      %52 = sbr.rel (0) target = $region25
    $region24: #{rnn_model_forward.5} parent=1 // pred_region
      %53 = dma.done [#allocation6], 64
    $region25: #{rnn_model_forward.5} parent=1 // pred_fallthru
      _
    %v54 = vld [vmem:[#allocation2] sm:$0xff]
    %v55 = vld [vmem:[#allocation2 + $0x8] sm:$0xff]
    %v56 = vld [vmem:[#allocation2 + $0x10] sm:$0xff]
    %v57 = vld [vmem:[#allocation2 + $0x18] sm:$0xff]
    %v58 = vld [vmem:[#allocation2 + $0x20] sm:$0xff]
    %v59 = vld [vmem:[#allocation2 + $0x28] sm:$0xff]
    %v60 = vld [vmem:[#allocation2 + $0x30] sm:$0xff]
    %v61 = vld [vmem:[#allocation2 + $0x38] sm:$0xff]
    %v62 = vld [vmem:[#allocation2 + $0x40] sm:$0xff]
    %v63 = vld [vmem:[#allocation2 + $0x48] sm:$0xff]
    %v64 = vld [vmem:[#allocation2 + $0x50] sm:$0xff]
    %v65 = vld [vmem:[#allocation2 + $0x58] sm:$0xff]
    %v66 = vld [vmem:[#allocation2 + $0x60] sm:$0xff]
    %v67 = vld [vmem:[#allocation2 + $0x68] sm:$0xff]
    %v68 = vld [vmem:[#allocation2 + $0x70] sm:$0xff]
    %v69 = vld [vmem:[#allocation2 + $0x78] sm:$0xff]
    %v70 = vld [vmem:[#allocation5] sm:$0xff]
    %v71 = vld [vmem:[#allocation5 + $0x8] sm:$0xff]
    %v72 = vld [vmem:[#allocation5 + $0x10] sm:$0xff]
    %v73 = vld [vmem:[#allocation5 + $0x18] sm:$0xff]
    %v74 = vld [vmem:[#allocation5 + $0x20] sm:$0xff]
    %v75 = vld [vmem:[#allocation5 + $0x28] sm:$0xff]
    %v76 = vld [vmem:[#allocation5 + $0x30] sm:$0xff]
    %v77 = vld [vmem:[#allocation5 + $0x38] sm:$0xff]
    %v78 = vld [vmem:[#allocation5 + $0x40] sm:$0xff]
    %v79 = vld [vmem:[#allocation5 + $0x48] sm:$0xff]
    %v80 = vld [vmem:[#allocation5 + $0x50] sm:$0xff]
    %v81 = vld [vmem:[#allocation5 + $0x58] sm:$0xff]
    %v82 = vld [vmem:[#allocation5 + $0x60] sm:$0xff]
    %v83 = vld [vmem:[#allocation5 + $0x68] sm:$0xff]
    %v84 = vld [vmem:[#allocation5 + $0x70] sm:$0xff]
    %v85 = vld [vmem:[#allocation5 + $0x78] sm:$0xff]
    %v86 = vld [vmem:[#allocation5 + $0x80] sm:$0xff]
    %v87 = vld [vmem:[#allocation5 + $0x88] sm:$0xff]
    %v88 = vld [vmem:[#allocation5 + $0x90] sm:$0xff]
    %v89 = vld [vmem:[#allocation5 + $0x98] sm:$0xff]
    %v90 = vld [vmem:[#allocation5 + $0xa0] sm:$0xff]
    %v91 = vld [vmem:[#allocation5 + $0xa8] sm:$0xff]
    %v92 = vld [vmem:[#allocation5 + $0xb0] sm:$0xff]
    %v93 = vld [vmem:[#allocation5 + $0xb8] sm:$0xff]
    %v94 = vld [vmem:[#allocation5 + $0xc0] sm:$0xff]
    %v95 = vld [vmem:[#allocation5 + $0xc8] sm:$0xff]
    %v96 = vld [vmem:[#allocation5 + $0xd0] sm:$0xff]
    %v97 = vld [vmem:[#allocation5 + $0xd8] sm:$0xff]
    %v98 = vld [vmem:[#allocation5 + $0xe0] sm:$0xff]
    %v99 = vld [vmem:[#allocation5 + $0xe8] sm:$0xff]
    %v100 = vld [vmem:[#allocation5 + $0xf0] sm:$0xff]
    %v101 = vld [vmem:[#allocation5 + $0xf8] sm:$0xff]
    %v102 = vld [vmem:[#allocation5 + $0x100] sm:$0xff]
    %v103 = vld [vmem:[#allocation5 + $0x108] sm:$0xff]
    %v104 = vld [vmem:[#allocation5 + $0x110] sm:$0xff]
    %v105 = vld [vmem:[#allocation5 + $0x118] sm:$0xff]
    %v106 = vld [vmem:[#allocation5 + $0x120] sm:$0xff]
    %v107 = vld [vmem:[#allocation5 + $0x128] sm:$0xff]
    %v108 = vld [vmem:[#allocation5 + $0x130] sm:$0xff]
    %v109 = vld [vmem:[#allocation5 + $0x138] sm:$0xff]
    %v110 = vld [vmem:[#allocation5 + $0x140] sm:$0xff]
    %v111 = vld [vmem:[#allocation5 + $0x148] sm:$0xff]
    %v112 = vld [vmem:[#allocation5 + $0x150] sm:$0xff]
    %v113 = vld [vmem:[#allocation5 + $0x158] sm:$0xff]
    %v114 = vld [vmem:[#allocation5 + $0x160] sm:$0xff]
    %v115 = vld [vmem:[#allocation5 + $0x168] sm:$0xff]
    %v116 = vld [vmem:[#allocation5 + $0x170] sm:$0xff]
    %v117 = vld [vmem:[#allocation5 + $0x178] sm:$0xff]
    %v118 = vld [vmem:[#allocation5 + $0x180] sm:$0xff]
    %v119 = vld [vmem:[#allocation5 + $0x188] sm:$0xff]
    %v120 = vld [vmem:[#allocation5 + $0x190] sm:$0xff]
    %v121 = vld [vmem:[#allocation5 + $0x198] sm:$0xff]
    %v122 = vld [vmem:[#allocation5 + $0x1a0] sm:$0xff]
    %v123 = vld [vmem:[#allocation5 + $0x1a8] sm:$0xff]
    %v124 = vld [vmem:[#allocation5 + $0x1b0] sm:$0xff]
    %v125 = vld [vmem:[#allocation5 + $0x1b8] sm:$0xff]
    %v126 = vld [vmem:[#allocation5 + $0x1c0] sm:$0xff]
    %v127 = vld [vmem:[#allocation5 + $0x1c8] sm:$0xff]
    %v128 = vld [vmem:[#allocation5 + $0x1d0] sm:$0xff]
    %v129 = vld [vmem:[#allocation5 + $0x1d8] sm:$0xff]
    %v130 = vld [vmem:[#allocation5 + $0x1e0] sm:$0xff]
    %v131 = vld [vmem:[#allocation5 + $0x1e8] sm:$0xff]
    %v132 = vld [vmem:[#allocation5 + $0x1f0] sm:$0xff]
    %v133 = vld [vmem:[#allocation5 + $0x1f8] sm:$0xff]
    %v134 = vld [vmem:[#allocation7] sm:$0xf]
    %v136 = vlaneseq
    %v137 = vshrl.u32 %v136, 7
    %v138 = vsub.s32 0, %v137
    %v139 = vrot.slane %v134, %v138
    %v140 = vlaneseq
    %v141 = vshrl.u32 %v140, 7
    %v142 = vsub.s32 1, %v141
    %v143 = vrot.slane %v134, %v142
    %v144 = vlaneseq
    %v145 = vshrl.u32 %v144, 7
    %v146 = vsub.s32 2, %v145
    %v147 = vrot.slane %v134, %v146
    %v148 = vlaneseq
    %v149 = vshrl.u32 %v148, 7
    %v150 = vsub.s32 3, %v149
    %v151 = vrot.slane %v134, %v150
    %156 = vmatprep.subr.mxu0 %v71
    %157 = vmatpush1.msra.mxu0 %v70
    %158 = vmatprep.subr.mxu0 %v75
    %159 = vmatpush1.msra.mxu0 %v74
    %160 = vmatprep.subr.mxu0 %v79
    %161 = vmatpush1.msra.mxu0 %v78
    %162 = vmatprep.subr.mxu0 %v83
    %163 = vmatpush1.msra.mxu0 %v82
    %164 = vmatprep.subr.mxu0 %v87
    %165 = vmatpush1.msra.mxu0 %v86
    %166 = vmatprep.subr.mxu0 %v91
    %167 = vmatpush1.msra.mxu0 %v90
    %168 = vmatprep.subr.mxu0 %v95
    %169 = vmatpush1.msra.mxu0 %v94
    %170 = vmatprep.subr.mxu0 %v99
    %171 = vmatpush1.msra.mxu0 %v98
    %172 = vmatprep.subr.mxu0 %v103
    %173 = vmatpush1.msra.mxu0 %v102
    %174 = vmatprep.subr.mxu0 %v107
    %175 = vmatpush1.msra.mxu0 %v106
    %176 = vmatprep.subr.mxu0 %v111
    %177 = vmatpush1.msra.mxu0 %v110
    %178 = vmatprep.subr.mxu0 %v115
    %179 = vmatpush1.msra.mxu0 %v114
    %180 = vmatprep.subr.mxu0 %v119
    %181 = vmatpush1.msra.mxu0 %v118
    %182 = vmatprep.subr.mxu0 %v123
    %183 = vmatpush1.msra.mxu0 %v122
    %184 = vmatprep.subr.mxu0 %v127
    %185 = vmatpush1.msra.mxu0 %v126
    %186 = vmatprep.subr.mxu0 %v131
    %187 = vmatpush1.msra.mxu0 %v130
    %188 = vmatprep.subr.mxu0 0.0
    %189 = vmatpush1.msra.mxu0 0.0
    %190 = vmatprep.subr.mxu0 0.0
    %191 = vmatpush1.msra.mxu0 0.0
    %192 = vmatprep.subr.mxu0 0.0
    %193 = vmatpush1.msra.mxu0 0.0
    %194 = vmatprep.subr.mxu0 0.0
    %195 = vmatpush1.msra.mxu0 0.0
    %196 = vmatprep.subr.mxu0 0.0
    %197 = vmatpush1.msra.mxu0 0.0
    %198 = vmatprep.subr.mxu0 0.0
    %199 = vmatpush1.msra.mxu0 0.0
    %200 = vmatprep.subr.mxu0 0.0
    %201 = vmatpush1.msra.mxu0 0.0
    %202 = vmatprep.subr.mxu0 0.0
    %203 = vmatpush1.msra.mxu0 0.0
    %204 = vmatprep.subr.mxu0 0.0
    %205 = vmatpush1.msra.mxu0 0.0
    %206 = vmatprep.subr.mxu0 0.0
    %207 = vmatpush1.msra.mxu0 0.0
    %208 = vmatprep.subr.mxu0 0.0
    %209 = vmatpush1.msra.mxu0 0.0
    %210 = vmatprep.subr.mxu0 0.0
    %211 = vmatpush1.msra.mxu0 0.0
    %212 = vmatprep.subr.mxu0 0.0
    %213 = vmatpush1.msra.mxu0 0.0
    %214 = vmatprep.subr.mxu0 0.0
    %215 = vmatpush1.msra.mxu0 0.0
    %216 = vmatprep.subr.mxu0 0.0
    %217 = vmatpush1.msra.mxu0 0.0
    %218 = vmatprep.subr.mxu0 0.0
    %219 = vmatpush1.msra.mxu0 0.0
    %220 = vmatprep.mubr.f32.mxu0 0.0
    %221 = vmatmul.mubr.f32.gmra.mrb[0].mxu0 %v54
    %v222 = vpop.f32.mrb[0].mxu0
    %v223 = vadd.f32 %v139, %v222
    %v224 = vpop.f32.mrb[0].mxu0
    %v225 = vadd.f32 %v143, %v224
    %226 = vmatprep.mubr.f32.mxu0 0.0
    %227 = vmatmul.mubr.f32.gmra.mrb[0].mxu0 %v55
    %v228 = vpop.f32.mrb[0].mxu0
    %v229 = vadd.f32 %v139, %v228
    %v230 = vpop.f32.mrb[0].mxu0
    %v231 = vadd.f32 %v143, %v230
    %232 = vmatprep.mubr.f32.mxu0 0.0
    %233 = vmatmul.mubr.f32.gmra.mrb[0].mxu0 %v56
    %v234 = vpop.f32.mrb[0].mxu0
    %v235 = vadd.f32 %v139, %v234
    %v236 = vpop.f32.mrb[0].mxu0
    %v237 = vadd.f32 %v143, %v236
    %238 = vmatprep.mubr.f32.mxu0 0.0
    %239 = vmatmul.mubr.f32.gmra.mrb[0].mxu0 %v57
    %v240 = vpop.f32.mrb[0].mxu0
    %v241 = vadd.f32 %v139, %v240
    %v242 = vpop.f32.mrb[0].mxu0
    %v243 = vadd.f32 %v143, %v242
    %244 = vmatprep.mubr.f32.mxu0 0.0
    %245 = vmatmul.mubr.f32.gmra.mrb[0].mxu0 %v58
    %v246 = vpop.f32.mrb[0].mxu0
    %v247 = vadd.f32 %v139, %v246
    %v248 = vpop.f32.mrb[0].mxu0
    %v249 = vadd.f32 %v143, %v248
    %250 = vmatprep.mubr.f32.mxu0 0.0
    %251 = vmatmul.mubr.f32.gmra.mrb[0].mxu0 %v59
    %v252 = vpop.f32.mrb[0].mxu0
    %v253 = vadd.f32 %v139, %v252
    %v254 = vpop.f32.mrb[0].mxu0
    %v255 = vadd.f32 %v143, %v254
    %256 = vmatprep.mubr.f32.mxu0 0.0
    %257 = vmatmul.mubr.f32.gmra.mrb[0].mxu0 %v60
    %v258 = vpop.f32.mrb[0].mxu0
    %v259 = vadd.f32 %v139, %v258
    %v260 = vpop.f32.mrb[0].mxu0
    %v261 = vadd.f32 %v143, %v260
    %262 = vmatprep.mubr.f32.mxu0 0.0
    %263 = vmatmul.mubr.f32.gmra.mrb[0].mxu0 %v61
    %v264 = vpop.f32.mrb[0].mxu0
    %v265 = vadd.f32 %v139, %v264
    %v266 = vpop.f32.mrb[0].mxu0
    %v267 = vadd.f32 %v143, %v266
    %268 = vmatprep.mubr.f32.mxu0 0.0
    %269 = vmatmul.mubr.f32.gmra.mrb[0].mxu0 %v62
    %v270 = vpop.f32.mrb[0].mxu0
    %v271 = vadd.f32 %v139, %v270
    %v272 = vpop.f32.mrb[0].mxu0
    %v273 = vadd.f32 %v143, %v272
    %274 = vmatprep.mubr.f32.mxu0 0.0
    %275 = vmatmul.mubr.f32.gmra.mrb[0].mxu0 %v63
    %v276 = vpop.f32.mrb[0].mxu0
    %v277 = vadd.f32 %v139, %v276
    %v278 = vpop.f32.mrb[0].mxu0
    %v279 = vadd.f32 %v143, %v278
    %280 = vmatprep.mubr.f32.mxu0 0.0
    %281 = vmatmul.mubr.f32.gmra.mrb[0].mxu0 %v64
    %v282 = vpop.f32.mrb[0].mxu0
    %v283 = vadd.f32 %v139, %v282
    %v284 = vpop.f32.mrb[0].mxu0
    %v285 = vadd.f32 %v143, %v284
    %286 = vmatprep.mubr.f32.mxu0 0.0
    %287 = vmatmul.mubr.f32.gmra.mrb[0].mxu0 %v65
    %v288 = vpop.f32.mrb[0].mxu0
    %v289 = vadd.f32 %v139, %v288
    %v290 = vpop.f32.mrb[0].mxu0
    %v291 = vadd.f32 %v143, %v290
    %292 = vmatprep.mubr.f32.mxu0 0.0
    %293 = vmatmul.mubr.f32.gmra.mrb[0].mxu0 %v66
    %v294 = vpop.f32.mrb[0].mxu0
    %v295 = vadd.f32 %v139, %v294
    %v296 = vpop.f32.mrb[0].mxu0
    %v297 = vadd.f32 %v143, %v296
    %298 = vmatprep.mubr.f32.mxu0 0.0
    %299 = vmatmul.mubr.f32.gmra.mrb[0].mxu0 %v67
    %v300 = vpop.f32.mrb[0].mxu0
    %v301 = vadd.f32 %v139, %v300
    %v302 = vpop.f32.mrb[0].mxu0
    %v303 = vadd.f32 %v143, %v302
    %304 = vmatprep.mubr.f32.mxu0 0.0
    %305 = vmatmul.mubr.f32.gmra.mrb[0].mxu0 %v68
    %v306 = vpop.f32.mrb[0].mxu0
    %v307 = vadd.f32 %v139, %v306
    %v308 = vpop.f32.mrb[0].mxu0
    %v309 = vadd.f32 %v143, %v308
    %310 = vmatprep.mubr.f32.mxu0 0.0
    %311 = vmatmul.mubr.f32.gmra.mrb[0].mxu0 %v69
    %v312 = vpop.f32.mrb[0].mxu0
    %v313 = vadd.f32 %v139, %v312
    %v314 = vpop.f32.mrb[0].mxu0
    %v315 = vadd.f32 %v143, %v314
    %316 = vdwg.mxu0
    %317 = vmatprep.subr.mxu0 %v73
    %318 = vmatpush1.msra.mxu0 %v72
    %319 = vmatprep.subr.mxu0 %v77
    %320 = vmatpush1.msra.mxu0 %v76
    %321 = vmatprep.subr.mxu0 %v81
    %322 = vmatpush1.msra.mxu0 %v80
    %323 = vmatprep.subr.mxu0 %v85
    %324 = vmatpush1.msra.mxu0 %v84
    %325 = vmatprep.subr.mxu0 %v89
    %326 = vmatpush1.msra.mxu0 %v88
    %327 = vmatprep.subr.mxu0 %v93
    %328 = vmatpush1.msra.mxu0 %v92
    %329 = vmatprep.subr.mxu0 %v97
    %330 = vmatpush1.msra.mxu0 %v96
    %331 = vmatprep.subr.mxu0 %v101
    %332 = vmatpush1.msra.mxu0 %v100
    %333 = vmatprep.subr.mxu0 %v105
    %334 = vmatpush1.msra.mxu0 %v104
    %335 = vmatprep.subr.mxu0 %v109
    %336 = vmatpush1.msra.mxu0 %v108
    %337 = vmatprep.subr.mxu0 %v113
    %338 = vmatpush1.msra.mxu0 %v112
    %339 = vmatprep.subr.mxu0 %v117
    %340 = vmatpush1.msra.mxu0 %v116
    %341 = vmatprep.subr.mxu0 %v121
    %342 = vmatpush1.msra.mxu0 %v120
    %343 = vmatprep.subr.mxu0 %v125
    %344 = vmatpush1.msra.mxu0 %v124
    %345 = vmatprep.subr.mxu0 %v129
    %346 = vmatpush1.msra.mxu0 %v128
    %347 = vmatprep.subr.mxu0 %v133
    %348 = vmatpush1.msra.mxu0 %v132
    %349 = vmatprep.subr.mxu0 0.0
    %350 = vmatpush1.msra.mxu0 0.0
    %351 = vmatprep.subr.mxu0 0.0
    %352 = vmatpush1.msra.mxu0 0.0
    %353 = vmatprep.subr.mxu0 0.0
    %354 = vmatpush1.msra.mxu0 0.0
    %355 = vmatprep.subr.mxu0 0.0
    %356 = vmatpush1.msra.mxu0 0.0
    %357 = vmatprep.subr.mxu0 0.0
    %358 = vmatpush1.msra.mxu0 0.0
    %359 = vmatprep.subr.mxu0 0.0
    %360 = vmatpush1.msra.mxu0 0.0
    %361 = vmatprep.subr.mxu0 0.0
    %362 = vmatpush1.msra.mxu0 0.0
    %363 = vmatprep.subr.mxu0 0.0
    %364 = vmatpush1.msra.mxu0 0.0
    %365 = vmatprep.subr.mxu0 0.0
    %366 = vmatpush1.msra.mxu0 0.0
    %367 = vmatprep.subr.mxu0 0.0
    %368 = vmatpush1.msra.mxu0 0.0
    %369 = vmatprep.subr.mxu0 0.0
    %370 = vmatpush1.msra.mxu0 0.0
    %371 = vmatprep.subr.mxu0 0.0
    %372 = vmatpush1.msra.mxu0 0.0
    %373 = vmatprep.subr.mxu0 0.0
    %374 = vmatpush1.msra.mxu0 0.0
    %375 = vmatprep.subr.mxu0 0.0
    %376 = vmatpush1.msra.mxu0 0.0
    %377 = vmatprep.subr.mxu0 0.0
    %378 = vmatpush1.msra.mxu0 0.0
    %379 = vmatprep.subr.mxu0 0.0
    %380 = vmatpush1.msra.mxu0 0.0
    %381 = vmatprep.mubr.f32.mxu0 0.0
    %382 = vmatmul.mubr.f32.gmra.mrb[0].mxu0 %v54
    %v383 = vpop.f32.mrb[0].mxu0
    %v384 = vadd.f32 %v147, %v383
    %v385 = vpop.f32.mrb[0].mxu0
    %v386 = vadd.f32 %v151, %v385
    %387 = vmatprep.mubr.f32.mxu0 0.0
    %388 = vmatmul.mubr.f32.gmra.mrb[0].mxu0 %v55
    %v389 = vpop.f32.mrb[0].mxu0
    %v390 = vadd.f32 %v147, %v389
    %v391 = vpop.f32.mrb[0].mxu0
    %v392 = vadd.f32 %v151, %v391
    %393 = vmatprep.mubr.f32.mxu0 0.0
    %394 = vmatmul.mubr.f32.gmra.mrb[0].mxu0 %v56
    %v395 = vpop.f32.mrb[0].mxu0
    %v396 = vadd.f32 %v147, %v395
    %v397 = vpop.f32.mrb[0].mxu0
    %v398 = vadd.f32 %v151, %v397
    %399 = vmatprep.mubr.f32.mxu0 0.0
    %400 = vmatmul.mubr.f32.gmra.mrb[0].mxu0 %v57
    %v401 = vpop.f32.mrb[0].mxu0
    %v402 = vadd.f32 %v147, %v401
    %v403 = vpop.f32.mrb[0].mxu0
    %v404 = vadd.f32 %v151, %v403
    %405 = vmatprep.mubr.f32.mxu0 0.0
    %406 = vmatmul.mubr.f32.gmra.mrb[0].mxu0 %v58
    %v407 = vpop.f32.mrb[0].mxu0
    %v408 = vadd.f32 %v147, %v407
    %v409 = vpop.f32.mrb[0].mxu0
    %v410 = vadd.f32 %v151, %v409
    %411 = vmatprep.mubr.f32.mxu0 0.0
    %412 = vmatmul.mubr.f32.gmra.mrb[0].mxu0 %v59
    %v413 = vpop.f32.mrb[0].mxu0
    %v414 = vadd.f32 %v147, %v413
    %v415 = vpop.f32.mrb[0].mxu0
    %v416 = vadd.f32 %v151, %v415
    %417 = vmatprep.mubr.f32.mxu0 0.0
    %418 = vmatmul.mubr.f32.gmra.mrb[0].mxu0 %v60
    %v419 = vpop.f32.mrb[0].mxu0
    %v420 = vadd.f32 %v147, %v419
    %v421 = vpop.f32.mrb[0].mxu0
    %v422 = vadd.f32 %v151, %v421
    %423 = vmatprep.mubr.f32.mxu0 0.0
    %424 = vmatmul.mubr.f32.gmra.mrb[0].mxu0 %v61
    %v425 = vpop.f32.mrb[0].mxu0
    %v426 = vadd.f32 %v147, %v425
    %v427 = vpop.f32.mrb[0].mxu0
    %v428 = vadd.f32 %v151, %v427
    %429 = vmatprep.mubr.f32.mxu0 0.0
    %430 = vmatmul.mubr.f32.gmra.mrb[0].mxu0 %v62
    %v431 = vpop.f32.mrb[0].mxu0
    %v432 = vadd.f32 %v147, %v431
    %v433 = vpop.f32.mrb[0].mxu0
    %v434 = vadd.f32 %v151, %v433
    %435 = vmatprep.mubr.f32.mxu0 0.0
    %436 = vmatmul.mubr.f32.gmra.mrb[0].mxu0 %v63
    %v437 = vpop.f32.mrb[0].mxu0
    %v438 = vadd.f32 %v147, %v437
    %v439 = vpop.f32.mrb[0].mxu0
    %v440 = vadd.f32 %v151, %v439
    %441 = vmatprep.mubr.f32.mxu0 0.0
    %442 = vmatmul.mubr.f32.gmra.mrb[0].mxu0 %v64
    %v443 = vpop.f32.mrb[0].mxu0
    %v444 = vadd.f32 %v147, %v443
    %v445 = vpop.f32.mrb[0].mxu0
    %v446 = vadd.f32 %v151, %v445
    %447 = vmatprep.mubr.f32.mxu0 0.0
    %448 = vmatmul.mubr.f32.gmra.mrb[0].mxu0 %v65
    %v449 = vpop.f32.mrb[0].mxu0
    %v450 = vadd.f32 %v147, %v449
    %v451 = vpop.f32.mrb[0].mxu0
    %v452 = vadd.f32 %v151, %v451
    %453 = vmatprep.mubr.f32.mxu0 0.0
    %454 = vmatmul.mubr.f32.gmra.mrb[0].mxu0 %v66
    %v455 = vpop.f32.mrb[0].mxu0
    %v456 = vadd.f32 %v147, %v455
    %v457 = vpop.f32.mrb[0].mxu0
    %v458 = vadd.f32 %v151, %v457
    %459 = vmatprep.mubr.f32.mxu0 0.0
    %460 = vmatmul.mubr.f32.gmra.mrb[0].mxu0 %v67
    %v461 = vpop.f32.mrb[0].mxu0
    %v462 = vadd.f32 %v147, %v461
    %v463 = vpop.f32.mrb[0].mxu0
    %v464 = vadd.f32 %v151, %v463
    %465 = vmatprep.mubr.f32.mxu0 0.0
    %466 = vmatmul.mubr.f32.gmra.mrb[0].mxu0 %v68
    %v467 = vpop.f32.mrb[0].mxu0
    %v468 = vadd.f32 %v147, %v467
    %v469 = vpop.f32.mrb[0].mxu0
    %v470 = vadd.f32 %v151, %v469
    %471 = vmatprep.mubr.f32.mxu0 0.0
    %472 = vmatmul.mubr.f32.gmra.mrb[0].mxu0 %v69
    %v473 = vpop.f32.mrb[0].mxu0
    %v474 = vadd.f32 %v147, %v473
    %v475 = vpop.f32.mrb[0].mxu0
    %v476 = vadd.f32 %v151, %v475
    %477 = vdwg.mxu0
    %478 = vst [vmem:[#allocation8] sm:$0xff] %v223
    %479 = vst [vmem:[#allocation8 + $0x8] sm:$0xff] %v225
    %480 = vst [vmem:[#allocation8 + $0x10] sm:$0xff] %v384
    %481 = vst [vmem:[#allocation8 + $0x18] sm:$0xff] %v386
    %482 = vst [vmem:[#allocation8 + $0x20] sm:$0xff] %v229
    %483 = vst [vmem:[#allocation8 + $0x28] sm:$0xff] %v231
    %484 = vst [vmem:[#allocation8 + $0x30] sm:$0xff] %v390
    %485 = vst [vmem:[#allocation8 + $0x38] sm:$0xff] %v392
    %486 = vst [vmem:[#allocation8 + $0x40] sm:$0xff] %v235
    %487 = vst [vmem:[#allocation8 + $0x48] sm:$0xff] %v237
    %488 = vst [vmem:[#allocation8 + $0x50] sm:$0xff] %v396
    %489 = vst [vmem:[#allocation8 + $0x58] sm:$0xff] %v398
    %490 = vst [vmem:[#allocation8 + $0x60] sm:$0xff] %v241
    %491 = vst [vmem:[#allocation8 + $0x68] sm:$0xff] %v243
    %492 = vst [vmem:[#allocation8 + $0x70] sm:$0xff] %v402
    %493 = vst [vmem:[#allocation8 + $0x78] sm:$0xff] %v404
    %494 = vst [vmem:[#allocation8 + $0x80] sm:$0xff] %v247
    %495 = vst [vmem:[#allocation8 + $0x88] sm:$0xff] %v249
    %496 = vst [vmem:[#allocation8 + $0x90] sm:$0xff] %v408
    %497 = vst [vmem:[#allocation8 + $0x98] sm:$0xff] %v410
    %498 = vst [vmem:[#allocation8 + $0xa0] sm:$0xff] %v253
    %499 = vst [vmem:[#allocation8 + $0xa8] sm:$0xff] %v255
    %500 = vst [vmem:[#allocation8 + $0xb0] sm:$0xff] %v414
    %501 = vst [vmem:[#allocation8 + $0xb8] sm:$0xff] %v416
    %502 = vst [vmem:[#allocation8 + $0xc0] sm:$0xff] %v259
    %503 = vst [vmem:[#allocation8 + $0xc8] sm:$0xff] %v261
    %504 = vst [vmem:[#allocation8 + $0xd0] sm:$0xff] %v420
    %505 = vst [vmem:[#allocation8 + $0xd8] sm:$0xff] %v422
    %506 = vst [vmem:[#allocation8 + $0xe0] sm:$0xff] %v265
    %507 = vst [vmem:[#allocation8 + $0xe8] sm:$0xff] %v267
    %508 = vst [vmem:[#allocation8 + $0xf0] sm:$0xff] %v426
    %509 = vst [vmem:[#allocation8 + $0xf8] sm:$0xff] %v428
    %510 = vst [vmem:[#allocation8 + $0x100] sm:$0xff] %v271
    %511 = vst [vmem:[#allocation8 + $0x108] sm:$0xff] %v273
    %512 = vst [vmem:[#allocation8 + $0x110] sm:$0xff] %v432
    %513 = vst [vmem:[#allocation8 + $0x118] sm:$0xff] %v434
    %514 = vst [vmem:[#allocation8 + $0x120] sm:$0xff] %v277
    %515 = vst [vmem:[#allocation8 + $0x128] sm:$0xff] %v279
    %516 = vst [vmem:[#allocation8 + $0x130] sm:$0xff] %v438
    %517 = vst [vmem:[#allocation8 + $0x138] sm:$0xff] %v440
    %518 = vst [vmem:[#allocation8 + $0x140] sm:$0xff] %v283
    %519 = vst [vmem:[#allocation8 + $0x148] sm:$0xff] %v285
    %520 = vst [vmem:[#allocation8 + $0x150] sm:$0xff] %v444
    %521 = vst [vmem:[#allocation8 + $0x158] sm:$0xff] %v446
    %522 = vst [vmem:[#allocation8 + $0x160] sm:$0xff] %v289
    %523 = vst [vmem:[#allocation8 + $0x168] sm:$0xff] %v291
    %524 = vst [vmem:[#allocation8 + $0x170] sm:$0xff] %v450
    %525 = vst [vmem:[#allocation8 + $0x178] sm:$0xff] %v452
    %526 = vst [vmem:[#allocation8 + $0x180] sm:$0xff] %v295
    %527 = vst [vmem:[#allocation8 + $0x188] sm:$0xff] %v297
    %528 = vst [vmem:[#allocation8 + $0x190] sm:$0xff] %v456
    %529 = vst [vmem:[#allocation8 + $0x198] sm:$0xff] %v458
    %530 = vst [vmem:[#allocation8 + $0x1a0] sm:$0xff] %v301
    %531 = vst [vmem:[#allocation8 + $0x1a8] sm:$0xff] %v303
    %532 = vst [vmem:[#allocation8 + $0x1b0] sm:$0xff] %v462
    %533 = vst [vmem:[#allocation8 + $0x1b8] sm:$0xff] %v464
    %534 = vst [vmem:[#allocation8 + $0x1c0] sm:$0xff] %v307
    %535 = vst [vmem:[#allocation8 + $0x1c8] sm:$0xff] %v309
    %536 = vst [vmem:[#allocation8 + $0x1d0] sm:$0xff] %v468
    %537 = vst [vmem:[#allocation8 + $0x1d8] sm:$0xff] %v470
    %538 = vst [vmem:[#allocation8 + $0x1e0] sm:$0xff] %v313
    %539 = vst [vmem:[#allocation8 + $0x1e8] sm:$0xff] %v315
    %540 = vst [vmem:[#allocation8 + $0x1f0] sm:$0xff] %v474
    %541 = vst [vmem:[#allocation8 + $0x1f8] sm:$0xff] %v476
    // Predicated region
    $region26: #{rnn_model_forward.5} parent=1 // pred_check
      _
    $region27: #{rnn_model_forward.5} parent=1 // pred_check_branch
      %543 = sbr.rel (0) target = $region29
    $region28: #{rnn_model_forward.5} parent=1 // pred_region
      %s545 = ssub.s32 8192, 8192
      %546 = vsyncadd [#allocation4], %s545
      %s547 = sshll.u32 [#allocation8], 4
      %s548 = int_to_ptr.vmem [resolvable:$true] %s547
      %553 = dma.vmem_to_hbm [thread:$0]  %s548, 8192, %s3, [#allocation4], 512, 512, 32
    $region29: #{rnn_model_forward.5} parent=1 // pred_fallthru
      _
    // Predicated region
    $region30: #{rnn_model_forward.5} parent=1 // pred_check
      _
    $region31: #{rnn_model_forward.5} parent=1 // pred_check_branch
      %555 = sbr.rel (0) target = $region33
    $region32: #{rnn_model_forward.5} parent=1 // pred_region
      %556 = dma.done [#allocation4], 8192
    $region33: #{rnn_model_forward.5} parent=1 // pred_fallthru
      _
    %557 = vsyncpa [#allocation3], 1
    %558 = vsyncpa [#allocation6], 1
    %559 = vsyncpa [#allocation4], 1

// kernel: rnn_model_forward.6
$region0: #{rnn_model_forward.6}
  #allocation0 [shape = 'u32[]', space=smem, size = 0x4, offset = 0x4, fixed_abs, tag = 'smem constant byte address 0x4 - core index']
  #allocation1 [shape = 'u32[144,128]{1,0:T(1,128)}', space=vmem, size = 0x12000, scoped, tag = 'internal scratch']
  #allocation2 [shape = 'f32[8,128]{1,0:T(8,128)}', space=vmem, size = 0x1000, scoped, tag = 'scratch operand']
  #allocation3 [shape = 'f32[8,128]{1,0:T(8,128)}', space=vmem, size = 0x1000, scoped, tag = 'scratch operand']
  %s0 = inlined_call_operand.hbm [shape: f32[16,8,512], index: 0, kind: input, shape index: {}]
  %s1 = inlined_call_operand.hbm [shape: f32[128,512], index: 1, kind: input, shape index: {}]
  %s2 = inlined_call_operand.hbm [shape: f32[8,128], index: 2, kind: input, shape index: {}]
  %s3 = inlined_call_operand.hbm [shape: f32[8,128], index: 3, kind: input, shape index: {}]
  %s4 = inlined_call_operand.hbm [shape: f32[16,8,128], index: 4, kind: output, shape index: {0}]
  %s5 = inlined_call_operand.hbm [shape: f32[8,128], index: 5, kind: output, shape index: {1}]
  %s6 = inlined_call_operand.hbm [shape: f32[8,128], index: 6, kind: output, shape index: {2}]
  %7 = xla_tuple %s4, %s5, %s6
  %s8 = sld [smem:[#allocation0]]
  $region66: #{rnn_model_forward.6} parent=0
    _
  %s10 = ssub.s32 1, %s8
  %s11 = scalar_select 0, %s10, %s8
  $region1: #{rnn_model_forward.6} parent=0
    #allocation4 [shape = 'u8[262144]{0}', space=vmem, size = 0x40000, scoped, tag = 'input window, operand 0, single buffered']
    #allocation5 [shape = 's32[1]{0}', space=sflag, size = 0x4, scoped, tag = 'scoped memory for rnn_model_forward.6']
    #allocation6 [shape = 's32[1]{0}', space=sflag, size = 0x4, scoped, tag = 'scoped memory for rnn_model_forward.6']
    #allocation7 [shape = 'u8[262144]{0}', space=vmem, size = 0x40000, scoped, tag = 'input window, operand 1, single buffered']
    #allocation8 [shape = 's32[1]{0}', space=sflag, size = 0x4, scoped, tag = 'scoped memory for rnn_model_forward.6']
    #allocation9 [shape = 'u8[4096]{0}', space=vmem, size = 0x1000, scoped, tag = 'input window, operand 2, single buffered']
    #allocation10 [shape = 'u8[4096]{0}', space=vmem, size = 0x1000, scoped, tag = 'input window, operand 3, single buffered']
    #allocation11 [shape = 's32[1]{0}', space=sflag, size = 0x4, scoped, tag = 'scoped memory for rnn_model_forward.6']
    #allocation12 [shape = 'u8[65536]{0}', space=vmem, size = 0x10000, scoped, tag = 'output window, operand 0, single buffered']
    #allocation13 [shape = 'u8[4096]{0}', space=vmem, size = 0x1000, scoped, tag = 'output window, operand 1, single buffered']
    #allocation14 [shape = 's32[1]{0}', space=sflag, size = 0x4, scoped, tag = 'scoped memory for rnn_model_forward.6']
    #allocation15 [shape = 'u8[4096]{0}', space=vmem, size = 0x1000, scoped, tag = 'output window, operand 2, single buffered']
    %12 = vsyncpa [#allocation5], 0
    %13 = vsyncpa [#allocation8], 0
    %14 = vsyncpa [#allocation11], 0
    %15 = vsyncpa [#allocation6], 0
    %16 = vsyncpa [#allocation14], 0
    // Predicated region
    $region2: #{rnn_model_forward.6} parent=1 // pred_check
      _
    $region3: #{rnn_model_forward.6} parent=1 // pred_check_branch
      %18 = sbr.rel (0) target = $region5
    $region4: #{rnn_model_forward.6} parent=1 // pred_region
      %s20 = ssub.s32 8192, 8192
      %21 = vsyncadd [#allocation5], %s20
      %s22 = sshll.u32 [#allocation4], 4
      %s23 = int_to_ptr.vmem [resolvable:$true] %s22
      %28 = dma.hbm_to_vmem [thread:$0]  %s0, 8192, %s23, [#allocation5], 512, 512, 32
    $region5: #{rnn_model_forward.6} parent=1 // pred_fallthru
      _
    // Predicated region
    $region6: #{rnn_model_forward.6} parent=1 // pred_check
      _
    $region7: #{rnn_model_forward.6} parent=1 // pred_check_branch
      %30 = sbr.rel (0) target = $region9
    $region8: #{rnn_model_forward.6} parent=1 // pred_region
      %s32 = ssub.s32 8192, 8192
      %33 = vsyncadd [#allocation8], %s32
      %s34 = sshll.u32 [#allocation7], 4
      %s35 = int_to_ptr.vmem [resolvable:$true] %s34
      %40 = dma.hbm_to_vmem [thread:$0]  %s1, 8192, %s35, [#allocation8], 512, 512, 32
    $region9: #{rnn_model_forward.6} parent=1 // pred_fallthru
      _
    // Predicated region
    $region10: #{rnn_model_forward.6} parent=1 // pred_check
      _
    $region11: #{rnn_model_forward.6} parent=1 // pred_check_branch
      %42 = sbr.rel (0) target = $region13
    $region12: #{rnn_model_forward.6} parent=1 // pred_region
      %s44 = ssub.s32 128, 128
      %45 = vsyncadd [#allocation8], %s44
      %s47 = sshll.u32 [#allocation9], 4
      %s48 = int_to_ptr.vmem [resolvable:$true] %s47
      %50 = dma.hbm_to_vmem [thread:$0]  %s2, 128, %s48, [#allocation8]
    $region13: #{rnn_model_forward.6} parent=1 // pred_fallthru
      _
    // Predicated region
    $region14: #{rnn_model_forward.6} parent=1 // pred_check
      _
    $region15: #{rnn_model_forward.6} parent=1 // pred_check_branch
      %52 = sbr.rel (0) target = $region17
    $region16: #{rnn_model_forward.6} parent=1 // pred_region
      %s54 = ssub.s32 128, 128
      %55 = vsyncadd [#allocation11], %s54
      %s57 = sshll.u32 [#allocation10], 4
      %s58 = int_to_ptr.vmem [resolvable:$true] %s57
      %60 = dma.hbm_to_vmem [thread:$0]  %s3, 128, %s58, [#allocation11]
    $region17: #{rnn_model_forward.6} parent=1 // pred_fallthru
      _
    // Predicated region
    $region18: #{rnn_model_forward.6} parent=1 // pred_check
      _
    $region19: #{rnn_model_forward.6} parent=1 // pred_check_branch
      %62 = sbr.rel (0) target = $region21
    $region20: #{rnn_model_forward.6} parent=1 // pred_region
      %63 = dma.done [#allocation5], 8192
    $region21: #{rnn_model_forward.6} parent=1 // pred_fallthru
      _
    // Predicated region
    $region22: #{rnn_model_forward.6} parent=1 // pred_check
      _
    $region23: #{rnn_model_forward.6} parent=1 // pred_check_branch
      %65 = sbr.rel (0) target = $region25
    $region24: #{rnn_model_forward.6} parent=1 // pred_region
      %66 = dma.done [#allocation8], 8192
    $region25: #{rnn_model_forward.6} parent=1 // pred_fallthru
      _
    // Predicated region
    $region26: #{rnn_model_forward.6} parent=1 // pred_check
      _
    $region27: #{rnn_model_forward.6} parent=1 // pred_check_branch
      %68 = sbr.rel (0) target = $region29
    $region28: #{rnn_model_forward.6} parent=1 // pred_region
      %69 = dma.done [#allocation8], 128
    $region29: #{rnn_model_forward.6} parent=1 // pred_fallthru
      _
    // Predicated region
    $region30: #{rnn_model_forward.6} parent=1 // pred_check
      _
    $region31: #{rnn_model_forward.6} parent=1 // pred_check_branch
      %71 = sbr.rel (0) target = $region33
    $region32: #{rnn_model_forward.6} parent=1 // pred_region
      %72 = dma.done [#allocation11], 128
    $region33: #{rnn_model_forward.6} parent=1 // pred_fallthru
      _
    %p73 = scmp.eq.s32.totalorder 0, 0
    // Predicated region
    $region34: #{rnn_model_forward.6} parent=1 // pred_check
      %p74 = pneg %p73
    $region35: #{rnn_model_forward.6} parent=1 // pred_check_branch
      %76 = sbr.rel (%p74) target = $region37
    $region36: #{rnn_model_forward.6} parent=1 // pred_region
      %v77 = vld [vmem:[#allocation9] sm:$0xff]
      %78 = vst [vmem:[#allocation2] sm:$0xff] %v77
      %v79 = vld [vmem:[#allocation10] sm:$0xff]
      %80 = vst [vmem:[#allocation3] sm:$0xff] %v79
    $region37: #{rnn_model_forward.6} parent=1 // pred_fallthru
      _
    %v81 = vld [vmem:[#allocation7] sm:$0xff]
    %v82 = vld [vmem:[#allocation7 + $0x8] sm:$0xff]
    %v83 = vld [vmem:[#allocation7 + $0x10] sm:$0xff]
    %v84 = vld [vmem:[#allocation7 + $0x18] sm:$0xff]
    %v85 = vld [vmem:[#allocation7 + $0x20] sm:$0xff]
    %v86 = vld [vmem:[#allocation7 + $0x28] sm:$0xff]
    %v87 = vld [vmem:[#allocation7 + $0x30] sm:$0xff]
    %v88 = vld [vmem:[#allocation7 + $0x38] sm:$0xff]
    %v89 = vld [vmem:[#allocation7 + $0x40] sm:$0xff]
    %v90 = vld [vmem:[#allocation7 + $0x48] sm:$0xff]
    %v91 = vld [vmem:[#allocation7 + $0x50] sm:$0xff]
    %v92 = vld [vmem:[#allocation7 + $0x58] sm:$0xff]
    %v93 = vld [vmem:[#allocation7 + $0x60] sm:$0xff]
    %v94 = vld [vmem:[#allocation7 + $0x68] sm:$0xff]
    %v95 = vld [vmem:[#allocation7 + $0x70] sm:$0xff]
    %v96 = vld [vmem:[#allocation7 + $0x78] sm:$0xff]
    %v97 = vld [vmem:[#allocation7 + $0x80] sm:$0xff]
    %v98 = vld [vmem:[#allocation7 + $0x88] sm:$0xff]
    %v99 = vld [vmem:[#allocation7 + $0x90] sm:$0xff]
    %v100 = vld [vmem:[#allocation7 + $0x98] sm:$0xff]
    %v101 = vld [vmem:[#allocation7 + $0xa0] sm:$0xff]
    %v102 = vld [vmem:[#allocation7 + $0xa8] sm:$0xff]
    %v103 = vld [vmem:[#allocation7 + $0xb0] sm:$0xff]
    %v104 = vld [vmem:[#allocation7 + $0xb8] sm:$0xff]
    %v105 = vld [vmem:[#allocation7 + $0xc0] sm:$0xff]
    %v106 = vld [vmem:[#allocation7 + $0xc8] sm:$0xff]
    %v107 = vld [vmem:[#allocation7 + $0xd0] sm:$0xff]
    %v108 = vld [vmem:[#allocation7 + $0xd8] sm:$0xff]
    %v109 = vld [vmem:[#allocation7 + $0xe0] sm:$0xff]
    %v110 = vld [vmem:[#allocation7 + $0xe8] sm:$0xff]
    %v111 = vld [vmem:[#allocation7 + $0xf0] sm:$0xff]
    %v112 = vld [vmem:[#allocation7 + $0xf8] sm:$0xff]
    %v113 = vld [vmem:[#allocation7 + $0x100] sm:$0xff]
    %v114 = vld [vmem:[#allocation7 + $0x108] sm:$0xff]
    %v115 = vld [vmem:[#allocation7 + $0x110] sm:$0xff]
    %v116 = vld [vmem:[#allocation7 + $0x118] sm:$0xff]
    %v117 = vld [vmem:[#allocation7 + $0x120] sm:$0xff]
    %v118 = vld [vmem:[#allocation7 + $0x128] sm:$0xff]
    %v119 = vld [vmem:[#allocation7 + $0x130] sm:$0xff]
    %v120 = vld [vmem:[#allocation7 + $0x138] sm:$0xff]
    %v121 = vld [vmem:[#allocation7 + $0x140] sm:$0xff]
    %v122 = vld [vmem:[#allocation7 + $0x148] sm:$0xff]
    %v123 = vld [vmem:[#allocation7 + $0x150] sm:$0xff]
    %v124 = vld [vmem:[#allocation7 + $0x158] sm:$0xff]
    %v125 = vld [vmem:[#allocation7 + $0x160] sm:$0xff]
    %v126 = vld [vmem:[#allocation7 + $0x168] sm:$0xff]
    %v127 = vld [vmem:[#allocation7 + $0x170] sm:$0xff]
    %v128 = vld [vmem:[#allocation7 + $0x178] sm:$0xff]
    %v129 = vld [vmem:[#allocation7 + $0x180] sm:$0xff]
    %v130 = vld [vmem:[#allocation7 + $0x188] sm:$0xff]
    %v131 = vld [vmem:[#allocation7 + $0x190] sm:$0xff]
    %v132 = vld [vmem:[#allocation7 + $0x198] sm:$0xff]
    %v133 = vld [vmem:[#allocation7 + $0x1a0] sm:$0xff]
    %v134 = vld [vmem:[#allocation7 + $0x1a8] sm:$0xff]
    %v135 = vld [vmem:[#allocation7 + $0x1b0] sm:$0xff]
    %v136 = vld [vmem:[#allocation7 + $0x1b8] sm:$0xff]
    %v137 = vld [vmem:[#allocation7 + $0x1c0] sm:$0xff]
    %v138 = vld [vmem:[#allocation7 + $0x1c8] sm:$0xff]
    %v139 = vld [vmem:[#allocation7 + $0x1d0] sm:$0xff]
    %v140 = vld [vmem:[#allocation7 + $0x1d8] sm:$0xff]
    %v141 = vld [vmem:[#allocation7 + $0x1e0] sm:$0xff]
    %v142 = vld [vmem:[#allocation7 + $0x1e8] sm:$0xff]
    %v143 = vld [vmem:[#allocation7 + $0x1f0] sm:$0xff]
    %v144 = vld [vmem:[#allocation7 + $0x1f8] sm:$0xff]
    %v145 = vld [vmem:[#allocation2] sm:$0xff]
    %v146 = vld [vmem:[#allocation3] sm:$0xff]
    %v147 = vld [vmem:[#allocation4] sm:$0xff]
    %v148 = vld [vmem:[#allocation4 + $0x8] sm:$0xff]
    %v149 = vld [vmem:[#allocation4 + $0x10] sm:$0xff]
    %v150 = vld [vmem:[#allocation4 + $0x18] sm:$0xff]
    %151 = vmatprep.subr.mxu0 %v82
    %152 = vmatpush1.msra.mxu0 %v81
    %153 = vmatprep.subr.mxu0 %v86
    %154 = vmatpush1.msra.mxu0 %v85
    %155 = vmatprep.subr.mxu0 %v90
    %156 = vmatpush1.msra.mxu0 %v89
    %157 = vmatprep.subr.mxu0 %v94
    %158 = vmatpush1.msra.mxu0 %v93
    %159 = vmatprep.subr.mxu0 %v98
    %160 = vmatpush1.msra.mxu0 %v97
    %161 = vmatprep.subr.mxu0 %v102
    %162 = vmatpush1.msra.mxu0 %v101
    %163 = vmatprep.subr.mxu0 %v106
    %164 = vmatpush1.msra.mxu0 %v105
    %165 = vmatprep.subr.mxu0 %v110
    %166 = vmatpush1.msra.mxu0 %v109
    %167 = vmatprep.subr.mxu0 %v114
    %168 = vmatpush1.msra.mxu0 %v113
    %169 = vmatprep.subr.mxu0 %v118
    %170 = vmatpush1.msra.mxu0 %v117
    %171 = vmatprep.subr.mxu0 %v122
    %172 = vmatpush1.msra.mxu0 %v121
    %173 = vmatprep.subr.mxu0 %v126
    %174 = vmatpush1.msra.mxu0 %v125
    %175 = vmatprep.subr.mxu0 %v130
    %176 = vmatpush1.msra.mxu0 %v129
    %177 = vmatprep.subr.mxu0 %v134
    %178 = vmatpush1.msra.mxu0 %v133
    %179 = vmatprep.subr.mxu0 %v138
    %180 = vmatpush1.msra.mxu0 %v137
    %181 = vmatprep.subr.mxu0 %v142
    %182 = vmatpush1.msra.mxu0 %v141
    %183 = vmatprep.subr.mxu0 0.0
    %184 = vmatpush1.msra.mxu0 0.0
    %185 = vmatprep.subr.mxu0 0.0
    %186 = vmatpush1.msra.mxu0 0.0
    %187 = vmatprep.subr.mxu0 0.0
    %188 = vmatpush1.msra.mxu0 0.0
    %189 = vmatprep.subr.mxu0 0.0
    %190 = vmatpush1.msra.mxu0 0.0
    %191 = vmatprep.subr.mxu0 0.0
    %192 = vmatpush1.msra.mxu0 0.0
    %193 = vmatprep.subr.mxu0 0.0
    %194 = vmatpush1.msra.mxu0 0.0
    %195 = vmatprep.subr.mxu0 0.0
    %196 = vmatpush1.msra.mxu0 0.0
    %197 = vmatprep.subr.mxu0 0.0
    %198 = vmatpush1.msra.mxu0 0.0
    %199 = vmatprep.subr.mxu0 0.0
    %200 = vmatpush1.msra.mxu0 0.0
    %201 = vmatprep.subr.mxu0 0.0
    %202 = vmatpush1.msra.mxu0 0.0
    %203 = vmatprep.subr.mxu0 0.0
    %204 = vmatpush1.msra.mxu0 0.0
    %205 = vmatprep.subr.mxu0 0.0
    %206 = vmatpush1.msra.mxu0 0.0
    %207 = vmatprep.subr.mxu0 0.0
    %208 = vmatpush1.msra.mxu0 0.0
    %209 = vmatprep.subr.mxu0 0.0
    %210 = vmatpush1.msra.mxu0 0.0
    %211 = vmatprep.subr.mxu0 0.0
    %212 = vmatpush1.msra.mxu0 0.0
    %213 = vmatprep.subr.mxu0 0.0
    %214 = vmatpush1.msra.mxu0 0.0
    %215 = vmatprep.mubr.f32.mxu0 0.0
    %216 = vmatmul.mubr.f32.gmra.mrb[0].mxu0 %v145
    %v217 = vpop.f32.mrb[0].mxu0
    %v218 = vadd.f32 0.0, %v217
    %v219 = vpop.f32.mrb[0].mxu0
    %v220 = vadd.f32 0.0, %v219
    %221 = vdwg.mxu0
    %222 = vmatprep.subr.mxu0 %v84
    %223 = vmatpush1.msra.mxu0 %v83
    %224 = vmatprep.subr.mxu0 %v88
    %225 = vmatpush1.msra.mxu0 %v87
    %226 = vmatprep.subr.mxu0 %v92
    %227 = vmatpush1.msra.mxu0 %v91
    %228 = vmatprep.subr.mxu0 %v96
    %229 = vmatpush1.msra.mxu0 %v95
    %230 = vmatprep.subr.mxu0 %v100
    %231 = vmatpush1.msra.mxu0 %v99
    %232 = vmatprep.subr.mxu0 %v104
    %233 = vmatpush1.msra.mxu0 %v103
    %234 = vmatprep.subr.mxu0 %v108
    %235 = vmatpush1.msra.mxu0 %v107
    %236 = vmatprep.subr.mxu0 %v112
    %237 = vmatpush1.msra.mxu0 %v111
    %238 = vmatprep.subr.mxu0 %v116
    %239 = vmatpush1.msra.mxu0 %v115
    %240 = vmatprep.subr.mxu0 %v120
    %241 = vmatpush1.msra.mxu0 %v119
    %242 = vmatprep.subr.mxu0 %v124
    %243 = vmatpush1.msra.mxu0 %v123
    %244 = vmatprep.subr.mxu0 %v128
    %245 = vmatpush1.msra.mxu0 %v127
    %246 = vmatprep.subr.mxu0 %v132
    %247 = vmatpush1.msra.mxu0 %v131
    %248 = vmatprep.subr.mxu0 %v136
    %249 = vmatpush1.msra.mxu0 %v135
    %250 = vmatprep.subr.mxu0 %v140
    %251 = vmatpush1.msra.mxu0 %v139
    %252 = vmatprep.subr.mxu0 %v144
    %253 = vmatpush1.msra.mxu0 %v143
    %254 = vmatprep.subr.mxu0 0.0
    %255 = vmatpush1.msra.mxu0 0.0
    %256 = vmatprep.subr.mxu0 0.0
    %257 = vmatpush1.msra.mxu0 0.0
    %258 = vmatprep.subr.mxu0 0.0
    %259 = vmatpush1.msra.mxu0 0.0
    %260 = vmatprep.subr.mxu0 0.0
    %261 = vmatpush1.msra.mxu0 0.0
    %262 = vmatprep.subr.mxu0 0.0
    %263 = vmatpush1.msra.mxu0 0.0
    %264 = vmatprep.subr.mxu0 0.0
    %265 = vmatpush1.msra.mxu0 0.0
    %266 = vmatprep.subr.mxu0 0.0
    %267 = vmatpush1.msra.mxu0 0.0
    %268 = vmatprep.subr.mxu0 0.0
    %269 = vmatpush1.msra.mxu0 0.0
    %270 = vmatprep.subr.mxu0 0.0
    %271 = vmatpush1.msra.mxu0 0.0
    %272 = vmatprep.subr.mxu0 0.0
    %273 = vmatpush1.msra.mxu0 0.0
    %274 = vmatprep.subr.mxu0 0.0
    %275 = vmatpush1.msra.mxu0 0.0
    %276 = vmatprep.subr.mxu0 0.0
    %277 = vmatpush1.msra.mxu0 0.0
    %278 = vmatprep.subr.mxu0 0.0
    %279 = vmatpush1.msra.mxu0 0.0
    %280 = vmatprep.subr.mxu0 0.0
    %281 = vmatpush1.msra.mxu0 0.0
    %282 = vmatprep.subr.mxu0 0.0
    %283 = vmatpush1.msra.mxu0 0.0
    %284 = vmatprep.subr.mxu0 0.0
    %285 = vmatpush1.msra.mxu0 0.0
    %286 = vmatprep.mubr.f32.mxu0 0.0
    %287 = vmatmul.mubr.f32.gmra.mrb[0].mxu0 %v145
    %v288 = vpop.f32.mrb[0].mxu0
    %v289 = vadd.f32 0.0, %v288
    %v290 = vpop.f32.mrb[0].mxu0
    %v291 = vadd.f32 0.0, %v290
    %292 = vdwg.mxu0
    %v293 = vadd.f32 %v147, %v218
    %v294 = vadd.f32 %v148, %v220
    %v295 = vadd.f32 %v149, %v289
    %v296 = vadd.f32 %v150, %v291
    %v297 = vxor.u32 %v293, 2147483648
    %v298 = vmul.f32 %v297, 1.442695
    %v299 = vpow.pop %v298
    %v300 = vadd.f32 %v299, 1.0
    %v301 = vrcp.pop %v300
    %v302 = vmul.f32 1.0, %v301
    %v303 = vxor.u32 %v294, 2147483648
    %v304 = vmul.f32 %v303, 1.442695
    %v305 = vpow.pop %v304
    %v306 = vadd.f32 %v305, 1.0
    %v307 = vrcp.pop %v306
    %v308 = vmul.f32 1.0, %v307
    %v309 = vtanh.pop %v295
    %v310 = vxor.u32 %v296, 2147483648
    %v311 = vmul.f32 %v310, 1.442695
    %v312 = vpow.pop %v311
    %v313 = vadd.f32 %v312, 1.0
    %v314 = vrcp.pop %v313
    %v315 = vmul.f32 1.0, %v314
    %v316 = vmul.f32 %v308, %v146
    %v317 = vmul.f32 %v302, %v309
    %v318 = vadd.f32 %v316, %v317
    %v319 = vtanh.pop %v318
    %v320 = vmul.f32 %v315, %v319
    %321 = vst [vmem:[#allocation12] sm:$0xff] %v320
    %s322 = scalar_lea.vmem [#allocation4], 32
    %v323 = vld [vmem:[%s322] sm:$0xff]
    %v324 = vld [vmem:[%s322 + $0x8] sm:$0xff]
    %v325 = vld [vmem:[%s322 + $0x10] sm:$0xff]
    %v326 = vld [vmem:[%s322 + $0x18] sm:$0xff]
    %327 = vmatprep.subr.mxu0 %v82
    %328 = vmatpush1.msra.mxu0 %v81
    %329 = vmatprep.subr.mxu0 %v86
    %330 = vmatpush1.msra.mxu0 %v85
    %331 = vmatprep.subr.mxu0 %v90
    %332 = vmatpush1.msra.mxu0 %v89
    %333 = vmatprep.subr.mxu0 %v94
    %334 = vmatpush1.msra.mxu0 %v93
    %335 = vmatprep.subr.mxu0 %v98
    %336 = vmatpush1.msra.mxu0 %v97
    %337 = vmatprep.subr.mxu0 %v102
    %338 = vmatpush1.msra.mxu0 %v101
    %339 = vmatprep.subr.mxu0 %v106
    %340 = vmatpush1.msra.mxu0 %v105
    %341 = vmatprep.subr.mxu0 %v110
    %342 = vmatpush1.msra.mxu0 %v109
    %343 = vmatprep.subr.mxu0 %v114
    %344 = vmatpush1.msra.mxu0 %v113
    %345 = vmatprep.subr.mxu0 %v118
    %346 = vmatpush1.msra.mxu0 %v117
    %347 = vmatprep.subr.mxu0 %v122
    %348 = vmatpush1.msra.mxu0 %v121
    %349 = vmatprep.subr.mxu0 %v126
    %350 = vmatpush1.msra.mxu0 %v125
    %351 = vmatprep.subr.mxu0 %v130
    %352 = vmatpush1.msra.mxu0 %v129
    %353 = vmatprep.subr.mxu0 %v134
    %354 = vmatpush1.msra.mxu0 %v133
    %355 = vmatprep.subr.mxu0 %v138
    %356 = vmatpush1.msra.mxu0 %v137
    %357 = vmatprep.subr.mxu0 %v142
    %358 = vmatpush1.msra.mxu0 %v141
    %359 = vmatprep.subr.mxu0 0.0
    %360 = vmatpush1.msra.mxu0 0.0
    %361 = vmatprep.subr.mxu0 0.0
    %362 = vmatpush1.msra.mxu0 0.0
    %363 = vmatprep.subr.mxu0 0.0
    %364 = vmatpush1.msra.mxu0 0.0
    %365 = vmatprep.subr.mxu0 0.0
    %366 = vmatpush1.msra.mxu0 0.0
    %367 = vmatprep.subr.mxu0 0.0
    %368 = vmatpush1.msra.mxu0 0.0
    %369 = vmatprep.subr.mxu0 0.0
    %370 = vmatpush1.msra.mxu0 0.0
    %371 = vmatprep.subr.mxu0 0.0
    %372 = vmatpush1.msra.mxu0 0.0
    %373 = vmatprep.subr.mxu0 0.0
    %374 = vmatpush1.msra.mxu0 0.0
    %375 = vmatprep.subr.mxu0 0.0
    %376 = vmatpush1.msra.mxu0 0.0
    %377 = vmatprep.subr.mxu0 0.0
    %378 = vmatpush1.msra.mxu0 0.0
    %379 = vmatprep.subr.mxu0 0.0
    %380 = vmatpush1.msra.mxu0 0.0
    %381 = vmatprep.subr.mxu0 0.0
    %382 = vmatpush1.msra.mxu0 0.0
    %383 = vmatprep.subr.mxu0 0.0
    %384 = vmatpush1.msra.mxu0 0.0
    %385 = vmatprep.subr.mxu0 0.0
    %386 = vmatpush1.msra.mxu0 0.0
    %387 = vmatprep.subr.mxu0 0.0
    %388 = vmatpush1.msra.mxu0 0.0
    %389 = vmatprep.subr.mxu0 0.0
    %390 = vmatpush1.msra.mxu0 0.0
    %391 = vmatprep.mubr.f32.mxu0 0.0
    %392 = vmatmul.mubr.f32.gmra.mrb[0].mxu0 %v320
    %v393 = vpop.f32.mrb[0].mxu0
    %v394 = vadd.f32 0.0, %v393
    %v395 = vpop.f32.mrb[0].mxu0
    %v396 = vadd.f32 0.0, %v395
    %397 = vdwg.mxu0
    %398 = vmatprep.subr.mxu0 %v84
    %399 = vmatpush1.msra.mxu0 %v83
    %400 = vmatprep.subr.mxu0 %v88
    %401 = vmatpush1.msra.mxu0 %v87
    %402 = vmatprep.subr.mxu0 %v92
    %403 = vmatpush1.msra.mxu0 %v91
    %404 = vmatprep.subr.mxu0 %v96
    %405 = vmatpush1.msra.mxu0 %v95
    %406 = vmatprep.subr.mxu0 %v100
    %407 = vmatpush1.msra.mxu0 %v99
    %408 = vmatprep.subr.mxu0 %v104
    %409 = vmatpush1.msra.mxu0 %v103
    %410 = vmatprep.subr.mxu0 %v108
    %411 = vmatpush1.msra.mxu0 %v107
    %412 = vmatprep.subr.mxu0 %v112
    %413 = vmatpush1.msra.mxu0 %v111
    %414 = vmatprep.subr.mxu0 %v116
    %415 = vmatpush1.msra.mxu0 %v115
    %416 = vmatprep.subr.mxu0 %v120
    %417 = vmatpush1.msra.mxu0 %v119
    %418 = vmatprep.subr.mxu0 %v124
    %419 = vmatpush1.msra.mxu0 %v123
    %420 = vmatprep.subr.mxu0 %v128
    %421 = vmatpush1.msra.mxu0 %v127
    %422 = vmatprep.subr.mxu0 %v132
    %423 = vmatpush1.msra.mxu0 %v131
    %424 = vmatprep.subr.mxu0 %v136
    %425 = vmatpush1.msra.mxu0 %v135
    %426 = vmatprep.subr.mxu0 %v140
    %427 = vmatpush1.msra.mxu0 %v139
    %428 = vmatprep.subr.mxu0 %v144
    %429 = vmatpush1.msra.mxu0 %v143
    %430 = vmatprep.subr.mxu0 0.0
    %431 = vmatpush1.msra.mxu0 0.0
    %432 = vmatprep.subr.mxu0 0.0
    %433 = vmatpush1.msra.mxu0 0.0
    %434 = vmatprep.subr.mxu0 0.0
    %435 = vmatpush1.msra.mxu0 0.0
    %436 = vmatprep.subr.mxu0 0.0
    %437 = vmatpush1.msra.mxu0 0.0
    %438 = vmatprep.subr.mxu0 0.0
    %439 = vmatpush1.msra.mxu0 0.0
    %440 = vmatprep.subr.mxu0 0.0
    %441 = vmatpush1.msra.mxu0 0.0
    %442 = vmatprep.subr.mxu0 0.0
    %443 = vmatpush1.msra.mxu0 0.0
    %444 = vmatprep.subr.mxu0 0.0
    %445 = vmatpush1.msra.mxu0 0.0
    %446 = vmatprep.subr.mxu0 0.0
    %447 = vmatpush1.msra.mxu0 0.0
    %448 = vmatprep.subr.mxu0 0.0
    %449 = vmatpush1.msra.mxu0 0.0
    %450 = vmatprep.subr.mxu0 0.0
    %451 = vmatpush1.msra.mxu0 0.0
    %452 = vmatprep.subr.mxu0 0.0
    %453 = vmatpush1.msra.mxu0 0.0
    %454 = vmatprep.subr.mxu0 0.0
    %455 = vmatpush1.msra.mxu0 0.0
    %456 = vmatprep.subr.mxu0 0.0
    %457 = vmatpush1.msra.mxu0 0.0
    %458 = vmatprep.subr.mxu0 0.0
    %459 = vmatpush1.msra.mxu0 0.0
    %460 = vmatprep.subr.mxu0 0.0
    %461 = vmatpush1.msra.mxu0 0.0
    %462 = vmatprep.mubr.f32.mxu0 0.0
    %463 = vmatmul.mubr.f32.gmra.mrb[0].mxu0 %v320
    %v464 = vpop.f32.mrb[0].mxu0
    %v465 = vadd.f32 0.0, %v464
    %v466 = vpop.f32.mrb[0].mxu0
    %v467 = vadd.f32 0.0, %v466
    %468 = vdwg.mxu0
    %v469 = vadd.f32 %v323, %v394
    %v470 = vadd.f32 %v324, %v396
    %v471 = vadd.f32 %v325, %v465
    %v472 = vadd.f32 %v326, %v467
    %v473 = vxor.u32 %v469, 2147483648
    %v474 = vmul.f32 %v473, 1.442695
    %v475 = vpow.pop %v474
    %v476 = vadd.f32 %v475, 1.0
    %v477 = vrcp.pop %v476
    %v478 = vmul.f32 1.0, %v477
    %v479 = vxor.u32 %v470, 2147483648
    %v480 = vmul.f32 %v479, 1.442695
    %v481 = vpow.pop %v480
    %v482 = vadd.f32 %v481, 1.0
    %v483 = vrcp.pop %v482
    %v484 = vmul.f32 1.0, %v483
    %v485 = vtanh.pop %v471
    %v486 = vxor.u32 %v472, 2147483648
    %v487 = vmul.f32 %v486, 1.442695
    %v488 = vpow.pop %v487
    %v489 = vadd.f32 %v488, 1.0
    %v490 = vrcp.pop %v489
    %v491 = vmul.f32 1.0, %v490
    %v492 = vmul.f32 %v484, %v318
    %v493 = vmul.f32 %v478, %v485
    %v494 = vadd.f32 %v492, %v493
    %v495 = vtanh.pop %v494
    %v496 = vmul.f32 %v491, %v495
    %s497 = scalar_lea.vmem [#allocation12], 8
    %498 = vst [vmem:[%s497] sm:$0xff] %v496
    %s499 = scalar_lea.vmem [#allocation4], 64
    %v500 = vld [vmem:[%s499] sm:$0xff]
    %v501 = vld [vmem:[%s499 + $0x8] sm:$0xff]
    %v502 = vld [vmem:[%s499 + $0x10] sm:$0xff]
    %v503 = vld [vmem:[%s499 + $0x18] sm:$0xff]
    %504 = vmatprep.subr.mxu0 %v82
    %505 = vmatpush1.msra.mxu0 %v81
    %506 = vmatprep.subr.mxu0 %v86
    %507 = vmatpush1.msra.mxu0 %v85
    %508 = vmatprep.subr.mxu0 %v90
    %509 = vmatpush1.msra.mxu0 %v89
    %510 = vmatprep.subr.mxu0 %v94
    %511 = vmatpush1.msra.mxu0 %v93
    %512 = vmatprep.subr.mxu0 %v98
    %513 = vmatpush1.msra.mxu0 %v97
    %514 = vmatprep.subr.mxu0 %v102
    %515 = vmatpush1.msra.mxu0 %v101
    %516 = vmatprep.subr.mxu0 %v106
    %517 = vmatpush1.msra.mxu0 %v105
    %518 = vmatprep.subr.mxu0 %v110
    %519 = vmatpush1.msra.mxu0 %v109
    %520 = vmatprep.subr.mxu0 %v114
    %521 = vmatpush1.msra.mxu0 %v113
    %522 = vmatprep.subr.mxu0 %v118
    %523 = vmatpush1.msra.mxu0 %v117
    %524 = vmatprep.subr.mxu0 %v122
    %525 = vmatpush1.msra.mxu0 %v121
    %526 = vmatprep.subr.mxu0 %v126
    %527 = vmatpush1.msra.mxu0 %v125
    %528 = vmatprep.subr.mxu0 %v130
    %529 = vmatpush1.msra.mxu0 %v129
    %530 = vmatprep.subr.mxu0 %v134
    %531 = vmatpush1.msra.mxu0 %v133
    %532 = vmatprep.subr.mxu0 %v138
    %533 = vmatpush1.msra.mxu0 %v137
    %534 = vmatprep.subr.mxu0 %v142
    %535 = vmatpush1.msra.mxu0 %v141
    %536 = vmatprep.subr.mxu0 0.0
    %537 = vmatpush1.msra.mxu0 0.0
    %538 = vmatprep.subr.mxu0 0.0
    %539 = vmatpush1.msra.mxu0 0.0
    %540 = vmatprep.subr.mxu0 0.0
    %541 = vmatpush1.msra.mxu0 0.0
    %542 = vmatprep.subr.mxu0 0.0
    %543 = vmatpush1.msra.mxu0 0.0
    %544 = vmatprep.subr.mxu0 0.0
    %545 = vmatpush1.msra.mxu0 0.0
    %546 = vmatprep.subr.mxu0 0.0
    %547 = vmatpush1.msra.mxu0 0.0
    %548 = vmatprep.subr.mxu0 0.0
    %549 = vmatpush1.msra.mxu0 0.0
    %550 = vmatprep.subr.mxu0 0.0
    %551 = vmatpush1.msra.mxu0 0.0
    %552 = vmatprep.subr.mxu0 0.0
    %553 = vmatpush1.msra.mxu0 0.0
    %554 = vmatprep.subr.mxu0 0.0
    %555 = vmatpush1.msra.mxu0 0.0
    %556 = vmatprep.subr.mxu0 0.0
    %557 = vmatpush1.msra.mxu0 0.0
    %558 = vmatprep.subr.mxu0 0.0
    %559 = vmatpush1.msra.mxu0 0.0
    %560 = vmatprep.subr.mxu0 0.0
    %561 = vmatpush1.msra.mxu0 0.0
    %562 = vmatprep.subr.mxu0 0.0
    %563 = vmatpush1.msra.mxu0 0.0
    %564 = vmatprep.subr.mxu0 0.0
    %565 = vmatpush1.msra.mxu0 0.0
    %566 = vmatprep.subr.mxu0 0.0
    %567 = vmatpush1.msra.mxu0 0.0
    %568 = vmatprep.mubr.f32.mxu0 0.0
    %569 = vmatmul.mubr.f32.gmra.mrb[0].mxu0 %v496
    %v570 = vpop.f32.mrb[0].mxu0
    %v571 = vadd.f32 0.0, %v570
    %v572 = vpop.f32.mrb[0].mxu0
    %v573 = vadd.f32 0.0, %v572
    %574 = vdwg.mxu0
    %575 = vmatprep.subr.mxu0 %v84
    %576 = vmatpush1.msra.mxu0 %v83
    %577 = vmatprep.subr.mxu0 %v88
    %578 = vmatpush1.msra.mxu0 %v87
    %579 = vmatprep.subr.mxu0 %v92
    %580 = vmatpush1.msra.mxu0 %v91
    %581 = vmatprep.subr.mxu0 %v96
    %582 = vmatpush1.msra.mxu0 %v95
    %583 = vmatprep.subr.mxu0 %v100
    %584 = vmatpush1.msra.mxu0 %v99
    %585 = vmatprep.subr.mxu0 %v104
    %586 = vmatpush1.msra.mxu0 %v103
    %587 = vmatprep.subr.mxu0 %v108
    %588 = vmatpush1.msra.mxu0 %v107
    %589 = vmatprep.subr.mxu0 %v112
    %590 = vmatpush1.msra.mxu0 %v111
    %591 = vmatprep.subr.mxu0 %v116
    %592 = vmatpush1.msra.mxu0 %v115
    %593 = vmatprep.subr.mxu0 %v120
    %594 = vmatpush1.msra.mxu0 %v119
    %595 = vmatprep.subr.mxu0 %v124
    %596 = vmatpush1.msra.mxu0 %v123
    %597 = vmatprep.subr.mxu0 %v128
    %598 = vmatpush1.msra.mxu0 %v127
    %599 = vmatprep.subr.mxu0 %v132
    %600 = vmatpush1.msra.mxu0 %v131
    %601 = vmatprep.subr.mxu0 %v136
    %602 = vmatpush1.msra.mxu0 %v135
    %603 = vmatprep.subr.mxu0 %v140
    %604 = vmatpush1.msra.mxu0 %v139
    %605 = vmatprep.subr.mxu0 %v144
    %606 = vmatpush1.msra.mxu0 %v143
    %607 = vmatprep.subr.mxu0 0.0
    %608 = vmatpush1.msra.mxu0 0.0
    %609 = vmatprep.subr.mxu0 0.0
    %610 = vmatpush1.msra.mxu0 0.0
    %611 = vmatprep.subr.mxu0 0.0
    %612 = vmatpush1.msra.mxu0 0.0
    %613 = vmatprep.subr.mxu0 0.0
    %614 = vmatpush1.msra.mxu0 0.0
    %615 = vmatprep.subr.mxu0 0.0
    %616 = vmatpush1.msra.mxu0 0.0
    %617 = vmatprep.subr.mxu0 0.0
    %618 = vmatpush1.msra.mxu0 0.0
    %619 = vmatprep.subr.mxu0 0.0
    %620 = vmatpush1.msra.mxu0 0.0
    %621 = vmatprep.subr.mxu0 0.0
    %622 = vmatpush1.msra.mxu0 0.0
    %623 = vmatprep.subr.mxu0 0.0
    %624 = vmatpush1.msra.mxu0 0.0
    %625 = vmatprep.subr.mxu0 0.0
    %626 = vmatpush1.msra.mxu0 0.0
    %627 = vmatprep.subr.mxu0 0.0
    %628 = vmatpush1.msra.mxu0 0.0
    %629 = vmatprep.subr.mxu0 0.0
    %630 = vmatpush1.msra.mxu0 0.0
    %631 = vmatprep.subr.mxu0 0.0
    %632 = vmatpush1.msra.mxu0 0.0
    %633 = vmatprep.subr.mxu0 0.0
    %634 = vmatpush1.msra.mxu0 0.0
    %635 = vmatprep.subr.mxu0 0.0
    %636 = vmatpush1.msra.mxu0 0.0
    %637 = vmatprep.subr.mxu0 0.0
    %638 = vmatpush1.msra.mxu0 0.0
    %639 = vmatprep.mubr.f32.mxu0 0.0
    %640 = vmatmul.mubr.f32.gmra.mrb[0].mxu0 %v496
    %v641 = vpop.f32.mrb[0].mxu0
    %v642 = vadd.f32 0.0, %v641
    %v643 = vpop.f32.mrb[0].mxu0
    %v644 = vadd.f32 0.0, %v643
    %645 = vdwg.mxu0
    %v646 = vadd.f32 %v500, %v571
    %v647 = vadd.f32 %v501, %v573
    %v648 = vadd.f32 %v502, %v642
    %v649 = vadd.f32 %v503, %v644
    %v650 = vxor.u32 %v646, 2147483648
    %v651 = vmul.f32 %v650, 1.442695
    %v652 = vpow.pop %v651
    %v653 = vadd.f32 %v652, 1.0
    %v654 = vrcp.pop %v653
    %v655 = vmul.f32 1.0, %v654
    %v656 = vxor.u32 %v647, 2147483648
    %v657 = vmul.f32 %v656, 1.442695
    %v658 = vpow.pop %v657
    %v659 = vadd.f32 %v658, 1.0
    %v660 = vrcp.pop %v659
    %v661 = vmul.f32 1.0, %v660
    %v662 = vtanh.pop %v648
    %v663 = vxor.u32 %v649, 2147483648
    %v664 = vmul.f32 %v663, 1.442695
    %v665 = vpow.pop %v664
    %v666 = vadd.f32 %v665, 1.0
    %v667 = vrcp.pop %v666
    %v668 = vmul.f32 1.0, %v667
    %v669 = vmul.f32 %v661, %v494
    %v670 = vmul.f32 %v655, %v662
    %v671 = vadd.f32 %v669, %v670
    %v672 = vtanh.pop %v671
    %v673 = vmul.f32 %v668, %v672
    %s674 = scalar_lea.vmem [#allocation12], 16
    %675 = vst [vmem:[%s674] sm:$0xff] %v673
    %s676 = scalar_lea.vmem [#allocation4], 96
    %v677 = vld [vmem:[%s676] sm:$0xff]
    %v678 = vld [vmem:[%s676 + $0x8] sm:$0xff]
    %v679 = vld [vmem:[%s676 + $0x10] sm:$0xff]
    %v680 = vld [vmem:[%s676 + $0x18] sm:$0xff]
    %681 = vmatprep.subr.mxu0 %v82
    %682 = vmatpush1.msra.mxu0 %v81
    %683 = vmatprep.subr.mxu0 %v86
    %684 = vmatpush1.msra.mxu0 %v85
    %685 = vmatprep.subr.mxu0 %v90
    %686 = vmatpush1.msra.mxu0 %v89
    %687 = vmatprep.subr.mxu0 %v94
    %688 = vmatpush1.msra.mxu0 %v93
    %689 = vmatprep.subr.mxu0 %v98
    %690 = vmatpush1.msra.mxu0 %v97
    %691 = vmatprep.subr.mxu0 %v102
    %692 = vmatpush1.msra.mxu0 %v101
    %693 = vmatprep.subr.mxu0 %v106
    %694 = vmatpush1.msra.mxu0 %v105
    %695 = vmatprep.subr.mxu0 %v110
    %696 = vmatpush1.msra.mxu0 %v109
    %697 = vmatprep.subr.mxu0 %v114
    %698 = vmatpush1.msra.mxu0 %v113
    %699 = vmatprep.subr.mxu0 %v118
    %700 = vmatpush1.msra.mxu0 %v117
    %701 = vmatprep.subr.mxu0 %v122
    %702 = vmatpush1.msra.mxu0 %v121
    %703 = vmatprep.subr.mxu0 %v126
    %704 = vmatpush1.msra.mxu0 %v125
    %705 = vmatprep.subr.mxu0 %v130
    %706 = vmatpush1.msra.mxu0 %v129
    %707 = vmatprep.subr.mxu0 %v134
    %708 = vmatpush1.msra.mxu0 %v133
    %709 = vmatprep.subr.mxu0 %v138
    %710 = vmatpush1.msra.mxu0 %v137
    %711 = vmatprep.subr.mxu0 %v142
    %712 = vmatpush1.msra.mxu0 %v141
    %713 = vmatprep.subr.mxu0 0.0
    %714 = vmatpush1.msra.mxu0 0.0
    %715 = vmatprep.subr.mxu0 0.0
    %716 = vmatpush1.msra.mxu0 0.0
    %717 = vmatprep.subr.mxu0 0.0
    %718 = vmatpush1.msra.mxu0 0.0
    %719 = vmatprep.subr.mxu0 0.0
    %720 = vmatpush1.msra.mxu0 0.0
    %721 = vmatprep.subr.mxu0 0.0
    %722 = vmatpush1.msra.mxu0 0.0
    %723 = vmatprep.subr.mxu0 0.0
    %724 = vmatpush1.msra.mxu0 0.0
    %725 = vmatprep.subr.mxu0 0.0
    %726 = vmatpush1.msra.mxu0 0.0
    %727 = vmatprep.subr.mxu0 0.0
    %728 = vmatpush1.msra.mxu0 0.0
    %729 = vmatprep.subr.mxu0 0.0
    %730 = vmatpush1.msra.mxu0 0.0
    %731 = vmatprep.subr.mxu0 0.0
    %732 = vmatpush1.msra.mxu0 0.0
    %733 = vmatprep.subr.mxu0 0.0
    %734 = vmatpush1.msra.mxu0 0.0
    %735 = vmatprep.subr.mxu0 0.0
    %736 = vmatpush1.msra.mxu0 0.0
    %737 = vmatprep.subr.mxu0 0.0
    %738 = vmatpush1.msra.mxu0 0.0
    %739 = vmatprep.subr.mxu0 0.0
    %740 = vmatpush1.msra.mxu0 0.0
    %741 = vmatprep.subr.mxu0 0.0
    %742 = vmatpush1.msra.mxu0 0.0
    %743 = vmatprep.subr.mxu0 0.0
    %744 = vmatpush1.msra.mxu0 0.0
    %745 = vmatprep.mubr.f32.mxu0 0.0
    %746 = vmatmul.mubr.f32.gmra.mrb[0].mxu0 %v673
    %v747 = vpop.f32.mrb[0].mxu0
    %v748 = vadd.f32 0.0, %v747
    %v749 = vpop.f32.mrb[0].mxu0
    %v750 = vadd.f32 0.0, %v749
    %751 = vdwg.mxu0
    %752 = vmatprep.subr.mxu0 %v84
    %753 = vmatpush1.msra.mxu0 %v83
    %754 = vmatprep.subr.mxu0 %v88
    %755 = vmatpush1.msra.mxu0 %v87
    %756 = vmatprep.subr.mxu0 %v92
    %757 = vmatpush1.msra.mxu0 %v91
    %758 = vmatprep.subr.mxu0 %v96
    %759 = vmatpush1.msra.mxu0 %v95
    %760 = vmatprep.subr.mxu0 %v100
    %761 = vmatpush1.msra.mxu0 %v99
    %762 = vmatprep.subr.mxu0 %v104
    %763 = vmatpush1.msra.mxu0 %v103
    %764 = vmatprep.subr.mxu0 %v108
    %765 = vmatpush1.msra.mxu0 %v107
    %766 = vmatprep.subr.mxu0 %v112
    %767 = vmatpush1.msra.mxu0 %v111
    %768 = vmatprep.subr.mxu0 %v116
    %769 = vmatpush1.msra.mxu0 %v115
    %770 = vmatprep.subr.mxu0 %v120
    %771 = vmatpush1.msra.mxu0 %v119
    %772 = vmatprep.subr.mxu0 %v124
    %773 = vmatpush1.msra.mxu0 %v123
    %774 = vmatprep.subr.mxu0 %v128
    %775 = vmatpush1.msra.mxu0 %v127
    %776 = vmatprep.subr.mxu0 %v132
    %777 = vmatpush1.msra.mxu0 %v131
    %778 = vmatprep.subr.mxu0 %v136
    %779 = vmatpush1.msra.mxu0 %v135
    %780 = vmatprep.subr.mxu0 %v140
    %781 = vmatpush1.msra.mxu0 %v139
    %782 = vmatprep.subr.mxu0 %v144
    %783 = vmatpush1.msra.mxu0 %v143
    %784 = vmatprep.subr.mxu0 0.0
    %785 = vmatpush1.msra.mxu0 0.0
    %786 = vmatprep.subr.mxu0 0.0
    %787 = vmatpush1.msra.mxu0 0.0
    %788 = vmatprep.subr.mxu0 0.0
    %789 = vmatpush1.msra.mxu0 0.0
    %790 = vmatprep.subr.mxu0 0.0
    %791 = vmatpush1.msra.mxu0 0.0
    %792 = vmatprep.subr.mxu0 0.0
    %793 = vmatpush1.msra.mxu0 0.0
    %794 = vmatprep.subr.mxu0 0.0
    %795 = vmatpush1.msra.mxu0 0.0
    %796 = vmatprep.subr.mxu0 0.0
    %797 = vmatpush1.msra.mxu0 0.0
    %798 = vmatprep.subr.mxu0 0.0
    %799 = vmatpush1.msra.mxu0 0.0
    %800 = vmatprep.subr.mxu0 0.0
    %801 = vmatpush1.msra.mxu0 0.0
    %802 = vmatprep.subr.mxu0 0.0
    %803 = vmatpush1.msra.mxu0 0.0
    %804 = vmatprep.subr.mxu0 0.0
    %805 = vmatpush1.msra.mxu0 0.0
    %806 = vmatprep.subr.mxu0 0.0
    %807 = vmatpush1.msra.mxu0 0.0
    %808 = vmatprep.subr.mxu0 0.0
    %809 = vmatpush1.msra.mxu0 0.0
    %810 = vmatprep.subr.mxu0 0.0
    %811 = vmatpush1.msra.mxu0 0.0
    %812 = vmatprep.subr.mxu0 0.0
    %813 = vmatpush1.msra.mxu0 0.0
    %814 = vmatprep.subr.mxu0 0.0
    %815 = vmatpush1.msra.mxu0 0.0
    %816 = vmatprep.mubr.f32.mxu0 0.0
    %817 = vmatmul.mubr.f32.gmra.mrb[0].mxu0 %v673
    %v818 = vpop.f32.mrb[0].mxu0
    %v819 = vadd.f32 0.0, %v818
    %v820 = vpop.f32.mrb[0].mxu0
    %v821 = vadd.f32 0.0, %v820
    %822 = vdwg.mxu0
    %v823 = vadd.f32 %v677, %v748
    %v824 = vadd.f32 %v678, %v750
    %v825 = vadd.f32 %v679, %v819
    %v826 = vadd.f32 %v680, %v821
    %v827 = vxor.u32 %v823, 2147483648
    %v828 = vmul.f32 %v827, 1.442695
    %v829 = vpow.pop %v828
    %v830 = vadd.f32 %v829, 1.0
    %v831 = vrcp.pop %v830
    %v832 = vmul.f32 1.0, %v831
    %v833 = vxor.u32 %v824, 2147483648
    %v834 = vmul.f32 %v833, 1.442695
    %v835 = vpow.pop %v834
    %v836 = vadd.f32 %v835, 1.0
    %v837 = vrcp.pop %v836
    %v838 = vmul.f32 1.0, %v837
    %v839 = vtanh.pop %v825
    %v840 = vxor.u32 %v826, 2147483648
    %v841 = vmul.f32 %v840, 1.442695
    %v842 = vpow.pop %v841
    %v843 = vadd.f32 %v842, 1.0
    %v844 = vrcp.pop %v843
    %v845 = vmul.f32 1.0, %v844
    %v846 = vmul.f32 %v838, %v671
    %v847 = vmul.f32 %v832, %v839
    %v848 = vadd.f32 %v846, %v847
    %v849 = vtanh.pop %v848
    %v850 = vmul.f32 %v845, %v849
    %s851 = scalar_lea.vmem [#allocation12], 24
    %852 = vst [vmem:[%s851] sm:$0xff] %v850
    %s853 = scalar_lea.vmem [#allocation4], 128
    %v854 = vld [vmem:[%s853] sm:$0xff]
    %v855 = vld [vmem:[%s853 + $0x8] sm:$0xff]
    %v856 = vld [vmem:[%s853 + $0x10] sm:$0xff]
    %v857 = vld [vmem:[%s853 + $0x18] sm:$0xff]
    %858 = vmatprep.subr.mxu0 %v82
    %859 = vmatpush1.msra.mxu0 %v81
    %860 = vmatprep.subr.mxu0 %v86
    %861 = vmatpush1.msra.mxu0 %v85
    %862 = vmatprep.subr.mxu0 %v90
    %863 = vmatpush1.msra.mxu0 %v89
    %864 = vmatprep.subr.mxu0 %v94
    %865 = vmatpush1.msra.mxu0 %v93
    %866 = vmatprep.subr.mxu0 %v98
    %867 = vmatpush1.msra.mxu0 %v97
    %868 = vmatprep.subr.mxu0 %v102
    %869 = vmatpush1.msra.mxu0 %v101
    %870 = vmatprep.subr.mxu0 %v106
    %871 = vmatpush1.msra.mxu0 %v105
    %872 = vmatprep.subr.mxu0 %v110
    %873 = vmatpush1.msra.mxu0 %v109
    %874 = vmatprep.subr.mxu0 %v114
    %875 = vmatpush1.msra.mxu0 %v113
    %876 = vmatprep.subr.mxu0 %v118
    %877 = vmatpush1.msra.mxu0 %v117
    %878 = vmatprep.subr.mxu0 %v122
    %879 = vmatpush1.msra.mxu0 %v121
    %880 = vmatprep.subr.mxu0 %v126
    %881 = vmatpush1.msra.mxu0 %v125
    %882 = vmatprep.subr.mxu0 %v130
    %883 = vmatpush1.msra.mxu0 %v129
    %884 = vmatprep.subr.mxu0 %v134
    %885 = vmatpush1.msra.mxu0 %v133
    %886 = vmatprep.subr.mxu0 %v138
    %887 = vmatpush1.msra.mxu0 %v137
    %888 = vmatprep.subr.mxu0 %v142
    %889 = vmatpush1.msra.mxu0 %v141
    %890 = vmatprep.subr.mxu0 0.0
    %891 = vmatpush1.msra.mxu0 0.0
    %892 = vmatprep.subr.mxu0 0.0
    %893 = vmatpush1.msra.mxu0 0.0
    %894 = vmatprep.subr.mxu0 0.0
    %895 = vmatpush1.msra.mxu0 0.0
    %896 = vmatprep.subr.mxu0 0.0
    %897 = vmatpush1.msra.mxu0 0.0
    %898 = vmatprep.subr.mxu0 0.0
    %899 = vmatpush1.msra.mxu0 0.0
    %900 = vmatprep.subr.mxu0 0.0
    %901 = vmatpush1.msra.mxu0 0.0
    %902 = vmatprep.subr.mxu0 0.0
    %903 = vmatpush1.msra.mxu0 0.0
    %904 = vmatprep.subr.mxu0 0.0
    %905 = vmatpush1.msra.mxu0 0.0
    %906 = vmatprep.subr.mxu0 0.0
    %907 = vmatpush1.msra.mxu0 0.0
    %908 = vmatprep.subr.mxu0 0.0
    %909 = vmatpush1.msra.mxu0 0.0
    %910 = vmatprep.subr.mxu0 0.0
    %911 = vmatpush1.msra.mxu0 0.0
    %912 = vmatprep.subr.mxu0 0.0
    %913 = vmatpush1.msra.mxu0 0.0
    %914 = vmatprep.subr.mxu0 0.0
    %915 = vmatpush1.msra.mxu0 0.0
    %916 = vmatprep.subr.mxu0 0.0
    %917 = vmatpush1.msra.mxu0 0.0
    %918 = vmatprep.subr.mxu0 0.0
    %919 = vmatpush1.msra.mxu0 0.0
    %920 = vmatprep.subr.mxu0 0.0
    %921 = vmatpush1.msra.mxu0 0.0
    %922 = vmatprep.mubr.f32.mxu0 0.0
    %923 = vmatmul.mubr.f32.gmra.mrb[0].mxu0 %v850
    %v924 = vpop.f32.mrb[0].mxu0
    %v925 = vadd.f32 0.0, %v924
    %v926 = vpop.f32.mrb[0].mxu0
    %v927 = vadd.f32 0.0, %v926
    %928 = vdwg.mxu0
    %929 = vmatprep.subr.mxu0 %v84
    %930 = vmatpush1.msra.mxu0 %v83
    %931 = vmatprep.subr.mxu0 %v88
    %932 = vmatpush1.msra.mxu0 %v87
    %933 = vmatprep.subr.mxu0 %v92
    %934 = vmatpush1.msra.mxu0 %v91
    %935 = vmatprep.subr.mxu0 %v96
    %936 = vmatpush1.msra.mxu0 %v95
    %937 = vmatprep.subr.mxu0 %v100
    %938 = vmatpush1.msra.mxu0 %v99
    %939 = vmatprep.subr.mxu0 %v104
    %940 = vmatpush1.msra.mxu0 %v103
    %941 = vmatprep.subr.mxu0 %v108
    %942 = vmatpush1.msra.mxu0 %v107
    %943 = vmatprep.subr.mxu0 %v112
    %944 = vmatpush1.msra.mxu0 %v111
    %945 = vmatprep.subr.mxu0 %v116
    %946 = vmatpush1.msra.mxu0 %v115
    %947 = vmatprep.subr.mxu0 %v120
    %948 = vmatpush1.msra.mxu0 %v119
    %949 = vmatprep.subr.mxu0 %v124
    %950 = vmatpush1.msra.mxu0 %v123
    %951 = vmatprep.subr.mxu0 %v128
    %952 = vmatpush1.msra.mxu0 %v127
    %953 = vmatprep.subr.mxu0 %v132
    %954 = vmatpush1.msra.mxu0 %v131
    %955 = vmatprep.subr.mxu0 %v136
    %956 = vmatpush1.msra.mxu0 %v135
    %957 = vmatprep.subr.mxu0 %v140
    %958 = vmatpush1.msra.mxu0 %v139
    %959 = vmatprep.subr.mxu0 %v144
    %960 = vmatpush1.msra.mxu0 %v143
    %961 = vmatprep.subr.mxu0 0.0
    %962 = vmatpush1.msra.mxu0 0.0
    %963 = vmatprep.subr.mxu0 0.0
    %964 = vmatpush1.msra.mxu0 0.0
    %965 = vmatprep.subr.mxu0 0.0
    %966 = vmatpush1.msra.mxu0 0.0
    %967 = vmatprep.subr.mxu0 0.0
    %968 = vmatpush1.msra.mxu0 0.0
    %969 = vmatprep.subr.mxu0 0.0
    %970 = vmatpush1.msra.mxu0 0.0
    %971 = vmatprep.subr.mxu0 0.0
    %972 = vmatpush1.msra.mxu0 0.0
    %973 = vmatprep.subr.mxu0 0.0
    %974 = vmatpush1.msra.mxu0 0.0
    %975 = vmatprep.subr.mxu0 0.0
    %976 = vmatpush1.msra.mxu0 0.0
    %977 = vmatprep.subr.mxu0 0.0
    %978 = vmatpush1.msra.mxu0 0.0
    %979 = vmatprep.subr.mxu0 0.0
    %980 = vmatpush1.msra.mxu0 0.0
    %981 = vmatprep.subr.mxu0 0.0
    %982 = vmatpush1.msra.mxu0 0.0
    %983 = vmatprep.subr.mxu0 0.0
    %984 = vmatpush1.msra.mxu0 0.0
    %985 = vmatprep.subr.mxu0 0.0
    %986 = vmatpush1.msra.mxu0 0.0
    %987 = vmatprep.subr.mxu0 0.0
    %988 = vmatpush1.msra.mxu0 0.0
    %989 = vmatprep.subr.mxu0 0.0
    %990 = vmatpush1.msra.mxu0 0.0
    %991 = vmatprep.subr.mxu0 0.0
    %992 = vmatpush1.msra.mxu0 0.0
    %993 = vmatprep.mubr.f32.mxu0 0.0
    %994 = vmatmul.mubr.f32.gmra.mrb[0].mxu0 %v850
    %v995 = vpop.f32.mrb[0].mxu0
    %v996 = vadd.f32 0.0, %v995
    %v997 = vpop.f32.mrb[0].mxu0
    %v998 = vadd.f32 0.0, %v997
    %999 = vdwg.mxu0
    %v1000 = vadd.f32 %v854, %v925
    %v1001 = vadd.f32 %v855, %v927
    %v1002 = vadd.f32 %v856, %v996
    %v1003 = vadd.f32 %v857, %v998
    %v1004 = vxor.u32 %v1000, 2147483648
    %v1005 = vmul.f32 %v1004, 1.442695
    %v1006 = vpow.pop %v1005
    %v1007 = vadd.f32 %v1006, 1.0
    %v1008 = vrcp.pop %v1007
    %v1009 = vmul.f32 1.0, %v1008
    %v1010 = vxor.u32 %v1001, 2147483648
    %v1011 = vmul.f32 %v1010, 1.442695
    %v1012 = vpow.pop %v1011
    %v1013 = vadd.f32 %v1012, 1.0
    %v1014 = vrcp.pop %v1013
    %v1015 = vmul.f32 1.0, %v1014
    %v1016 = vtanh.pop %v1002
    %v1017 = vxor.u32 %v1003, 2147483648
    %v1018 = vmul.f32 %v1017, 1.442695
    %v1019 = vpow.pop %v1018
    %v1020 = vadd.f32 %v1019, 1.0
    %v1021 = vrcp.pop %v1020
    %v1022 = vmul.f32 1.0, %v1021
    %v1023 = vmul.f32 %v1015, %v848
    %v1024 = vmul.f32 %v1009, %v1016
    %v1025 = vadd.f32 %v1023, %v1024
    %v1026 = vtanh.pop %v1025
    %v1027 = vmul.f32 %v1022, %v1026
    %s1028 = scalar_lea.vmem [#allocation12], 32
    %1029 = vst [vmem:[%s1028] sm:$0xff] %v1027
    %s1030 = scalar_lea.vmem [#allocation4], 160
    %v1031 = vld [vmem:[%s1030] sm:$0xff]
    %v1032 = vld [vmem:[%s1030 + $0x8] sm:$0xff]
    %v1033 = vld [vmem:[%s1030 + $0x10] sm:$0xff]
    %v1034 = vld [vmem:[%s1030 + $0x18] sm:$0xff]
    %1035 = vmatprep.subr.mxu0 %v82
    %1036 = vmatpush1.msra.mxu0 %v81
    %1037 = vmatprep.subr.mxu0 %v86
    %1038 = vmatpush1.msra.mxu0 %v85
    %1039 = vmatprep.subr.mxu0 %v90
    %1040 = vmatpush1.msra.mxu0 %v89
    %1041 = vmatprep.subr.mxu0 %v94
    %1042 = vmatpush1.msra.mxu0 %v93
    %1043 = vmatprep.subr.mxu0 %v98
    %1044 = vmatpush1.msra.mxu0 %v97
    %1045 = vmatprep.subr.mxu0 %v102
    %1046 = vmatpush1.msra.mxu0 %v101
    %1047 = vmatprep.subr.mxu0 %v106
    %1048 = vmatpush1.msra.mxu0 %v105
    %1049 = vmatprep.subr.mxu0 %v110
    %1050 = vmatpush1.msra.mxu0 %v109
    %1051 = vmatprep.subr.mxu0 %v114
    %1052 = vmatpush1.msra.mxu0 %v113
    %1053 = vmatprep.subr.mxu0 %v118
    %1054 = vmatpush1.msra.mxu0 %v117
    %1055 = vmatprep.subr.mxu0 %v122
    %1056 = vmatpush1.msra.mxu0 %v121
    %1057 = vmatprep.subr.mxu0 %v126
    %1058 = vmatpush1.msra.mxu0 %v125
    %1059 = vmatprep.subr.mxu0 %v130
    %1060 = vmatpush1.msra.mxu0 %v129
    %1061 = vmatprep.subr.mxu0 %v134
    %1062 = vmatpush1.msra.mxu0 %v133
    %1063 = vmatprep.subr.mxu0 %v138
    %1064 = vmatpush1.msra.mxu0 %v137
    %1065 = vmatprep.subr.mxu0 %v142
    %1066 = vmatpush1.msra.mxu0 %v141
    %1067 = vmatprep.subr.mxu0 0.0
    %1068 = vmatpush1.msra.mxu0 0.0
    %1069 = vmatprep.subr.mxu0 0.0
    %1070 = vmatpush1.msra.mxu0 0.0
    %1071 = vmatprep.subr.mxu0 0.0
    %1072 = vmatpush1.msra.mxu0 0.0
    %1073 = vmatprep.subr.mxu0 0.0
    %1074 = vmatpush1.msra.mxu0 0.0
    %1075 = vmatprep.subr.mxu0 0.0
    %1076 = vmatpush1.msra.mxu0 0.0
    %1077 = vmatprep.subr.mxu0 0.0
    %1078 = vmatpush1.msra.mxu0 0.0
    %1079 = vmatprep.subr.mxu0 0.0
    %1080 = vmatpush1.msra.mxu0 0.0
    %1081 = vmatprep.subr.mxu0 0.0
    %1082 = vmatpush1.msra.mxu0 0.0
    %1083 = vmatprep.subr.mxu0 0.0
    %1084 = vmatpush1.msra.mxu0 0.0
    %1085 = vmatprep.subr.mxu0 0.0
    %1086 = vmatpush1.msra.mxu0 0.0
    %1087 = vmatprep.subr.mxu0 0.0
    %1088 = vmatpush1.msra.mxu0 0.0
    %1089 = vmatprep.subr.mxu0 0.0
    %1090 = vmatpush1.msra.mxu0 0.0
    %1091 = vmatprep.subr.mxu0 0.0
    %1092 = vmatpush1.msra.mxu0 0.0
    %1093 = vmatprep.subr.mxu0 0.0
    %1094 = vmatpush1.msra.mxu0 0.0
    %1095 = vmatprep.subr.mxu0 0.0
    %1096 = vmatpush1.msra.mxu0 0.0
    %1097 = vmatprep.subr.mxu0 0.0
    %1098 = vmatpush1.msra.mxu0 0.0
    %1099 = vmatprep.mubr.f32.mxu0 0.0
    %1100 = vmatmul.mubr.f32.gmra.mrb[0].mxu0 %v1027
    %v1101 = vpop.f32.mrb[0].mxu0
    %v1102 = vadd.f32 0.0, %v1101
    %v1103 = vpop.f32.mrb[0].mxu0
    %v1104 = vadd.f32 0.0, %v1103
    %1105 = vdwg.mxu0
    %1106 = vmatprep.subr.mxu0 %v84
    %1107 = vmatpush1.msra.mxu0 %v83
    %1108 = vmatprep.subr.mxu0 %v88
    %1109 = vmatpush1.msra.mxu0 %v87
    %1110 = vmatprep.subr.mxu0 %v92
    %1111 = vmatpush1.msra.mxu0 %v91
    %1112 = vmatprep.subr.mxu0 %v96
    %1113 = vmatpush1.msra.mxu0 %v95
    %1114 = vmatprep.subr.mxu0 %v100
    %1115 = vmatpush1.msra.mxu0 %v99
    %1116 = vmatprep.subr.mxu0 %v104
    %1117 = vmatpush1.msra.mxu0 %v103
    %1118 = vmatprep.subr.mxu0 %v108
    %1119 = vmatpush1.msra.mxu0 %v107
    %1120 = vmatprep.subr.mxu0 %v112
    %1121 = vmatpush1.msra.mxu0 %v111
    %1122 = vmatprep.subr.mxu0 %v116
    %1123 = vmatpush1.msra.mxu0 %v115
    %1124 = vmatprep.subr.mxu0 %v120
    %1125 = vmatpush1.msra.mxu0 %v119
    %1126 = vmatprep.subr.mxu0 %v124
    %1127 = vmatpush1.msra.mxu0 %v123
    %1128 = vmatprep.subr.mxu0 %v128
    %1129 = vmatpush1.msra.mxu0 %v127
    %1130 = vmatprep.subr.mxu0 %v132
    %1131 = vmatpush1.msra.mxu0 %v131
    %1132 = vmatprep.subr.mxu0 %v136
    %1133 = vmatpush1.msra.mxu0 %v135
    %1134 = vmatprep.subr.mxu0 %v140
    %1135 = vmatpush1.msra.mxu0 %v139
    %1136 = vmatprep.subr.mxu0 %v144
    %1137 = vmatpush1.msra.mxu0 %v143
    %1138 = vmatprep.subr.mxu0 0.0
    %1139 = vmatpush1.msra.mxu0 0.0
    %1140 = vmatprep.subr.mxu0 0.0
    %1141 = vmatpush1.msra.mxu0 0.0
    %1142 = vmatprep.subr.mxu0 0.0
    %1143 = vmatpush1.msra.mxu0 0.0
    %1144 = vmatprep.subr.mxu0 0.0
    %1145 = vmatpush1.msra.mxu0 0.0
    %1146 = vmatprep.subr.mxu0 0.0
    %1147 = vmatpush1.msra.mxu0 0.0
    %1148 = vmatprep.subr.mxu0 0.0
    %1149 = vmatpush1.msra.mxu0 0.0
    %1150 = vmatprep.subr.mxu0 0.0
    %1151 = vmatpush1.msra.mxu0 0.0
    %1152 = vmatprep.subr.mxu0 0.0
    %1153 = vmatpush1.msra.mxu0 0.0
    %1154 = vmatprep.subr.mxu0 0.0
    %1155 = vmatpush1.msra.mxu0 0.0
    %1156 = vmatprep.subr.mxu0 0.0
    %1157 = vmatpush1.msra.mxu0 0.0
    %1158 = vmatprep.subr.mxu0 0.0
    %1159 = vmatpush1.msra.mxu0 0.0
    %1160 = vmatprep.subr.mxu0 0.0
    %1161 = vmatpush1.msra.mxu0 0.0
    %1162 = vmatprep.subr.mxu0 0.0
    %1163 = vmatpush1.msra.mxu0 0.0
    %1164 = vmatprep.subr.mxu0 0.0
    %1165 = vmatpush1.msra.mxu0 0.0
    %1166 = vmatprep.subr.mxu0 0.0
    %1167 = vmatpush1.msra.mxu0 0.0
    %1168 = vmatprep.subr.mxu0 0.0
    %1169 = vmatpush1.msra.mxu0 0.0
    %1170 = vmatprep.mubr.f32.mxu0 0.0
    %1171 = vmatmul.mubr.f32.gmra.mrb[0].mxu0 %v1027
    %v1172 = vpop.f32.mrb[0].mxu0
    %v1173 = vadd.f32 0.0, %v1172
    %v1174 = vpop.f32.mrb[0].mxu0
    %v1175 = vadd.f32 0.0, %v1174
    %1176 = vdwg.mxu0
    %v1177 = vadd.f32 %v1031, %v1102
    %v1178 = vadd.f32 %v1032, %v1104
    %v1179 = vadd.f32 %v1033, %v1173
    %v1180 = vadd.f32 %v1034, %v1175
    %v1181 = vxor.u32 %v1177, 2147483648
    %v1182 = vmul.f32 %v1181, 1.442695
    %v1183 = vpow.pop %v1182
    %v1184 = vadd.f32 %v1183, 1.0
    %v1185 = vrcp.pop %v1184
    %v1186 = vmul.f32 1.0, %v1185
    %v1187 = vxor.u32 %v1178, 2147483648
    %v1188 = vmul.f32 %v1187, 1.442695
    %v1189 = vpow.pop %v1188
    %v1190 = vadd.f32 %v1189, 1.0
    %v1191 = vrcp.pop %v1190
    %v1192 = vmul.f32 1.0, %v1191
    %v1193 = vtanh.pop %v1179
    %v1194 = vxor.u32 %v1180, 2147483648
    %v1195 = vmul.f32 %v1194, 1.442695
    %v1196 = vpow.pop %v1195
    %v1197 = vadd.f32 %v1196, 1.0
    %v1198 = vrcp.pop %v1197
    %v1199 = vmul.f32 1.0, %v1198
    %v1200 = vmul.f32 %v1192, %v1025
    %v1201 = vmul.f32 %v1186, %v1193
    %v1202 = vadd.f32 %v1200, %v1201
    %v1203 = vtanh.pop %v1202
    %v1204 = vmul.f32 %v1199, %v1203
    %s1205 = scalar_lea.vmem [#allocation12], 40
    %1206 = vst [vmem:[%s1205] sm:$0xff] %v1204
    %s1207 = scalar_lea.vmem [#allocation4], 192
    %v1208 = vld [vmem:[%s1207] sm:$0xff]
    %v1209 = vld [vmem:[%s1207 + $0x8] sm:$0xff]
    %v1210 = vld [vmem:[%s1207 + $0x10] sm:$0xff]
    %v1211 = vld [vmem:[%s1207 + $0x18] sm:$0xff]
    %1212 = vmatprep.subr.mxu0 %v82
    %1213 = vmatpush1.msra.mxu0 %v81
    %1214 = vmatprep.subr.mxu0 %v86
    %1215 = vmatpush1.msra.mxu0 %v85
    %1216 = vmatprep.subr.mxu0 %v90
    %1217 = vmatpush1.msra.mxu0 %v89
    %1218 = vmatprep.subr.mxu0 %v94
    %1219 = vmatpush1.msra.mxu0 %v93
    %1220 = vmatprep.subr.mxu0 %v98
    %1221 = vmatpush1.msra.mxu0 %v97
    %1222 = vmatprep.subr.mxu0 %v102
    %1223 = vmatpush1.msra.mxu0 %v101
    %1224 = vmatprep.subr.mxu0 %v106
    %1225 = vmatpush1.msra.mxu0 %v105
    %1226 = vmatprep.subr.mxu0 %v110
    %1227 = vmatpush1.msra.mxu0 %v109
    %1228 = vmatprep.subr.mxu0 %v114
    %1229 = vmatpush1.msra.mxu0 %v113
    %1230 = vmatprep.subr.mxu0 %v118
    %1231 = vmatpush1.msra.mxu0 %v117
    %1232 = vmatprep.subr.mxu0 %v122
    %1233 = vmatpush1.msra.mxu0 %v121
    %1234 = vmatprep.subr.mxu0 %v126
    %1235 = vmatpush1.msra.mxu0 %v125
    %1236 = vmatprep.subr.mxu0 %v130
    %1237 = vmatpush1.msra.mxu0 %v129
    %1238 = vmatprep.subr.mxu0 %v134
    %1239 = vmatpush1.msra.mxu0 %v133
    %1240 = vmatprep.subr.mxu0 %v138
    %1241 = vmatpush1.msra.mxu0 %v137
    %1242 = vmatprep.subr.mxu0 %v142
    %1243 = vmatpush1.msra.mxu0 %v141
    %1244 = vmatprep.subr.mxu0 0.0
    %1245 = vmatpush1.msra.mxu0 0.0
    %1246 = vmatprep.subr.mxu0 0.0
    %1247 = vmatpush1.msra.mxu0 0.0
    %1248 = vmatprep.subr.mxu0 0.0
    %1249 = vmatpush1.msra.mxu0 0.0
    %1250 = vmatprep.subr.mxu0 0.0
    %1251 = vmatpush1.msra.mxu0 0.0
    %1252 = vmatprep.subr.mxu0 0.0
    %1253 = vmatpush1.msra.mxu0 0.0
    %1254 = vmatprep.subr.mxu0 0.0
    %1255 = vmatpush1.msra.mxu0 0.0
    %1256 = vmatprep.subr.mxu0 0.0
    %1257 = vmatpush1.msra.mxu0 0.0
    %1258 = vmatprep.subr.mxu0 0.0
    %1259 = vmatpush1.msra.mxu0 0.0
    %1260 = vmatprep.subr.mxu0 0.0
    %1261 = vmatpush1.msra.mxu0 0.0
    %1262 = vmatprep.subr.mxu0 0.0
    %1263 = vmatpush1.msra.mxu0 0.0
    %1264 = vmatprep.subr.mxu0 0.0
    %1265 = vmatpush1.msra.mxu0 0.0
    %1266 = vmatprep.subr.mxu0 0.0
    %1267 = vmatpush1.msra.mxu0 0.0
    %1268 = vmatprep.subr.mxu0 0.0
    %1269 = vmatpush1.msra.mxu0 0.0
    %1270 = vmatprep.subr.mxu0 0.0
    %1271 = vmatpush1.msra.mxu0 0.0
    %1272 = vmatprep.subr.mxu0 0.0
    %1273 = vmatpush1.msra.mxu0 0.0
    %1274 = vmatprep.subr.mxu0 0.0
    %1275 = vmatpush1.msra.mxu0 0.0
    %1276 = vmatprep.mubr.f32.mxu0 0.0
    %1277 = vmatmul.mubr.f32.gmra.mrb[0].mxu0 %v1204
    %v1278 = vpop.f32.mrb[0].mxu0
    %v1279 = vadd.f32 0.0, %v1278
    %v1280 = vpop.f32.mrb[0].mxu0
    %v1281 = vadd.f32 0.0, %v1280
    %1282 = vdwg.mxu0
    %1283 = vmatprep.subr.mxu0 %v84
    %1284 = vmatpush1.msra.mxu0 %v83
    %1285 = vmatprep.subr.mxu0 %v88
    %1286 = vmatpush1.msra.mxu0 %v87
    %1287 = vmatprep.subr.mxu0 %v92
    %1288 = vmatpush1.msra.mxu0 %v91
    %1289 = vmatprep.subr.mxu0 %v96
    %1290 = vmatpush1.msra.mxu0 %v95
    %1291 = vmatprep.subr.mxu0 %v100
    %1292 = vmatpush1.msra.mxu0 %v99
    %1293 = vmatprep.subr.mxu0 %v104
    %1294 = vmatpush1.msra.mxu0 %v103
    %1295 = vmatprep.subr.mxu0 %v108
    %1296 = vmatpush1.msra.mxu0 %v107
    %1297 = vmatprep.subr.mxu0 %v112
    %1298 = vmatpush1.msra.mxu0 %v111
    %1299 = vmatprep.subr.mxu0 %v116
    %1300 = vmatpush1.msra.mxu0 %v115
    %1301 = vmatprep.subr.mxu0 %v120
    %1302 = vmatpush1.msra.mxu0 %v119
    %1303 = vmatprep.subr.mxu0 %v124
    %1304 = vmatpush1.msra.mxu0 %v123
    %1305 = vmatprep.subr.mxu0 %v128
    %1306 = vmatpush1.msra.mxu0 %v127
    %1307 = vmatprep.subr.mxu0 %v132
    %1308 = vmatpush1.msra.mxu0 %v131
    %1309 = vmatprep.subr.mxu0 %v136
    %1310 = vmatpush1.msra.mxu0 %v135
    %1311 = vmatprep.subr.mxu0 %v140
    %1312 = vmatpush1.msra.mxu0 %v139
    %1313 = vmatprep.subr.mxu0 %v144
    %1314 = vmatpush1.msra.mxu0 %v143
    %1315 = vmatprep.subr.mxu0 0.0
    %1316 = vmatpush1.msra.mxu0 0.0
    %1317 = vmatprep.subr.mxu0 0.0
    %1318 = vmatpush1.msra.mxu0 0.0
    %1319 = vmatprep.subr.mxu0 0.0
    %1320 = vmatpush1.msra.mxu0 0.0
    %1321 = vmatprep.subr.mxu0 0.0
    %1322 = vmatpush1.msra.mxu0 0.0
    %1323 = vmatprep.subr.mxu0 0.0
    %1324 = vmatpush1.msra.mxu0 0.0
    %1325 = vmatprep.subr.mxu0 0.0
    %1326 = vmatpush1.msra.mxu0 0.0
    %1327 = vmatprep.subr.mxu0 0.0
    %1328 = vmatpush1.msra.mxu0 0.0
    %1329 = vmatprep.subr.mxu0 0.0
    %1330 = vmatpush1.msra.mxu0 0.0
    %1331 = vmatprep.subr.mxu0 0.0
    %1332 = vmatpush1.msra.mxu0 0.0
    %1333 = vmatprep.subr.mxu0 0.0
    %1334 = vmatpush1.msra.mxu0 0.0
    %1335 = vmatprep.subr.mxu0 0.0
    %1336 = vmatpush1.msra.mxu0 0.0
    %1337 = vmatprep.subr.mxu0 0.0
    %1338 = vmatpush1.msra.mxu0 0.0
    %1339 = vmatprep.subr.mxu0 0.0
    %1340 = vmatpush1.msra.mxu0 0.0
    %1341 = vmatprep.subr.mxu0 0.0
    %1342 = vmatpush1.msra.mxu0 0.0
    %1343 = vmatprep.subr.mxu0 0.0
    %1344 = vmatpush1.msra.mxu0 0.0
    %1345 = vmatprep.subr.mxu0 0.0
    %1346 = vmatpush1.msra.mxu0 0.0
    %1347 = vmatprep.mubr.f32.mxu0 0.0
    %1348 = vmatmul.mubr.f32.gmra.mrb[0].mxu0 %v1204
    %v1349 = vpop.f32.mrb[0].mxu0
    %v1350 = vadd.f32 0.0, %v1349
    %v1351 = vpop.f32.mrb[0].mxu0
    %v1352 = vadd.f32 0.0, %v1351
    %1353 = vdwg.mxu0
    %v1354 = vadd.f32 %v1208, %v1279
    %v1355 = vadd.f32 %v1209, %v1281
    %v1356 = vadd.f32 %v1210, %v1350
    %v1357 = vadd.f32 %v1211, %v1352
    %v1358 = vxor.u32 %v1354, 2147483648
    %v1359 = vmul.f32 %v1358, 1.442695
    %v1360 = vpow.pop %v1359
    %v1361 = vadd.f32 %v1360, 1.0
    %v1362 = vrcp.pop %v1361
    %v1363 = vmul.f32 1.0, %v1362
    %v1364 = vxor.u32 %v1355, 2147483648
    %v1365 = vmul.f32 %v1364, 1.442695
    %v1366 = vpow.pop %v1365
    %v1367 = vadd.f32 %v1366, 1.0
    %v1368 = vrcp.pop %v1367
    %v1369 = vmul.f32 1.0, %v1368
    %v1370 = vtanh.pop %v1356
    %v1371 = vxor.u32 %v1357, 2147483648
    %v1372 = vmul.f32 %v1371, 1.442695
    %v1373 = vpow.pop %v1372
    %v1374 = vadd.f32 %v1373, 1.0
    %v1375 = vrcp.pop %v1374
    %v1376 = vmul.f32 1.0, %v1375
    %v1377 = vmul.f32 %v1369, %v1202
    %v1378 = vmul.f32 %v1363, %v1370
    %v1379 = vadd.f32 %v1377, %v1378
    %v1380 = vtanh.pop %v1379
    %v1381 = vmul.f32 %v1376, %v1380
    %s1382 = scalar_lea.vmem [#allocation12], 48
    %1383 = vst [vmem:[%s1382] sm:$0xff] %v1381
    %s1384 = scalar_lea.vmem [#allocation4], 224
    %v1385 = vld [vmem:[%s1384] sm:$0xff]
    %v1386 = vld [vmem:[%s1384 + $0x8] sm:$0xff]
    %v1387 = vld [vmem:[%s1384 + $0x10] sm:$0xff]
    %v1388 = vld [vmem:[%s1384 + $0x18] sm:$0xff]
    %1389 = vmatprep.subr.mxu0 %v82
    %1390 = vmatpush1.msra.mxu0 %v81
    %1391 = vmatprep.subr.mxu0 %v86
    %1392 = vmatpush1.msra.mxu0 %v85
    %1393 = vmatprep.subr.mxu0 %v90
    %1394 = vmatpush1.msra.mxu0 %v89
    %1395 = vmatprep.subr.mxu0 %v94
    %1396 = vmatpush1.msra.mxu0 %v93
    %1397 = vmatprep.subr.mxu0 %v98
    %1398 = vmatpush1.msra.mxu0 %v97
    %1399 = vmatprep.subr.mxu0 %v102
    %1400 = vmatpush1.msra.mxu0 %v101
    %1401 = vmatprep.subr.mxu0 %v106
    %1402 = vmatpush1.msra.mxu0 %v105
    %1403 = vmatprep.subr.mxu0 %v110
    %1404 = vmatpush1.msra.mxu0 %v109
    %1405 = vmatprep.subr.mxu0 %v114
    %1406 = vmatpush1.msra.mxu0 %v113
    %1407 = vmatprep.subr.mxu0 %v118
    %1408 = vmatpush1.msra.mxu0 %v117
    %1409 = vmatprep.subr.mxu0 %v122
    %1410 = vmatpush1.msra.mxu0 %v121
    %1411 = vmatprep.subr.mxu0 %v126
    %1412 = vmatpush1.msra.mxu0 %v125
    %1413 = vmatprep.subr.mxu0 %v130
    %1414 = vmatpush1.msra.mxu0 %v129
    %1415 = vmatprep.subr.mxu0 %v134
    %1416 = vmatpush1.msra.mxu0 %v133
    %1417 = vmatprep.subr.mxu0 %v138
    %1418 = vmatpush1.msra.mxu0 %v137
    %1419 = vmatprep.subr.mxu0 %v142
    %1420 = vmatpush1.msra.mxu0 %v141
    %1421 = vmatprep.subr.mxu0 0.0
    %1422 = vmatpush1.msra.mxu0 0.0
    %1423 = vmatprep.subr.mxu0 0.0
    %1424 = vmatpush1.msra.mxu0 0.0
    %1425 = vmatprep.subr.mxu0 0.0
    %1426 = vmatpush1.msra.mxu0 0.0
    %1427 = vmatprep.subr.mxu0 0.0
    %1428 = vmatpush1.msra.mxu0 0.0
    %1429 = vmatprep.subr.mxu0 0.0
    %1430 = vmatpush1.msra.mxu0 0.0
    %1431 = vmatprep.subr.mxu0 0.0
    %1432 = vmatpush1.msra.mxu0 0.0
    %1433 = vmatprep.subr.mxu0 0.0
    %1434 = vmatpush1.msra.mxu0 0.0
    %1435 = vmatprep.subr.mxu0 0.0
    %1436 = vmatpush1.msra.mxu0 0.0
    %1437 = vmatprep.subr.mxu0 0.0
    %1438 = vmatpush1.msra.mxu0 0.0
    %1439 = vmatprep.subr.mxu0 0.0
    %1440 = vmatpush1.msra.mxu0 0.0
    %1441 = vmatprep.subr.mxu0 0.0
    %1442 = vmatpush1.msra.mxu0 0.0
    %1443 = vmatprep.subr.mxu0 0.0
    %1444 = vmatpush1.msra.mxu0 0.0
    %1445 = vmatprep.subr.mxu0 0.0
    %1446 = vmatpush1.msra.mxu0 0.0
    %1447 = vmatprep.subr.mxu0 0.0
    %1448 = vmatpush1.msra.mxu0 0.0
    %1449 = vmatprep.subr.mxu0 0.0
    %1450 = vmatpush1.msra.mxu0 0.0
    %1451 = vmatprep.subr.mxu0 0.0
    %1452 = vmatpush1.msra.mxu0 0.0
    %1453 = vmatprep.mubr.f32.mxu0 0.0
    %1454 = vmatmul.mubr.f32.gmra.mrb[0].mxu0 %v1381
    %v1455 = vpop.f32.mrb[0].mxu0
    %v1456 = vadd.f32 0.0, %v1455
    %v1457 = vpop.f32.mrb[0].mxu0
    %v1458 = vadd.f32 0.0, %v1457
    %1459 = vdwg.mxu0
    %1460 = vmatprep.subr.mxu0 %v84
    %1461 = vmatpush1.msra.mxu0 %v83
    %1462 = vmatprep.subr.mxu0 %v88
    %1463 = vmatpush1.msra.mxu0 %v87
    %1464 = vmatprep.subr.mxu0 %v92
    %1465 = vmatpush1.msra.mxu0 %v91
    %1466 = vmatprep.subr.mxu0 %v96
    %1467 = vmatpush1.msra.mxu0 %v95
    %1468 = vmatprep.subr.mxu0 %v100
    %1469 = vmatpush1.msra.mxu0 %v99
    %1470 = vmatprep.subr.mxu0 %v104
    %1471 = vmatpush1.msra.mxu0 %v103
    %1472 = vmatprep.subr.mxu0 %v108
    %1473 = vmatpush1.msra.mxu0 %v107
    %1474 = vmatprep.subr.mxu0 %v112
    %1475 = vmatpush1.msra.mxu0 %v111
    %1476 = vmatprep.subr.mxu0 %v116
    %1477 = vmatpush1.msra.mxu0 %v115
    %1478 = vmatprep.subr.mxu0 %v120
    %1479 = vmatpush1.msra.mxu0 %v119
    %1480 = vmatprep.subr.mxu0 %v124
    %1481 = vmatpush1.msra.mxu0 %v123
    %1482 = vmatprep.subr.mxu0 %v128
    %1483 = vmatpush1.msra.mxu0 %v127
    %1484 = vmatprep.subr.mxu0 %v132
    %1485 = vmatpush1.msra.mxu0 %v131
    %1486 = vmatprep.subr.mxu0 %v136
    %1487 = vmatpush1.msra.mxu0 %v135
    %1488 = vmatprep.subr.mxu0 %v140
    %1489 = vmatpush1.msra.mxu0 %v139
    %1490 = vmatprep.subr.mxu0 %v144
    %1491 = vmatpush1.msra.mxu0 %v143
    %1492 = vmatprep.subr.mxu0 0.0
    %1493 = vmatpush1.msra.mxu0 0.0
    %1494 = vmatprep.subr.mxu0 0.0
    %1495 = vmatpush1.msra.mxu0 0.0
    %1496 = vmatprep.subr.mxu0 0.0
    %1497 = vmatpush1.msra.mxu0 0.0
    %1498 = vmatprep.subr.mxu0 0.0
    %1499 = vmatpush1.msra.mxu0 0.0
    %1500 = vmatprep.subr.mxu0 0.0
    %1501 = vmatpush1.msra.mxu0 0.0
    %1502 = vmatprep.subr.mxu0 0.0
    %1503 = vmatpush1.msra.mxu0 0.0
    %1504 = vmatprep.subr.mxu0 0.0
    %1505 = vmatpush1.msra.mxu0 0.0
    %1506 = vmatprep.subr.mxu0 0.0
    %1507 = vmatpush1.msra.mxu0 0.0
    %1508 = vmatprep.subr.mxu0 0.0
    %1509 = vmatpush1.msra.mxu0 0.0
    %1510 = vmatprep.subr.mxu0 0.0
    %1511 = vmatpush1.msra.mxu0 0.0
    %1512 = vmatprep.subr.mxu0 0.0
    %1513 = vmatpush1.msra.mxu0 0.0
    %1514 = vmatprep.subr.mxu0 0.0
    %1515 = vmatpush1.msra.mxu0 0.0
    %1516 = vmatprep.subr.mxu0 0.0
    %1517 = vmatpush1.msra.mxu0 0.0
    %1518 = vmatprep.subr.mxu0 0.0
    %1519 = vmatpush1.msra.mxu0 0.0
    %1520 = vmatprep.subr.mxu0 0.0
    %1521 = vmatpush1.msra.mxu0 0.0
    %1522 = vmatprep.subr.mxu0 0.0
    %1523 = vmatpush1.msra.mxu0 0.0
    %1524 = vmatprep.mubr.f32.mxu0 0.0
    %1525 = vmatmul.mubr.f32.gmra.mrb[0].mxu0 %v1381
    %v1526 = vpop.f32.mrb[0].mxu0
    %v1527 = vadd.f32 0.0, %v1526
    %v1528 = vpop.f32.mrb[0].mxu0
    %v1529 = vadd.f32 0.0, %v1528
    %1530 = vdwg.mxu0
    %v1531 = vadd.f32 %v1385, %v1456
    %v1532 = vadd.f32 %v1386, %v1458
    %v1533 = vadd.f32 %v1387, %v1527
    %v1534 = vadd.f32 %v1388, %v1529
    %v1535 = vxor.u32 %v1531, 2147483648
    %v1536 = vmul.f32 %v1535, 1.442695
    %v1537 = vpow.pop %v1536
    %v1538 = vadd.f32 %v1537, 1.0
    %v1539 = vrcp.pop %v1538
    %v1540 = vmul.f32 1.0, %v1539
    %v1541 = vxor.u32 %v1532, 2147483648
    %v1542 = vmul.f32 %v1541, 1.442695
    %v1543 = vpow.pop %v1542
    %v1544 = vadd.f32 %v1543, 1.0
    %v1545 = vrcp.pop %v1544
    %v1546 = vmul.f32 1.0, %v1545
    %v1547 = vtanh.pop %v1533
    %v1548 = vxor.u32 %v1534, 2147483648
    %v1549 = vmul.f32 %v1548, 1.442695
    %v1550 = vpow.pop %v1549
    %v1551 = vadd.f32 %v1550, 1.0
    %v1552 = vrcp.pop %v1551
    %v1553 = vmul.f32 1.0, %v1552
    %v1554 = vmul.f32 %v1546, %v1379
    %v1555 = vmul.f32 %v1540, %v1547
    %v1556 = vadd.f32 %v1554, %v1555
    %v1557 = vtanh.pop %v1556
    %v1558 = vmul.f32 %v1553, %v1557
    %s1559 = scalar_lea.vmem [#allocation12], 56
    %1560 = vst [vmem:[%s1559] sm:$0xff] %v1558
    %s1561 = scalar_lea.vmem [#allocation4], 256
    %v1562 = vld [vmem:[%s1561] sm:$0xff]
    %v1563 = vld [vmem:[%s1561 + $0x8] sm:$0xff]
    %v1564 = vld [vmem:[%s1561 + $0x10] sm:$0xff]
    %v1565 = vld [vmem:[%s1561 + $0x18] sm:$0xff]
    %1566 = vmatprep.subr.mxu0 %v82
    %1567 = vmatpush1.msra.mxu0 %v81
    %1568 = vmatprep.subr.mxu0 %v86
    %1569 = vmatpush1.msra.mxu0 %v85
    %1570 = vmatprep.subr.mxu0 %v90
    %1571 = vmatpush1.msra.mxu0 %v89
    %1572 = vmatprep.subr.mxu0 %v94
    %1573 = vmatpush1.msra.mxu0 %v93
    %1574 = vmatprep.subr.mxu0 %v98
    %1575 = vmatpush1.msra.mxu0 %v97
    %1576 = vmatprep.subr.mxu0 %v102
    %1577 = vmatpush1.msra.mxu0 %v101
    %1578 = vmatprep.subr.mxu0 %v106
    %1579 = vmatpush1.msra.mxu0 %v105
    %1580 = vmatprep.subr.mxu0 %v110
    %1581 = vmatpush1.msra.mxu0 %v109
    %1582 = vmatprep.subr.mxu0 %v114
    %1583 = vmatpush1.msra.mxu0 %v113
    %1584 = vmatprep.subr.mxu0 %v118
    %1585 = vmatpush1.msra.mxu0 %v117
    %1586 = vmatprep.subr.mxu0 %v122
    %1587 = vmatpush1.msra.mxu0 %v121
    %1588 = vmatprep.subr.mxu0 %v126
    %1589 = vmatpush1.msra.mxu0 %v125
    %1590 = vmatprep.subr.mxu0 %v130
    %1591 = vmatpush1.msra.mxu0 %v129
    %1592 = vmatprep.subr.mxu0 %v134
    %1593 = vmatpush1.msra.mxu0 %v133
    %1594 = vmatprep.subr.mxu0 %v138
    %1595 = vmatpush1.msra.mxu0 %v137
    %1596 = vmatprep.subr.mxu0 %v142
    %1597 = vmatpush1.msra.mxu0 %v141
    %1598 = vmatprep.subr.mxu0 0.0
    %1599 = vmatpush1.msra.mxu0 0.0
    %1600 = vmatprep.subr.mxu0 0.0
    %1601 = vmatpush1.msra.mxu0 0.0
    %1602 = vmatprep.subr.mxu0 0.0
    %1603 = vmatpush1.msra.mxu0 0.0
    %1604 = vmatprep.subr.mxu0 0.0
    %1605 = vmatpush1.msra.mxu0 0.0
    %1606 = vmatprep.subr.mxu0 0.0
    %1607 = vmatpush1.msra.mxu0 0.0
    %1608 = vmatprep.subr.mxu0 0.0
    %1609 = vmatpush1.msra.mxu0 0.0
    %1610 = vmatprep.subr.mxu0 0.0
    %1611 = vmatpush1.msra.mxu0 0.0
    %1612 = vmatprep.subr.mxu0 0.0
    %1613 = vmatpush1.msra.mxu0 0.0
    %1614 = vmatprep.subr.mxu0 0.0
    %1615 = vmatpush1.msra.mxu0 0.0
    %1616 = vmatprep.subr.mxu0 0.0
    %1617 = vmatpush1.msra.mxu0 0.0
    %1618 = vmatprep.subr.mxu0 0.0
    %1619 = vmatpush1.msra.mxu0 0.0
    %1620 = vmatprep.subr.mxu0 0.0
    %1621 = vmatpush1.msra.mxu0 0.0
    %1622 = vmatprep.subr.mxu0 0.0
    %1623 = vmatpush1.msra.mxu0 0.0
    %1624 = vmatprep.subr.mxu0 0.0
    %1625 = vmatpush1.msra.mxu0 0.0
    %1626 = vmatprep.subr.mxu0 0.0
    %1627 = vmatpush1.msra.mxu0 0.0
    %1628 = vmatprep.subr.mxu0 0.0
    %1629 = vmatpush1.msra.mxu0 0.0
    %1630 = vmatprep.mubr.f32.mxu0 0.0
    %1631 = vmatmul.mubr.f32.gmra.mrb[0].mxu0 %v1558
    %v1632 = vpop.f32.mrb[0].mxu0
    %v1633 = vadd.f32 0.0, %v1632
    %v1634 = vpop.f32.mrb[0].mxu0
    %v1635 = vadd.f32 0.0, %v1634
    %1636 = vdwg.mxu0
    %1637 = vmatprep.subr.mxu0 %v84
    %1638 = vmatpush1.msra.mxu0 %v83
    %1639 = vmatprep.subr.mxu0 %v88
    %1640 = vmatpush1.msra.mxu0 %v87
    %1641 = vmatprep.subr.mxu0 %v92
    %1642 = vmatpush1.msra.mxu0 %v91
    %1643 = vmatprep.subr.mxu0 %v96
    %1644 = vmatpush1.msra.mxu0 %v95
    %1645 = vmatprep.subr.mxu0 %v100
    %1646 = vmatpush1.msra.mxu0 %v99
    %1647 = vmatprep.subr.mxu0 %v104
    %1648 = vmatpush1.msra.mxu0 %v103
    %1649 = vmatprep.subr.mxu0 %v108
    %1650 = vmatpush1.msra.mxu0 %v107
    %1651 = vmatprep.subr.mxu0 %v112
    %1652 = vmatpush1.msra.mxu0 %v111
    %1653 = vmatprep.subr.mxu0 %v116
    %1654 = vmatpush1.msra.mxu0 %v115
    %1655 = vmatprep.subr.mxu0 %v120
    %1656 = vmatpush1.msra.mxu0 %v119
    %1657 = vmatprep.subr.mxu0 %v124
    %1658 = vmatpush1.msra.mxu0 %v123
    %1659 = vmatprep.subr.mxu0 %v128
    %1660 = vmatpush1.msra.mxu0 %v127
    %1661 = vmatprep.subr.mxu0 %v132
    %1662 = vmatpush1.msra.mxu0 %v131
    %1663 = vmatprep.subr.mxu0 %v136
    %1664 = vmatpush1.msra.mxu0 %v135
    %1665 = vmatprep.subr.mxu0 %v140
    %1666 = vmatpush1.msra.mxu0 %v139
    %1667 = vmatprep.subr.mxu0 %v144
    %1668 = vmatpush1.msra.mxu0 %v143
    %1669 = vmatprep.subr.mxu0 0.0
    %1670 = vmatpush1.msra.mxu0 0.0
    %1671 = vmatprep.subr.mxu0 0.0
    %1672 = vmatpush1.msra.mxu0 0.0
    %1673 = vmatprep.subr.mxu0 0.0
    %1674 = vmatpush1.msra.mxu0 0.0
    %1675 = vmatprep.subr.mxu0 0.0
    %1676 = vmatpush1.msra.mxu0 0.0
    %1677 = vmatprep.subr.mxu0 0.0
    %1678 = vmatpush1.msra.mxu0 0.0
    %1679 = vmatprep.subr.mxu0 0.0
    %1680 = vmatpush1.msra.mxu0 0.0
    %1681 = vmatprep.subr.mxu0 0.0
    %1682 = vmatpush1.msra.mxu0 0.0
    %1683 = vmatprep.subr.mxu0 0.0
    %1684 = vmatpush1.msra.mxu0 0.0
    %1685 = vmatprep.subr.mxu0 0.0
    %1686 = vmatpush1.msra.mxu0 0.0
    %1687 = vmatprep.subr.mxu0 0.0
    %1688 = vmatpush1.msra.mxu0 0.0
    %1689 = vmatprep.subr.mxu0 0.0
    %1690 = vmatpush1.msra.mxu0 0.0
    %1691 = vmatprep.subr.mxu0 0.0
    %1692 = vmatpush1.msra.mxu0 0.0
    %1693 = vmatprep.subr.mxu0 0.0
    %1694 = vmatpush1.msra.mxu0 0.0
    %1695 = vmatprep.subr.mxu0 0.0
    %1696 = vmatpush1.msra.mxu0 0.0
    %1697 = vmatprep.subr.mxu0 0.0
    %1698 = vmatpush1.msra.mxu0 0.0
    %1699 = vmatprep.subr.mxu0 0.0
    %1700 = vmatpush1.msra.mxu0 0.0
    %1701 = vmatprep.mubr.f32.mxu0 0.0
    %1702 = vmatmul.mubr.f32.gmra.mrb[0].mxu0 %v1558
    %v1703 = vpop.f32.mrb[0].mxu0
    %v1704 = vadd.f32 0.0, %v1703
    %v1705 = vpop.f32.mrb[0].mxu0
    %v1706 = vadd.f32 0.0, %v1705
    %1707 = vdwg.mxu0
    %v1708 = vadd.f32 %v1562, %v1633
    %v1709 = vadd.f32 %v1563, %v1635
    %v1710 = vadd.f32 %v1564, %v1704
    %v1711 = vadd.f32 %v1565, %v1706
    %v1712 = vxor.u32 %v1708, 2147483648
    %v1713 = vmul.f32 %v1712, 1.442695
    %v1714 = vpow.pop %v1713
    %v1715 = vadd.f32 %v1714, 1.0
    %v1716 = vrcp.pop %v1715
    %v1717 = vmul.f32 1.0, %v1716
    %v1718 = vxor.u32 %v1709, 2147483648
    %v1719 = vmul.f32 %v1718, 1.442695
    %v1720 = vpow.pop %v1719
    %v1721 = vadd.f32 %v1720, 1.0
    %v1722 = vrcp.pop %v1721
    %v1723 = vmul.f32 1.0, %v1722
    %v1724 = vtanh.pop %v1710
    %v1725 = vxor.u32 %v1711, 2147483648
    %v1726 = vmul.f32 %v1725, 1.442695
    %v1727 = vpow.pop %v1726
    %v1728 = vadd.f32 %v1727, 1.0
    %v1729 = vrcp.pop %v1728
    %v1730 = vmul.f32 1.0, %v1729
    %v1731 = vmul.f32 %v1723, %v1556
    %v1732 = vmul.f32 %v1717, %v1724
    %v1733 = vadd.f32 %v1731, %v1732
    %v1734 = vtanh.pop %v1733
    %v1735 = vmul.f32 %v1730, %v1734
    %s1736 = scalar_lea.vmem [#allocation12], 64
    %1737 = vst [vmem:[%s1736] sm:$0xff] %v1735
    %s1738 = scalar_lea.vmem [#allocation4], 288
    %v1739 = vld [vmem:[%s1738] sm:$0xff]
    %v1740 = vld [vmem:[%s1738 + $0x8] sm:$0xff]
    %v1741 = vld [vmem:[%s1738 + $0x10] sm:$0xff]
    %v1742 = vld [vmem:[%s1738 + $0x18] sm:$0xff]
    %1743 = vmatprep.subr.mxu0 %v82
    %1744 = vmatpush1.msra.mxu0 %v81
    %1745 = vmatprep.subr.mxu0 %v86
    %1746 = vmatpush1.msra.mxu0 %v85
    %1747 = vmatprep.subr.mxu0 %v90
    %1748 = vmatpush1.msra.mxu0 %v89
    %1749 = vmatprep.subr.mxu0 %v94
    %1750 = vmatpush1.msra.mxu0 %v93
    %1751 = vmatprep.subr.mxu0 %v98
    %1752 = vmatpush1.msra.mxu0 %v97
    %1753 = vmatprep.subr.mxu0 %v102
    %1754 = vmatpush1.msra.mxu0 %v101
    %1755 = vmatprep.subr.mxu0 %v106
    %1756 = vmatpush1.msra.mxu0 %v105
    %1757 = vmatprep.subr.mxu0 %v110
    %1758 = vmatpush1.msra.mxu0 %v109
    %1759 = vmatprep.subr.mxu0 %v114
    %1760 = vmatpush1.msra.mxu0 %v113
    %1761 = vmatprep.subr.mxu0 %v118
    %1762 = vmatpush1.msra.mxu0 %v117
    %1763 = vmatprep.subr.mxu0 %v122
    %1764 = vmatpush1.msra.mxu0 %v121
    %1765 = vmatprep.subr.mxu0 %v126
    %1766 = vmatpush1.msra.mxu0 %v125
    %1767 = vmatprep.subr.mxu0 %v130
    %1768 = vmatpush1.msra.mxu0 %v129
    %1769 = vmatprep.subr.mxu0 %v134
    %1770 = vmatpush1.msra.mxu0 %v133
    %1771 = vmatprep.subr.mxu0 %v138
    %1772 = vmatpush1.msra.mxu0 %v137
    %1773 = vmatprep.subr.mxu0 %v142
    %1774 = vmatpush1.msra.mxu0 %v141
    %1775 = vmatprep.subr.mxu0 0.0
    %1776 = vmatpush1.msra.mxu0 0.0
    %1777 = vmatprep.subr.mxu0 0.0
    %1778 = vmatpush1.msra.mxu0 0.0
    %1779 = vmatprep.subr.mxu0 0.0
    %1780 = vmatpush1.msra.mxu0 0.0
    %1781 = vmatprep.subr.mxu0 0.0
    %1782 = vmatpush1.msra.mxu0 0.0
    %1783 = vmatprep.subr.mxu0 0.0
    %1784 = vmatpush1.msra.mxu0 0.0
    %1785 = vmatprep.subr.mxu0 0.0
    %1786 = vmatpush1.msra.mxu0 0.0
    %1787 = vmatprep.subr.mxu0 0.0
    %1788 = vmatpush1.msra.mxu0 0.0
    %1789 = vmatprep.subr.mxu0 0.0
    %1790 = vmatpush1.msra.mxu0 0.0
    %1791 = vmatprep.subr.mxu0 0.0
    %1792 = vmatpush1.msra.mxu0 0.0
    %1793 = vmatprep.subr.mxu0 0.0
    %1794 = vmatpush1.msra.mxu0 0.0
    %1795 = vmatprep.subr.mxu0 0.0
    %1796 = vmatpush1.msra.mxu0 0.0
    %1797 = vmatprep.subr.mxu0 0.0
    %1798 = vmatpush1.msra.mxu0 0.0
    %1799 = vmatprep.subr.mxu0 0.0
    %1800 = vmatpush1.msra.mxu0 0.0
    %1801 = vmatprep.subr.mxu0 0.0
    %1802 = vmatpush1.msra.mxu0 0.0
    %1803 = vmatprep.subr.mxu0 0.0
    %1804 = vmatpush1.msra.mxu0 0.0
    %1805 = vmatprep.subr.mxu0 0.0
    %1806 = vmatpush1.msra.mxu0 0.0
    %1807 = vmatprep.mubr.f32.mxu0 0.0
    %1808 = vmatmul.mubr.f32.gmra.mrb[0].mxu0 %v1735
    %v1809 = vpop.f32.mrb[0].mxu0
    %v1810 = vadd.f32 0.0, %v1809
    %v1811 = vpop.f32.mrb[0].mxu0
    %v1812 = vadd.f32 0.0, %v1811
    %1813 = vdwg.mxu0
    %1814 = vmatprep.subr.mxu0 %v84
    %1815 = vmatpush1.msra.mxu0 %v83
    %1816 = vmatprep.subr.mxu0 %v88
    %1817 = vmatpush1.msra.mxu0 %v87
    %1818 = vmatprep.subr.mxu0 %v92
    %1819 = vmatpush1.msra.mxu0 %v91
    %1820 = vmatprep.subr.mxu0 %v96
    %1821 = vmatpush1.msra.mxu0 %v95
    %1822 = vmatprep.subr.mxu0 %v100
    %1823 = vmatpush1.msra.mxu0 %v99
    %1824 = vmatprep.subr.mxu0 %v104
    %1825 = vmatpush1.msra.mxu0 %v103
    %1826 = vmatprep.subr.mxu0 %v108
    %1827 = vmatpush1.msra.mxu0 %v107
    %1828 = vmatprep.subr.mxu0 %v112
    %1829 = vmatpush1.msra.mxu0 %v111
    %1830 = vmatprep.subr.mxu0 %v116
    %1831 = vmatpush1.msra.mxu0 %v115
    %1832 = vmatprep.subr.mxu0 %v120
    %1833 = vmatpush1.msra.mxu0 %v119
    %1834 = vmatprep.subr.mxu0 %v124
    %1835 = vmatpush1.msra.mxu0 %v123
    %1836 = vmatprep.subr.mxu0 %v128
    %1837 = vmatpush1.msra.mxu0 %v127
    %1838 = vmatprep.subr.mxu0 %v132
    %1839 = vmatpush1.msra.mxu0 %v131
    %1840 = vmatprep.subr.mxu0 %v136
    %1841 = vmatpush1.msra.mxu0 %v135
    %1842 = vmatprep.subr.mxu0 %v140
    %1843 = vmatpush1.msra.mxu0 %v139
    %1844 = vmatprep.subr.mxu0 %v144
    %1845 = vmatpush1.msra.mxu0 %v143
    %1846 = vmatprep.subr.mxu0 0.0
    %1847 = vmatpush1.msra.mxu0 0.0
    %1848 = vmatprep.subr.mxu0 0.0
    %1849 = vmatpush1.msra.mxu0 0.0
    %1850 = vmatprep.subr.mxu0 0.0
    %1851 = vmatpush1.msra.mxu0 0.0
    %1852 = vmatprep.subr.mxu0 0.0
    %1853 = vmatpush1.msra.mxu0 0.0
    %1854 = vmatprep.subr.mxu0 0.0
    %1855 = vmatpush1.msra.mxu0 0.0
    %1856 = vmatprep.subr.mxu0 0.0
    %1857 = vmatpush1.msra.mxu0 0.0
    %1858 = vmatprep.subr.mxu0 0.0
    %1859 = vmatpush1.msra.mxu0 0.0
    %1860 = vmatprep.subr.mxu0 0.0
    %1861 = vmatpush1.msra.mxu0 0.0
    %1862 = vmatprep.subr.mxu0 0.0
    %1863 = vmatpush1.msra.mxu0 0.0
    %1864 = vmatprep.subr.mxu0 0.0
    %1865 = vmatpush1.msra.mxu0 0.0
    %1866 = vmatprep.subr.mxu0 0.0
    %1867 = vmatpush1.msra.mxu0 0.0
    %1868 = vmatprep.subr.mxu0 0.0
    %1869 = vmatpush1.msra.mxu0 0.0
    %1870 = vmatprep.subr.mxu0 0.0
    %1871 = vmatpush1.msra.mxu0 0.0
    %1872 = vmatprep.subr.mxu0 0.0
    %1873 = vmatpush1.msra.mxu0 0.0
    %1874 = vmatprep.subr.mxu0 0.0
    %1875 = vmatpush1.msra.mxu0 0.0
    %1876 = vmatprep.subr.mxu0 0.0
    %1877 = vmatpush1.msra.mxu0 0.0
    %1878 = vmatprep.mubr.f32.mxu0 0.0
    %1879 = vmatmul.mubr.f32.gmra.mrb[0].mxu0 %v1735
    %v1880 = vpop.f32.mrb[0].mxu0
    %v1881 = vadd.f32 0.0, %v1880
    %v1882 = vpop.f32.mrb[0].mxu0
    %v1883 = vadd.f32 0.0, %v1882
    %1884 = vdwg.mxu0
    %v1885 = vadd.f32 %v1739, %v1810
    %v1886 = vadd.f32 %v1740, %v1812
    %v1887 = vadd.f32 %v1741, %v1881
    %v1888 = vadd.f32 %v1742, %v1883
    %v1889 = vxor.u32 %v1885, 2147483648
    %v1890 = vmul.f32 %v1889, 1.442695
    %v1891 = vpow.pop %v1890
    %v1892 = vadd.f32 %v1891, 1.0
    %v1893 = vrcp.pop %v1892
    %v1894 = vmul.f32 1.0, %v1893
    %v1895 = vxor.u32 %v1886, 2147483648
    %v1896 = vmul.f32 %v1895, 1.442695
    %v1897 = vpow.pop %v1896
    %v1898 = vadd.f32 %v1897, 1.0
    %v1899 = vrcp.pop %v1898
    %v1900 = vmul.f32 1.0, %v1899
    %v1901 = vtanh.pop %v1887
    %v1902 = vxor.u32 %v1888, 2147483648
    %v1903 = vmul.f32 %v1902, 1.442695
    %v1904 = vpow.pop %v1903
    %v1905 = vadd.f32 %v1904, 1.0
    %v1906 = vrcp.pop %v1905
    %v1907 = vmul.f32 1.0, %v1906
    %v1908 = vmul.f32 %v1900, %v1733
    %v1909 = vmul.f32 %v1894, %v1901
    %v1910 = vadd.f32 %v1908, %v1909
    %v1911 = vtanh.pop %v1910
    %v1912 = vmul.f32 %v1907, %v1911
    %s1913 = scalar_lea.vmem [#allocation12], 72
    %1914 = vst [vmem:[%s1913] sm:$0xff] %v1912
    %s1915 = scalar_lea.vmem [#allocation4], 320
    %v1916 = vld [vmem:[%s1915] sm:$0xff]
    %v1917 = vld [vmem:[%s1915 + $0x8] sm:$0xff]
    %v1918 = vld [vmem:[%s1915 + $0x10] sm:$0xff]
    %v1919 = vld [vmem:[%s1915 + $0x18] sm:$0xff]
    %1920 = vmatprep.subr.mxu0 %v82
    %1921 = vmatpush1.msra.mxu0 %v81
    %1922 = vmatprep.subr.mxu0 %v86
    %1923 = vmatpush1.msra.mxu0 %v85
    %1924 = vmatprep.subr.mxu0 %v90
    %1925 = vmatpush1.msra.mxu0 %v89
    %1926 = vmatprep.subr.mxu0 %v94
    %1927 = vmatpush1.msra.mxu0 %v93
    %1928 = vmatprep.subr.mxu0 %v98
    %1929 = vmatpush1.msra.mxu0 %v97
    %1930 = vmatprep.subr.mxu0 %v102
    %1931 = vmatpush1.msra.mxu0 %v101
    %1932 = vmatprep.subr.mxu0 %v106
    %1933 = vmatpush1.msra.mxu0 %v105
    %1934 = vmatprep.subr.mxu0 %v110
    %1935 = vmatpush1.msra.mxu0 %v109
    %1936 = vmatprep.subr.mxu0 %v114
    %1937 = vmatpush1.msra.mxu0 %v113
    %1938 = vmatprep.subr.mxu0 %v118
    %1939 = vmatpush1.msra.mxu0 %v117
    %1940 = vmatprep.subr.mxu0 %v122
    %1941 = vmatpush1.msra.mxu0 %v121
    %1942 = vmatprep.subr.mxu0 %v126
    %1943 = vmatpush1.msra.mxu0 %v125
    %1944 = vmatprep.subr.mxu0 %v130
    %1945 = vmatpush1.msra.mxu0 %v129
    %1946 = vmatprep.subr.mxu0 %v134
    %1947 = vmatpush1.msra.mxu0 %v133
    %1948 = vmatprep.subr.mxu0 %v138
    %1949 = vmatpush1.msra.mxu0 %v137
    %1950 = vmatprep.subr.mxu0 %v142
    %1951 = vmatpush1.msra.mxu0 %v141
    %1952 = vmatprep.subr.mxu0 0.0
    %1953 = vmatpush1.msra.mxu0 0.0
    %1954 = vmatprep.subr.mxu0 0.0
    %1955 = vmatpush1.msra.mxu0 0.0
    %1956 = vmatprep.subr.mxu0 0.0
    %1957 = vmatpush1.msra.mxu0 0.0
    %1958 = vmatprep.subr.mxu0 0.0
    %1959 = vmatpush1.msra.mxu0 0.0
    %1960 = vmatprep.subr.mxu0 0.0
    %1961 = vmatpush1.msra.mxu0 0.0
    %1962 = vmatprep.subr.mxu0 0.0
    %1963 = vmatpush1.msra.mxu0 0.0
    %1964 = vmatprep.subr.mxu0 0.0
    %1965 = vmatpush1.msra.mxu0 0.0
    %1966 = vmatprep.subr.mxu0 0.0
    %1967 = vmatpush1.msra.mxu0 0.0
    %1968 = vmatprep.subr.mxu0 0.0
    %1969 = vmatpush1.msra.mxu0 0.0
    %1970 = vmatprep.subr.mxu0 0.0
    %1971 = vmatpush1.msra.mxu0 0.0
    %1972 = vmatprep.subr.mxu0 0.0
    %1973 = vmatpush1.msra.mxu0 0.0
    %1974 = vmatprep.subr.mxu0 0.0
    %1975 = vmatpush1.msra.mxu0 0.0
    %1976 = vmatprep.subr.mxu0 0.0
    %1977 = vmatpush1.msra.mxu0 0.0
    %1978 = vmatprep.subr.mxu0 0.0
    %1979 = vmatpush1.msra.mxu0 0.0
    %1980 = vmatprep.subr.mxu0 0.0
    %1981 = vmatpush1.msra.mxu0 0.0
    %1982 = vmatprep.subr.mxu0 0.0
    %1983 = vmatpush1.msra.mxu0 0.0
    %1984 = vmatprep.mubr.f32.mxu0 0.0
    %1985 = vmatmul.mubr.f32.gmra.mrb[0].mxu0 %v1912
    %v1986 = vpop.f32.mrb[0].mxu0
    %v1987 = vadd.f32 0.0, %v1986
    %v1988 = vpop.f32.mrb[0].mxu0
    %v1989 = vadd.f32 0.0, %v1988
    %1990 = vdwg.mxu0
    %1991 = vmatprep.subr.mxu0 %v84
    %1992 = vmatpush1.msra.mxu0 %v83
    %1993 = vmatprep.subr.mxu0 %v88
    %1994 = vmatpush1.msra.mxu0 %v87
    %1995 = vmatprep.subr.mxu0 %v92
    %1996 = vmatpush1.msra.mxu0 %v91
    %1997 = vmatprep.subr.mxu0 %v96
    %1998 = vmatpush1.msra.mxu0 %v95
    %1999 = vmatprep.subr.mxu0 %v100
    %2000 = vmatpush1.msra.mxu0 %v99
    %2001 = vmatprep.subr.mxu0 %v104
    %2002 = vmatpush1.msra.mxu0 %v103
    %2003 = vmatprep.subr.mxu0 %v108
    %2004 = vmatpush1.msra.mxu0 %v107
    %2005 = vmatprep.subr.mxu0 %v112
    %2006 = vmatpush1.msra.mxu0 %v111
    %2007 = vmatprep.subr.mxu0 %v116
    %2008 = vmatpush1.msra.mxu0 %v115
    %2009 = vmatprep.subr.mxu0 %v120
    %2010 = vmatpush1.msra.mxu0 %v119
    %2011 = vmatprep.subr.mxu0 %v124
    %2012 = vmatpush1.msra.mxu0 %v123
    %2013 = vmatprep.subr.mxu0 %v128
    %2014 = vmatpush1.msra.mxu0 %v127
    %2015 = vmatprep.subr.mxu0 %v132
    %2016 = vmatpush1.msra.mxu0 %v131
    %2017 = vmatprep.subr.mxu0 %v136
    %2018 = vmatpush1.msra.mxu0 %v135
    %2019 = vmatprep.subr.mxu0 %v140
    %2020 = vmatpush1.msra.mxu0 %v139
    %2021 = vmatprep.subr.mxu0 %v144
    %2022 = vmatpush1.msra.mxu0 %v143
    %2023 = vmatprep.subr.mxu0 0.0
    %2024 = vmatpush1.msra.mxu0 0.0
    %2025 = vmatprep.subr.mxu0 0.0
    %2026 = vmatpush1.msra.mxu0 0.0
    %2027 = vmatprep.subr.mxu0 0.0
    %2028 = vmatpush1.msra.mxu0 0.0
    %2029 = vmatprep.subr.mxu0 0.0
    %2030 = vmatpush1.msra.mxu0 0.0
    %2031 = vmatprep.subr.mxu0 0.0
    %2032 = vmatpush1.msra.mxu0 0.0
    %2033 = vmatprep.subr.mxu0 0.0
    %2034 = vmatpush1.msra.mxu0 0.0
    %2035 = vmatprep.subr.mxu0 0.0
    %2036 = vmatpush1.msra.mxu0 0.0
    %2037 = vmatprep.subr.mxu0 0.0
    %2038 = vmatpush1.msra.mxu0 0.0
    %2039 = vmatprep.subr.mxu0 0.0
    %2040 = vmatpush1.msra.mxu0 0.0
    %2041 = vmatprep.subr.mxu0 0.0
    %2042 = vmatpush1.msra.mxu0 0.0
    %2043 = vmatprep.subr.mxu0 0.0
    %2044 = vmatpush1.msra.mxu0 0.0
    %2045 = vmatprep.subr.mxu0 0.0
    %2046 = vmatpush1.msra.mxu0 0.0
    %2047 = vmatprep.subr.mxu0 0.0
    %2048 = vmatpush1.msra.mxu0 0.0
    %2049 = vmatprep.subr.mxu0 0.0
    %2050 = vmatpush1.msra.mxu0 0.0
    %2051 = vmatprep.subr.mxu0 0.0
    %2052 = vmatpush1.msra.mxu0 0.0
    %2053 = vmatprep.subr.mxu0 0.0
    %2054 = vmatpush1.msra.mxu0 0.0
    %2055 = vmatprep.mubr.f32.mxu0 0.0
    %2056 = vmatmul.mubr.f32.gmra.mrb[0].mxu0 %v1912
    %v2057 = vpop.f32.mrb[0].mxu0
    %v2058 = vadd.f32 0.0, %v2057
    %v2059 = vpop.f32.mrb[0].mxu0
    %v2060 = vadd.f32 0.0, %v2059
    %2061 = vdwg.mxu0
    %v2062 = vadd.f32 %v1916, %v1987
    %v2063 = vadd.f32 %v1917, %v1989
    %v2064 = vadd.f32 %v1918, %v2058
    %v2065 = vadd.f32 %v1919, %v2060
    %v2066 = vxor.u32 %v2062, 2147483648
    %v2067 = vmul.f32 %v2066, 1.442695
    %v2068 = vpow.pop %v2067
    %v2069 = vadd.f32 %v2068, 1.0
    %v2070 = vrcp.pop %v2069
    %v2071 = vmul.f32 1.0, %v2070
    %v2072 = vxor.u32 %v2063, 2147483648
    %v2073 = vmul.f32 %v2072, 1.442695
    %v2074 = vpow.pop %v2073
    %v2075 = vadd.f32 %v2074, 1.0
    %v2076 = vrcp.pop %v2075
    %v2077 = vmul.f32 1.0, %v2076
    %v2078 = vtanh.pop %v2064
    %v2079 = vxor.u32 %v2065, 2147483648
    %v2080 = vmul.f32 %v2079, 1.442695
    %v2081 = vpow.pop %v2080
    %v2082 = vadd.f32 %v2081, 1.0
    %v2083 = vrcp.pop %v2082
    %v2084 = vmul.f32 1.0, %v2083
    %v2085 = vmul.f32 %v2077, %v1910
    %v2086 = vmul.f32 %v2071, %v2078
    %v2087 = vadd.f32 %v2085, %v2086
    %v2088 = vtanh.pop %v2087
    %v2089 = vmul.f32 %v2084, %v2088
    %s2090 = scalar_lea.vmem [#allocation12], 80
    %2091 = vst [vmem:[%s2090] sm:$0xff] %v2089
    %s2092 = scalar_lea.vmem [#allocation4], 352
    %v2093 = vld [vmem:[%s2092] sm:$0xff]
    %v2094 = vld [vmem:[%s2092 + $0x8] sm:$0xff]
    %v2095 = vld [vmem:[%s2092 + $0x10] sm:$0xff]
    %v2096 = vld [vmem:[%s2092 + $0x18] sm:$0xff]
    %2097 = vmatprep.subr.mxu0 %v82
    %2098 = vmatpush1.msra.mxu0 %v81
    %2099 = vmatprep.subr.mxu0 %v86
    %2100 = vmatpush1.msra.mxu0 %v85
    %2101 = vmatprep.subr.mxu0 %v90
    %2102 = vmatpush1.msra.mxu0 %v89
    %2103 = vmatprep.subr.mxu0 %v94
    %2104 = vmatpush1.msra.mxu0 %v93
    %2105 = vmatprep.subr.mxu0 %v98
    %2106 = vmatpush1.msra.mxu0 %v97
    %2107 = vmatprep.subr.mxu0 %v102
    %2108 = vmatpush1.msra.mxu0 %v101
    %2109 = vmatprep.subr.mxu0 %v106
    %2110 = vmatpush1.msra.mxu0 %v105
    %2111 = vmatprep.subr.mxu0 %v110
    %2112 = vmatpush1.msra.mxu0 %v109
    %2113 = vmatprep.subr.mxu0 %v114
    %2114 = vmatpush1.msra.mxu0 %v113
    %2115 = vmatprep.subr.mxu0 %v118
    %2116 = vmatpush1.msra.mxu0 %v117
    %2117 = vmatprep.subr.mxu0 %v122
    %2118 = vmatpush1.msra.mxu0 %v121
    %2119 = vmatprep.subr.mxu0 %v126
    %2120 = vmatpush1.msra.mxu0 %v125
    %2121 = vmatprep.subr.mxu0 %v130
    %2122 = vmatpush1.msra.mxu0 %v129
    %2123 = vmatprep.subr.mxu0 %v134
    %2124 = vmatpush1.msra.mxu0 %v133
    %2125 = vmatprep.subr.mxu0 %v138
    %2126 = vmatpush1.msra.mxu0 %v137
    %2127 = vmatprep.subr.mxu0 %v142
    %2128 = vmatpush1.msra.mxu0 %v141
    %2129 = vmatprep.subr.mxu0 0.0
    %2130 = vmatpush1.msra.mxu0 0.0
    %2131 = vmatprep.subr.mxu0 0.0
    %2132 = vmatpush1.msra.mxu0 0.0
    %2133 = vmatprep.subr.mxu0 0.0
    %2134 = vmatpush1.msra.mxu0 0.0
    %2135 = vmatprep.subr.mxu0 0.0
    %2136 = vmatpush1.msra.mxu0 0.0
    %2137 = vmatprep.subr.mxu0 0.0
    %2138 = vmatpush1.msra.mxu0 0.0
    %2139 = vmatprep.subr.mxu0 0.0
    %2140 = vmatpush1.msra.mxu0 0.0
    %2141 = vmatprep.subr.mxu0 0.0
    %2142 = vmatpush1.msra.mxu0 0.0
    %2143 = vmatprep.subr.mxu0 0.0
    %2144 = vmatpush1.msra.mxu0 0.0
    %2145 = vmatprep.subr.mxu0 0.0
    %2146 = vmatpush1.msra.mxu0 0.0
    %2147 = vmatprep.subr.mxu0 0.0
    %2148 = vmatpush1.msra.mxu0 0.0
    %2149 = vmatprep.subr.mxu0 0.0
    %2150 = vmatpush1.msra.mxu0 0.0
    %2151 = vmatprep.subr.mxu0 0.0
    %2152 = vmatpush1.msra.mxu0 0.0
    %2153 = vmatprep.subr.mxu0 0.0
    %2154 = vmatpush1.msra.mxu0 0.0
    %2155 = vmatprep.subr.mxu0 0.0
    %2156 = vmatpush1.msra.mxu0 0.0
    %2157 = vmatprep.subr.mxu0 0.0
    %2158 = vmatpush1.msra.mxu0 0.0
    %2159 = vmatprep.subr.mxu0 0.0
    %2160 = vmatpush1.msra.mxu0 0.0
    %2161 = vmatprep.mubr.f32.mxu0 0.0
    %2162 = vmatmul.mubr.f32.gmra.mrb[0].mxu0 %v2089
    %v2163 = vpop.f32.mrb[0].mxu0
    %v2164 = vadd.f32 0.0, %v2163
    %v2165 = vpop.f32.mrb[0].mxu0
    %v2166 = vadd.f32 0.0, %v2165
    %2167 = vdwg.mxu0
    %2168 = vmatprep.subr.mxu0 %v84
    %2169 = vmatpush1.msra.mxu0 %v83
    %2170 = vmatprep.subr.mxu0 %v88
    %2171 = vmatpush1.msra.mxu0 %v87
    %2172 = vmatprep.subr.mxu0 %v92
    %2173 = vmatpush1.msra.mxu0 %v91
    %2174 = vmatprep.subr.mxu0 %v96
    %2175 = vmatpush1.msra.mxu0 %v95
    %2176 = vmatprep.subr.mxu0 %v100
    %2177 = vmatpush1.msra.mxu0 %v99
    %2178 = vmatprep.subr.mxu0 %v104
    %2179 = vmatpush1.msra.mxu0 %v103
    %2180 = vmatprep.subr.mxu0 %v108
    %2181 = vmatpush1.msra.mxu0 %v107
    %2182 = vmatprep.subr.mxu0 %v112
    %2183 = vmatpush1.msra.mxu0 %v111
    %2184 = vmatprep.subr.mxu0 %v116
    %2185 = vmatpush1.msra.mxu0 %v115
    %2186 = vmatprep.subr.mxu0 %v120
    %2187 = vmatpush1.msra.mxu0 %v119
    %2188 = vmatprep.subr.mxu0 %v124
    %2189 = vmatpush1.msra.mxu0 %v123
    %2190 = vmatprep.subr.mxu0 %v128
    %2191 = vmatpush1.msra.mxu0 %v127
    %2192 = vmatprep.subr.mxu0 %v132
    %2193 = vmatpush1.msra.mxu0 %v131
    %2194 = vmatprep.subr.mxu0 %v136
    %2195 = vmatpush1.msra.mxu0 %v135
    %2196 = vmatprep.subr.mxu0 %v140
    %2197 = vmatpush1.msra.mxu0 %v139
    %2198 = vmatprep.subr.mxu0 %v144
    %2199 = vmatpush1.msra.mxu0 %v143
    %2200 = vmatprep.subr.mxu0 0.0
    %2201 = vmatpush1.msra.mxu0 0.0
    %2202 = vmatprep.subr.mxu0 0.0
    %2203 = vmatpush1.msra.mxu0 0.0
    %2204 = vmatprep.subr.mxu0 0.0
    %2205 = vmatpush1.msra.mxu0 0.0
    %2206 = vmatprep.subr.mxu0 0.0
    %2207 = vmatpush1.msra.mxu0 0.0
    %2208 = vmatprep.subr.mxu0 0.0
    %2209 = vmatpush1.msra.mxu0 0.0
    %2210 = vmatprep.subr.mxu0 0.0
    %2211 = vmatpush1.msra.mxu0 0.0
    %2212 = vmatprep.subr.mxu0 0.0
    %2213 = vmatpush1.msra.mxu0 0.0
    %2214 = vmatprep.subr.mxu0 0.0
    %2215 = vmatpush1.msra.mxu0 0.0
    %2216 = vmatprep.subr.mxu0 0.0
    %2217 = vmatpush1.msra.mxu0 0.0
    %2218 = vmatprep.subr.mxu0 0.0
    %2219 = vmatpush1.msra.mxu0 0.0
    %2220 = vmatprep.subr.mxu0 0.0
    %2221 = vmatpush1.msra.mxu0 0.0
    %2222 = vmatprep.subr.mxu0 0.0
    %2223 = vmatpush1.msra.mxu0 0.0
    %2224 = vmatprep.subr.mxu0 0.0
    %2225 = vmatpush1.msra.mxu0 0.0
    %2226 = vmatprep.subr.mxu0 0.0
    %2227 = vmatpush1.msra.mxu0 0.0
    %2228 = vmatprep.subr.mxu0 0.0
    %2229 = vmatpush1.msra.mxu0 0.0
    %2230 = vmatprep.subr.mxu0 0.0
    %2231 = vmatpush1.msra.mxu0 0.0
    %2232 = vmatprep.mubr.f32.mxu0 0.0
    %2233 = vmatmul.mubr.f32.gmra.mrb[0].mxu0 %v2089
    %v2234 = vpop.f32.mrb[0].mxu0
    %v2235 = vadd.f32 0.0, %v2234
    %v2236 = vpop.f32.mrb[0].mxu0
    %v2237 = vadd.f32 0.0, %v2236
    %2238 = vdwg.mxu0
    %v2239 = vadd.f32 %v2093, %v2164
    %v2240 = vadd.f32 %v2094, %v2166
    %v2241 = vadd.f32 %v2095, %v2235
    %v2242 = vadd.f32 %v2096, %v2237
    %v2243 = vxor.u32 %v2239, 2147483648
    %v2244 = vmul.f32 %v2243, 1.442695
    %v2245 = vpow.pop %v2244
    %v2246 = vadd.f32 %v2245, 1.0
    %v2247 = vrcp.pop %v2246
    %v2248 = vmul.f32 1.0, %v2247
    %v2249 = vxor.u32 %v2240, 2147483648
    %v2250 = vmul.f32 %v2249, 1.442695
    %v2251 = vpow.pop %v2250
    %v2252 = vadd.f32 %v2251, 1.0
    %v2253 = vrcp.pop %v2252
    %v2254 = vmul.f32 1.0, %v2253
    %v2255 = vtanh.pop %v2241
    %v2256 = vxor.u32 %v2242, 2147483648
    %v2257 = vmul.f32 %v2256, 1.442695
    %v2258 = vpow.pop %v2257
    %v2259 = vadd.f32 %v2258, 1.0
    %v2260 = vrcp.pop %v2259
    %v2261 = vmul.f32 1.0, %v2260
    %v2262 = vmul.f32 %v2254, %v2087
    %v2263 = vmul.f32 %v2248, %v2255
    %v2264 = vadd.f32 %v2262, %v2263
    %v2265 = vtanh.pop %v2264
    %v2266 = vmul.f32 %v2261, %v2265
    %s2267 = scalar_lea.vmem [#allocation12], 88
    %2268 = vst [vmem:[%s2267] sm:$0xff] %v2266
    %s2269 = scalar_lea.vmem [#allocation4], 384
    %v2270 = vld [vmem:[%s2269] sm:$0xff]
    %v2271 = vld [vmem:[%s2269 + $0x8] sm:$0xff]
    %v2272 = vld [vmem:[%s2269 + $0x10] sm:$0xff]
    %v2273 = vld [vmem:[%s2269 + $0x18] sm:$0xff]
    %2274 = vmatprep.subr.mxu0 %v82
    %2275 = vmatpush1.msra.mxu0 %v81
    %2276 = vmatprep.subr.mxu0 %v86
    %2277 = vmatpush1.msra.mxu0 %v85
    %2278 = vmatprep.subr.mxu0 %v90
    %2279 = vmatpush1.msra.mxu0 %v89
    %2280 = vmatprep.subr.mxu0 %v94
    %2281 = vmatpush1.msra.mxu0 %v93
    %2282 = vmatprep.subr.mxu0 %v98
    %2283 = vmatpush1.msra.mxu0 %v97
    %2284 = vmatprep.subr.mxu0 %v102
    %2285 = vmatpush1.msra.mxu0 %v101
    %2286 = vmatprep.subr.mxu0 %v106
    %2287 = vmatpush1.msra.mxu0 %v105
    %2288 = vmatprep.subr.mxu0 %v110
    %2289 = vmatpush1.msra.mxu0 %v109
    %2290 = vmatprep.subr.mxu0 %v114
    %2291 = vmatpush1.msra.mxu0 %v113
    %2292 = vmatprep.subr.mxu0 %v118
    %2293 = vmatpush1.msra.mxu0 %v117
    %2294 = vmatprep.subr.mxu0 %v122
    %2295 = vmatpush1.msra.mxu0 %v121
    %2296 = vmatprep.subr.mxu0 %v126
    %2297 = vmatpush1.msra.mxu0 %v125
    %2298 = vmatprep.subr.mxu0 %v130
    %2299 = vmatpush1.msra.mxu0 %v129
    %2300 = vmatprep.subr.mxu0 %v134
    %2301 = vmatpush1.msra.mxu0 %v133
    %2302 = vmatprep.subr.mxu0 %v138
    %2303 = vmatpush1.msra.mxu0 %v137
    %2304 = vmatprep.subr.mxu0 %v142
    %2305 = vmatpush1.msra.mxu0 %v141
    %2306 = vmatprep.subr.mxu0 0.0
    %2307 = vmatpush1.msra.mxu0 0.0
    %2308 = vmatprep.subr.mxu0 0.0
    %2309 = vmatpush1.msra.mxu0 0.0
    %2310 = vmatprep.subr.mxu0 0.0
    %2311 = vmatpush1.msra.mxu0 0.0
    %2312 = vmatprep.subr.mxu0 0.0
    %2313 = vmatpush1.msra.mxu0 0.0
    %2314 = vmatprep.subr.mxu0 0.0
    %2315 = vmatpush1.msra.mxu0 0.0
    %2316 = vmatprep.subr.mxu0 0.0
    %2317 = vmatpush1.msra.mxu0 0.0
    %2318 = vmatprep.subr.mxu0 0.0
    %2319 = vmatpush1.msra.mxu0 0.0
    %2320 = vmatprep.subr.mxu0 0.0
    %2321 = vmatpush1.msra.mxu0 0.0
    %2322 = vmatprep.subr.mxu0 0.0
    %2323 = vmatpush1.msra.mxu0 0.0
    %2324 = vmatprep.subr.mxu0 0.0
    %2325 = vmatpush1.msra.mxu0 0.0
    %2326 = vmatprep.subr.mxu0 0.0
    %2327 = vmatpush1.msra.mxu0 0.0
    %2328 = vmatprep.subr.mxu0 0.0
    %2329 = vmatpush1.msra.mxu0 0.0
    %2330 = vmatprep.subr.mxu0 0.0
    %2331 = vmatpush1.msra.mxu0 0.0
    %2332 = vmatprep.subr.mxu0 0.0
    %2333 = vmatpush1.msra.mxu0 0.0
    %2334 = vmatprep.subr.mxu0 0.0
    %2335 = vmatpush1.msra.mxu0 0.0
    %2336 = vmatprep.subr.mxu0 0.0
    %2337 = vmatpush1.msra.mxu0 0.0
    %2338 = vmatprep.mubr.f32.mxu0 0.0
    %2339 = vmatmul.mubr.f32.gmra.mrb[0].mxu0 %v2266
    %v2340 = vpop.f32.mrb[0].mxu0
    %v2341 = vadd.f32 0.0, %v2340
    %v2342 = vpop.f32.mrb[0].mxu0
    %v2343 = vadd.f32 0.0, %v2342
    %2344 = vdwg.mxu0
    %2345 = vmatprep.subr.mxu0 %v84
    %2346 = vmatpush1.msra.mxu0 %v83
    %2347 = vmatprep.subr.mxu0 %v88
    %2348 = vmatpush1.msra.mxu0 %v87
    %2349 = vmatprep.subr.mxu0 %v92
    %2350 = vmatpush1.msra.mxu0 %v91
    %2351 = vmatprep.subr.mxu0 %v96
    %2352 = vmatpush1.msra.mxu0 %v95
    %2353 = vmatprep.subr.mxu0 %v100
    %2354 = vmatpush1.msra.mxu0 %v99
    %2355 = vmatprep.subr.mxu0 %v104
    %2356 = vmatpush1.msra.mxu0 %v103
    %2357 = vmatprep.subr.mxu0 %v108
    %2358 = vmatpush1.msra.mxu0 %v107
    %2359 = vmatprep.subr.mxu0 %v112
    %2360 = vmatpush1.msra.mxu0 %v111
    %2361 = vmatprep.subr.mxu0 %v116
    %2362 = vmatpush1.msra.mxu0 %v115
    %2363 = vmatprep.subr.mxu0 %v120
    %2364 = vmatpush1.msra.mxu0 %v119
    %2365 = vmatprep.subr.mxu0 %v124
    %2366 = vmatpush1.msra.mxu0 %v123
    %2367 = vmatprep.subr.mxu0 %v128
    %2368 = vmatpush1.msra.mxu0 %v127
    %2369 = vmatprep.subr.mxu0 %v132
    %2370 = vmatpush1.msra.mxu0 %v131
    %2371 = vmatprep.subr.mxu0 %v136
    %2372 = vmatpush1.msra.mxu0 %v135
    %2373 = vmatprep.subr.mxu0 %v140
    %2374 = vmatpush1.msra.mxu0 %v139
    %2375 = vmatprep.subr.mxu0 %v144
    %2376 = vmatpush1.msra.mxu0 %v143
    %2377 = vmatprep.subr.mxu0 0.0
    %2378 = vmatpush1.msra.mxu0 0.0
    %2379 = vmatprep.subr.mxu0 0.0
    %2380 = vmatpush1.msra.mxu0 0.0
    %2381 = vmatprep.subr.mxu0 0.0
    %2382 = vmatpush1.msra.mxu0 0.0
    %2383 = vmatprep.subr.mxu0 0.0
    %2384 = vmatpush1.msra.mxu0 0.0
    %2385 = vmatprep.subr.mxu0 0.0
    %2386 = vmatpush1.msra.mxu0 0.0
    %2387 = vmatprep.subr.mxu0 0.0
    %2388 = vmatpush1.msra.mxu0 0.0
    %2389 = vmatprep.subr.mxu0 0.0
    %2390 = vmatpush1.msra.mxu0 0.0
    %2391 = vmatprep.subr.mxu0 0.0
    %2392 = vmatpush1.msra.mxu0 0.0
    %2393 = vmatprep.subr.mxu0 0.0
    %2394 = vmatpush1.msra.mxu0 0.0
    %2395 = vmatprep.subr.mxu0 0.0
    %2396 = vmatpush1.msra.mxu0 0.0
    %2397 = vmatprep.subr.mxu0 0.0
    %2398 = vmatpush1.msra.mxu0 0.0
    %2399 = vmatprep.subr.mxu0 0.0
    %2400 = vmatpush1.msra.mxu0 0.0
    %2401 = vmatprep.subr.mxu0 0.0
    %2402 = vmatpush1.msra.mxu0 0.0
    %2403 = vmatprep.subr.mxu0 0.0
    %2404 = vmatpush1.msra.mxu0 0.0
    %2405 = vmatprep.subr.mxu0 0.0
    %2406 = vmatpush1.msra.mxu0 0.0
    %2407 = vmatprep.subr.mxu0 0.0
    %2408 = vmatpush1.msra.mxu0 0.0
    %2409 = vmatprep.mubr.f32.mxu0 0.0
    %2410 = vmatmul.mubr.f32.gmra.mrb[0].mxu0 %v2266
    %v2411 = vpop.f32.mrb[0].mxu0
    %v2412 = vadd.f32 0.0, %v2411
    %v2413 = vpop.f32.mrb[0].mxu0
    %v2414 = vadd.f32 0.0, %v2413
    %2415 = vdwg.mxu0
    %v2416 = vadd.f32 %v2270, %v2341
    %v2417 = vadd.f32 %v2271, %v2343
    %v2418 = vadd.f32 %v2272, %v2412
    %v2419 = vadd.f32 %v2273, %v2414
    %v2420 = vxor.u32 %v2416, 2147483648
    %v2421 = vmul.f32 %v2420, 1.442695
    %v2422 = vpow.pop %v2421
    %v2423 = vadd.f32 %v2422, 1.0
    %v2424 = vrcp.pop %v2423
    %v2425 = vmul.f32 1.0, %v2424
    %v2426 = vxor.u32 %v2417, 2147483648
    %v2427 = vmul.f32 %v2426, 1.442695
    %v2428 = vpow.pop %v2427
    %v2429 = vadd.f32 %v2428, 1.0
    %v2430 = vrcp.pop %v2429
    %v2431 = vmul.f32 1.0, %v2430
    %v2432 = vtanh.pop %v2418
    %v2433 = vxor.u32 %v2419, 2147483648
    %v2434 = vmul.f32 %v2433, 1.442695
    %v2435 = vpow.pop %v2434
    %v2436 = vadd.f32 %v2435, 1.0
    %v2437 = vrcp.pop %v2436
    %v2438 = vmul.f32 1.0, %v2437
    %v2439 = vmul.f32 %v2431, %v2264
    %v2440 = vmul.f32 %v2425, %v2432
    %v2441 = vadd.f32 %v2439, %v2440
    %v2442 = vtanh.pop %v2441
    %v2443 = vmul.f32 %v2438, %v2442
    %s2444 = scalar_lea.vmem [#allocation12], 96
    %2445 = vst [vmem:[%s2444] sm:$0xff] %v2443
    %s2446 = scalar_lea.vmem [#allocation4], 416
    %v2447 = vld [vmem:[%s2446] sm:$0xff]
    %v2448 = vld [vmem:[%s2446 + $0x8] sm:$0xff]
    %v2449 = vld [vmem:[%s2446 + $0x10] sm:$0xff]
    %v2450 = vld [vmem:[%s2446 + $0x18] sm:$0xff]
    %2451 = vmatprep.subr.mxu0 %v82
    %2452 = vmatpush1.msra.mxu0 %v81
    %2453 = vmatprep.subr.mxu0 %v86
    %2454 = vmatpush1.msra.mxu0 %v85
    %2455 = vmatprep.subr.mxu0 %v90
    %2456 = vmatpush1.msra.mxu0 %v89
    %2457 = vmatprep.subr.mxu0 %v94
    %2458 = vmatpush1.msra.mxu0 %v93
    %2459 = vmatprep.subr.mxu0 %v98
    %2460 = vmatpush1.msra.mxu0 %v97
    %2461 = vmatprep.subr.mxu0 %v102
    %2462 = vmatpush1.msra.mxu0 %v101
    %2463 = vmatprep.subr.mxu0 %v106
    %2464 = vmatpush1.msra.mxu0 %v105
    %2465 = vmatprep.subr.mxu0 %v110
    %2466 = vmatpush1.msra.mxu0 %v109
    %2467 = vmatprep.subr.mxu0 %v114
    %2468 = vmatpush1.msra.mxu0 %v113
    %2469 = vmatprep.subr.mxu0 %v118
    %2470 = vmatpush1.msra.mxu0 %v117
    %2471 = vmatprep.subr.mxu0 %v122
    %2472 = vmatpush1.msra.mxu0 %v121
    %2473 = vmatprep.subr.mxu0 %v126
    %2474 = vmatpush1.msra.mxu0 %v125
    %2475 = vmatprep.subr.mxu0 %v130
    %2476 = vmatpush1.msra.mxu0 %v129
    %2477 = vmatprep.subr.mxu0 %v134
    %2478 = vmatpush1.msra.mxu0 %v133
    %2479 = vmatprep.subr.mxu0 %v138
    %2480 = vmatpush1.msra.mxu0 %v137
    %2481 = vmatprep.subr.mxu0 %v142
    %2482 = vmatpush1.msra.mxu0 %v141
    %2483 = vmatprep.subr.mxu0 0.0
    %2484 = vmatpush1.msra.mxu0 0.0
    %2485 = vmatprep.subr.mxu0 0.0
    %2486 = vmatpush1.msra.mxu0 0.0
    %2487 = vmatprep.subr.mxu0 0.0
    %2488 = vmatpush1.msra.mxu0 0.0
    %2489 = vmatprep.subr.mxu0 0.0
    %2490 = vmatpush1.msra.mxu0 0.0
    %2491 = vmatprep.subr.mxu0 0.0
    %2492 = vmatpush1.msra.mxu0 0.0
    %2493 = vmatprep.subr.mxu0 0.0
    %2494 = vmatpush1.msra.mxu0 0.0
    %2495 = vmatprep.subr.mxu0 0.0
    %2496 = vmatpush1.msra.mxu0 0.0
    %2497 = vmatprep.subr.mxu0 0.0
    %2498 = vmatpush1.msra.mxu0 0.0
    %2499 = vmatprep.subr.mxu0 0.0
    %2500 = vmatpush1.msra.mxu0 0.0
    %2501 = vmatprep.subr.mxu0 0.0
    %2502 = vmatpush1.msra.mxu0 0.0
    %2503 = vmatprep.subr.mxu0 0.0
    %2504 = vmatpush1.msra.mxu0 0.0
    %2505 = vmatprep.subr.mxu0 0.0
    %2506 = vmatpush1.msra.mxu0 0.0
    %2507 = vmatprep.subr.mxu0 0.0
    %2508 = vmatpush1.msra.mxu0 0.0
    %2509 = vmatprep.subr.mxu0 0.0
    %2510 = vmatpush1.msra.mxu0 0.0
    %2511 = vmatprep.subr.mxu0 0.0
    %2512 = vmatpush1.msra.mxu0 0.0
    %2513 = vmatprep.subr.mxu0 0.0
    %2514 = vmatpush1.msra.mxu0 0.0
    %2515 = vmatprep.mubr.f32.mxu0 0.0
    %2516 = vmatmul.mubr.f32.gmra.mrb[0].mxu0 %v2443
    %v2517 = vpop.f32.mrb[0].mxu0
    %v2518 = vadd.f32 0.0, %v2517
    %v2519 = vpop.f32.mrb[0].mxu0
    %v2520 = vadd.f32 0.0, %v2519
    %2521 = vdwg.mxu0
    %2522 = vmatprep.subr.mxu0 %v84
    %2523 = vmatpush1.msra.mxu0 %v83
    %2524 = vmatprep.subr.mxu0 %v88
    %2525 = vmatpush1.msra.mxu0 %v87
    %2526 = vmatprep.subr.mxu0 %v92
    %2527 = vmatpush1.msra.mxu0 %v91
    %2528 = vmatprep.subr.mxu0 %v96
    %2529 = vmatpush1.msra.mxu0 %v95
    %2530 = vmatprep.subr.mxu0 %v100
    %2531 = vmatpush1.msra.mxu0 %v99
    %2532 = vmatprep.subr.mxu0 %v104
    %2533 = vmatpush1.msra.mxu0 %v103
    %2534 = vmatprep.subr.mxu0 %v108
    %2535 = vmatpush1.msra.mxu0 %v107
    %2536 = vmatprep.subr.mxu0 %v112
    %2537 = vmatpush1.msra.mxu0 %v111
    %2538 = vmatprep.subr.mxu0 %v116
    %2539 = vmatpush1.msra.mxu0 %v115
    %2540 = vmatprep.subr.mxu0 %v120
    %2541 = vmatpush1.msra.mxu0 %v119
    %2542 = vmatprep.subr.mxu0 %v124
    %2543 = vmatpush1.msra.mxu0 %v123
    %2544 = vmatprep.subr.mxu0 %v128
    %2545 = vmatpush1.msra.mxu0 %v127
    %2546 = vmatprep.subr.mxu0 %v132
    %2547 = vmatpush1.msra.mxu0 %v131
    %2548 = vmatprep.subr.mxu0 %v136
    %2549 = vmatpush1.msra.mxu0 %v135
    %2550 = vmatprep.subr.mxu0 %v140
    %2551 = vmatpush1.msra.mxu0 %v139
    %2552 = vmatprep.subr.mxu0 %v144
    %2553 = vmatpush1.msra.mxu0 %v143
    %2554 = vmatprep.subr.mxu0 0.0
    %2555 = vmatpush1.msra.mxu0 0.0
    %2556 = vmatprep.subr.mxu0 0.0
    %2557 = vmatpush1.msra.mxu0 0.0
    %2558 = vmatprep.subr.mxu0 0.0
    %2559 = vmatpush1.msra.mxu0 0.0
    %2560 = vmatprep.subr.mxu0 0.0
    %2561 = vmatpush1.msra.mxu0 0.0
    %2562 = vmatprep.subr.mxu0 0.0
    %2563 = vmatpush1.msra.mxu0 0.0
    %2564 = vmatprep.subr.mxu0 0.0
    %2565 = vmatpush1.msra.mxu0 0.0
    %2566 = vmatprep.subr.mxu0 0.0
    %2567 = vmatpush1.msra.mxu0 0.0
    %2568 = vmatprep.subr.mxu0 0.0
    %2569 = vmatpush1.msra.mxu0 0.0
    %2570 = vmatprep.subr.mxu0 0.0
    %2571 = vmatpush1.msra.mxu0 0.0
    %2572 = vmatprep.subr.mxu0 0.0
    %2573 = vmatpush1.msra.mxu0 0.0
    %2574 = vmatprep.subr.mxu0 0.0
    %2575 = vmatpush1.msra.mxu0 0.0
    %2576 = vmatprep.subr.mxu0 0.0
    %2577 = vmatpush1.msra.mxu0 0.0
    %2578 = vmatprep.subr.mxu0 0.0
    %2579 = vmatpush1.msra.mxu0 0.0
    %2580 = vmatprep.subr.mxu0 0.0
    %2581 = vmatpush1.msra.mxu0 0.0
    %2582 = vmatprep.subr.mxu0 0.0
    %2583 = vmatpush1.msra.mxu0 0.0
    %2584 = vmatprep.subr.mxu0 0.0
    %2585 = vmatpush1.msra.mxu0 0.0
    %2586 = vmatprep.mubr.f32.mxu0 0.0
    %2587 = vmatmul.mubr.f32.gmra.mrb[0].mxu0 %v2443
    %v2588 = vpop.f32.mrb[0].mxu0
    %v2589 = vadd.f32 0.0, %v2588
    %v2590 = vpop.f32.mrb[0].mxu0
    %v2591 = vadd.f32 0.0, %v2590
    %2592 = vdwg.mxu0
    %v2593 = vadd.f32 %v2447, %v2518
    %v2594 = vadd.f32 %v2448, %v2520
    %v2595 = vadd.f32 %v2449, %v2589
    %v2596 = vadd.f32 %v2450, %v2591
    %v2597 = vxor.u32 %v2593, 2147483648
    %v2598 = vmul.f32 %v2597, 1.442695
    %v2599 = vpow.pop %v2598
    %v2600 = vadd.f32 %v2599, 1.0
    %v2601 = vrcp.pop %v2600
    %v2602 = vmul.f32 1.0, %v2601
    %v2603 = vxor.u32 %v2594, 2147483648
    %v2604 = vmul.f32 %v2603, 1.442695
    %v2605 = vpow.pop %v2604
    %v2606 = vadd.f32 %v2605, 1.0
    %v2607 = vrcp.pop %v2606
    %v2608 = vmul.f32 1.0, %v2607
    %v2609 = vtanh.pop %v2595
    %v2610 = vxor.u32 %v2596, 2147483648
    %v2611 = vmul.f32 %v2610, 1.442695
    %v2612 = vpow.pop %v2611
    %v2613 = vadd.f32 %v2612, 1.0
    %v2614 = vrcp.pop %v2613
    %v2615 = vmul.f32 1.0, %v2614
    %v2616 = vmul.f32 %v2608, %v2441
    %v2617 = vmul.f32 %v2602, %v2609
    %v2618 = vadd.f32 %v2616, %v2617
    %v2619 = vtanh.pop %v2618
    %v2620 = vmul.f32 %v2615, %v2619
    %s2621 = scalar_lea.vmem [#allocation12], 104
    %2622 = vst [vmem:[%s2621] sm:$0xff] %v2620
    %s2623 = scalar_lea.vmem [#allocation4], 448
    %v2624 = vld [vmem:[%s2623] sm:$0xff]
    %v2625 = vld [vmem:[%s2623 + $0x8] sm:$0xff]
    %v2626 = vld [vmem:[%s2623 + $0x10] sm:$0xff]
    %v2627 = vld [vmem:[%s2623 + $0x18] sm:$0xff]
    %2628 = vmatprep.subr.mxu0 %v82
    %2629 = vmatpush1.msra.mxu0 %v81
    %2630 = vmatprep.subr.mxu0 %v86
    %2631 = vmatpush1.msra.mxu0 %v85
    %2632 = vmatprep.subr.mxu0 %v90
    %2633 = vmatpush1.msra.mxu0 %v89
    %2634 = vmatprep.subr.mxu0 %v94
    %2635 = vmatpush1.msra.mxu0 %v93
    %2636 = vmatprep.subr.mxu0 %v98
    %2637 = vmatpush1.msra.mxu0 %v97
    %2638 = vmatprep.subr.mxu0 %v102
    %2639 = vmatpush1.msra.mxu0 %v101
    %2640 = vmatprep.subr.mxu0 %v106
    %2641 = vmatpush1.msra.mxu0 %v105
    %2642 = vmatprep.subr.mxu0 %v110
    %2643 = vmatpush1.msra.mxu0 %v109
    %2644 = vmatprep.subr.mxu0 %v114
    %2645 = vmatpush1.msra.mxu0 %v113
    %2646 = vmatprep.subr.mxu0 %v118
    %2647 = vmatpush1.msra.mxu0 %v117
    %2648 = vmatprep.subr.mxu0 %v122
    %2649 = vmatpush1.msra.mxu0 %v121
    %2650 = vmatprep.subr.mxu0 %v126
    %2651 = vmatpush1.msra.mxu0 %v125
    %2652 = vmatprep.subr.mxu0 %v130
    %2653 = vmatpush1.msra.mxu0 %v129
    %2654 = vmatprep.subr.mxu0 %v134
    %2655 = vmatpush1.msra.mxu0 %v133
    %2656 = vmatprep.subr.mxu0 %v138
    %2657 = vmatpush1.msra.mxu0 %v137
    %2658 = vmatprep.subr.mxu0 %v142
    %2659 = vmatpush1.msra.mxu0 %v141
    %2660 = vmatprep.subr.mxu0 0.0
    %2661 = vmatpush1.msra.mxu0 0.0
    %2662 = vmatprep.subr.mxu0 0.0
    %2663 = vmatpush1.msra.mxu0 0.0
    %2664 = vmatprep.subr.mxu0 0.0
    %2665 = vmatpush1.msra.mxu0 0.0
    %2666 = vmatprep.subr.mxu0 0.0
    %2667 = vmatpush1.msra.mxu0 0.0
    %2668 = vmatprep.subr.mxu0 0.0
    %2669 = vmatpush1.msra.mxu0 0.0
    %2670 = vmatprep.subr.mxu0 0.0
    %2671 = vmatpush1.msra.mxu0 0.0
    %2672 = vmatprep.subr.mxu0 0.0
    %2673 = vmatpush1.msra.mxu0 0.0
    %2674 = vmatprep.subr.mxu0 0.0
    %2675 = vmatpush1.msra.mxu0 0.0
    %2676 = vmatprep.subr.mxu0 0.0
    %2677 = vmatpush1.msra.mxu0 0.0
    %2678 = vmatprep.subr.mxu0 0.0
    %2679 = vmatpush1.msra.mxu0 0.0
    %2680 = vmatprep.subr.mxu0 0.0
    %2681 = vmatpush1.msra.mxu0 0.0
    %2682 = vmatprep.subr.mxu0 0.0
    %2683 = vmatpush1.msra.mxu0 0.0
    %2684 = vmatprep.subr.mxu0 0.0
    %2685 = vmatpush1.msra.mxu0 0.0
    %2686 = vmatprep.subr.mxu0 0.0
    %2687 = vmatpush1.msra.mxu0 0.0
    %2688 = vmatprep.subr.mxu0 0.0
    %2689 = vmatpush1.msra.mxu0 0.0
    %2690 = vmatprep.subr.mxu0 0.0
    %2691 = vmatpush1.msra.mxu0 0.0
    %2692 = vmatprep.mubr.f32.mxu0 0.0
    %2693 = vmatmul.mubr.f32.gmra.mrb[0].mxu0 %v2620
    %v2694 = vpop.f32.mrb[0].mxu0
    %v2695 = vadd.f32 0.0, %v2694
    %v2696 = vpop.f32.mrb[0].mxu0
    %v2697 = vadd.f32 0.0, %v2696
    %2698 = vdwg.mxu0
    %2699 = vmatprep.subr.mxu0 %v84
    %2700 = vmatpush1.msra.mxu0 %v83
    %2701 = vmatprep.subr.mxu0 %v88
    %2702 = vmatpush1.msra.mxu0 %v87
    %2703 = vmatprep.subr.mxu0 %v92
    %2704 = vmatpush1.msra.mxu0 %v91
    %2705 = vmatprep.subr.mxu0 %v96
    %2706 = vmatpush1.msra.mxu0 %v95
    %2707 = vmatprep.subr.mxu0 %v100
    %2708 = vmatpush1.msra.mxu0 %v99
    %2709 = vmatprep.subr.mxu0 %v104
    %2710 = vmatpush1.msra.mxu0 %v103
    %2711 = vmatprep.subr.mxu0 %v108
    %2712 = vmatpush1.msra.mxu0 %v107
    %2713 = vmatprep.subr.mxu0 %v112
    %2714 = vmatpush1.msra.mxu0 %v111
    %2715 = vmatprep.subr.mxu0 %v116
    %2716 = vmatpush1.msra.mxu0 %v115
    %2717 = vmatprep.subr.mxu0 %v120
    %2718 = vmatpush1.msra.mxu0 %v119
    %2719 = vmatprep.subr.mxu0 %v124
    %2720 = vmatpush1.msra.mxu0 %v123
    %2721 = vmatprep.subr.mxu0 %v128
    %2722 = vmatpush1.msra.mxu0 %v127
    %2723 = vmatprep.subr.mxu0 %v132
    %2724 = vmatpush1.msra.mxu0 %v131
    %2725 = vmatprep.subr.mxu0 %v136
    %2726 = vmatpush1.msra.mxu0 %v135
    %2727 = vmatprep.subr.mxu0 %v140
    %2728 = vmatpush1.msra.mxu0 %v139
    %2729 = vmatprep.subr.mxu0 %v144
    %2730 = vmatpush1.msra.mxu0 %v143
    %2731 = vmatprep.subr.mxu0 0.0
    %2732 = vmatpush1.msra.mxu0 0.0
    %2733 = vmatprep.subr.mxu0 0.0
    %2734 = vmatpush1.msra.mxu0 0.0
    %2735 = vmatprep.subr.mxu0 0.0
    %2736 = vmatpush1.msra.mxu0 0.0
    %2737 = vmatprep.subr.mxu0 0.0
    %2738 = vmatpush1.msra.mxu0 0.0
    %2739 = vmatprep.subr.mxu0 0.0
    %2740 = vmatpush1.msra.mxu0 0.0
    %2741 = vmatprep.subr.mxu0 0.0
    %2742 = vmatpush1.msra.mxu0 0.0
    %2743 = vmatprep.subr.mxu0 0.0
    %2744 = vmatpush1.msra.mxu0 0.0
    %2745 = vmatprep.subr.mxu0 0.0
    %2746 = vmatpush1.msra.mxu0 0.0
    %2747 = vmatprep.subr.mxu0 0.0
    %2748 = vmatpush1.msra.mxu0 0.0
    %2749 = vmatprep.subr.mxu0 0.0
    %2750 = vmatpush1.msra.mxu0 0.0
    %2751 = vmatprep.subr.mxu0 0.0
    %2752 = vmatpush1.msra.mxu0 0.0
    %2753 = vmatprep.subr.mxu0 0.0
    %2754 = vmatpush1.msra.mxu0 0.0
    %2755 = vmatprep.subr.mxu0 0.0
    %2756 = vmatpush1.msra.mxu0 0.0
    %2757 = vmatprep.subr.mxu0 0.0
    %2758 = vmatpush1.msra.mxu0 0.0
    %2759 = vmatprep.subr.mxu0 0.0
    %2760 = vmatpush1.msra.mxu0 0.0
    %2761 = vmatprep.subr.mxu0 0.0
    %2762 = vmatpush1.msra.mxu0 0.0
    %2763 = vmatprep.mubr.f32.mxu0 0.0
    %2764 = vmatmul.mubr.f32.gmra.mrb[0].mxu0 %v2620
    %v2765 = vpop.f32.mrb[0].mxu0
    %v2766 = vadd.f32 0.0, %v2765
    %v2767 = vpop.f32.mrb[0].mxu0
    %v2768 = vadd.f32 0.0, %v2767
    %2769 = vdwg.mxu0
    %v2770 = vadd.f32 %v2624, %v2695
    %v2771 = vadd.f32 %v2625, %v2697
    %v2772 = vadd.f32 %v2626, %v2766
    %v2773 = vadd.f32 %v2627, %v2768
    %v2774 = vxor.u32 %v2770, 2147483648
    %v2775 = vmul.f32 %v2774, 1.442695
    %v2776 = vpow.pop %v2775
    %v2777 = vadd.f32 %v2776, 1.0
    %v2778 = vrcp.pop %v2777
    %v2779 = vmul.f32 1.0, %v2778
    %v2780 = vxor.u32 %v2771, 2147483648
    %v2781 = vmul.f32 %v2780, 1.442695
    %v2782 = vpow.pop %v2781
    %v2783 = vadd.f32 %v2782, 1.0
    %v2784 = vrcp.pop %v2783
    %v2785 = vmul.f32 1.0, %v2784
    %v2786 = vtanh.pop %v2772
    %v2787 = vxor.u32 %v2773, 2147483648
    %v2788 = vmul.f32 %v2787, 1.442695
    %v2789 = vpow.pop %v2788
    %v2790 = vadd.f32 %v2789, 1.0
    %v2791 = vrcp.pop %v2790
    %v2792 = vmul.f32 1.0, %v2791
    %v2793 = vmul.f32 %v2785, %v2618
    %v2794 = vmul.f32 %v2779, %v2786
    %v2795 = vadd.f32 %v2793, %v2794
    %v2796 = vtanh.pop %v2795
    %v2797 = vmul.f32 %v2792, %v2796
    %s2798 = scalar_lea.vmem [#allocation12], 112
    %2799 = vst [vmem:[%s2798] sm:$0xff] %v2797
    %s2800 = scalar_lea.vmem [#allocation4], 480
    %v2801 = vld [vmem:[%s2800] sm:$0xff]
    %v2802 = vld [vmem:[%s2800 + $0x8] sm:$0xff]
    %v2803 = vld [vmem:[%s2800 + $0x10] sm:$0xff]
    %v2804 = vld [vmem:[%s2800 + $0x18] sm:$0xff]
    %2805 = vmatprep.subr.mxu0 %v82
    %2806 = vmatpush1.msra.mxu0 %v81
    %2807 = vmatprep.subr.mxu0 %v86
    %2808 = vmatpush1.msra.mxu0 %v85
    %2809 = vmatprep.subr.mxu0 %v90
    %2810 = vmatpush1.msra.mxu0 %v89
    %2811 = vmatprep.subr.mxu0 %v94
    %2812 = vmatpush1.msra.mxu0 %v93
    %2813 = vmatprep.subr.mxu0 %v98
    %2814 = vmatpush1.msra.mxu0 %v97
    %2815 = vmatprep.subr.mxu0 %v102
    %2816 = vmatpush1.msra.mxu0 %v101
    %2817 = vmatprep.subr.mxu0 %v106
    %2818 = vmatpush1.msra.mxu0 %v105
    %2819 = vmatprep.subr.mxu0 %v110
    %2820 = vmatpush1.msra.mxu0 %v109
    %2821 = vmatprep.subr.mxu0 %v114
    %2822 = vmatpush1.msra.mxu0 %v113
    %2823 = vmatprep.subr.mxu0 %v118
    %2824 = vmatpush1.msra.mxu0 %v117
    %2825 = vmatprep.subr.mxu0 %v122
    %2826 = vmatpush1.msra.mxu0 %v121
    %2827 = vmatprep.subr.mxu0 %v126
    %2828 = vmatpush1.msra.mxu0 %v125
    %2829 = vmatprep.subr.mxu0 %v130
    %2830 = vmatpush1.msra.mxu0 %v129
    %2831 = vmatprep.subr.mxu0 %v134
    %2832 = vmatpush1.msra.mxu0 %v133
    %2833 = vmatprep.subr.mxu0 %v138
    %2834 = vmatpush1.msra.mxu0 %v137
    %2835 = vmatprep.subr.mxu0 %v142
    %2836 = vmatpush1.msra.mxu0 %v141
    %2837 = vmatprep.subr.mxu0 0.0
    %2838 = vmatpush1.msra.mxu0 0.0
    %2839 = vmatprep.subr.mxu0 0.0
    %2840 = vmatpush1.msra.mxu0 0.0
    %2841 = vmatprep.subr.mxu0 0.0
    %2842 = vmatpush1.msra.mxu0 0.0
    %2843 = vmatprep.subr.mxu0 0.0
    %2844 = vmatpush1.msra.mxu0 0.0
    %2845 = vmatprep.subr.mxu0 0.0
    %2846 = vmatpush1.msra.mxu0 0.0
    %2847 = vmatprep.subr.mxu0 0.0
    %2848 = vmatpush1.msra.mxu0 0.0
    %2849 = vmatprep.subr.mxu0 0.0
    %2850 = vmatpush1.msra.mxu0 0.0
    %2851 = vmatprep.subr.mxu0 0.0
    %2852 = vmatpush1.msra.mxu0 0.0
    %2853 = vmatprep.subr.mxu0 0.0
    %2854 = vmatpush1.msra.mxu0 0.0
    %2855 = vmatprep.subr.mxu0 0.0
    %2856 = vmatpush1.msra.mxu0 0.0
    %2857 = vmatprep.subr.mxu0 0.0
    %2858 = vmatpush1.msra.mxu0 0.0
    %2859 = vmatprep.subr.mxu0 0.0
    %2860 = vmatpush1.msra.mxu0 0.0
    %2861 = vmatprep.subr.mxu0 0.0
    %2862 = vmatpush1.msra.mxu0 0.0
    %2863 = vmatprep.subr.mxu0 0.0
    %2864 = vmatpush1.msra.mxu0 0.0
    %2865 = vmatprep.subr.mxu0 0.0
    %2866 = vmatpush1.msra.mxu0 0.0
    %2867 = vmatprep.subr.mxu0 0.0
    %2868 = vmatpush1.msra.mxu0 0.0
    %2869 = vmatprep.mubr.f32.mxu0 0.0
    %2870 = vmatmul.mubr.f32.gmra.mrb[0].mxu0 %v2797
    %v2871 = vpop.f32.mrb[0].mxu0
    %v2872 = vadd.f32 0.0, %v2871
    %v2873 = vpop.f32.mrb[0].mxu0
    %v2874 = vadd.f32 0.0, %v2873
    %2875 = vdwg.mxu0
    %2876 = vmatprep.subr.mxu0 %v84
    %2877 = vmatpush1.msra.mxu0 %v83
    %2878 = vmatprep.subr.mxu0 %v88
    %2879 = vmatpush1.msra.mxu0 %v87
    %2880 = vmatprep.subr.mxu0 %v92
    %2881 = vmatpush1.msra.mxu0 %v91
    %2882 = vmatprep.subr.mxu0 %v96
    %2883 = vmatpush1.msra.mxu0 %v95
    %2884 = vmatprep.subr.mxu0 %v100
    %2885 = vmatpush1.msra.mxu0 %v99
    %2886 = vmatprep.subr.mxu0 %v104
    %2887 = vmatpush1.msra.mxu0 %v103
    %2888 = vmatprep.subr.mxu0 %v108
    %2889 = vmatpush1.msra.mxu0 %v107
    %2890 = vmatprep.subr.mxu0 %v112
    %2891 = vmatpush1.msra.mxu0 %v111
    %2892 = vmatprep.subr.mxu0 %v116
    %2893 = vmatpush1.msra.mxu0 %v115
    %2894 = vmatprep.subr.mxu0 %v120
    %2895 = vmatpush1.msra.mxu0 %v119
    %2896 = vmatprep.subr.mxu0 %v124
    %2897 = vmatpush1.msra.mxu0 %v123
    %2898 = vmatprep.subr.mxu0 %v128
    %2899 = vmatpush1.msra.mxu0 %v127
    %2900 = vmatprep.subr.mxu0 %v132
    %2901 = vmatpush1.msra.mxu0 %v131
    %2902 = vmatprep.subr.mxu0 %v136
    %2903 = vmatpush1.msra.mxu0 %v135
    %2904 = vmatprep.subr.mxu0 %v140
    %2905 = vmatpush1.msra.mxu0 %v139
    %2906 = vmatprep.subr.mxu0 %v144
    %2907 = vmatpush1.msra.mxu0 %v143
    %2908 = vmatprep.subr.mxu0 0.0
    %2909 = vmatpush1.msra.mxu0 0.0
    %2910 = vmatprep.subr.mxu0 0.0
    %2911 = vmatpush1.msra.mxu0 0.0
    %2912 = vmatprep.subr.mxu0 0.0
    %2913 = vmatpush1.msra.mxu0 0.0
    %2914 = vmatprep.subr.mxu0 0.0
    %2915 = vmatpush1.msra.mxu0 0.0
    %2916 = vmatprep.subr.mxu0 0.0
    %2917 = vmatpush1.msra.mxu0 0.0
    %2918 = vmatprep.subr.mxu0 0.0
    %2919 = vmatpush1.msra.mxu0 0.0
    %2920 = vmatprep.subr.mxu0 0.0
    %2921 = vmatpush1.msra.mxu0 0.0
    %2922 = vmatprep.subr.mxu0 0.0
    %2923 = vmatpush1.msra.mxu0 0.0
    %2924 = vmatprep.subr.mxu0 0.0
    %2925 = vmatpush1.msra.mxu0 0.0
    %2926 = vmatprep.subr.mxu0 0.0
    %2927 = vmatpush1.msra.mxu0 0.0
    %2928 = vmatprep.subr.mxu0 0.0
    %2929 = vmatpush1.msra.mxu0 0.0
    %2930 = vmatprep.subr.mxu0 0.0
    %2931 = vmatpush1.msra.mxu0 0.0
    %2932 = vmatprep.subr.mxu0 0.0
    %2933 = vmatpush1.msra.mxu0 0.0
    %2934 = vmatprep.subr.mxu0 0.0
    %2935 = vmatpush1.msra.mxu0 0.0
    %2936 = vmatprep.subr.mxu0 0.0
    %2937 = vmatpush1.msra.mxu0 0.0
    %2938 = vmatprep.subr.mxu0 0.0
    %2939 = vmatpush1.msra.mxu0 0.0
    %2940 = vmatprep.mubr.f32.mxu0 0.0
    %2941 = vmatmul.mubr.f32.gmra.mrb[0].mxu0 %v2797
    %v2942 = vpop.f32.mrb[0].mxu0
    %v2943 = vadd.f32 0.0, %v2942
    %v2944 = vpop.f32.mrb[0].mxu0
    %v2945 = vadd.f32 0.0, %v2944
    %2946 = vdwg.mxu0
    %v2947 = vadd.f32 %v2801, %v2872
    %v2948 = vadd.f32 %v2802, %v2874
    %v2949 = vadd.f32 %v2803, %v2943
    %v2950 = vadd.f32 %v2804, %v2945
    %v2951 = vxor.u32 %v2947, 2147483648
    %v2952 = vmul.f32 %v2951, 1.442695
    %v2953 = vpow.pop %v2952
    %v2954 = vadd.f32 %v2953, 1.0
    %v2955 = vrcp.pop %v2954
    %v2956 = vmul.f32 1.0, %v2955
    %v2957 = vxor.u32 %v2948, 2147483648
    %v2958 = vmul.f32 %v2957, 1.442695
    %v2959 = vpow.pop %v2958
    %v2960 = vadd.f32 %v2959, 1.0
    %v2961 = vrcp.pop %v2960
    %v2962 = vmul.f32 1.0, %v2961
    %v2963 = vtanh.pop %v2949
    %v2964 = vxor.u32 %v2950, 2147483648
    %v2965 = vmul.f32 %v2964, 1.442695
    %v2966 = vpow.pop %v2965
    %v2967 = vadd.f32 %v2966, 1.0
    %v2968 = vrcp.pop %v2967
    %v2969 = vmul.f32 1.0, %v2968
    %v2970 = vmul.f32 %v2962, %v2795
    %v2971 = vmul.f32 %v2956, %v2963
    %v2972 = vadd.f32 %v2970, %v2971
    %v2973 = vtanh.pop %v2972
    %v2974 = vmul.f32 %v2969, %v2973
    %s2975 = scalar_lea.vmem [#allocation12], 120
    %2976 = vst [vmem:[%s2975] sm:$0xff] %v2974
    %2977 = vst [vmem:[#allocation2] sm:$0xff] %v2974
    %2978 = vst [vmem:[#allocation3] sm:$0xff] %v2972
    // Predicated region
    $region38: #{rnn_model_forward.6} parent=1 // pred_check
      %p2979 = pneg %p73
    $region39: #{rnn_model_forward.6} parent=1 // pred_check_branch
      %2981 = sbr.rel (%p2979) target = $region41
    $region40: #{rnn_model_forward.6} parent=1 // pred_region
      %2982 = vst [vmem:[#allocation13] sm:$0xff] %v2974
      %2983 = vst [vmem:[#allocation15] sm:$0xff] %v2972
    $region41: #{rnn_model_forward.6} parent=1 // pred_fallthru
      _
    // Predicated region
    $region42: #{rnn_model_forward.6} parent=1 // pred_check
      _
    $region43: #{rnn_model_forward.6} parent=1 // pred_check_branch
      %2985 = sbr.rel (0) target = $region45
    $region44: #{rnn_model_forward.6} parent=1 // pred_region
      %s2987 = ssub.s32 2048, 2048
      %2988 = vsyncadd [#allocation6], %s2987
      %s2989 = sshll.u32 [#allocation12], 4
      %s2990 = int_to_ptr.vmem [resolvable:$true] %s2989
      %2995 = dma.vmem_to_hbm [thread:$0]  %s2990, 2048, %s4, [#allocation6], 128, 128, 8
    $region45: #{rnn_model_forward.6} parent=1 // pred_fallthru
      _
    // Predicated region
    $region46: #{rnn_model_forward.6} parent=1 // pred_check
      _
    $region47: #{rnn_model_forward.6} parent=1 // pred_check_branch
      %2997 = sbr.rel (0) target = $region49
    $region48: #{rnn_model_forward.6} parent=1 // pred_region
      %s2999 = ssub.s32 128, 128
      %3000 = vsyncadd [#allocation14], %s2999
      %s3002 = sshll.u32 [#allocation13], 4
      %s3003 = int_to_ptr.vmem [resolvable:$true] %s3002
      %3005 = dma.vmem_to_hbm [thread:$0]  %s3003, 128, %s5, [#allocation14]
    $region49: #{rnn_model_forward.6} parent=1 // pred_fallthru
      _
    // Predicated region
    $region50: #{rnn_model_forward.6} parent=1 // pred_check
      _
    $region51: #{rnn_model_forward.6} parent=1 // pred_check_branch
      %3007 = sbr.rel (0) target = $region53
    $region52: #{rnn_model_forward.6} parent=1 // pred_region
      %s3009 = ssub.s32 128, 128
      %3010 = vsyncadd [#allocation14], %s3009
      %s3012 = sshll.u32 [#allocation15], 4
      %s3013 = int_to_ptr.vmem [resolvable:$true] %s3012
      %3015 = dma.vmem_to_hbm [thread:$0]  %s3013, 128, %s6, [#allocation14]
    $region53: #{rnn_model_forward.6} parent=1 // pred_fallthru
      _
    // Predicated region
    $region54: #{rnn_model_forward.6} parent=1 // pred_check
      _
    $region55: #{rnn_model_forward.6} parent=1 // pred_check_branch
      %3017 = sbr.rel (0) target = $region57
    $region56: #{rnn_model_forward.6} parent=1 // pred_region
      %3018 = dma.done [#allocation6], 2048
    $region57: #{rnn_model_forward.6} parent=1 // pred_fallthru
      _
    // Predicated region
    $region58: #{rnn_model_forward.6} parent=1 // pred_check
      _
    $region59: #{rnn_model_forward.6} parent=1 // pred_check_branch
      %3020 = sbr.rel (0) target = $region61
    $region60: #{rnn_model_forward.6} parent=1 // pred_region
      %3021 = dma.done [#allocation14], 128
    $region61: #{rnn_model_forward.6} parent=1 // pred_fallthru
      _
    // Predicated region
    $region62: #{rnn_model_forward.6} parent=1 // pred_check
      _
    $region63: #{rnn_model_forward.6} parent=1 // pred_check_branch
      %3023 = sbr.rel (0) target = $region65
    $region64: #{rnn_model_forward.6} parent=1 // pred_region
      %3024 = dma.done [#allocation14], 128
    $region65: #{rnn_model_forward.6} parent=1 // pred_fallthru
      _
    %3025 = vsyncpa [#allocation5], 1
    %3026 = vsyncpa [#allocation8], 1
    %3027 = vsyncpa [#allocation11], 1
    %3028 = vsyncpa [#allocation6], 1
    %3029 = vsyncpa [#allocation14], 1

// kernel: rnn_model_forward.9
$region0: #{rnn_model_forward.9}
  #allocation0 [shape = 'u32[]', space=smem, size = 0x4, offset = 0x4, fixed_abs, tag = 'smem constant byte address 0x4 - core index']
  #allocation1 [shape = 'u32[144,128]{1,0:T(1,128)}', space=vmem, size = 0x12000, scoped, tag = 'internal scratch']
  %s0 = inlined_call_operand.hbm [shape: f32[128,128], index: 0, kind: input, shape index: {}]
  %s1 = inlined_call_operand.hbm [shape: f32[128,128], index: 1, kind: input, shape index: {}]
  %s2 = inlined_call_operand.hbm [shape: f32[1,128], index: 2, kind: input, shape index: {}]
  %s3 = inlined_call_operand.hbm [shape: f32[128,128], index: 3, kind: output, shape index: {}]
  %s4 = sld [smem:[#allocation0]]
  $region34: #{rnn_model_forward.9} parent=0
    _
  %s6 = ssub.s32 1, %s4
  %s7 = scalar_select 0, %s6, %s4
  $region1: #{rnn_model_forward.9} parent=0
    #allocation2 [shape = 'u8[65536]{0}', space=vmem, size = 0x10000, scoped, tag = 'input window, operand 0, single buffered']
    #allocation3 [shape = 's32[1]{0}', space=sflag, size = 0x4, scoped, tag = 'scoped memory for rnn_model_forward.9']
    #allocation4 [shape = 's32[1]{0}', space=sflag, size = 0x4, scoped, tag = 'scoped memory for rnn_model_forward.9']
    #allocation5 [shape = 'u8[65536]{0}', space=vmem, size = 0x10000, scoped, tag = 'input window, operand 1, single buffered']
    #allocation6 [shape = 's32[1]{0}', space=sflag, size = 0x4, scoped, tag = 'scoped memory for rnn_model_forward.9']
    #allocation7 [shape = 'u8[512]{0}', space=vmem, size = 0x400, scoped, tag = 'input window, operand 2, single buffered']
    #allocation8 [shape = 'u8[65536]{0}', space=vmem, size = 0x10000, scoped, tag = 'output window, operand 0, single buffered']
    %8 = vsyncpa [#allocation3], 0
    %9 = vsyncpa [#allocation6], 0
    %10 = vsyncpa [#allocation4], 0
    // Predicated region
    $region2: #{rnn_model_forward.9} parent=1 // pred_check
      _
    $region3: #{rnn_model_forward.9} parent=1 // pred_check_branch
      %12 = sbr.rel (0) target = $region5
    $region4: #{rnn_model_forward.9} parent=1 // pred_region
      %s14 = ssub.s32 2048, 2048
      %15 = vsyncadd [#allocation3], %s14
      %s16 = sshll.u32 [#allocation2], 4
      %s17 = int_to_ptr.vmem [resolvable:$true] %s16
      %22 = dma.hbm_to_vmem [thread:$0]  %s0, 2048, %s17, [#allocation3], 128, 128, 8
    $region5: #{rnn_model_forward.9} parent=1 // pred_fallthru
      _
    // Predicated region
    $region6: #{rnn_model_forward.9} parent=1 // pred_check
      _
    $region7: #{rnn_model_forward.9} parent=1 // pred_check_branch
      %24 = sbr.rel (0) target = $region9
    $region8: #{rnn_model_forward.9} parent=1 // pred_region
      %s26 = ssub.s32 2048, 2048
      %27 = vsyncadd [#allocation6], %s26
      %s28 = sshll.u32 [#allocation5], 4
      %s29 = int_to_ptr.vmem [resolvable:$true] %s28
      %34 = dma.hbm_to_vmem [thread:$0]  %s1, 2048, %s29, [#allocation6], 128, 128, 8
    $region9: #{rnn_model_forward.9} parent=1 // pred_fallthru
      _
    // Predicated region
    $region10: #{rnn_model_forward.9} parent=1 // pred_check
      _
    $region11: #{rnn_model_forward.9} parent=1 // pred_check_branch
      %36 = sbr.rel (0) target = $region13
    $region12: #{rnn_model_forward.9} parent=1 // pred_region
      %s38 = ssub.s32 16, 16
      %39 = vsyncadd [#allocation6], %s38
      %s41 = sshll.u32 [#allocation7], 4
      %s42 = int_to_ptr.vmem [resolvable:$true] %s41
      %44 = dma.hbm_to_vmem [thread:$0]  %s2, 16, %s42, [#allocation6]
    $region13: #{rnn_model_forward.9} parent=1 // pred_fallthru
      _
    // Predicated region
    $region14: #{rnn_model_forward.9} parent=1 // pred_check
      _
    $region15: #{rnn_model_forward.9} parent=1 // pred_check_branch
      %46 = sbr.rel (0) target = $region17
    $region16: #{rnn_model_forward.9} parent=1 // pred_region
      %47 = dma.done [#allocation3], 2048
    $region17: #{rnn_model_forward.9} parent=1 // pred_fallthru
      _
    // Predicated region
    $region18: #{rnn_model_forward.9} parent=1 // pred_check
      _
    $region19: #{rnn_model_forward.9} parent=1 // pred_check_branch
      %49 = sbr.rel (0) target = $region21
    $region20: #{rnn_model_forward.9} parent=1 // pred_region
      %50 = dma.done [#allocation6], 2048
    $region21: #{rnn_model_forward.9} parent=1 // pred_fallthru
      _
    // Predicated region
    $region22: #{rnn_model_forward.9} parent=1 // pred_check
      _
    $region23: #{rnn_model_forward.9} parent=1 // pred_check_branch
      %52 = sbr.rel (0) target = $region25
    $region24: #{rnn_model_forward.9} parent=1 // pred_region
      %53 = dma.done [#allocation6], 16
    $region25: #{rnn_model_forward.9} parent=1 // pred_fallthru
      _
    %v54 = vld [vmem:[#allocation2] sm:$0xff]
    %v55 = vld [vmem:[#allocation2 + $0x8] sm:$0xff]
    %v56 = vld [vmem:[#allocation2 + $0x10] sm:$0xff]
    %v57 = vld [vmem:[#allocation2 + $0x18] sm:$0xff]
    %v58 = vld [vmem:[#allocation2 + $0x20] sm:$0xff]
    %v59 = vld [vmem:[#allocation2 + $0x28] sm:$0xff]
    %v60 = vld [vmem:[#allocation2 + $0x30] sm:$0xff]
    %v61 = vld [vmem:[#allocation2 + $0x38] sm:$0xff]
    %v62 = vld [vmem:[#allocation2 + $0x40] sm:$0xff]
    %v63 = vld [vmem:[#allocation2 + $0x48] sm:$0xff]
    %v64 = vld [vmem:[#allocation2 + $0x50] sm:$0xff]
    %v65 = vld [vmem:[#allocation2 + $0x58] sm:$0xff]
    %v66 = vld [vmem:[#allocation2 + $0x60] sm:$0xff]
    %v67 = vld [vmem:[#allocation2 + $0x68] sm:$0xff]
    %v68 = vld [vmem:[#allocation2 + $0x70] sm:$0xff]
    %v69 = vld [vmem:[#allocation2 + $0x78] sm:$0xff]
    %v70 = vld [vmem:[#allocation5] sm:$0xff]
    %v71 = vld [vmem:[#allocation5 + $0x8] sm:$0xff]
    %v72 = vld [vmem:[#allocation5 + $0x10] sm:$0xff]
    %v73 = vld [vmem:[#allocation5 + $0x18] sm:$0xff]
    %v74 = vld [vmem:[#allocation5 + $0x20] sm:$0xff]
    %v75 = vld [vmem:[#allocation5 + $0x28] sm:$0xff]
    %v76 = vld [vmem:[#allocation5 + $0x30] sm:$0xff]
    %v77 = vld [vmem:[#allocation5 + $0x38] sm:$0xff]
    %v78 = vld [vmem:[#allocation5 + $0x40] sm:$0xff]
    %v79 = vld [vmem:[#allocation5 + $0x48] sm:$0xff]
    %v80 = vld [vmem:[#allocation5 + $0x50] sm:$0xff]
    %v81 = vld [vmem:[#allocation5 + $0x58] sm:$0xff]
    %v82 = vld [vmem:[#allocation5 + $0x60] sm:$0xff]
    %v83 = vld [vmem:[#allocation5 + $0x68] sm:$0xff]
    %v84 = vld [vmem:[#allocation5 + $0x70] sm:$0xff]
    %v85 = vld [vmem:[#allocation5 + $0x78] sm:$0xff]
    %v86 = vld [vmem:[#allocation7] sm:$0x1]
    %v88 = vlaneseq
    %v89 = vshrl.u32 %v88, 7
    %v90 = vsub.s32 0, %v89
    %v91 = vrot.slane %v86, %v90
    %93 = vmatprep.subr.mxu0 0.0
    %94 = vmatpush1.msra.mxu0 %v70
    %95 = vmatprep.subr.mxu0 0.0
    %96 = vmatpush1.msra.mxu0 %v71
    %97 = vmatprep.subr.mxu0 0.0
    %98 = vmatpush1.msra.mxu0 %v72
    %99 = vmatprep.subr.mxu0 0.0
    %100 = vmatpush1.msra.mxu0 %v73
    %101 = vmatprep.subr.mxu0 0.0
    %102 = vmatpush1.msra.mxu0 %v74
    %103 = vmatprep.subr.mxu0 0.0
    %104 = vmatpush1.msra.mxu0 %v75
    %105 = vmatprep.subr.mxu0 0.0
    %106 = vmatpush1.msra.mxu0 %v76
    %107 = vmatprep.subr.mxu0 0.0
    %108 = vmatpush1.msra.mxu0 %v77
    %109 = vmatprep.subr.mxu0 0.0
    %110 = vmatpush1.msra.mxu0 %v78
    %111 = vmatprep.subr.mxu0 0.0
    %112 = vmatpush1.msra.mxu0 %v79
    %113 = vmatprep.subr.mxu0 0.0
    %114 = vmatpush1.msra.mxu0 %v80
    %115 = vmatprep.subr.mxu0 0.0
    %116 = vmatpush1.msra.mxu0 %v81
    %117 = vmatprep.subr.mxu0 0.0
    %118 = vmatpush1.msra.mxu0 %v82
    %119 = vmatprep.subr.mxu0 0.0
    %120 = vmatpush1.msra.mxu0 %v83
    %121 = vmatprep.subr.mxu0 0.0
    %122 = vmatpush1.msra.mxu0 %v84
    %123 = vmatprep.subr.mxu0 0.0
    %124 = vmatpush1.msra.mxu0 %v85
    %125 = vmatprep.subr.mxu0 0.0
    %126 = vmatpush1.msra.mxu0 0.0
    %127 = vmatprep.subr.mxu0 0.0
    %128 = vmatpush1.msra.mxu0 0.0
    %129 = vmatprep.subr.mxu0 0.0
    %130 = vmatpush1.msra.mxu0 0.0
    %131 = vmatprep.subr.mxu0 0.0
    %132 = vmatpush1.msra.mxu0 0.0
    %133 = vmatprep.subr.mxu0 0.0
    %134 = vmatpush1.msra.mxu0 0.0
    %135 = vmatprep.subr.mxu0 0.0
    %136 = vmatpush1.msra.mxu0 0.0
    %137 = vmatprep.subr.mxu0 0.0
    %138 = vmatpush1.msra.mxu0 0.0
    %139 = vmatprep.subr.mxu0 0.0
    %140 = vmatpush1.msra.mxu0 0.0
    %141 = vmatprep.subr.mxu0 0.0
    %142 = vmatpush1.msra.mxu0 0.0
    %143 = vmatprep.subr.mxu0 0.0
    %144 = vmatpush1.msra.mxu0 0.0
    %145 = vmatprep.subr.mxu0 0.0
    %146 = vmatpush1.msra.mxu0 0.0
    %147 = vmatprep.subr.mxu0 0.0
    %148 = vmatpush1.msra.mxu0 0.0
    %149 = vmatprep.subr.mxu0 0.0
    %150 = vmatpush1.msra.mxu0 0.0
    %151 = vmatprep.subr.mxu0 0.0
    %152 = vmatpush1.msra.mxu0 0.0
    %153 = vmatprep.subr.mxu0 0.0
    %154 = vmatpush1.msra.mxu0 0.0
    %155 = vmatprep.subr.mxu0 0.0
    %156 = vmatpush1.msra.mxu0 0.0
    %157 = vmatprep.mubr.f32.mxu0 0.0
    %158 = vmatmul.mubr.f32.gmra.mrb[0].mxu0 %v54
    %v159 = vpop.f32.mrb[0].mxu0
    %v160 = vadd.f32 %v91, %v159
    %v161 = vpop.f32.mrb[0].mxu0
    %162 = vmatprep.mubr.f32.mxu0 0.0
    %163 = vmatmul.mubr.f32.gmra.mrb[0].mxu0 %v55
    %v164 = vpop.f32.mrb[0].mxu0
    %v165 = vadd.f32 %v91, %v164
    %v166 = vpop.f32.mrb[0].mxu0
    %167 = vmatprep.mubr.f32.mxu0 0.0
    %168 = vmatmul.mubr.f32.gmra.mrb[0].mxu0 %v56
    %v169 = vpop.f32.mrb[0].mxu0
    %v170 = vadd.f32 %v91, %v169
    %v171 = vpop.f32.mrb[0].mxu0
    %172 = vmatprep.mubr.f32.mxu0 0.0
    %173 = vmatmul.mubr.f32.gmra.mrb[0].mxu0 %v57
    %v174 = vpop.f32.mrb[0].mxu0
    %v175 = vadd.f32 %v91, %v174
    %v176 = vpop.f32.mrb[0].mxu0
    %177 = vmatprep.mubr.f32.mxu0 0.0
    %178 = vmatmul.mubr.f32.gmra.mrb[0].mxu0 %v58
    %v179 = vpop.f32.mrb[0].mxu0
    %v180 = vadd.f32 %v91, %v179
    %v181 = vpop.f32.mrb[0].mxu0
    %182 = vmatprep.mubr.f32.mxu0 0.0
    %183 = vmatmul.mubr.f32.gmra.mrb[0].mxu0 %v59
    %v184 = vpop.f32.mrb[0].mxu0
    %v185 = vadd.f32 %v91, %v184
    %v186 = vpop.f32.mrb[0].mxu0
    %187 = vmatprep.mubr.f32.mxu0 0.0
    %188 = vmatmul.mubr.f32.gmra.mrb[0].mxu0 %v60
    %v189 = vpop.f32.mrb[0].mxu0
    %v190 = vadd.f32 %v91, %v189
    %v191 = vpop.f32.mrb[0].mxu0
    %192 = vmatprep.mubr.f32.mxu0 0.0
    %193 = vmatmul.mubr.f32.gmra.mrb[0].mxu0 %v61
    %v194 = vpop.f32.mrb[0].mxu0
    %v195 = vadd.f32 %v91, %v194
    %v196 = vpop.f32.mrb[0].mxu0
    %197 = vmatprep.mubr.f32.mxu0 0.0
    %198 = vmatmul.mubr.f32.gmra.mrb[0].mxu0 %v62
    %v199 = vpop.f32.mrb[0].mxu0
    %v200 = vadd.f32 %v91, %v199
    %v201 = vpop.f32.mrb[0].mxu0
    %202 = vmatprep.mubr.f32.mxu0 0.0
    %203 = vmatmul.mubr.f32.gmra.mrb[0].mxu0 %v63
    %v204 = vpop.f32.mrb[0].mxu0
    %v205 = vadd.f32 %v91, %v204
    %v206 = vpop.f32.mrb[0].mxu0
    %207 = vmatprep.mubr.f32.mxu0 0.0
    %208 = vmatmul.mubr.f32.gmra.mrb[0].mxu0 %v64
    %v209 = vpop.f32.mrb[0].mxu0
    %v210 = vadd.f32 %v91, %v209
    %v211 = vpop.f32.mrb[0].mxu0
    %212 = vmatprep.mubr.f32.mxu0 0.0
    %213 = vmatmul.mubr.f32.gmra.mrb[0].mxu0 %v65
    %v214 = vpop.f32.mrb[0].mxu0
    %v215 = vadd.f32 %v91, %v214
    %v216 = vpop.f32.mrb[0].mxu0
    %217 = vmatprep.mubr.f32.mxu0 0.0
    %218 = vmatmul.mubr.f32.gmra.mrb[0].mxu0 %v66
    %v219 = vpop.f32.mrb[0].mxu0
    %v220 = vadd.f32 %v91, %v219
    %v221 = vpop.f32.mrb[0].mxu0
    %222 = vmatprep.mubr.f32.mxu0 0.0
    %223 = vmatmul.mubr.f32.gmra.mrb[0].mxu0 %v67
    %v224 = vpop.f32.mrb[0].mxu0
    %v225 = vadd.f32 %v91, %v224
    %v226 = vpop.f32.mrb[0].mxu0
    %227 = vmatprep.mubr.f32.mxu0 0.0
    %228 = vmatmul.mubr.f32.gmra.mrb[0].mxu0 %v68
    %v229 = vpop.f32.mrb[0].mxu0
    %v230 = vadd.f32 %v91, %v229
    %v231 = vpop.f32.mrb[0].mxu0
    %232 = vmatprep.mubr.f32.mxu0 0.0
    %233 = vmatmul.mubr.f32.gmra.mrb[0].mxu0 %v69
    %v234 = vpop.f32.mrb[0].mxu0
    %v235 = vadd.f32 %v91, %v234
    %v236 = vpop.f32.mrb[0].mxu0
    %237 = vdwg.mxu0
    %238 = vst [vmem:[#allocation8] sm:$0xff] %v160
    %239 = vst [vmem:[#allocation8 + $0x8] sm:$0xff] %v165
    %240 = vst [vmem:[#allocation8 + $0x10] sm:$0xff] %v170
    %241 = vst [vmem:[#allocation8 + $0x18] sm:$0xff] %v175
    %242 = vst [vmem:[#allocation8 + $0x20] sm:$0xff] %v180
    %243 = vst [vmem:[#allocation8 + $0x28] sm:$0xff] %v185
    %244 = vst [vmem:[#allocation8 + $0x30] sm:$0xff] %v190
    %245 = vst [vmem:[#allocation8 + $0x38] sm:$0xff] %v195
    %246 = vst [vmem:[#allocation8 + $0x40] sm:$0xff] %v200
    %247 = vst [vmem:[#allocation8 + $0x48] sm:$0xff] %v205
    %248 = vst [vmem:[#allocation8 + $0x50] sm:$0xff] %v210
    %249 = vst [vmem:[#allocation8 + $0x58] sm:$0xff] %v215
    %250 = vst [vmem:[#allocation8 + $0x60] sm:$0xff] %v220
    %251 = vst [vmem:[#allocation8 + $0x68] sm:$0xff] %v225
    %252 = vst [vmem:[#allocation8 + $0x70] sm:$0xff] %v230
    %253 = vst [vmem:[#allocation8 + $0x78] sm:$0xff] %v235
    // Predicated region
    $region26: #{rnn_model_forward.9} parent=1 // pred_check
      _
    $region27: #{rnn_model_forward.9} parent=1 // pred_check_branch
      %255 = sbr.rel (0) target = $region29
    $region28: #{rnn_model_forward.9} parent=1 // pred_region
      %s257 = ssub.s32 2048, 2048
      %258 = vsyncadd [#allocation4], %s257
      %s259 = sshll.u32 [#allocation8], 4
      %s260 = int_to_ptr.vmem [resolvable:$true] %s259
      %265 = dma.vmem_to_hbm [thread:$0]  %s260, 2048, %s3, [#allocation4], 128, 128, 8
    $region29: #{rnn_model_forward.9} parent=1 // pred_fallthru
      _
    // Predicated region
    $region30: #{rnn_model_forward.9} parent=1 // pred_check
      _
    $region31: #{rnn_model_forward.9} parent=1 // pred_check_branch
      %267 = sbr.rel (0) target = $region33
    $region32: #{rnn_model_forward.9} parent=1 // pred_region
      %268 = dma.done [#allocation4], 2048
    $region33: #{rnn_model_forward.9} parent=1 // pred_fallthru
      _
    %269 = vsyncpa [#allocation3], 1
    %270 = vsyncpa [#allocation6], 1
    %271 = vsyncpa [#allocation4], 1

// kernel: rnn_model_forward.5
$region0: #{rnn_model_forward.5}
  #allocation0 [shape = 'u32[]', space=smem, size = 0x4, offset = 0x4, fixed_abs, tag = 'smem constant byte address 0x4 - core index']
  #allocation1 [shape = 'u32[144,128]{1,0:T(1,128)}', space=vmem, size = 0x12000, scoped, tag = 'internal scratch']
  %s0 = inlined_call_operand.hbm [shape: f32[128,128], index: 0, kind: input, shape index: {}]
  %s1 = inlined_call_operand.hbm [shape: f32[128,512], index: 1, kind: input, shape index: {}]
  %s2 = inlined_call_operand.hbm [shape: f32[1,512], index: 2, kind: input, shape index: {}]
  %s3 = inlined_call_operand.hbm [shape: f32[128,512], index: 3, kind: output, shape index: {}]
  %s4 = sld [smem:[#allocation0]]
  $region34: #{rnn_model_forward.5} parent=0
    _
  %s6 = ssub.s32 1, %s4
  %s7 = scalar_select 0, %s6, %s4
  $region1: #{rnn_model_forward.5} parent=0
    #allocation2 [shape = 'u8[65536]{0}', space=vmem, size = 0x10000, scoped, tag = 'input window, operand 0, single buffered']
    #allocation3 [shape = 's32[1]{0}', space=sflag, size = 0x4, scoped, tag = 'scoped memory for rnn_model_forward.5']
    #allocation4 [shape = 's32[1]{0}', space=sflag, size = 0x4, scoped, tag = 'scoped memory for rnn_model_forward.5']
    #allocation5 [shape = 'u8[262144]{0}', space=vmem, size = 0x40000, scoped, tag = 'input window, operand 1, single buffered']
    #allocation6 [shape = 's32[1]{0}', space=sflag, size = 0x4, scoped, tag = 'scoped memory for rnn_model_forward.5']
    #allocation7 [shape = 'u8[2048]{0}', space=vmem, size = 0x800, scoped, tag = 'input window, operand 2, single buffered']
    #allocation8 [shape = 'u8[262144]{0}', space=vmem, size = 0x40000, scoped, tag = 'output window, operand 0, single buffered']
    %8 = vsyncpa [#allocation3], 0
    %9 = vsyncpa [#allocation6], 0
    %10 = vsyncpa [#allocation4], 0
    // Predicated region
    $region2: #{rnn_model_forward.5} parent=1 // pred_check
      _
    $region3: #{rnn_model_forward.5} parent=1 // pred_check_branch
      %12 = sbr.rel (0) target = $region5
    $region4: #{rnn_model_forward.5} parent=1 // pred_region
      %s14 = ssub.s32 2048, 2048
      %15 = vsyncadd [#allocation3], %s14
      %s16 = sshll.u32 [#allocation2], 4
      %s17 = int_to_ptr.vmem [resolvable:$true] %s16
      %22 = dma.hbm_to_vmem [thread:$0]  %s0, 2048, %s17, [#allocation3], 128, 128, 8
    $region5: #{rnn_model_forward.5} parent=1 // pred_fallthru
      _
    // Predicated region
    $region6: #{rnn_model_forward.5} parent=1 // pred_check
      _
    $region7: #{rnn_model_forward.5} parent=1 // pred_check_branch
      %24 = sbr.rel (0) target = $region9
    $region8: #{rnn_model_forward.5} parent=1 // pred_region
      %s26 = ssub.s32 8192, 8192
      %27 = vsyncadd [#allocation6], %s26
      %s28 = sshll.u32 [#allocation5], 4
      %s29 = int_to_ptr.vmem [resolvable:$true] %s28
      %34 = dma.hbm_to_vmem [thread:$0]  %s1, 8192, %s29, [#allocation6], 512, 512, 32
    $region9: #{rnn_model_forward.5} parent=1 // pred_fallthru
      _
    // Predicated region
    $region10: #{rnn_model_forward.5} parent=1 // pred_check
      _
    $region11: #{rnn_model_forward.5} parent=1 // pred_check_branch
      %36 = sbr.rel (0) target = $region13
    $region12: #{rnn_model_forward.5} parent=1 // pred_region
      %s38 = ssub.s32 64, 64
      %39 = vsyncadd [#allocation6], %s38
      %s41 = sshll.u32 [#allocation7], 4
      %s42 = int_to_ptr.vmem [resolvable:$true] %s41
      %44 = dma.hbm_to_vmem [thread:$0]  %s2, 64, %s42, [#allocation6]
    $region13: #{rnn_model_forward.5} parent=1 // pred_fallthru
      _
    // Predicated region
    $region14: #{rnn_model_forward.5} parent=1 // pred_check
      _
    $region15: #{rnn_model_forward.5} parent=1 // pred_check_branch
      %46 = sbr.rel (0) target = $region17
    $region16: #{rnn_model_forward.5} parent=1 // pred_region
      %47 = dma.done [#allocation3], 2048
    $region17: #{rnn_model_forward.5} parent=1 // pred_fallthru
      _
    // Predicated region
    $region18: #{rnn_model_forward.5} parent=1 // pred_check
      _
    $region19: #{rnn_model_forward.5} parent=1 // pred_check_branch
      %49 = sbr.rel (0) target = $region21
    $region20: #{rnn_model_forward.5} parent=1 // pred_region
      %50 = dma.done [#allocation6], 8192
    $region21: #{rnn_model_forward.5} parent=1 // pred_fallthru
      _
    // Predicated region
    $region22: #{rnn_model_forward.5} parent=1 // pred_check
      _
    $region23: #{rnn_model_forward.5} parent=1 // pred_check_branch
      %52 = sbr.rel (0) target = $region25
    $region24: #{rnn_model_forward.5} parent=1 // pred_region
      %53 = dma.done [#allocation6], 64
    $region25: #{rnn_model_forward.5} parent=1 // pred_fallthru
      _
    %v54 = vld [vmem:[#allocation2] sm:$0xff]
    %v55 = vld [vmem:[#allocation2 + $0x8] sm:$0xff]
    %v56 = vld [vmem:[#allocation2 + $0x10] sm:$0xff]
    %v57 = vld [vmem:[#allocation2 + $0x18] sm:$0xff]
    %v58 = vld [vmem:[#allocation2 + $0x20] sm:$0xff]
    %v59 = vld [vmem:[#allocation2 + $0x28] sm:$0xff]
    %v60 = vld [vmem:[#allocation2 + $0x30] sm:$0xff]
    %v61 = vld [vmem:[#allocation2 + $0x38] sm:$0xff]
    %v62 = vld [vmem:[#allocation2 + $0x40] sm:$0xff]
    %v63 = vld [vmem:[#allocation2 + $0x48] sm:$0xff]
    %v64 = vld [vmem:[#allocation2 + $0x50] sm:$0xff]
    %v65 = vld [vmem:[#allocation2 + $0x58] sm:$0xff]
    %v66 = vld [vmem:[#allocation2 + $0x60] sm:$0xff]
    %v67 = vld [vmem:[#allocation2 + $0x68] sm:$0xff]
    %v68 = vld [vmem:[#allocation2 + $0x70] sm:$0xff]
    %v69 = vld [vmem:[#allocation2 + $0x78] sm:$0xff]
    %v70 = vld [vmem:[#allocation5] sm:$0xff]
    %v71 = vld [vmem:[#allocation5 + $0x8] sm:$0xff]
    %v72 = vld [vmem:[#allocation5 + $0x10] sm:$0xff]
    %v73 = vld [vmem:[#allocation5 + $0x18] sm:$0xff]
    %v74 = vld [vmem:[#allocation5 + $0x20] sm:$0xff]
    %v75 = vld [vmem:[#allocation5 + $0x28] sm:$0xff]
    %v76 = vld [vmem:[#allocation5 + $0x30] sm:$0xff]
    %v77 = vld [vmem:[#allocation5 + $0x38] sm:$0xff]
    %v78 = vld [vmem:[#allocation5 + $0x40] sm:$0xff]
    %v79 = vld [vmem:[#allocation5 + $0x48] sm:$0xff]
    %v80 = vld [vmem:[#allocation5 + $0x50] sm:$0xff]
    %v81 = vld [vmem:[#allocation5 + $0x58] sm:$0xff]
    %v82 = vld [vmem:[#allocation5 + $0x60] sm:$0xff]
    %v83 = vld [vmem:[#allocation5 + $0x68] sm:$0xff]
    %v84 = vld [vmem:[#allocation5 + $0x70] sm:$0xff]
    %v85 = vld [vmem:[#allocation5 + $0x78] sm:$0xff]
    %v86 = vld [vmem:[#allocation5 + $0x80] sm:$0xff]
    %v87 = vld [vmem:[#allocation5 + $0x88] sm:$0xff]
    %v88 = vld [vmem:[#allocation5 + $0x90] sm:$0xff]
    %v89 = vld [vmem:[#allocation5 + $0x98] sm:$0xff]
    %v90 = vld [vmem:[#allocation5 + $0xa0] sm:$0xff]
    %v91 = vld [vmem:[#allocation5 + $0xa8] sm:$0xff]
    %v92 = vld [vmem:[#allocation5 + $0xb0] sm:$0xff]
    %v93 = vld [vmem:[#allocation5 + $0xb8] sm:$0xff]
    %v94 = vld [vmem:[#allocation5 + $0xc0] sm:$0xff]
    %v95 = vld [vmem:[#allocation5 + $0xc8] sm:$0xff]
    %v96 = vld [vmem:[#allocation5 + $0xd0] sm:$0xff]
    %v97 = vld [vmem:[#allocation5 + $0xd8] sm:$0xff]
    %v98 = vld [vmem:[#allocation5 + $0xe0] sm:$0xff]
    %v99 = vld [vmem:[#allocation5 + $0xe8] sm:$0xff]
    %v100 = vld [vmem:[#allocation5 + $0xf0] sm:$0xff]
    %v101 = vld [vmem:[#allocation5 + $0xf8] sm:$0xff]
    %v102 = vld [vmem:[#allocation5 + $0x100] sm:$0xff]
    %v103 = vld [vmem:[#allocation5 + $0x108] sm:$0xff]
    %v104 = vld [vmem:[#allocation5 + $0x110] sm:$0xff]
    %v105 = vld [vmem:[#allocation5 + $0x118] sm:$0xff]
    %v106 = vld [vmem:[#allocation5 + $0x120] sm:$0xff]
    %v107 = vld [vmem:[#allocation5 + $0x128] sm:$0xff]
    %v108 = vld [vmem:[#allocation5 + $0x130] sm:$0xff]
    %v109 = vld [vmem:[#allocation5 + $0x138] sm:$0xff]
    %v110 = vld [vmem:[#allocation5 + $0x140] sm:$0xff]
    %v111 = vld [vmem:[#allocation5 + $0x148] sm:$0xff]
    %v112 = vld [vmem:[#allocation5 + $0x150] sm:$0xff]
    %v113 = vld [vmem:[#allocation5 + $0x158] sm:$0xff]
    %v114 = vld [vmem:[#allocation5 + $0x160] sm:$0xff]
    %v115 = vld [vmem:[#allocation5 + $0x168] sm:$0xff]
    %v116 = vld [vmem:[#allocation5 + $0x170] sm:$0xff]
    %v117 = vld [vmem:[#allocation5 + $0x178] sm:$0xff]
    %v118 = vld [vmem:[#allocation5 + $0x180] sm:$0xff]
    %v119 = vld [vmem:[#allocation5 + $0x188] sm:$0xff]
    %v120 = vld [vmem:[#allocation5 + $0x190] sm:$0xff]
    %v121 = vld [vmem:[#allocation5 + $0x198] sm:$0xff]
    %v122 = vld [vmem:[#allocation5 + $0x1a0] sm:$0xff]
    %v123 = vld [vmem:[#allocation5 + $0x1a8] sm:$0xff]
    %v124 = vld [vmem:[#allocation5 + $0x1b0] sm:$0xff]
    %v125 = vld [vmem:[#allocation5 + $0x1b8] sm:$0xff]
    %v126 = vld [vmem:[#allocation5 + $0x1c0] sm:$0xff]
    %v127 = vld [vmem:[#allocation5 + $0x1c8] sm:$0xff]
    %v128 = vld [vmem:[#allocation5 + $0x1d0] sm:$0xff]
    %v129 = vld [vmem:[#allocation5 + $0x1d8] sm:$0xff]
    %v130 = vld [vmem:[#allocation5 + $0x1e0] sm:$0xff]
    %v131 = vld [vmem:[#allocation5 + $0x1e8] sm:$0xff]
    %v132 = vld [vmem:[#allocation5 + $0x1f0] sm:$0xff]
    %v133 = vld [vmem:[#allocation5 + $0x1f8] sm:$0xff]
    %v134 = vld [vmem:[#allocation7] sm:$0xf]
    %v136 = vlaneseq
    %v137 = vshrl.u32 %v136, 7
    %v138 = vsub.s32 0, %v137
    %v139 = vrot.slane %v134, %v138
    %v140 = vlaneseq
    %v141 = vshrl.u32 %v140, 7
    %v142 = vsub.s32 1, %v141
    %v143 = vrot.slane %v134, %v142
    %v144 = vlaneseq
    %v145 = vshrl.u32 %v144, 7
    %v146 = vsub.s32 2, %v145
    %v147 = vrot.slane %v134, %v146
    %v148 = vlaneseq
    %v149 = vshrl.u32 %v148, 7
    %v150 = vsub.s32 3, %v149
    %v151 = vrot.slane %v134, %v150
    %156 = vmatprep.subr.mxu0 %v71
    %157 = vmatpush1.msra.mxu0 %v70
    %158 = vmatprep.subr.mxu0 %v75
    %159 = vmatpush1.msra.mxu0 %v74
    %160 = vmatprep.subr.mxu0 %v79
    %161 = vmatpush1.msra.mxu0 %v78
    %162 = vmatprep.subr.mxu0 %v83
    %163 = vmatpush1.msra.mxu0 %v82
    %164 = vmatprep.subr.mxu0 %v87
    %165 = vmatpush1.msra.mxu0 %v86
    %166 = vmatprep.subr.mxu0 %v91
    %167 = vmatpush1.msra.mxu0 %v90
    %168 = vmatprep.subr.mxu0 %v95
    %169 = vmatpush1.msra.mxu0 %v94
    %170 = vmatprep.subr.mxu0 %v99
    %171 = vmatpush1.msra.mxu0 %v98
    %172 = vmatprep.subr.mxu0 %v103
    %173 = vmatpush1.msra.mxu0 %v102
    %174 = vmatprep.subr.mxu0 %v107
    %175 = vmatpush1.msra.mxu0 %v106
    %176 = vmatprep.subr.mxu0 %v111
    %177 = vmatpush1.msra.mxu0 %v110
    %178 = vmatprep.subr.mxu0 %v115
    %179 = vmatpush1.msra.mxu0 %v114
    %180 = vmatprep.subr.mxu0 %v119
    %181 = vmatpush1.msra.mxu0 %v118
    %182 = vmatprep.subr.mxu0 %v123
    %183 = vmatpush1.msra.mxu0 %v122
    %184 = vmatprep.subr.mxu0 %v127
    %185 = vmatpush1.msra.mxu0 %v126
    %186 = vmatprep.subr.mxu0 %v131
    %187 = vmatpush1.msra.mxu0 %v130
    %188 = vmatprep.subr.mxu0 0.0
    %189 = vmatpush1.msra.mxu0 0.0
    %190 = vmatprep.subr.mxu0 0.0
    %191 = vmatpush1.msra.mxu0 0.0
    %192 = vmatprep.subr.mxu0 0.0
    %193 = vmatpush1.msra.mxu0 0.0
    %194 = vmatprep.subr.mxu0 0.0
    %195 = vmatpush1.msra.mxu0 0.0
    %196 = vmatprep.subr.mxu0 0.0
    %197 = vmatpush1.msra.mxu0 0.0
    %198 = vmatprep.subr.mxu0 0.0
    %199 = vmatpush1.msra.mxu0 0.0
    %200 = vmatprep.subr.mxu0 0.0
    %201 = vmatpush1.msra.mxu0 0.0
    %202 = vmatprep.subr.mxu0 0.0
    %203 = vmatpush1.msra.mxu0 0.0
    %204 = vmatprep.subr.mxu0 0.0
    %205 = vmatpush1.msra.mxu0 0.0
    %206 = vmatprep.subr.mxu0 0.0
    %207 = vmatpush1.msra.mxu0 0.0
    %208 = vmatprep.subr.mxu0 0.0
    %209 = vmatpush1.msra.mxu0 0.0
    %210 = vmatprep.subr.mxu0 0.0
    %211 = vmatpush1.msra.mxu0 0.0
    %212 = vmatprep.subr.mxu0 0.0
    %213 = vmatpush1.msra.mxu0 0.0
    %214 = vmatprep.subr.mxu0 0.0
    %215 = vmatpush1.msra.mxu0 0.0
    %216 = vmatprep.subr.mxu0 0.0
    %217 = vmatpush1.msra.mxu0 0.0
    %218 = vmatprep.subr.mxu0 0.0
    %219 = vmatpush1.msra.mxu0 0.0
    %220 = vmatprep.mubr.f32.mxu0 0.0
    %221 = vmatmul.mubr.f32.gmra.mrb[0].mxu0 %v54
    %v222 = vpop.f32.mrb[0].mxu0
    %v223 = vadd.f32 %v139, %v222
    %v224 = vpop.f32.mrb[0].mxu0
    %v225 = vadd.f32 %v143, %v224
    %226 = vmatprep.mubr.f32.mxu0 0.0
    %227 = vmatmul.mubr.f32.gmra.mrb[0].mxu0 %v55
    %v228 = vpop.f32.mrb[0].mxu0
    %v229 = vadd.f32 %v139, %v228
    %v230 = vpop.f32.mrb[0].mxu0
    %v231 = vadd.f32 %v143, %v230
    %232 = vmatprep.mubr.f32.mxu0 0.0
    %233 = vmatmul.mubr.f32.gmra.mrb[0].mxu0 %v56
    %v234 = vpop.f32.mrb[0].mxu0
    %v235 = vadd.f32 %v139, %v234
    %v236 = vpop.f32.mrb[0].mxu0
    %v237 = vadd.f32 %v143, %v236
    %238 = vmatprep.mubr.f32.mxu0 0.0
    %239 = vmatmul.mubr.f32.gmra.mrb[0].mxu0 %v57
    %v240 = vpop.f32.mrb[0].mxu0
    %v241 = vadd.f32 %v139, %v240
    %v242 = vpop.f32.mrb[0].mxu0
    %v243 = vadd.f32 %v143, %v242
    %244 = vmatprep.mubr.f32.mxu0 0.0
    %245 = vmatmul.mubr.f32.gmra.mrb[0].mxu0 %v58
    %v246 = vpop.f32.mrb[0].mxu0
    %v247 = vadd.f32 %v139, %v246
    %v248 = vpop.f32.mrb[0].mxu0
    %v249 = vadd.f32 %v143, %v248
    %250 = vmatprep.mubr.f32.mxu0 0.0
    %251 = vmatmul.mubr.f32.gmra.mrb[0].mxu0 %v59
    %v252 = vpop.f32.mrb[0].mxu0
    %v253 = vadd.f32 %v139, %v252
    %v254 = vpop.f32.mrb[0].mxu0
    %v255 = vadd.f32 %v143, %v254
    %256 = vmatprep.mubr.f32.mxu0 0.0
    %257 = vmatmul.mubr.f32.gmra.mrb[0].mxu0 %v60
    %v258 = vpop.f32.mrb[0].mxu0
    %v259 = vadd.f32 %v139, %v258
    %v260 = vpop.f32.mrb[0].mxu0
    %v261 = vadd.f32 %v143, %v260
    %262 = vmatprep.mubr.f32.mxu0 0.0
    %263 = vmatmul.mubr.f32.gmra.mrb[0].mxu0 %v61
    %v264 = vpop.f32.mrb[0].mxu0
    %v265 = vadd.f32 %v139, %v264
    %v266 = vpop.f32.mrb[0].mxu0
    %v267 = vadd.f32 %v143, %v266
    %268 = vmatprep.mubr.f32.mxu0 0.0
    %269 = vmatmul.mubr.f32.gmra.mrb[0].mxu0 %v62
    %v270 = vpop.f32.mrb[0].mxu0
    %v271 = vadd.f32 %v139, %v270
    %v272 = vpop.f32.mrb[0].mxu0
    %v273 = vadd.f32 %v143, %v272
    %274 = vmatprep.mubr.f32.mxu0 0.0
    %275 = vmatmul.mubr.f32.gmra.mrb[0].mxu0 %v63
    %v276 = vpop.f32.mrb[0].mxu0
    %v277 = vadd.f32 %v139, %v276
    %v278 = vpop.f32.mrb[0].mxu0
    %v279 = vadd.f32 %v143, %v278
    %280 = vmatprep.mubr.f32.mxu0 0.0
    %281 = vmatmul.mubr.f32.gmra.mrb[0].mxu0 %v64
    %v282 = vpop.f32.mrb[0].mxu0
    %v283 = vadd.f32 %v139, %v282
    %v284 = vpop.f32.mrb[0].mxu0
    %v285 = vadd.f32 %v143, %v284
    %286 = vmatprep.mubr.f32.mxu0 0.0
    %287 = vmatmul.mubr.f32.gmra.mrb[0].mxu0 %v65
    %v288 = vpop.f32.mrb[0].mxu0
    %v289 = vadd.f32 %v139, %v288
    %v290 = vpop.f32.mrb[0].mxu0
    %v291 = vadd.f32 %v143, %v290
    %292 = vmatprep.mubr.f32.mxu0 0.0
    %293 = vmatmul.mubr.f32.gmra.mrb[0].mxu0 %v66
    %v294 = vpop.f32.mrb[0].mxu0
    %v295 = vadd.f32 %v139, %v294
    %v296 = vpop.f32.mrb[0].mxu0
    %v297 = vadd.f32 %v143, %v296
    %298 = vmatprep.mubr.f32.mxu0 0.0
    %299 = vmatmul.mubr.f32.gmra.mrb[0].mxu0 %v67
    %v300 = vpop.f32.mrb[0].mxu0
    %v301 = vadd.f32 %v139, %v300
    %v302 = vpop.f32.mrb[0].mxu0
    %v303 = vadd.f32 %v143, %v302
    %304 = vmatprep.mubr.f32.mxu0 0.0
    %305 = vmatmul.mubr.f32.gmra.mrb[0].mxu0 %v68
    %v306 = vpop.f32.mrb[0].mxu0
    %v307 = vadd.f32 %v139, %v306
    %v308 = vpop.f32.mrb[0].mxu0
    %v309 = vadd.f32 %v143, %v308
    %310 = vmatprep.mubr.f32.mxu0 0.0
    %311 = vmatmul.mubr.f32.gmra.mrb[0].mxu0 %v69
    %v312 = vpop.f32.mrb[0].mxu0
    %v313 = vadd.f32 %v139, %v312
    %v314 = vpop.f32.mrb[0].mxu0
    %v315 = vadd.f32 %v143, %v314
    %316 = vdwg.mxu0
    %317 = vmatprep.subr.mxu0 %v73
    %318 = vmatpush1.msra.mxu0 %v72
    %319 = vmatprep.subr.mxu0 %v77
    %320 = vmatpush1.msra.mxu0 %v76
    %321 = vmatprep.subr.mxu0 %v81
    %322 = vmatpush1.msra.mxu0 %v80
    %323 = vmatprep.subr.mxu0 %v85
    %324 = vmatpush1.msra.mxu0 %v84
    %325 = vmatprep.subr.mxu0 %v89
    %326 = vmatpush1.msra.mxu0 %v88
    %327 = vmatprep.subr.mxu0 %v93
    %328 = vmatpush1.msra.mxu0 %v92
    %329 = vmatprep.subr.mxu0 %v97
    %330 = vmatpush1.msra.mxu0 %v96
    %331 = vmatprep.subr.mxu0 %v101
    %332 = vmatpush1.msra.mxu0 %v100
    %333 = vmatprep.subr.mxu0 %v105
    %334 = vmatpush1.msra.mxu0 %v104
    %335 = vmatprep.subr.mxu0 %v109
    %336 = vmatpush1.msra.mxu0 %v108
    %337 = vmatprep.subr.mxu0 %v113
    %338 = vmatpush1.msra.mxu0 %v112
    %339 = vmatprep.subr.mxu0 %v117
    %340 = vmatpush1.msra.mxu0 %v116
    %341 = vmatprep.subr.mxu0 %v121
    %342 = vmatpush1.msra.mxu0 %v120
    %343 = vmatprep.subr.mxu0 %v125
    %344 = vmatpush1.msra.mxu0 %v124
    %345 = vmatprep.subr.mxu0 %v129
    %346 = vmatpush1.msra.mxu0 %v128
    %347 = vmatprep.subr.mxu0 %v133
    %348 = vmatpush1.msra.mxu0 %v132
    %349 = vmatprep.subr.mxu0 0.0
    %350 = vmatpush1.msra.mxu0 0.0
    %351 = vmatprep.subr.mxu0 0.0
    %352 = vmatpush1.msra.mxu0 0.0
    %353 = vmatprep.subr.mxu0 0.0
    %354 = vmatpush1.msra.mxu0 0.0
    %355 = vmatprep.subr.mxu0 0.0
    %356 = vmatpush1.msra.mxu0 0.0
    %357 = vmatprep.subr.mxu0 0.0
    %358 = vmatpush1.msra.mxu0 0.0
    %359 = vmatprep.subr.mxu0 0.0
    %360 = vmatpush1.msra.mxu0 0.0
    %361 = vmatprep.subr.mxu0 0.0
    %362 = vmatpush1.msra.mxu0 0.0
    %363 = vmatprep.subr.mxu0 0.0
    %364 = vmatpush1.msra.mxu0 0.0
    %365 = vmatprep.subr.mxu0 0.0
    %366 = vmatpush1.msra.mxu0 0.0
    %367 = vmatprep.subr.mxu0 0.0
    %368 = vmatpush1.msra.mxu0 0.0
    %369 = vmatprep.subr.mxu0 0.0
    %370 = vmatpush1.msra.mxu0 0.0
    %371 = vmatprep.subr.mxu0 0.0
    %372 = vmatpush1.msra.mxu0 0.0
    %373 = vmatprep.subr.mxu0 0.0
    %374 = vmatpush1.msra.mxu0 0.0
    %375 = vmatprep.subr.mxu0 0.0
    %376 = vmatpush1.msra.mxu0 0.0
    %377 = vmatprep.subr.mxu0 0.0
    %378 = vmatpush1.msra.mxu0 0.0
    %379 = vmatprep.subr.mxu0 0.0
    %380 = vmatpush1.msra.mxu0 0.0
    %381 = vmatprep.mubr.f32.mxu0 0.0
    %382 = vmatmul.mubr.f32.gmra.mrb[0].mxu0 %v54
    %v383 = vpop.f32.mrb[0].mxu0
    %v384 = vadd.f32 %v147, %v383
    %v385 = vpop.f32.mrb[0].mxu0
    %v386 = vadd.f32 %v151, %v385
    %387 = vmatprep.mubr.f32.mxu0 0.0
    %388 = vmatmul.mubr.f32.gmra.mrb[0].mxu0 %v55
    %v389 = vpop.f32.mrb[0].mxu0
    %v390 = vadd.f32 %v147, %v389
    %v391 = vpop.f32.mrb[0].mxu0
    %v392 = vadd.f32 %v151, %v391
    %393 = vmatprep.mubr.f32.mxu0 0.0
    %394 = vmatmul.mubr.f32.gmra.mrb[0].mxu0 %v56
    %v395 = vpop.f32.mrb[0].mxu0
    %v396 = vadd.f32 %v147, %v395
    %v397 = vpop.f32.mrb[0].mxu0
    %v398 = vadd.f32 %v151, %v397
    %399 = vmatprep.mubr.f32.mxu0 0.0
    %400 = vmatmul.mubr.f32.gmra.mrb[0].mxu0 %v57
    %v401 = vpop.f32.mrb[0].mxu0
    %v402 = vadd.f32 %v147, %v401
    %v403 = vpop.f32.mrb[0].mxu0
    %v404 = vadd.f32 %v151, %v403
    %405 = vmatprep.mubr.f32.mxu0 0.0
    %406 = vmatmul.mubr.f32.gmra.mrb[0].mxu0 %v58
    %v407 = vpop.f32.mrb[0].mxu0
    %v408 = vadd.f32 %v147, %v407
    %v409 = vpop.f32.mrb[0].mxu0
    %v410 = vadd.f32 %v151, %v409
    %411 = vmatprep.mubr.f32.mxu0 0.0
    %412 = vmatmul.mubr.f32.gmra.mrb[0].mxu0 %v59
    %v413 = vpop.f32.mrb[0].mxu0
    %v414 = vadd.f32 %v147, %v413
    %v415 = vpop.f32.mrb[0].mxu0
    %v416 = vadd.f32 %v151, %v415
    %417 = vmatprep.mubr.f32.mxu0 0.0
    %418 = vmatmul.mubr.f32.gmra.mrb[0].mxu0 %v60
    %v419 = vpop.f32.mrb[0].mxu0
    %v420 = vadd.f32 %v147, %v419
    %v421 = vpop.f32.mrb[0].mxu0
    %v422 = vadd.f32 %v151, %v421
    %423 = vmatprep.mubr.f32.mxu0 0.0
    %424 = vmatmul.mubr.f32.gmra.mrb[0].mxu0 %v61
    %v425 = vpop.f32.mrb[0].mxu0
    %v426 = vadd.f32 %v147, %v425
    %v427 = vpop.f32.mrb[0].mxu0
    %v428 = vadd.f32 %v151, %v427
    %429 = vmatprep.mubr.f32.mxu0 0.0
    %430 = vmatmul.mubr.f32.gmra.mrb[0].mxu0 %v62
    %v431 = vpop.f32.mrb[0].mxu0
    %v432 = vadd.f32 %v147, %v431
    %v433 = vpop.f32.mrb[0].mxu0
    %v434 = vadd.f32 %v151, %v433
    %435 = vmatprep.mubr.f32.mxu0 0.0
    %436 = vmatmul.mubr.f32.gmra.mrb[0].mxu0 %v63
    %v437 = vpop.f32.mrb[0].mxu0
    %v438 = vadd.f32 %v147, %v437
    %v439 = vpop.f32.mrb[0].mxu0
    %v440 = vadd.f32 %v151, %v439
    %441 = vmatprep.mubr.f32.mxu0 0.0
    %442 = vmatmul.mubr.f32.gmra.mrb[0].mxu0 %v64
    %v443 = vpop.f32.mrb[0].mxu0
    %v444 = vadd.f32 %v147, %v443
    %v445 = vpop.f32.mrb[0].mxu0
    %v446 = vadd.f32 %v151, %v445
    %447 = vmatprep.mubr.f32.mxu0 0.0
    %448 = vmatmul.mubr.f32.gmra.mrb[0].mxu0 %v65
    %v449 = vpop.f32.mrb[0].mxu0
    %v450 = vadd.f32 %v147, %v449
    %v451 = vpop.f32.mrb[0].mxu0
    %v452 = vadd.f32 %v151, %v451
    %453 = vmatprep.mubr.f32.mxu0 0.0
    %454 = vmatmul.mubr.f32.gmra.mrb[0].mxu0 %v66
    %v455 = vpop.f32.mrb[0].mxu0
    %v456 = vadd.f32 %v147, %v455
    %v457 = vpop.f32.mrb[0].mxu0
    %v458 = vadd.f32 %v151, %v457
    %459 = vmatprep.mubr.f32.mxu0 0.0
    %460 = vmatmul.mubr.f32.gmra.mrb[0].mxu0 %v67
    %v461 = vpop.f32.mrb[0].mxu0
    %v462 = vadd.f32 %v147, %v461
    %v463 = vpop.f32.mrb[0].mxu0
    %v464 = vadd.f32 %v151, %v463
    %465 = vmatprep.mubr.f32.mxu0 0.0
    %466 = vmatmul.mubr.f32.gmra.mrb[0].mxu0 %v68
    %v467 = vpop.f32.mrb[0].mxu0
    %v468 = vadd.f32 %v147, %v467
    %v469 = vpop.f32.mrb[0].mxu0
    %v470 = vadd.f32 %v151, %v469
    %471 = vmatprep.mubr.f32.mxu0 0.0
    %472 = vmatmul.mubr.f32.gmra.mrb[0].mxu0 %v69
    %v473 = vpop.f32.mrb[0].mxu0
    %v474 = vadd.f32 %v147, %v473
    %v475 = vpop.f32.mrb[0].mxu0
    %v476 = vadd.f32 %v151, %v475
    %477 = vdwg.mxu0
    %478 = vst [vmem:[#allocation8] sm:$0xff] %v223
    %479 = vst [vmem:[#allocation8 + $0x8] sm:$0xff] %v225
    %480 = vst [vmem:[#allocation8 + $0x10] sm:$0xff] %v384
    %481 = vst [vmem:[#allocation8 + $0x18] sm:$0xff] %v386
    %482 = vst [vmem:[#allocation8 + $0x20] sm:$0xff] %v229
    %483 = vst [vmem:[#allocation8 + $0x28] sm:$0xff] %v231
    %484 = vst [vmem:[#allocation8 + $0x30] sm:$0xff] %v390
    %485 = vst [vmem:[#allocation8 + $0x38] sm:$0xff] %v392
    %486 = vst [vmem:[#allocation8 + $0x40] sm:$0xff] %v235
    %487 = vst [vmem:[#allocation8 + $0x48] sm:$0xff] %v237
    %488 = vst [vmem:[#allocation8 + $0x50] sm:$0xff] %v396
    %489 = vst [vmem:[#allocation8 + $0x58] sm:$0xff] %v398
    %490 = vst [vmem:[#allocation8 + $0x60] sm:$0xff] %v241
    %491 = vst [vmem:[#allocation8 + $0x68] sm:$0xff] %v243
    %492 = vst [vmem:[#allocation8 + $0x70] sm:$0xff] %v402
    %493 = vst [vmem:[#allocation8 + $0x78] sm:$0xff] %v404
    %494 = vst [vmem:[#allocation8 + $0x80] sm:$0xff] %v247
    %495 = vst [vmem:[#allocation8 + $0x88] sm:$0xff] %v249
    %496 = vst [vmem:[#allocation8 + $0x90] sm:$0xff] %v408
    %497 = vst [vmem:[#allocation8 + $0x98] sm:$0xff] %v410
    %498 = vst [vmem:[#allocation8 + $0xa0] sm:$0xff] %v253
    %499 = vst [vmem:[#allocation8 + $0xa8] sm:$0xff] %v255
    %500 = vst [vmem:[#allocation8 + $0xb0] sm:$0xff] %v414
    %501 = vst [vmem:[#allocation8 + $0xb8] sm:$0xff] %v416
    %502 = vst [vmem:[#allocation8 + $0xc0] sm:$0xff] %v259
    %503 = vst [vmem:[#allocation8 + $0xc8] sm:$0xff] %v261
    %504 = vst [vmem:[#allocation8 + $0xd0] sm:$0xff] %v420
    %505 = vst [vmem:[#allocation8 + $0xd8] sm:$0xff] %v422
    %506 = vst [vmem:[#allocation8 + $0xe0] sm:$0xff] %v265
    %507 = vst [vmem:[#allocation8 + $0xe8] sm:$0xff] %v267
    %508 = vst [vmem:[#allocation8 + $0xf0] sm:$0xff] %v426
    %509 = vst [vmem:[#allocation8 + $0xf8] sm:$0xff] %v428
    %510 = vst [vmem:[#allocation8 + $0x100] sm:$0xff] %v271
    %511 = vst [vmem:[#allocation8 + $0x108] sm:$0xff] %v273
    %512 = vst [vmem:[#allocation8 + $0x110] sm:$0xff] %v432
    %513 = vst [vmem:[#allocation8 + $0x118] sm:$0xff] %v434
    %514 = vst [vmem:[#allocation8 + $0x120] sm:$0xff] %v277
    %515 = vst [vmem:[#allocation8 + $0x128] sm:$0xff] %v279
    %516 = vst [vmem:[#allocation8 + $0x130] sm:$0xff] %v438
    %517 = vst [vmem:[#allocation8 + $0x138] sm:$0xff] %v440
    %518 = vst [vmem:[#allocation8 + $0x140] sm:$0xff] %v283
    %519 = vst [vmem:[#allocation8 + $0x148] sm:$0xff] %v285
    %520 = vst [vmem:[#allocation8 + $0x150] sm:$0xff] %v444
    %521 = vst [vmem:[#allocation8 + $0x158] sm:$0xff] %v446
    %522 = vst [vmem:[#allocation8 + $0x160] sm:$0xff] %v289
    %523 = vst [vmem:[#allocation8 + $0x168] sm:$0xff] %v291
    %524 = vst [vmem:[#allocation8 + $0x170] sm:$0xff] %v450
    %525 = vst [vmem:[#allocation8 + $0x178] sm:$0xff] %v452
    %526 = vst [vmem:[#allocation8 + $0x180] sm:$0xff] %v295
    %527 = vst [vmem:[#allocation8 + $0x188] sm:$0xff] %v297
    %528 = vst [vmem:[#allocation8 + $0x190] sm:$0xff] %v456
    %529 = vst [vmem:[#allocation8 + $0x198] sm:$0xff] %v458
    %530 = vst [vmem:[#allocation8 + $0x1a0] sm:$0xff] %v301
    %531 = vst [vmem:[#allocation8 + $0x1a8] sm:$0xff] %v303
    %532 = vst [vmem:[#allocation8 + $0x1b0] sm:$0xff] %v462
    %533 = vst [vmem:[#allocation8 + $0x1b8] sm:$0xff] %v464
    %534 = vst [vmem:[#allocation8 + $0x1c0] sm:$0xff] %v307
    %535 = vst [vmem:[#allocation8 + $0x1c8] sm:$0xff] %v309
    %536 = vst [vmem:[#allocation8 + $0x1d0] sm:$0xff] %v468
    %537 = vst [vmem:[#allocation8 + $0x1d8] sm:$0xff] %v470
    %538 = vst [vmem:[#allocation8 + $0x1e0] sm:$0xff] %v313
    %539 = vst [vmem:[#allocation8 + $0x1e8] sm:$0xff] %v315
    %540 = vst [vmem:[#allocation8 + $0x1f0] sm:$0xff] %v474
    %541 = vst [vmem:[#allocation8 + $0x1f8] sm:$0xff] %v476
    // Predicated region
    $region26: #{rnn_model_forward.5} parent=1 // pred_check
      _
    $region27: #{rnn_model_forward.5} parent=1 // pred_check_branch
      %543 = sbr.rel (0) target = $region29
    $region28: #{rnn_model_forward.5} parent=1 // pred_region
      %s545 = ssub.s32 8192, 8192
      %546 = vsyncadd [#allocation4], %s545
      %s547 = sshll.u32 [#allocation8], 4
      %s548 = int_to_ptr.vmem [resolvable:$true] %s547
      %553 = dma.vmem_to_hbm [thread:$0]  %s548, 8192, %s3, [#allocation4], 512, 512, 32
    $region29: #{rnn_model_forward.5} parent=1 // pred_fallthru
      _
    // Predicated region
    $region30: #{rnn_model_forward.5} parent=1 // pred_check
      _
    $region31: #{rnn_model_forward.5} parent=1 // pred_check_branch
      %555 = sbr.rel (0) target = $region33
    $region32: #{rnn_model_forward.5} parent=1 // pred_region
      %556 = dma.done [#allocation4], 8192
    $region33: #{rnn_model_forward.5} parent=1 // pred_fallthru
      _
    %557 = vsyncpa [#allocation3], 1
    %558 = vsyncpa [#allocation6], 1
    %559 = vsyncpa [#allocation4], 1

// kernel: rnn_model_forward.6
$region0: #{rnn_model_forward.6}
  #allocation0 [shape = 'u32[]', space=smem, size = 0x4, offset = 0x4, fixed_abs, tag = 'smem constant byte address 0x4 - core index']
  #allocation1 [shape = 'u32[144,128]{1,0:T(1,128)}', space=vmem, size = 0x12000, scoped, tag = 'internal scratch']
  #allocation2 [shape = 'f32[8,128]{1,0:T(8,128)}', space=vmem, size = 0x1000, scoped, tag = 'scratch operand']
  #allocation3 [shape = 'f32[8,128]{1,0:T(8,128)}', space=vmem, size = 0x1000, scoped, tag = 'scratch operand']
  %s0 = inlined_call_operand.hbm [shape: f32[16,8,512], index: 0, kind: input, shape index: {}]
  %s1 = inlined_call_operand.hbm [shape: f32[128,512], index: 1, kind: input, shape index: {}]
  %s2 = inlined_call_operand.hbm [shape: f32[8,128], index: 2, kind: input, shape index: {}]
  %s3 = inlined_call_operand.hbm [shape: f32[8,128], index: 3, kind: input, shape index: {}]
  %s4 = inlined_call_operand.hbm [shape: f32[16,8,128], index: 4, kind: output, shape index: {0}]
  %s5 = inlined_call_operand.hbm [shape: f32[8,128], index: 5, kind: output, shape index: {1}]
  %s6 = inlined_call_operand.hbm [shape: f32[8,128], index: 6, kind: output, shape index: {2}]
  %7 = xla_tuple %s4, %s5, %s6
  %s8 = sld [smem:[#allocation0]]
  $region66: #{rnn_model_forward.6} parent=0
    _
  %s10 = ssub.s32 1, %s8
  %s11 = scalar_select 0, %s10, %s8
  $region1: #{rnn_model_forward.6} parent=0
    #allocation4 [shape = 'u8[262144]{0}', space=vmem, size = 0x40000, scoped, tag = 'input window, operand 0, single buffered']
    #allocation5 [shape = 's32[1]{0}', space=sflag, size = 0x4, scoped, tag = 'scoped memory for rnn_model_forward.6']
    #allocation6 [shape = 's32[1]{0}', space=sflag, size = 0x4, scoped, tag = 'scoped memory for rnn_model_forward.6']
    #allocation7 [shape = 'u8[262144]{0}', space=vmem, size = 0x40000, scoped, tag = 'input window, operand 1, single buffered']
    #allocation8 [shape = 's32[1]{0}', space=sflag, size = 0x4, scoped, tag = 'scoped memory for rnn_model_forward.6']
    #allocation9 [shape = 'u8[4096]{0}', space=vmem, size = 0x1000, scoped, tag = 'input window, operand 2, single buffered']
    #allocation10 [shape = 'u8[4096]{0}', space=vmem, size = 0x1000, scoped, tag = 'input window, operand 3, single buffered']
    #allocation11 [shape = 's32[1]{0}', space=sflag, size = 0x4, scoped, tag = 'scoped memory for rnn_model_forward.6']
    #allocation12 [shape = 'u8[65536]{0}', space=vmem, size = 0x10000, scoped, tag = 'output window, operand 0, single buffered']
    #allocation13 [shape = 'u8[4096]{0}', space=vmem, size = 0x1000, scoped, tag = 'output window, operand 1, single buffered']
    #allocation14 [shape = 's32[1]{0}', space=sflag, size = 0x4, scoped, tag = 'scoped memory for rnn_model_forward.6']
    #allocation15 [shape = 'u8[4096]{0}', space=vmem, size = 0x1000, scoped, tag = 'output window, operand 2, single buffered']
    %12 = vsyncpa [#allocation5], 0
    %13 = vsyncpa [#allocation8], 0
    %14 = vsyncpa [#allocation11], 0
    %15 = vsyncpa [#allocation6], 0
    %16 = vsyncpa [#allocation14], 0
    // Predicated region
    $region2: #{rnn_model_forward.6} parent=1 // pred_check
      _
    $region3: #{rnn_model_forward.6} parent=1 // pred_check_branch
      %18 = sbr.rel (0) target = $region5
    $region4: #{rnn_model_forward.6} parent=1 // pred_region
      %s20 = ssub.s32 8192, 8192
      %21 = vsyncadd [#allocation5], %s20
      %s22 = sshll.u32 [#allocation4], 4
      %s23 = int_to_ptr.vmem [resolvable:$true] %s22
      %28 = dma.hbm_to_vmem [thread:$0]  %s0, 8192, %s23, [#allocation5], 512, 512, 32
    $region5: #{rnn_model_forward.6} parent=1 // pred_fallthru
      _
    // Predicated region
    $region6: #{rnn_model_forward.6} parent=1 // pred_check
      _
    $region7: #{rnn_model_forward.6} parent=1 // pred_check_branch
      %30 = sbr.rel (0) target = $region9
    $region8: #{rnn_model_forward.6} parent=1 // pred_region
      %s32 = ssub.s32 8192, 8192
      %33 = vsyncadd [#allocation8], %s32
      %s34 = sshll.u32 [#allocation7], 4
      %s35 = int_to_ptr.vmem [resolvable:$true] %s34
      %40 = dma.hbm_to_vmem [thread:$0]  %s1, 8192, %s35, [#allocation8], 512, 512, 32
    $region9: #{rnn_model_forward.6} parent=1 // pred_fallthru
      _
    // Predicated region
    $region10: #{rnn_model_forward.6} parent=1 // pred_check
      _
    $region11: #{rnn_model_forward.6} parent=1 // pred_check_branch
      %42 = sbr.rel (0) target = $region13
    $region12: #{rnn_model_forward.6} parent=1 // pred_region
      %s44 = ssub.s32 128, 128
      %45 = vsyncadd [#allocation8], %s44
      %s47 = sshll.u32 [#allocation9], 4
      %s48 = int_to_ptr.vmem [resolvable:$true] %s47
      %50 = dma.hbm_to_vmem [thread:$0]  %s2, 128, %s48, [#allocation8]
    $region13: #{rnn_model_forward.6} parent=1 // pred_fallthru
      _
    // Predicated region
    $region14: #{rnn_model_forward.6} parent=1 // pred_check
      _
    $region15: #{rnn_model_forward.6} parent=1 // pred_check_branch
      %52 = sbr.rel (0) target = $region17
    $region16: #{rnn_model_forward.6} parent=1 // pred_region
      %s54 = ssub.s32 128, 128
      %55 = vsyncadd [#allocation11], %s54
      %s57 = sshll.u32 [#allocation10], 4
      %s58 = int_to_ptr.vmem [resolvable:$true] %s57
      %60 = dma.hbm_to_vmem [thread:$0]  %s3, 128, %s58, [#allocation11]
    $region17: #{rnn_model_forward.6} parent=1 // pred_fallthru
      _
    // Predicated region
    $region18: #{rnn_model_forward.6} parent=1 // pred_check
      _
    $region19: #{rnn_model_forward.6} parent=1 // pred_check_branch
      %62 = sbr.rel (0) target = $region21
    $region20: #{rnn_model_forward.6} parent=1 // pred_region
      %63 = dma.done [#allocation5], 8192
    $region21: #{rnn_model_forward.6} parent=1 // pred_fallthru
      _
    // Predicated region
    $region22: #{rnn_model_forward.6} parent=1 // pred_check
      _
    $region23: #{rnn_model_forward.6} parent=1 // pred_check_branch
      %65 = sbr.rel (0) target = $region25
    $region24: #{rnn_model_forward.6} parent=1 // pred_region
      %66 = dma.done [#allocation8], 8192
    $region25: #{rnn_model_forward.6} parent=1 // pred_fallthru
      _
    // Predicated region
    $region26: #{rnn_model_forward.6} parent=1 // pred_check
      _
    $region27: #{rnn_model_forward.6} parent=1 // pred_check_branch
      %68 = sbr.rel (0) target = $region29
    $region28: #{rnn_model_forward.6} parent=1 // pred_region
      %69 = dma.done [#allocation8], 128
    $region29: #{rnn_model_forward.6} parent=1 // pred_fallthru
      _
    // Predicated region
    $region30: #{rnn_model_forward.6} parent=1 // pred_check
      _
    $region31: #{rnn_model_forward.6} parent=1 // pred_check_branch
      %71 = sbr.rel (0) target = $region33
    $region32: #{rnn_model_forward.6} parent=1 // pred_region
      %72 = dma.done [#allocation11], 128
    $region33: #{rnn_model_forward.6} parent=1 // pred_fallthru
      _
    %p73 = scmp.eq.s32.totalorder 0, 0
    // Predicated region
    $region34: #{rnn_model_forward.6} parent=1 // pred_check
      %p74 = pneg %p73
    $region35: #{rnn_model_forward.6} parent=1 // pred_check_branch
      %76 = sbr.rel (%p74) target = $region37
    $region36: #{rnn_model_forward.6} parent=1 // pred_region
      %v77 = vld [vmem:[#allocation9] sm:$0xff]
      %78 = vst [vmem:[#allocation2] sm:$0xff] %v77
      %v79 = vld [vmem:[#allocation10] sm:$0xff]
      %80 = vst [vmem:[#allocation3] sm:$0xff] %v79
    $region37: #{rnn_model_forward.6} parent=1 // pred_fallthru
      _
    %v81 = vld [vmem:[#allocation7] sm:$0xff]
    %v82 = vld [vmem:[#allocation7 + $0x8] sm:$0xff]
    %v83 = vld [vmem:[#allocation7 + $0x10] sm:$0xff]
    %v84 = vld [vmem:[#allocation7 + $0x18] sm:$0xff]
    %v85 = vld [vmem:[#allocation7 + $0x20] sm:$0xff]
    %v86 = vld [vmem:[#allocation7 + $0x28] sm:$0xff]
    %v87 = vld [vmem:[#allocation7 + $0x30] sm:$0xff]
    %v88 = vld [vmem:[#allocation7 + $0x38] sm:$0xff]
    %v89 = vld [vmem:[#allocation7 + $0x40] sm:$0xff]
    %v90 = vld [vmem:[#allocation7 + $0x48] sm:$0xff]
    %v91 = vld [vmem:[#allocation7 + $0x50] sm:$0xff]
    %v92 = vld [vmem:[#allocation7 + $0x58] sm:$0xff]
    %v93 = vld [vmem:[#allocation7 + $0x60] sm:$0xff]
    %v94 = vld [vmem:[#allocation7 + $0x68] sm:$0xff]
    %v95 = vld [vmem:[#allocation7 + $0x70] sm:$0xff]
    %v96 = vld [vmem:[#allocation7 + $0x78] sm:$0xff]
    %v97 = vld [vmem:[#allocation7 + $0x80] sm:$0xff]
    %v98 = vld [vmem:[#allocation7 + $0x88] sm:$0xff]
    %v99 = vld [vmem:[#allocation7 + $0x90] sm:$0xff]
    %v100 = vld [vmem:[#allocation7 + $0x98] sm:$0xff]
    %v101 = vld [vmem:[#allocation7 + $0xa0] sm:$0xff]
    %v102 = vld [vmem:[#allocation7 + $0xa8] sm:$0xff]
    %v103 = vld [vmem:[#allocation7 + $0xb0] sm:$0xff]
    %v104 = vld [vmem:[#allocation7 + $0xb8] sm:$0xff]
    %v105 = vld [vmem:[#allocation7 + $0xc0] sm:$0xff]
    %v106 = vld [vmem:[#allocation7 + $0xc8] sm:$0xff]
    %v107 = vld [vmem:[#allocation7 + $0xd0] sm:$0xff]
    %v108 = vld [vmem:[#allocation7 + $0xd8] sm:$0xff]
    %v109 = vld [vmem:[#allocation7 + $0xe0] sm:$0xff]
    %v110 = vld [vmem:[#allocation7 + $0xe8] sm:$0xff]
    %v111 = vld [vmem:[#allocation7 + $0xf0] sm:$0xff]
    %v112 = vld [vmem:[#allocation7 + $0xf8] sm:$0xff]
    %v113 = vld [vmem:[#allocation7 + $0x100] sm:$0xff]
    %v114 = vld [vmem:[#allocation7 + $0x108] sm:$0xff]
    %v115 = vld [vmem:[#allocation7 + $0x110] sm:$0xff]
    %v116 = vld [vmem:[#allocation7 + $0x118] sm:$0xff]
    %v117 = vld [vmem:[#allocation7 + $0x120] sm:$0xff]
    %v118 = vld [vmem:[#allocation7 + $0x128] sm:$0xff]
    %v119 = vld [vmem:[#allocation7 + $0x130] sm:$0xff]
    %v120 = vld [vmem:[#allocation7 + $0x138] sm:$0xff]
    %v121 = vld [vmem:[#allocation7 + $0x140] sm:$0xff]
    %v122 = vld [vmem:[#allocation7 + $0x148] sm:$0xff]
    %v123 = vld [vmem:[#allocation7 + $0x150] sm:$0xff]
    %v124 = vld [vmem:[#allocation7 + $0x158] sm:$0xff]
    %v125 = vld [vmem:[#allocation7 + $0x160] sm:$0xff]
    %v126 = vld [vmem:[#allocation7 + $0x168] sm:$0xff]
    %v127 = vld [vmem:[#allocation7 + $0x170] sm:$0xff]
    %v128 = vld [vmem:[#allocation7 + $0x178] sm:$0xff]
    %v129 = vld [vmem:[#allocation7 + $0x180] sm:$0xff]
    %v130 = vld [vmem:[#allocation7 + $0x188] sm:$0xff]
    %v131 = vld [vmem:[#allocation7 + $0x190] sm:$0xff]
    %v132 = vld [vmem:[#allocation7 + $0x198] sm:$0xff]
    %v133 = vld [vmem:[#allocation7 + $0x1a0] sm:$0xff]
    %v134 = vld [vmem:[#allocation7 + $0x1a8] sm:$0xff]
    %v135 = vld [vmem:[#allocation7 + $0x1b0] sm:$0xff]
    %v136 = vld [vmem:[#allocation7 + $0x1b8] sm:$0xff]
    %v137 = vld [vmem:[#allocation7 + $0x1c0] sm:$0xff]
    %v138 = vld [vmem:[#allocation7 + $0x1c8] sm:$0xff]
    %v139 = vld [vmem:[#allocation7 + $0x1d0] sm:$0xff]
    %v140 = vld [vmem:[#allocation7 + $0x1d8] sm:$0xff]
    %v141 = vld [vmem:[#allocation7 + $0x1e0] sm:$0xff]
    %v142 = vld [vmem:[#allocation7 + $0x1e8] sm:$0xff]
    %v143 = vld [vmem:[#allocation7 + $0x1f0] sm:$0xff]
    %v144 = vld [vmem:[#allocation7 + $0x1f8] sm:$0xff]
    %v145 = vld [vmem:[#allocation2] sm:$0xff]
    %v146 = vld [vmem:[#allocation3] sm:$0xff]
    %v147 = vld [vmem:[#allocation4] sm:$0xff]
    %v148 = vld [vmem:[#allocation4 + $0x8] sm:$0xff]
    %v149 = vld [vmem:[#allocation4 + $0x10] sm:$0xff]
    %v150 = vld [vmem:[#allocation4 + $0x18] sm:$0xff]
    %151 = vmatprep.subr.mxu0 %v82
    %152 = vmatpush1.msra.mxu0 %v81
    %153 = vmatprep.subr.mxu0 %v86
    %154 = vmatpush1.msra.mxu0 %v85
    %155 = vmatprep.subr.mxu0 %v90
    %156 = vmatpush1.msra.mxu0 %v89
    %157 = vmatprep.subr.mxu0 %v94
    %158 = vmatpush1.msra.mxu0 %v93
    %159 = vmatprep.subr.mxu0 %v98
    %160 = vmatpush1.msra.mxu0 %v97
    %161 = vmatprep.subr.mxu0 %v102
    %162 = vmatpush1.msra.mxu0 %v101
    %163 = vmatprep.subr.mxu0 %v106
    %164 = vmatpush1.msra.mxu0 %v105
    %165 = vmatprep.subr.mxu0 %v110
    %166 = vmatpush1.msra.mxu0 %v109
    %167 = vmatprep.subr.mxu0 %v114
    %168 = vmatpush1.msra.mxu0 %v113
    %169 = vmatprep.subr.mxu0 %v118
    %170 = vmatpush1.msra.mxu0 %v117
    %171 = vmatprep.subr.mxu0 %v122
    %172 = vmatpush1.msra.mxu0 %v121
    %173 = vmatprep.subr.mxu0 %v126
    %174 = vmatpush1.msra.mxu0 %v125
    %175 = vmatprep.subr.mxu0 %v130
    %176 = vmatpush1.msra.mxu0 %v129
    %177 = vmatprep.subr.mxu0 %v134
    %178 = vmatpush1.msra.mxu0 %v133
    %179 = vmatprep.subr.mxu0 %v138
    %180 = vmatpush1.msra.mxu0 %v137
    %181 = vmatprep.subr.mxu0 %v142
    %182 = vmatpush1.msra.mxu0 %v141
    %183 = vmatprep.subr.mxu0 0.0
    %184 = vmatpush1.msra.mxu0 0.0
    %185 = vmatprep.subr.mxu0 0.0
    %186 = vmatpush1.msra.mxu0 0.0
    %187 = vmatprep.subr.mxu0 0.0
    %188 = vmatpush1.msra.mxu0 0.0
    %189 = vmatprep.subr.mxu0 0.0
    %190 = vmatpush1.msra.mxu0 0.0
    %191 = vmatprep.subr.mxu0 0.0
    %192 = vmatpush1.msra.mxu0 0.0
    %193 = vmatprep.subr.mxu0 0.0
    %194 = vmatpush1.msra.mxu0 0.0
    %195 = vmatprep.subr.mxu0 0.0
    %196 = vmatpush1.msra.mxu0 0.0
    %197 = vmatprep.subr.mxu0 0.0
    %198 = vmatpush1.msra.mxu0 0.0
    %199 = vmatprep.subr.mxu0 0.0
    %200 = vmatpush1.msra.mxu0 0.0
    %201 = vmatprep.subr.mxu0 0.0
    %202 = vmatpush1.msra.mxu0 0.0
    %203 = vmatprep.subr.mxu0 0.0
    %204 = vmatpush1.msra.mxu0 0.0
    %205 = vmatprep.subr.mxu0 0.0
    %206 = vmatpush1.msra.mxu0 0.0
    %207 = vmatprep.subr.mxu0 0.0
    %208 = vmatpush1.msra.mxu0 0.0
    %209 = vmatprep.subr.mxu0 0.0
    %210 = vmatpush1.msra.mxu0 0.0
    %211 = vmatprep.subr.mxu0 0.0
    %212 = vmatpush1.msra.mxu0 0.0
    %213 = vmatprep.subr.mxu0 0.0
    %214 = vmatpush1.msra.mxu0 0.0
    %215 = vmatprep.mubr.f32.mxu0 0.0
    %216 = vmatmul.mubr.f32.gmra.mrb[0].mxu0 %v145
    %v217 = vpop.f32.mrb[0].mxu0
    %v218 = vadd.f32 0.0, %v217
    %v219 = vpop.f32.mrb[0].mxu0
    %v220 = vadd.f32 0.0, %v219
    %221 = vdwg.mxu0
    %222 = vmatprep.subr.mxu0 %v84
    %223 = vmatpush1.msra.mxu0 %v83
    %224 = vmatprep.subr.mxu0 %v88
    %225 = vmatpush1.msra.mxu0 %v87
    %226 = vmatprep.subr.mxu0 %v92
    %227 = vmatpush1.msra.mxu0 %v91
    %228 = vmatprep.subr.mxu0 %v96
    %229 = vmatpush1.msra.mxu0 %v95
    %230 = vmatprep.subr.mxu0 %v100
    %231 = vmatpush1.msra.mxu0 %v99
    %232 = vmatprep.subr.mxu0 %v104
    %233 = vmatpush1.msra.mxu0 %v103
    %234 = vmatprep.subr.mxu0 %v108
    %235 = vmatpush1.msra.mxu0 %v107
    %236 = vmatprep.subr.mxu0 %v112
    %237 = vmatpush1.msra.mxu0 %v111
    %238 = vmatprep.subr.mxu0 %v116
    %239 = vmatpush1.msra.mxu0 %v115
    %240 = vmatprep.subr.mxu0 %v120
    %241 = vmatpush1.msra.mxu0 %v119
    %242 = vmatprep.subr.mxu0 %v124
    %243 = vmatpush1.msra.mxu0 %v123
    %244 = vmatprep.subr.mxu0 %v128
    %245 = vmatpush1.msra.mxu0 %v127
    %246 = vmatprep.subr.mxu0 %v132
    %247 = vmatpush1.msra.mxu0 %v131
    %248 = vmatprep.subr.mxu0 %v136
    %249 = vmatpush1.msra.mxu0 %v135
    %250 = vmatprep.subr.mxu0 %v140
    %251 = vmatpush1.msra.mxu0 %v139
    %252 = vmatprep.subr.mxu0 %v144
    %253 = vmatpush1.msra.mxu0 %v143
    %254 = vmatprep.subr.mxu0 0.0
    %255 = vmatpush1.msra.mxu0 0.0
    %256 = vmatprep.subr.mxu0 0.0
    %257 = vmatpush1.msra.mxu0 0.0
    %258 = vmatprep.subr.mxu0 0.0
    %259 = vmatpush1.msra.mxu0 0.0
    %260 = vmatprep.subr.mxu0 0.0
    %261 = vmatpush1.msra.mxu0 0.0
    %262 = vmatprep.subr.mxu0 0.0
    %263 = vmatpush1.msra.mxu0 0.0
    %264 = vmatprep.subr.mxu0 0.0
    %265 = vmatpush1.msra.mxu0 0.0
    %266 = vmatprep.subr.mxu0 0.0
    %267 = vmatpush1.msra.mxu0 0.0
    %268 = vmatprep.subr.mxu0 0.0
    %269 = vmatpush1.msra.mxu0 0.0
    %270 = vmatprep.subr.mxu0 0.0
    %271 = vmatpush1.msra.mxu0 0.0
    %272 = vmatprep.subr.mxu0 0.0
    %273 = vmatpush1.msra.mxu0 0.0
    %274 = vmatprep.subr.mxu0 0.0
    %275 = vmatpush1.msra.mxu0 0.0
    %276 = vmatprep.subr.mxu0 0.0
    %277 = vmatpush1.msra.mxu0 0.0
    %278 = vmatprep.subr.mxu0 0.0
    %279 = vmatpush1.msra.mxu0 0.0
    %280 = vmatprep.subr.mxu0 0.0
    %281 = vmatpush1.msra.mxu0 0.0
    %282 = vmatprep.subr.mxu0 0.0
    %283 = vmatpush1.msra.mxu0 0.0
    %284 = vmatprep.subr.mxu0 0.0
    %285 = vmatpush1.msra.mxu0 0.0
    %286 = vmatprep.mubr.f32.mxu0 0.0
    %287 = vmatmul.mubr.f32.gmra.mrb[0].mxu0 %v145
    %v288 = vpop.f32.mrb[0].mxu0
    %v289 = vadd.f32 0.0, %v288
    %v290 = vpop.f32.mrb[0].mxu0
    %v291 = vadd.f32 0.0, %v290
    %292 = vdwg.mxu0
    %v293 = vadd.f32 %v147, %v218
    %v294 = vadd.f32 %v148, %v220
    %v295 = vadd.f32 %v149, %v289
    %v296 = vadd.f32 %v150, %v291
    %v297 = vxor.u32 %v293, 2147483648
    %v298 = vmul.f32 %v297, 1.442695
    %v299 = vpow.pop %v298
    %v300 = vadd.f32 %v299, 1.0
    %v301 = vrcp.pop %v300
    %v302 = vmul.f32 1.0, %v301
    %v303 = vxor.u32 %v294, 2147483648
    %v304 = vmul.f32 %v303, 1.442695
    %v305 = vpow.pop %v304
    %v306 = vadd.f32 %v305, 1.0
    %v307 = vrcp.pop %v306
    %v308 = vmul.f32 1.0, %v307
    %v309 = vtanh.pop %v295
    %v310 = vxor.u32 %v296, 2147483648
    %v311 = vmul.f32 %v310, 1.442695
    %v312 = vpow.pop %v311
    %v313 = vadd.f32 %v312, 1.0
    %v314 = vrcp.pop %v313
    %v315 = vmul.f32 1.0, %v314
    %v316 = vmul.f32 %v308, %v146
    %v317 = vmul.f32 %v302, %v309
    %v318 = vadd.f32 %v316, %v317
    %v319 = vtanh.pop %v318
    %v320 = vmul.f32 %v315, %v319
    %321 = vst [vmem:[#allocation12] sm:$0xff] %v320
    %s322 = scalar_lea.vmem [#allocation4], 32
    %v323 = vld [vmem:[%s322] sm:$0xff]
    %v324 = vld [vmem:[%s322 + $0x8] sm:$0xff]
    %v325 = vld [vmem:[%s322 + $0x10] sm:$0xff]
    %v326 = vld [vmem:[%s322 + $0x18] sm:$0xff]
    %327 = vmatprep.subr.mxu0 %v82
    %328 = vmatpush1.msra.mxu0 %v81
    %329 = vmatprep.subr.mxu0 %v86
    %330 = vmatpush1.msra.mxu0 %v85
    %331 = vmatprep.subr.mxu0 %v90
    %332 = vmatpush1.msra.mxu0 %v89
    %333 = vmatprep.subr.mxu0 %v94
    %334 = vmatpush1.msra.mxu0 %v93
    %335 = vmatprep.subr.mxu0 %v98
    %336 = vmatpush1.msra.mxu0 %v97
    %337 = vmatprep.subr.mxu0 %v102
    %338 = vmatpush1.msra.mxu0 %v101
    %339 = vmatprep.subr.mxu0 %v106
    %340 = vmatpush1.msra.mxu0 %v105
    %341 = vmatprep.subr.mxu0 %v110
    %342 = vmatpush1.msra.mxu0 %v109
    %343 = vmatprep.subr.mxu0 %v114
    %344 = vmatpush1.msra.mxu0 %v113
    %345 = vmatprep.subr.mxu0 %v118
    %346 = vmatpush1.msra.mxu0 %v117
    %347 = vmatprep.subr.mxu0 %v122
    %348 = vmatpush1.msra.mxu0 %v121
    %349 = vmatprep.subr.mxu0 %v126
    %350 = vmatpush1.msra.mxu0 %v125
    %351 = vmatprep.subr.mxu0 %v130
    %352 = vmatpush1.msra.mxu0 %v129
    %353 = vmatprep.subr.mxu0 %v134
    %354 = vmatpush1.msra.mxu0 %v133
    %355 = vmatprep.subr.mxu0 %v138
    %356 = vmatpush1.msra.mxu0 %v137
    %357 = vmatprep.subr.mxu0 %v142
    %358 = vmatpush1.msra.mxu0 %v141
    %359 = vmatprep.subr.mxu0 0.0
    %360 = vmatpush1.msra.mxu0 0.0
    %361 = vmatprep.subr.mxu0 0.0
    %362 = vmatpush1.msra.mxu0 0.0
    %363 = vmatprep.subr.mxu0 0.0
    %364 = vmatpush1.msra.mxu0 0.0
    %365 = vmatprep.subr.mxu0 0.0
    %366 = vmatpush1.msra.mxu0 0.0
    %367 = vmatprep.subr.mxu0 0.0
    %368 = vmatpush1.msra.mxu0 0.0
    %369 = vmatprep.subr.mxu0 0.0
    %370 = vmatpush1.msra.mxu0 0.0
    %371 = vmatprep.subr.mxu0 0.0
    %372 = vmatpush1.msra.mxu0 0.0
    %373 = vmatprep.subr.mxu0 0.0
    %374 = vmatpush1.msra.mxu0 0.0
    %375 = vmatprep.subr.mxu0 0.0
    %376 = vmatpush1.msra.mxu0 0.0
    %377 = vmatprep.subr.mxu0 0.0
    %378 = vmatpush1.msra.mxu0 0.0
    %379 = vmatprep.subr.mxu0 0.0
    %380 = vmatpush1.msra.mxu0 0.0
    %381 = vmatprep.subr.mxu0 0.0
    %382 = vmatpush1.msra.mxu0 0.0
    %383 = vmatprep.subr.mxu0 0.0
    %384 = vmatpush1.msra.mxu0 0.0
    %385 = vmatprep.subr.mxu0 0.0
    %386 = vmatpush1.msra.mxu0 0.0
    %387 = vmatprep.subr.mxu0 0.0
    %388 = vmatpush1.msra.mxu0 0.0
    %389 = vmatprep.subr.mxu0 0.0
    %390 = vmatpush1.msra.mxu0 0.0
    %391 = vmatprep.mubr.f32.mxu0 0.0
    %392 = vmatmul.mubr.f32.gmra.mrb[0].mxu0 %v320
    %v393 = vpop.f32.mrb[0].mxu0
    %v394 = vadd.f32 0.0, %v393
    %v395 = vpop.f32.mrb[0].mxu0
    %v396 = vadd.f32 0.0, %v395
    %397 = vdwg.mxu0
    %398 = vmatprep.subr.mxu0 %v84
    %399 = vmatpush1.msra.mxu0 %v83
    %400 = vmatprep.subr.mxu0 %v88
    %401 = vmatpush1.msra.mxu0 %v87
    %402 = vmatprep.subr.mxu0 %v92
    %403 = vmatpush1.msra.mxu0 %v91
    %404 = vmatprep.subr.mxu0 %v96
    %405 = vmatpush1.msra.mxu0 %v95
    %406 = vmatprep.subr.mxu0 %v100
    %407 = vmatpush1.msra.mxu0 %v99
    %408 = vmatprep.subr.mxu0 %v104
    %409 = vmatpush1.msra.mxu0 %v103
    %410 = vmatprep.subr.mxu0 %v108
    %411 = vmatpush1.msra.mxu0 %v107
    %412 = vmatprep.subr.mxu0 %v112
    %413 = vmatpush1.msra.mxu0 %v111
    %414 = vmatprep.subr.mxu0 %v116
    %415 = vmatpush1.msra.mxu0 %v115
    %416 = vmatprep.subr.mxu0 %v120
    %417 = vmatpush1.msra.mxu0 %v119
    %418 = vmatprep.subr.mxu0 %v124
    %419 = vmatpush1.msra.mxu0 %v123
    %420 = vmatprep.subr.mxu0 %v128
    %421 = vmatpush1.msra.mxu0 %v127
    %422 = vmatprep.subr.mxu0 %v132
    %423 = vmatpush1.msra.mxu0 %v131
    %424 = vmatprep.subr.mxu0 %v136
    %425 = vmatpush1.msra.mxu0 %v135
    %426 = vmatprep.subr.mxu0 %v140
    %427 = vmatpush1.msra.mxu0 %v139
    %428 = vmatprep.subr.mxu0 %v144
    %429 = vmatpush1.msra.mxu0 %v143
    %430 = vmatprep.subr.mxu0 0.0
    %431 = vmatpush1.msra.mxu0 0.0
    %432 = vmatprep.subr.mxu0 0.0
    %433 = vmatpush1.msra.mxu0 0.0
    %434 = vmatprep.subr.mxu0 0.0
    %435 = vmatpush1.msra.mxu0 0.0
    %436 = vmatprep.subr.mxu0 0.0
    %437 = vmatpush1.msra.mxu0 0.0
    %438 = vmatprep.subr.mxu0 0.0
    %439 = vmatpush1.msra.mxu0 0.0
    %440 = vmatprep.subr.mxu0 0.0
    %441 = vmatpush1.msra.mxu0 0.0
    %442 = vmatprep.subr.mxu0 0.0
    %443 = vmatpush1.msra.mxu0 0.0
    %444 = vmatprep.subr.mxu0 0.0
    %445 = vmatpush1.msra.mxu0 0.0
    %446 = vmatprep.subr.mxu0 0.0
    %447 = vmatpush1.msra.mxu0 0.0
    %448 = vmatprep.subr.mxu0 0.0
    %449 = vmatpush1.msra.mxu0 0.0
    %450 = vmatprep.subr.mxu0 0.0
    %451 = vmatpush1.msra.mxu0 0.0
    %452 = vmatprep.subr.mxu0 0.0
    %453 = vmatpush1.msra.mxu0 0.0
    %454 = vmatprep.subr.mxu0 0.0
    %455 = vmatpush1.msra.mxu0 0.0
    %456 = vmatprep.subr.mxu0 0.0
    %457 = vmatpush1.msra.mxu0 0.0
    %458 = vmatprep.subr.mxu0 0.0
    %459 = vmatpush1.msra.mxu0 0.0
    %460 = vmatprep.subr.mxu0 0.0
    %461 = vmatpush1.msra.mxu0 0.0
    %462 = vmatprep.mubr.f32.mxu0 0.0
    %463 = vmatmul.mubr.f32.gmra.mrb[0].mxu0 %v320
    %v464 = vpop.f32.mrb[0].mxu0
    %v465 = vadd.f32 0.0, %v464
    %v466 = vpop.f32.mrb[0].mxu0
    %v467 = vadd.f32 0.0, %v466
    %468 = vdwg.mxu0
    %v469 = vadd.f32 %v323, %v394
    %v470 = vadd.f32 %v324, %v396
    %v471 = vadd.f32 %v325, %v465
    %v472 = vadd.f32 %v326, %v467
    %v473 = vxor.u32 %v469, 2147483648
    %v474 = vmul.f32 %v473, 1.442695
    %v475 = vpow.pop %v474
    %v476 = vadd.f32 %v475, 1.0
    %v477 = vrcp.pop %v476
    %v478 = vmul.f32 1.0, %v477
    %v479 = vxor.u32 %v470, 2147483648
    %v480 = vmul.f32 %v479, 1.442695
    %v481 = vpow.pop %v480
    %v482 = vadd.f32 %v481, 1.0
    %v483 = vrcp.pop %v482
    %v484 = vmul.f32 1.0, %v483
    %v485 = vtanh.pop %v471
    %v486 = vxor.u32 %v472, 2147483648
    %v487 = vmul.f32 %v486, 1.442695
    %v488 = vpow.pop %v487
    %v489 = vadd.f32 %v488, 1.0
    %v490 = vrcp.pop %v489
    %v491 = vmul.f32 1.0, %v490
    %v492 = vmul.f32 %v484, %v318
    %v493 = vmul.f32 %v478, %v485
    %v494 = vadd.f32 %v492, %v493
    %v495 = vtanh.pop %v494
    %v496 = vmul.f32 %v491, %v495
    %s497 = scalar_lea.vmem [#allocation12], 8
    %498 = vst [vmem:[%s497] sm:$0xff] %v496
    %s499 = scalar_lea.vmem [#allocation4], 64
    %v500 = vld [vmem:[%s499] sm:$0xff]
    %v501 = vld [vmem:[%s499 + $0x8] sm:$0xff]
    %v502 = vld [vmem:[%s499 + $0x10] sm:$0xff]
    %v503 = vld [vmem:[%s499 + $0x18] sm:$0xff]
    %504 = vmatprep.subr.mxu0 %v82
    %505 = vmatpush1.msra.mxu0 %v81
    %506 = vmatprep.subr.mxu0 %v86
    %507 = vmatpush1.msra.mxu0 %v85
    %508 = vmatprep.subr.mxu0 %v90
    %509 = vmatpush1.msra.mxu0 %v89
    %510 = vmatprep.subr.mxu0 %v94
    %511 = vmatpush1.msra.mxu0 %v93
    %512 = vmatprep.subr.mxu0 %v98
    %513 = vmatpush1.msra.mxu0 %v97
    %514 = vmatprep.subr.mxu0 %v102
    %515 = vmatpush1.msra.mxu0 %v101
    %516 = vmatprep.subr.mxu0 %v106
    %517 = vmatpush1.msra.mxu0 %v105
    %518 = vmatprep.subr.mxu0 %v110
    %519 = vmatpush1.msra.mxu0 %v109
    %520 = vmatprep.subr.mxu0 %v114
    %521 = vmatpush1.msra.mxu0 %v113
    %522 = vmatprep.subr.mxu0 %v118
    %523 = vmatpush1.msra.mxu0 %v117
    %524 = vmatprep.subr.mxu0 %v122
    %525 = vmatpush1.msra.mxu0 %v121
    %526 = vmatprep.subr.mxu0 %v126
    %527 = vmatpush1.msra.mxu0 %v125
    %528 = vmatprep.subr.mxu0 %v130
    %529 = vmatpush1.msra.mxu0 %v129
    %530 = vmatprep.subr.mxu0 %v134
    %531 = vmatpush1.msra.mxu0 %v133
    %532 = vmatprep.subr.mxu0 %v138
    %533 = vmatpush1.msra.mxu0 %v137
    %534 = vmatprep.subr.mxu0 %v142
    %535 = vmatpush1.msra.mxu0 %v141
    %536 = vmatprep.subr.mxu0 0.0
    %537 = vmatpush1.msra.mxu0 0.0
    %538 = vmatprep.subr.mxu0 0.0
    %539 = vmatpush1.msra.mxu0 0.0
    %540 = vmatprep.subr.mxu0 0.0
    %541 = vmatpush1.msra.mxu0 0.0
    %542 = vmatprep.subr.mxu0 0.0
    %543 = vmatpush1.msra.mxu0 0.0
    %544 = vmatprep.subr.mxu0 0.0
    %545 = vmatpush1.msra.mxu0 0.0
    %546 = vmatprep.subr.mxu0 0.0
    %547 = vmatpush1.msra.mxu0 0.0
    %548 = vmatprep.subr.mxu0 0.0
    %549 = vmatpush1.msra.mxu0 0.0
    %550 = vmatprep.subr.mxu0 0.0
    %551 = vmatpush1.msra.mxu0 0.0
    %552 = vmatprep.subr.mxu0 0.0
    %553 = vmatpush1.msra.mxu0 0.0
    %554 = vmatprep.subr.mxu0 0.0
    %555 = vmatpush1.msra.mxu0 0.0
    %556 = vmatprep.subr.mxu0 0.0
    %557 = vmatpush1.msra.mxu0 0.0
    %558 = vmatprep.subr.mxu0 0.0
    %559 = vmatpush1.msra.mxu0 0.0
    %560 = vmatprep.subr.mxu0 0.0
    %561 = vmatpush1.msra.mxu0 0.0
    %562 = vmatprep.subr.mxu0 0.0
    %563 = vmatpush1.msra.mxu0 0.0
    %564 = vmatprep.subr.mxu0 0.0
    %565 = vmatpush1.msra.mxu0 0.0
    %566 = vmatprep.subr.mxu0 0.0
    %567 = vmatpush1.msra.mxu0 0.0
    %568 = vmatprep.mubr.f32.mxu0 0.0
    %569 = vmatmul.mubr.f32.gmra.mrb[0].mxu0 %v496
    %v570 = vpop.f32.mrb[0].mxu0
    %v571 = vadd.f32 0.0, %v570
    %v572 = vpop.f32.mrb[0].mxu0
    %v573 = vadd.f32 0.0, %v572
    %574 = vdwg.mxu0
    %575 = vmatprep.subr.mxu0 %v84
    %576 = vmatpush1.msra.mxu0 %v83
    %577 = vmatprep.subr.mxu0 %v88
    %578 = vmatpush1.msra.mxu0 %v87
    %579 = vmatprep.subr.mxu0 %v92
    %580 = vmatpush1.msra.mxu0 %v91
    %581 = vmatprep.subr.mxu0 %v96
    %582 = vmatpush1.msra.mxu0 %v95
    %583 = vmatprep.subr.mxu0 %v100
    %584 = vmatpush1.msra.mxu0 %v99
    %585 = vmatprep.subr.mxu0 %v104
    %586 = vmatpush1.msra.mxu0 %v103
    %587 = vmatprep.subr.mxu0 %v108
    %588 = vmatpush1.msra.mxu0 %v107
    %589 = vmatprep.subr.mxu0 %v112
    %590 = vmatpush1.msra.mxu0 %v111
    %591 = vmatprep.subr.mxu0 %v116
    %592 = vmatpush1.msra.mxu0 %v115
    %593 = vmatprep.subr.mxu0 %v120
    %594 = vmatpush1.msra.mxu0 %v119
    %595 = vmatprep.subr.mxu0 %v124
    %596 = vmatpush1.msra.mxu0 %v123
    %597 = vmatprep.subr.mxu0 %v128
    %598 = vmatpush1.msra.mxu0 %v127
    %599 = vmatprep.subr.mxu0 %v132
    %600 = vmatpush1.msra.mxu0 %v131
    %601 = vmatprep.subr.mxu0 %v136
    %602 = vmatpush1.msra.mxu0 %v135
    %603 = vmatprep.subr.mxu0 %v140
    %604 = vmatpush1.msra.mxu0 %v139
    %605 = vmatprep.subr.mxu0 %v144
    %606 = vmatpush1.msra.mxu0 %v143
    %607 = vmatprep.subr.mxu0 0.0
    %608 = vmatpush1.msra.mxu0 0.0
    %609 = vmatprep.subr.mxu0 0.0
    %610 = vmatpush1.msra.mxu0 0.0
    %611 = vmatprep.subr.mxu0 0.0
    %612 = vmatpush1.msra.mxu0 0.0
    %613 = vmatprep.subr.mxu0 0.0
    %614 = vmatpush1.msra.mxu0 0.0
    %615 = vmatprep.subr.mxu0 0.0
    %616 = vmatpush1.msra.mxu0 0.0
    %617 = vmatprep.subr.mxu0 0.0
    %618 = vmatpush1.msra.mxu0 0.0
    %619 = vmatprep.subr.mxu0 0.0
    %620 = vmatpush1.msra.mxu0 0.0
    %621 = vmatprep.subr.mxu0 0.0
    %622 = vmatpush1.msra.mxu0 0.0
    %623 = vmatprep.subr.mxu0 0.0
    %624 = vmatpush1.msra.mxu0 0.0
    %625 = vmatprep.subr.mxu0 0.0
    %626 = vmatpush1.msra.mxu0 0.0
    %627 = vmatprep.subr.mxu0 0.0
    %628 = vmatpush1.msra.mxu0 0.0
    %629 = vmatprep.subr.mxu0 0.0
    %630 = vmatpush1.msra.mxu0 0.0
    %631 = vmatprep.subr.mxu0 0.0
    %632 = vmatpush1.msra.mxu0 0.0
    %633 = vmatprep.subr.mxu0 0.0
    %634 = vmatpush1.msra.mxu0 0.0
    %635 = vmatprep.subr.mxu0 0.0
    %636 = vmatpush1.msra.mxu0 0.0
    %637 = vmatprep.subr.mxu0 0.0
    %638 = vmatpush1.msra.mxu0 0.0
    %639 = vmatprep.mubr.f32.mxu0 0.0
    %640 = vmatmul.mubr.f32.gmra.mrb[0].mxu0 %v496
    %v641 = vpop.f32.mrb[0].mxu0
    %v642 = vadd.f32 0.0, %v641
    %v643 = vpop.f32.mrb[0].mxu0
    %v644 = vadd.f32 0.0, %v643
    %645 = vdwg.mxu0
    %v646 = vadd.f32 %v500, %v571
    %v647 = vadd.f32 %v501, %v573
    %v648 = vadd.f32 %v502, %v642
    %v649 = vadd.f32 %v503, %v644
    %v650 = vxor.u32 %v646, 2147483648
    %v651 = vmul.f32 %v650, 1.442695
    %v652 = vpow.pop %v651
    %v653 = vadd.f32 %v652, 1.0
    %v654 = vrcp.pop %v653
    %v655 = vmul.f32 1.0, %v654
    %v656 = vxor.u32 %v647, 2147483648
    %v657 = vmul.f32 %v656, 1.442695
    %v658 = vpow.pop %v657
    %v659 = vadd.f32 %v658, 1.0
    %v660 = vrcp.pop %v659
    %v661 = vmul.f32 1.0, %v660
    %v662 = vtanh.pop %v648
    %v663 = vxor.u32 %v649, 2147483648
    %v664 = vmul.f32 %v663, 1.442695
    %v665 = vpow.pop %v664
    %v666 = vadd.f32 %v665, 1.0
    %v667 = vrcp.pop %v666
    %v668 = vmul.f32 1.0, %v667
    %v669 = vmul.f32 %v661, %v494
    %v670 = vmul.f32 %v655, %v662
    %v671 = vadd.f32 %v669, %v670
    %v672 = vtanh.pop %v671
    %v673 = vmul.f32 %v668, %v672
    %s674 = scalar_lea.vmem [#allocation12], 16
    %675 = vst [vmem:[%s674] sm:$0xff] %v673
    %s676 = scalar_lea.vmem [#allocation4], 96
    %v677 = vld [vmem:[%s676] sm:$0xff]
    %v678 = vld [vmem:[%s676 + $0x8] sm:$0xff]
    %v679 = vld [vmem:[%s676 + $0x10] sm:$0xff]
    %v680 = vld [vmem:[%s676 + $0x18] sm:$0xff]
    %681 = vmatprep.subr.mxu0 %v82
    %682 = vmatpush1.msra.mxu0 %v81
    %683 = vmatprep.subr.mxu0 %v86
    %684 = vmatpush1.msra.mxu0 %v85
    %685 = vmatprep.subr.mxu0 %v90
    %686 = vmatpush1.msra.mxu0 %v89
    %687 = vmatprep.subr.mxu0 %v94
    %688 = vmatpush1.msra.mxu0 %v93
    %689 = vmatprep.subr.mxu0 %v98
    %690 = vmatpush1.msra.mxu0 %v97
    %691 = vmatprep.subr.mxu0 %v102
    %692 = vmatpush1.msra.mxu0 %v101
    %693 = vmatprep.subr.mxu0 %v106
    %694 = vmatpush1.msra.mxu0 %v105
    %695 = vmatprep.subr.mxu0 %v110
    %696 = vmatpush1.msra.mxu0 %v109
    %697 = vmatprep.subr.mxu0 %v114
    %698 = vmatpush1.msra.mxu0 %v113
    %699 = vmatprep.subr.mxu0 %v118
    %700 = vmatpush1.msra.mxu0 %v117
    %701 = vmatprep.subr.mxu0 %v122
    %702 = vmatpush1.msra.mxu0 %v121
    %703 = vmatprep.subr.mxu0 %v126
    %704 = vmatpush1.msra.mxu0 %v125
    %705 = vmatprep.subr.mxu0 %v130
    %706 = vmatpush1.msra.mxu0 %v129
    %707 = vmatprep.subr.mxu0 %v134
    %708 = vmatpush1.msra.mxu0 %v133
    %709 = vmatprep.subr.mxu0 %v138
    %710 = vmatpush1.msra.mxu0 %v137
    %711 = vmatprep.subr.mxu0 %v142
    %712 = vmatpush1.msra.mxu0 %v141
    %713 = vmatprep.subr.mxu0 0.0
    %714 = vmatpush1.msra.mxu0 0.0
    %715 = vmatprep.subr.mxu0 0.0
    %716 = vmatpush1.msra.mxu0 0.0
    %717 = vmatprep.subr.mxu0 0.0
    %718 = vmatpush1.msra.mxu0 0.0
    %719 = vmatprep.subr.mxu0 0.0
    %720 = vmatpush1.msra.mxu0 0.0
    %721 = vmatprep.subr.mxu0 0.0
    %722 = vmatpush1.msra.mxu0 0.0
    %723 = vmatprep.subr.mxu0 0.0
    %724 = vmatpush1.msra.mxu0 0.0
    %725 = vmatprep.subr.mxu0 0.0
    %726 = vmatpush1.msra.mxu0 0.0
    %727 = vmatprep.subr.mxu0 0.0
    %728 = vmatpush1.msra.mxu0 0.0
    %729 = vmatprep.subr.mxu0 0.0
    %730 = vmatpush1.msra.mxu0 0.0
    %731 = vmatprep.subr.mxu0 0.0
    %732 = vmatpush1.msra.mxu0 0.0
    %733 = vmatprep.subr.mxu0 0.0
    %734 = vmatpush1.msra.mxu0 0.0
    %735 = vmatprep.subr.mxu0 0.0
    %736 = vmatpush1.msra.mxu0 0.0
    %737 = vmatprep.subr.mxu0 0.0
    %738 = vmatpush1.msra.mxu0 0.0
    %739 = vmatprep.subr.mxu0 0.0
    %740 = vmatpush1.msra.mxu0 0.0
    %741 = vmatprep.subr.mxu0 0.0
    %742 = vmatpush1.msra.mxu0 0.0
    %743 = vmatprep.subr.mxu0 0.0
    %744 = vmatpush1.msra.mxu0 0.0
    %745 = vmatprep.mubr.f32.mxu0 0.0
    %746 = vmatmul.mubr.f32.gmra.mrb[0].mxu0 %v673
    %v747 = vpop.f32.mrb[0].mxu0
    %v748 = vadd.f32 0.0, %v747
    %v749 = vpop.f32.mrb[0].mxu0
    %v750 = vadd.f32 0.0, %v749
    %751 = vdwg.mxu0
    %752 = vmatprep.subr.mxu0 %v84
    %753 = vmatpush1.msra.mxu0 %v83
    %754 = vmatprep.subr.mxu0 %v88
    %755 = vmatpush1.msra.mxu0 %v87
    %756 = vmatprep.subr.mxu0 %v92
    %757 = vmatpush1.msra.mxu0 %v91
    %758 = vmatprep.subr.mxu0 %v96
    %759 = vmatpush1.msra.mxu0 %v95
    %760 = vmatprep.subr.mxu0 %v100
    %761 = vmatpush1.msra.mxu0 %v99
    %762 = vmatprep.subr.mxu0 %v104
    %763 = vmatpush1.msra.mxu0 %v103
    %764 = vmatprep.subr.mxu0 %v108
    %765 = vmatpush1.msra.mxu0 %v107
    %766 = vmatprep.subr.mxu0 %v112
    %767 = vmatpush1.msra.mxu0 %v111
    %768 = vmatprep.subr.mxu0 %v116
    %769 = vmatpush1.msra.mxu0 %v115
    %770 = vmatprep.subr.mxu0 %v120
    %771 = vmatpush1.msra.mxu0 %v119
    %772 = vmatprep.subr.mxu0 %v124
    %773 = vmatpush1.msra.mxu0 %v123
    %774 = vmatprep.subr.mxu0 %v128
    %775 = vmatpush1.msra.mxu0 %v127
    %776 = vmatprep.subr.mxu0 %v132
    %777 = vmatpush1.msra.mxu0 %v131
    %778 = vmatprep.subr.mxu0 %v136
    %779 = vmatpush1.msra.mxu0 %v135
    %780 = vmatprep.subr.mxu0 %v140
    %781 = vmatpush1.msra.mxu0 %v139
    %782 = vmatprep.subr.mxu0 %v144
    %783 = vmatpush1.msra.mxu0 %v143
    %784 = vmatprep.subr.mxu0 0.0
    %785 = vmatpush1.msra.mxu0 0.0
    %786 = vmatprep.subr.mxu0 0.0
    %787 = vmatpush1.msra.mxu0 0.0
    %788 = vmatprep.subr.mxu0 0.0
    %789 = vmatpush1.msra.mxu0 0.0
    %790 = vmatprep.subr.mxu0 0.0
    %791 = vmatpush1.msra.mxu0 0.0
    %792 = vmatprep.subr.mxu0 0.0
    %793 = vmatpush1.msra.mxu0 0.0
    %794 = vmatprep.subr.mxu0 0.0
    %795 = vmatpush1.msra.mxu0 0.0
    %796 = vmatprep.subr.mxu0 0.0
    %797 = vmatpush1.msra.mxu0 0.0
    %798 = vmatprep.subr.mxu0 0.0
    %799 = vmatpush1.msra.mxu0 0.0
    %800 = vmatprep.subr.mxu0 0.0
    %801 = vmatpush1.msra.mxu0 0.0
    %802 = vmatprep.subr.mxu0 0.0
    %803 = vmatpush1.msra.mxu0 0.0
    %804 = vmatprep.subr.mxu0 0.0
    %805 = vmatpush1.msra.mxu0 0.0
    %806 = vmatprep.subr.mxu0 0.0
    %807 = vmatpush1.msra.mxu0 0.0
    %808 = vmatprep.subr.mxu0 0.0
    %809 = vmatpush1.msra.mxu0 0.0
    %810 = vmatprep.subr.mxu0 0.0
    %811 = vmatpush1.msra.mxu0 0.0
    %812 = vmatprep.subr.mxu0 0.0
    %813 = vmatpush1.msra.mxu0 0.0
    %814 = vmatprep.subr.mxu0 0.0
    %815 = vmatpush1.msra.mxu0 0.0
    %816 = vmatprep.mubr.f32.mxu0 0.0
    %817 = vmatmul.mubr.f32.gmra.mrb[0].mxu0 %v673
    %v818 = vpop.f32.mrb[0].mxu0
    %v819 = vadd.f32 0.0, %v818
    %v820 = vpop.f32.mrb[0].mxu0
    %v821 = vadd.f32 0.0, %v820
    %822 = vdwg.mxu0
    %v823 = vadd.f32 %v677, %v748
    %v824 = vadd.f32 %v678, %v750
    %v825 = vadd.f32 %v679, %v819
    %v826 = vadd.f32 %v680, %v821
    %v827 = vxor.u32 %v823, 2147483648
    %v828 = vmul.f32 %v827, 1.442695
    %v829 = vpow.pop %v828
    %v830 = vadd.f32 %v829, 1.0
    %v831 = vrcp.pop %v830
    %v832 = vmul.f32 1.0, %v831
    %v833 = vxor.u32 %v824, 2147483648
    %v834 = vmul.f32 %v833, 1.442695
    %v835 = vpow.pop %v834
    %v836 = vadd.f32 %v835, 1.0
    %v837 = vrcp.pop %v836
    %v838 = vmul.f32 1.0, %v837
    %v839 = vtanh.pop %v825
    %v840 = vxor.u32 %v826, 2147483648
    %v841 = vmul.f32 %v840, 1.442695
    %v842 = vpow.pop %v841
    %v843 = vadd.f32 %v842, 1.0
    %v844 = vrcp.pop %v843
    %v845 = vmul.f32 1.0, %v844
    %v846 = vmul.f32 %v838, %v671
    %v847 = vmul.f32 %v832, %v839
    %v848 = vadd.f32 %v846, %v847
    %v849 = vtanh.pop %v848
    %v850 = vmul.f32 %v845, %v849
    %s851 = scalar_lea.vmem [#allocation12], 24
    %852 = vst [vmem:[%s851] sm:$0xff] %v850
    %s853 = scalar_lea.vmem [#allocation4], 128
    %v854 = vld [vmem:[%s853] sm:$0xff]
    %v855 = vld [vmem:[%s853 + $0x8] sm:$0xff]
    %v856 = vld [vmem:[%s853 + $0x10] sm:$0xff]
    %v857 = vld [vmem:[%s853 + $0x18] sm:$0xff]
    %858 = vmatprep.subr.mxu0 %v82
    %859 = vmatpush1.msra.mxu0 %v81
    %860 = vmatprep.subr.mxu0 %v86
    %861 = vmatpush1.msra.mxu0 %v85
    %862 = vmatprep.subr.mxu0 %v90
    %863 = vmatpush1.msra.mxu0 %v89
    %864 = vmatprep.subr.mxu0 %v94
    %865 = vmatpush1.msra.mxu0 %v93
    %866 = vmatprep.subr.mxu0 %v98
    %867 = vmatpush1.msra.mxu0 %v97
    %868 = vmatprep.subr.mxu0 %v102
    %869 = vmatpush1.msra.mxu0 %v101
    %870 = vmatprep.subr.mxu0 %v106
    %871 = vmatpush1.msra.mxu0 %v105
    %872 = vmatprep.subr.mxu0 %v110
    %873 = vmatpush1.msra.mxu0 %v109
    %874 = vmatprep.subr.mxu0 %v114
    %875 = vmatpush1.msra.mxu0 %v113
    %876 = vmatprep.subr.mxu0 %v118
    %877 = vmatpush1.msra.mxu0 %v117
    %878 = vmatprep.subr.mxu0 %v122
    %879 = vmatpush1.msra.mxu0 %v121
    %880 = vmatprep.subr.mxu0 %v126
    %881 = vmatpush1.msra.mxu0 %v125
    %882 = vmatprep.subr.mxu0 %v130
    %883 = vmatpush1.msra.mxu0 %v129
    %884 = vmatprep.subr.mxu0 %v134
    %885 = vmatpush1.msra.mxu0 %v133
    %886 = vmatprep.subr.mxu0 %v138
    %887 = vmatpush1.msra.mxu0 %v137
    %888 = vmatprep.subr.mxu0 %v142
    %889 = vmatpush1.msra.mxu0 %v141
    %890 = vmatprep.subr.mxu0 0.0
    %891 = vmatpush1.msra.mxu0 0.0
    %892 = vmatprep.subr.mxu0 0.0
    %893 = vmatpush1.msra.mxu0 0.0
    %894 = vmatprep.subr.mxu0 0.0
    %895 = vmatpush1.msra.mxu0 0.0
    %896 = vmatprep.subr.mxu0 0.0
    %897 = vmatpush1.msra.mxu0 0.0
    %898 = vmatprep.subr.mxu0 0.0
    %899 = vmatpush1.msra.mxu0 0.0
    %900 = vmatprep.subr.mxu0 0.0
    %901 = vmatpush1.msra.mxu0 0.0
    %902 = vmatprep.subr.mxu0 0.0
    %903 = vmatpush1.msra.mxu0 0.0
    %904 = vmatprep.subr.mxu0 0.0
    %905 = vmatpush1.msra.mxu0 0.0
    %906 = vmatprep.subr.mxu0 0.0
    %907 = vmatpush1.msra.mxu0 0.0
    %908 = vmatprep.subr.mxu0 0.0
    %909 = vmatpush1.msra.mxu0 0.0
    %910 = vmatprep.subr.mxu0 0.0
    %911 = vmatpush1.msra.mxu0 0.0
    %912 = vmatprep.subr.mxu0 0.0
    %913 = vmatpush1.msra.mxu0 0.0
    %914 = vmatprep.subr.mxu0 0.0
    %915 = vmatpush1.msra.mxu0 0.0
    %916 = vmatprep.subr.mxu0 0.0
    %917 = vmatpush1.msra.mxu0 0.0
    %918 = vmatprep.subr.mxu0 0.0
    %919 = vmatpush1.msra.mxu0 0.0
    %920 = vmatprep.subr.mxu0 0.0
    %921 = vmatpush1.msra.mxu0 0.0
    %922 = vmatprep.mubr.f32.mxu0 0.0
    %923 = vmatmul.mubr.f32.gmra.mrb[0].mxu0 %v850
    %v924 = vpop.f32.mrb[0].mxu0
    %v925 = vadd.f32 0.0, %v924
    %v926 = vpop.f32.mrb[0].mxu0
    %v927 = vadd.f32 0.0, %v926
    %928 = vdwg.mxu0
    %929 = vmatprep.subr.mxu0 %v84
    %930 = vmatpush1.msra.mxu0 %v83
    %931 = vmatprep.subr.mxu0 %v88
    %932 = vmatpush1.msra.mxu0 %v87
    %933 = vmatprep.subr.mxu0 %v92
    %934 = vmatpush1.msra.mxu0 %v91
    %935 = vmatprep.subr.mxu0 %v96
    %936 = vmatpush1.msra.mxu0 %v95
    %937 = vmatprep.subr.mxu0 %v100
    %938 = vmatpush1.msra.mxu0 %v99
    %939 = vmatprep.subr.mxu0 %v104
    %940 = vmatpush1.msra.mxu0 %v103
    %941 = vmatprep.subr.mxu0 %v108
    %942 = vmatpush1.msra.mxu0 %v107
    %943 = vmatprep.subr.mxu0 %v112
    %944 = vmatpush1.msra.mxu0 %v111
    %945 = vmatprep.subr.mxu0 %v116
    %946 = vmatpush1.msra.mxu0 %v115
    %947 = vmatprep.subr.mxu0 %v120
    %948 = vmatpush1.msra.mxu0 %v119
    %949 = vmatprep.subr.mxu0 %v124
    %950 = vmatpush1.msra.mxu0 %v123
    %951 = vmatprep.subr.mxu0 %v128
    %952 = vmatpush1.msra.mxu0 %v127
    %953 = vmatprep.subr.mxu0 %v132
    %954 = vmatpush1.msra.mxu0 %v131
    %955 = vmatprep.subr.mxu0 %v136
    %956 = vmatpush1.msra.mxu0 %v135
    %957 = vmatprep.subr.mxu0 %v140
    %958 = vmatpush1.msra.mxu0 %v139
    %959 = vmatprep.subr.mxu0 %v144
    %960 = vmatpush1.msra.mxu0 %v143
    %961 = vmatprep.subr.mxu0 0.0
    %962 = vmatpush1.msra.mxu0 0.0
    %963 = vmatprep.subr.mxu0 0.0
    %964 = vmatpush1.msra.mxu0 0.0
    %965 = vmatprep.subr.mxu0 0.0
    %966 = vmatpush1.msra.mxu0 0.0
    %967 = vmatprep.subr.mxu0 0.0
    %968 = vmatpush1.msra.mxu0 0.0
    %969 = vmatprep.subr.mxu0 0.0
    %970 = vmatpush1.msra.mxu0 0.0
    %971 = vmatprep.subr.mxu0 0.0
    %972 = vmatpush1.msra.mxu0 0.0
    %973 = vmatprep.subr.mxu0 0.0
    %974 = vmatpush1.msra.mxu0 0.0
    %975 = vmatprep.subr.mxu0 0.0
    %976 = vmatpush1.msra.mxu0 0.0
    %977 = vmatprep.subr.mxu0 0.0
    %978 = vmatpush1.msra.mxu0 0.0
    %979 = vmatprep.subr.mxu0 0.0
    %980 = vmatpush1.msra.mxu0 0.0
    %981 = vmatprep.subr.mxu0 0.0
    %982 = vmatpush1.msra.mxu0 0.0
    %983 = vmatprep.subr.mxu0 0.0
    %984 = vmatpush1.msra.mxu0 0.0
    %985 = vmatprep.subr.mxu0 0.0
    %986 = vmatpush1.msra.mxu0 0.0
    %987 = vmatprep.subr.mxu0 0.0
    %988 = vmatpush1.msra.mxu0 0.0
    %989 = vmatprep.subr.mxu0 0.0
    %990 = vmatpush1.msra.mxu0 0.0
    %991 = vmatprep.subr.mxu0 0.0
    %992 = vmatpush1.msra.mxu0 0.0
    %993 = vmatprep.mubr.f32.mxu0 0.0
    %994 = vmatmul.mubr.f32.gmra.mrb[0].mxu0 %v850
    %v995 = vpop.f32.mrb[0].mxu0
    %v996 = vadd.f32 0.0, %v995
    %v997 = vpop.f32.mrb[0].mxu0
    %v998 = vadd.f32 0.0, %v997
    %999 = vdwg.mxu0
    %v1000 = vadd.f32 %v854, %v925
    %v1001 = vadd.f32 %v855, %v927
    %v1002 = vadd.f32 %v856, %v996
    %v1003 = vadd.f32 %v857, %v998
    %v1004 = vxor.u32 %v1000, 2147483648
    %v1005 = vmul.f32 %v1004, 1.442695
    %v1006 = vpow.pop %v1005
    %v1007 = vadd.f32 %v1006, 1.0
    %v1008 = vrcp.pop %v1007
    %v1009 = vmul.f32 1.0, %v1008
    %v1010 = vxor.u32 %v1001, 2147483648
    %v1011 = vmul.f32 %v1010, 1.442695
    %v1012 = vpow.pop %v1011
    %v1013 = vadd.f32 %v1012, 1.0
    %v1014 = vrcp.pop %v1013
    %v1015 = vmul.f32 1.0, %v1014
    %v1016 = vtanh.pop %v1002
    %v1017 = vxor.u32 %v1003, 2147483648
    %v1018 = vmul.f32 %v1017, 1.442695
    %v1019 = vpow.pop %v1018
    %v1020 = vadd.f32 %v1019, 1.0
    %v1021 = vrcp.pop %v1020
    %v1022 = vmul.f32 1.0, %v1021
    %v1023 = vmul.f32 %v1015, %v848
    %v1024 = vmul.f32 %v1009, %v1016
    %v1025 = vadd.f32 %v1023, %v1024
    %v1026 = vtanh.pop %v1025
    %v1027 = vmul.f32 %v1022, %v1026
    %s1028 = scalar_lea.vmem [#allocation12], 32
    %1029 = vst [vmem:[%s1028] sm:$0xff] %v1027
    %s1030 = scalar_lea.vmem [#allocation4], 160
    %v1031 = vld [vmem:[%s1030] sm:$0xff]
    %v1032 = vld [vmem:[%s1030 + $0x8] sm:$0xff]
    %v1033 = vld [vmem:[%s1030 + $0x10] sm:$0xff]
    %v1034 = vld [vmem:[%s1030 + $0x18] sm:$0xff]
    %1035 = vmatprep.subr.mxu0 %v82
    %1036 = vmatpush1.msra.mxu0 %v81
    %1037 = vmatprep.subr.mxu0 %v86
    %1038 = vmatpush1.msra.mxu0 %v85
    %1039 = vmatprep.subr.mxu0 %v90
    %1040 = vmatpush1.msra.mxu0 %v89
    %1041 = vmatprep.subr.mxu0 %v94
    %1042 = vmatpush1.msra.mxu0 %v93
    %1043 = vmatprep.subr.mxu0 %v98
    %1044 = vmatpush1.msra.mxu0 %v97
    %1045 = vmatprep.subr.mxu0 %v102
    %1046 = vmatpush1.msra.mxu0 %v101
    %1047 = vmatprep.subr.mxu0 %v106
    %1048 = vmatpush1.msra.mxu0 %v105
    %1049 = vmatprep.subr.mxu0 %v110
    %1050 = vmatpush1.msra.mxu0 %v109
    %1051 = vmatprep.subr.mxu0 %v114
    %1052 = vmatpush1.msra.mxu0 %v113
    %1053 = vmatprep.subr.mxu0 %v118
    %1054 = vmatpush1.msra.mxu0 %v117
    %1055 = vmatprep.subr.mxu0 %v122
    %1056 = vmatpush1.msra.mxu0 %v121
    %1057 = vmatprep.subr.mxu0 %v126
    %1058 = vmatpush1.msra.mxu0 %v125
    %1059 = vmatprep.subr.mxu0 %v130
    %1060 = vmatpush1.msra.mxu0 %v129
    %1061 = vmatprep.subr.mxu0 %v134
    %1062 = vmatpush1.msra.mxu0 %v133
    %1063 = vmatprep.subr.mxu0 %v138
    %1064 = vmatpush1.msra.mxu0 %v137
    %1065 = vmatprep.subr.mxu0 %v142
    %1066 = vmatpush1.msra.mxu0 %v141
    %1067 = vmatprep.subr.mxu0 0.0
    %1068 = vmatpush1.msra.mxu0 0.0
    %1069 = vmatprep.subr.mxu0 0.0
    %1070 = vmatpush1.msra.mxu0 0.0
    %1071 = vmatprep.subr.mxu0 0.0
    %1072 = vmatpush1.msra.mxu0 0.0
    %1073 = vmatprep.subr.mxu0 0.0
    %1074 = vmatpush1.msra.mxu0 0.0
    %1075 = vmatprep.subr.mxu0 0.0
    %1076 = vmatpush1.msra.mxu0 0.0
    %1077 = vmatprep.subr.mxu0 0.0
    %1078 = vmatpush1.msra.mxu0 0.0
    %1079 = vmatprep.subr.mxu0 0.0
    %1080 = vmatpush1.msra.mxu0 0.0
    %1081 = vmatprep.subr.mxu0 0.0
    %1082 = vmatpush1.msra.mxu0 0.0
    %1083 = vmatprep.subr.mxu0 0.0
    %1084 = vmatpush1.msra.mxu0 0.0
    %1085 = vmatprep.subr.mxu0 0.0
    %1086 = vmatpush1.msra.mxu0 0.0
    %1087 = vmatprep.subr.mxu0 0.0
    %1088 = vmatpush1.msra.mxu0 0.0
    %1089 = vmatprep.subr.mxu0 0.0
    %1090 = vmatpush1.msra.mxu0 0.0
    %1091 = vmatprep.subr.mxu0 0.0
    %1092 = vmatpush1.msra.mxu0 0.0
    %1093 = vmatprep.subr.mxu0 0.0
    %1094 = vmatpush1.msra.mxu0 0.0
    %1095 = vmatprep.subr.mxu0 0.0
    %1096 = vmatpush1.msra.mxu0 0.0
    %1097 = vmatprep.subr.mxu0 0.0
    %1098 = vmatpush1.msra.mxu0 0.0
    %1099 = vmatprep.mubr.f32.mxu0 0.0
    %1100 = vmatmul.mubr.f32.gmra.mrb[0].mxu0 %v1027
    %v1101 = vpop.f32.mrb[0].mxu0
    %v1102 = vadd.f32 0.0, %v1101
    %v1103 = vpop.f32.mrb[0].mxu0
    %v1104 = vadd.f32 0.0, %v1103
    %1105 = vdwg.mxu0
    %1106 = vmatprep.subr.mxu0 %v84
    %1107 = vmatpush1.msra.mxu0 %v83
    %1108 = vmatprep.subr.mxu0 %v88
    %1109 = vmatpush1.msra.mxu0 %v87
    %1110 = vmatprep.subr.mxu0 %v92
    %1111 = vmatpush1.msra.mxu0 %v91
    %1112 = vmatprep.subr.mxu0 %v96
    %1113 = vmatpush1.msra.mxu0 %v95
    %1114 = vmatprep.subr.mxu0 %v100
    %1115 = vmatpush1.msra.mxu0 %v99
    %1116 = vmatprep.subr.mxu0 %v104
    %1117 = vmatpush1.msra.mxu0 %v103
    %1118 = vmatprep.subr.mxu0 %v108
    %1119 = vmatpush1.msra.mxu0 %v107
    %1120 = vmatprep.subr.mxu0 %v112
    %1121 = vmatpush1.msra.mxu0 %v111
    %1122 = vmatprep.subr.mxu0 %v116
    %1123 = vmatpush1.msra.mxu0 %v115
    %1124 = vmatprep.subr.mxu0 %v120
    %1125 = vmatpush1.msra.mxu0 %v119
    %1126 = vmatprep.subr.mxu0 %v124
    %1127 = vmatpush1.msra.mxu0 %v123
    %1128 = vmatprep.subr.mxu0 %v128
    %1129 = vmatpush1.msra.mxu0 %v127
    %1130 = vmatprep.subr.mxu0 %v132
    %1131 = vmatpush1.msra.mxu0 %v131
    %1132 = vmatprep.subr.mxu0 %v136
    %1133 = vmatpush1.msra.mxu0 %v135
    %1134 = vmatprep.subr.mxu0 %v140
    %1135 = vmatpush1.msra.mxu0 %v139
    %1136 = vmatprep.subr.mxu0 %v144
    %1137 = vmatpush1.msra.mxu0 %v143
    %1138 = vmatprep.subr.mxu0 0.0
    %1139 = vmatpush1.msra.mxu0 0.0
    %1140 = vmatprep.subr.mxu0 0.0
    %1141 = vmatpush1.msra.mxu0 0.0
    %1142 = vmatprep.subr.mxu0 0.0
    %1143 = vmatpush1.msra.mxu0 0.0
    %1144 = vmatprep.subr.mxu0 0.0
    %1145 = vmatpush1.msra.mxu0 0.0
    %1146 = vmatprep.subr.mxu0 0.0
    %1147 = vmatpush1.msra.mxu0 0.0
    %1148 = vmatprep.subr.mxu0 0.0
    %1149 = vmatpush1.msra.mxu0 0.0
    %1150 = vmatprep.subr.mxu0 0.0
    %1151 = vmatpush1.msra.mxu0 0.0
    %1152 = vmatprep.subr.mxu0 0.0
    %1153 = vmatpush1.msra.mxu0 0.0
    %1154 = vmatprep.subr.mxu0 0.0
    %1155 = vmatpush1.msra.mxu0 0.0
    %1156 = vmatprep.subr.mxu0 0.0
    %1157 = vmatpush1.msra.mxu0 0.0
    %1158 = vmatprep.subr.mxu0 0.0
    %1159 = vmatpush1.msra.mxu0 0.0
    %1160 = vmatprep.subr.mxu0 0.0
    %1161 = vmatpush1.msra.mxu0 0.0
    %1162 = vmatprep.subr.mxu0 0.0
    %1163 = vmatpush1.msra.mxu0 0.0
    %1164 = vmatprep.subr.mxu0 0.0
    %1165 = vmatpush1.msra.mxu0 0.0
    %1166 = vmatprep.subr.mxu0 0.0
    %1167 = vmatpush1.msra.mxu0 0.0
    %1168 = vmatprep.subr.mxu0 0.0
    %1169 = vmatpush1.msra.mxu0 0.0
    %1170 = vmatprep.mubr.f32.mxu0 0.0
    %1171 = vmatmul.mubr.f32.gmra.mrb[0].mxu0 %v1027
    %v1172 = vpop.f32.mrb[0].mxu0
    %v1173 = vadd.f32 0.0, %v1172
    %v1174 = vpop.f32.mrb[0].mxu0
    %v1175 = vadd.f32 0.0, %v1174
    %1176 = vdwg.mxu0
    %v1177 = vadd.f32 %v1031, %v1102
    %v1178 = vadd.f32 %v1032, %v1104
    %v1179 = vadd.f32 %v1033, %v1173
    %v1180 = vadd.f32 %v1034, %v1175
    %v1181 = vxor.u32 %v1177, 2147483648
    %v1182 = vmul.f32 %v1181, 1.442695
    %v1183 = vpow.pop %v1182
    %v1184 = vadd.f32 %v1183, 1.0
    %v1185 = vrcp.pop %v1184
    %v1186 = vmul.f32 1.0, %v1185
    %v1187 = vxor.u32 %v1178, 2147483648
    %v1188 = vmul.f32 %v1187, 1.442695
    %v1189 = vpow.pop %v1188
    %v1190 = vadd.f32 %v1189, 1.0
    %v1191 = vrcp.pop %v1190
    %v1192 = vmul.f32 1.0, %v1191
    %v1193 = vtanh.pop %v1179
    %v1194 = vxor.u32 %v1180, 2147483648
    %v1195 = vmul.f32 %v1194, 1.442695
    %v1196 = vpow.pop %v1195
    %v1197 = vadd.f32 %v1196, 1.0
    %v1198 = vrcp.pop %v1197
    %v1199 = vmul.f32 1.0, %v1198
    %v1200 = vmul.f32 %v1192, %v1025
    %v1201 = vmul.f32 %v1186, %v1193
    %v1202 = vadd.f32 %v1200, %v1201
    %v1203 = vtanh.pop %v1202
    %v1204 = vmul.f32 %v1199, %v1203
    %s1205 = scalar_lea.vmem [#allocation12], 40
    %1206 = vst [vmem:[%s1205] sm:$0xff] %v1204
    %s1207 = scalar_lea.vmem [#allocation4], 192
    %v1208 = vld [vmem:[%s1207] sm:$0xff]
    %v1209 = vld [vmem:[%s1207 + $0x8] sm:$0xff]
    %v1210 = vld [vmem:[%s1207 + $0x10] sm:$0xff]
    %v1211 = vld [vmem:[%s1207 + $0x18] sm:$0xff]
    %1212 = vmatprep.subr.mxu0 %v82
    %1213 = vmatpush1.msra.mxu0 %v81
    %1214 = vmatprep.subr.mxu0 %v86
    %1215 = vmatpush1.msra.mxu0 %v85
    %1216 = vmatprep.subr.mxu0 %v90
    %1217 = vmatpush1.msra.mxu0 %v89
    %1218 = vmatprep.subr.mxu0 %v94
    %1219 = vmatpush1.msra.mxu0 %v93
    %1220 = vmatprep.subr.mxu0 %v98
    %1221 = vmatpush1.msra.mxu0 %v97
    %1222 = vmatprep.subr.mxu0 %v102
    %1223 = vmatpush1.msra.mxu0 %v101
    %1224 = vmatprep.subr.mxu0 %v106
    %1225 = vmatpush1.msra.mxu0 %v105
    %1226 = vmatprep.subr.mxu0 %v110
    %1227 = vmatpush1.msra.mxu0 %v109
    %1228 = vmatprep.subr.mxu0 %v114
    %1229 = vmatpush1.msra.mxu0 %v113
    %1230 = vmatprep.subr.mxu0 %v118
    %1231 = vmatpush1.msra.mxu0 %v117
    %1232 = vmatprep.subr.mxu0 %v122
    %1233 = vmatpush1.msra.mxu0 %v121
    %1234 = vmatprep.subr.mxu0 %v126
    %1235 = vmatpush1.msra.mxu0 %v125
    %1236 = vmatprep.subr.mxu0 %v130
    %1237 = vmatpush1.msra.mxu0 %v129
    %1238 = vmatprep.subr.mxu0 %v134
    %1239 = vmatpush1.msra.mxu0 %v133
    %1240 = vmatprep.subr.mxu0 %v138
    %1241 = vmatpush1.msra.mxu0 %v137
    %1242 = vmatprep.subr.mxu0 %v142
    %1243 = vmatpush1.msra.mxu0 %v141
    %1244 = vmatprep.subr.mxu0 0.0
    %1245 = vmatpush1.msra.mxu0 0.0
    %1246 = vmatprep.subr.mxu0 0.0
    %1247 = vmatpush1.msra.mxu0 0.0
    %1248 = vmatprep.subr.mxu0 0.0
    %1249 = vmatpush1.msra.mxu0 0.0
    %1250 = vmatprep.subr.mxu0 0.0
    %1251 = vmatpush1.msra.mxu0 0.0
    %1252 = vmatprep.subr.mxu0 0.0
    %1253 = vmatpush1.msra.mxu0 0.0
    %1254 = vmatprep.subr.mxu0 0.0
    %1255 = vmatpush1.msra.mxu0 0.0
    %1256 = vmatprep.subr.mxu0 0.0
    %1257 = vmatpush1.msra.mxu0 0.0
    %1258 = vmatprep.subr.mxu0 0.0
    %1259 = vmatpush1.msra.mxu0 0.0
    %1260 = vmatprep.subr.mxu0 0.0
    %1261 = vmatpush1.msra.mxu0 0.0
    %1262 = vmatprep.subr.mxu0 0.0
    %1263 = vmatpush1.msra.mxu0 0.0
    %1264 = vmatprep.subr.mxu0 0.0
    %1265 = vmatpush1.msra.mxu0 0.0
    %1266 = vmatprep.subr.mxu0 0.0
    %1267 = vmatpush1.msra.mxu0 0.0
    %1268 = vmatprep.subr.mxu0 0.0
    %1269 = vmatpush1.msra.mxu0 0.0
    %1270 = vmatprep.subr.mxu0 0.0
    %1271 = vmatpush1.msra.mxu0 0.0
    %1272 = vmatprep.subr.mxu0 0.0
    %1273 = vmatpush1.msra.mxu0 0.0
    %1274 = vmatprep.subr.mxu0 0.0
    %1275 = vmatpush1.msra.mxu0 0.0
    %1276 = vmatprep.mubr.f32.mxu0 0.0
    %1277 = vmatmul.mubr.f32.gmra.mrb[0].mxu0 %v1204
    %v1278 = vpop.f32.mrb[0].mxu0
    %v1279 = vadd.f32 0.0, %v1278
    %v1280 = vpop.f32.mrb[0].mxu0
    %v1281 = vadd.f32 0.0, %v1280
    %1282 = vdwg.mxu0
    %1283 = vmatprep.subr.mxu0 %v84
    %1284 = vmatpush1.msra.mxu0 %v83
    %1285 = vmatprep.subr.mxu0 %v88
    %1286 = vmatpush1.msra.mxu0 %v87
    %1287 = vmatprep.subr.mxu0 %v92
    %1288 = vmatpush1.msra.mxu0 %v91
    %1289 = vmatprep.subr.mxu0 %v96
    %1290 = vmatpush1.msra.mxu0 %v95
    %1291 = vmatprep.subr.mxu0 %v100
    %1292 = vmatpush1.msra.mxu0 %v99
    %1293 = vmatprep.subr.mxu0 %v104
    %1294 = vmatpush1.msra.mxu0 %v103
    %1295 = vmatprep.subr.mxu0 %v108
    %1296 = vmatpush1.msra.mxu0 %v107
    %1297 = vmatprep.subr.mxu0 %v112
    %1298 = vmatpush1.msra.mxu0 %v111
    %1299 = vmatprep.subr.mxu0 %v116
    %1300 = vmatpush1.msra.mxu0 %v115
    %1301 = vmatprep.subr.mxu0 %v120
    %1302 = vmatpush1.msra.mxu0 %v119
    %1303 = vmatprep.subr.mxu0 %v124
    %1304 = vmatpush1.msra.mxu0 %v123
    %1305 = vmatprep.subr.mxu0 %v128
    %1306 = vmatpush1.msra.mxu0 %v127
    %1307 = vmatprep.subr.mxu0 %v132
    %1308 = vmatpush1.msra.mxu0 %v131
    %1309 = vmatprep.subr.mxu0 %v136
    %1310 = vmatpush1.msra.mxu0 %v135
    %1311 = vmatprep.subr.mxu0 %v140
    %1312 = vmatpush1.msra.mxu0 %v139
    %1313 = vmatprep.subr.mxu0 %v144
    %1314 = vmatpush1.msra.mxu0 %v143
    %1315 = vmatprep.subr.mxu0 0.0
    %1316 = vmatpush1.msra.mxu0 0.0
    %1317 = vmatprep.subr.mxu0 0.0
    %1318 = vmatpush1.msra.mxu0 0.0
    %1319 = vmatprep.subr.mxu0 0.0
    %1320 = vmatpush1.msra.mxu0 0.0
    %1321 = vmatprep.subr.mxu0 0.0
    %1322 = vmatpush1.msra.mxu0 0.0
    %1323 = vmatprep.subr.mxu0 0.0
    %1324 = vmatpush1.msra.mxu0 0.0
    %1325 = vmatprep.subr.mxu0 0.0
    %1326 = vmatpush1.msra.mxu0 0.0
    %1327 = vmatprep.subr.mxu0 0.0
    %1328 = vmatpush1.msra.mxu0 0.0
    %1329 = vmatprep.subr.mxu0 0.0
    %1330 = vmatpush1.msra.mxu0 0.0
    %1331 = vmatprep.subr.mxu0 0.0
    %1332 = vmatpush1.msra.mxu0 0.0
    %1333 = vmatprep.subr.mxu0 0.0
    %1334 = vmatpush1.msra.mxu0 0.0
    %1335 = vmatprep.subr.mxu0 0.0
    %1336 = vmatpush1.msra.mxu0 0.0
    %1337 = vmatprep.subr.mxu0 0.0
    %1338 = vmatpush1.msra.mxu0 0.0
    %1339 = vmatprep.subr.mxu0 0.0
    %1340 = vmatpush1.msra.mxu0 0.0
    %1341 = vmatprep.subr.mxu0 0.0
    %1342 = vmatpush1.msra.mxu0 0.0
    %1343 = vmatprep.subr.mxu0 0.0
    %1344 = vmatpush1.msra.mxu0 0.0
    %1345 = vmatprep.subr.mxu0 0.0
    %1346 = vmatpush1.msra.mxu0 0.0
    %1347 = vmatprep.mubr.f32.mxu0 0.0
    %1348 = vmatmul.mubr.f32.gmra.mrb[0].mxu0 %v1204
    %v1349 = vpop.f32.mrb[0].mxu0
    %v1350 = vadd.f32 0.0, %v1349
    %v1351 = vpop.f32.mrb[0].mxu0
    %v1352 = vadd.f32 0.0, %v1351
    %1353 = vdwg.mxu0
    %v1354 = vadd.f32 %v1208, %v1279
    %v1355 = vadd.f32 %v1209, %v1281
    %v1356 = vadd.f32 %v1210, %v1350
    %v1357 = vadd.f32 %v1211, %v1352
    %v1358 = vxor.u32 %v1354, 2147483648
    %v1359 = vmul.f32 %v1358, 1.442695
    %v1360 = vpow.pop %v1359
    %v1361 = vadd.f32 %v1360, 1.0
    %v1362 = vrcp.pop %v1361
    %v1363 = vmul.f32 1.0, %v1362
    %v1364 = vxor.u32 %v1355, 2147483648
    %v1365 = vmul.f32 %v1364, 1.442695
    %v1366 = vpow.pop %v1365
    %v1367 = vadd.f32 %v1366, 1.0
    %v1368 = vrcp.pop %v1367
    %v1369 = vmul.f32 1.0, %v1368
    %v1370 = vtanh.pop %v1356
    %v1371 = vxor.u32 %v1357, 2147483648
    %v1372 = vmul.f32 %v1371, 1.442695
    %v1373 = vpow.pop %v1372
    %v1374 = vadd.f32 %v1373, 1.0
    %v1375 = vrcp.pop %v1374
    %v1376 = vmul.f32 1.0, %v1375
    %v1377 = vmul.f32 %v1369, %v1202
    %v1378 = vmul.f32 %v1363, %v1370
    %v1379 = vadd.f32 %v1377, %v1378
    %v1380 = vtanh.pop %v1379
    %v1381 = vmul.f32 %v1376, %v1380
    %s1382 = scalar_lea.vmem [#allocation12], 48
    %1383 = vst [vmem:[%s1382] sm:$0xff] %v1381
    %s1384 = scalar_lea.vmem [#allocation4], 224
    %v1385 = vld [vmem:[%s1384] sm:$0xff]
    %v1386 = vld [vmem:[%s1384 + $0x8] sm:$0xff]
    %v1387 = vld [vmem:[%s1384 + $0x10] sm:$0xff]
    %v1388 = vld [vmem:[%s1384 + $0x18] sm:$0xff]
    %1389 = vmatprep.subr.mxu0 %v82
    %1390 = vmatpush1.msra.mxu0 %v81
    %1391 = vmatprep.subr.mxu0 %v86
    %1392 = vmatpush1.msra.mxu0 %v85
    %1393 = vmatprep.subr.mxu0 %v90
    %1394 = vmatpush1.msra.mxu0 %v89
    %1395 = vmatprep.subr.mxu0 %v94
    %1396 = vmatpush1.msra.mxu0 %v93
    %1397 = vmatprep.subr.mxu0 %v98
    %1398 = vmatpush1.msra.mxu0 %v97
    %1399 = vmatprep.subr.mxu0 %v102
    %1400 = vmatpush1.msra.mxu0 %v101
    %1401 = vmatprep.subr.mxu0 %v106
    %1402 = vmatpush1.msra.mxu0 %v105
    %1403 = vmatprep.subr.mxu0 %v110
    %1404 = vmatpush1.msra.mxu0 %v109
    %1405 = vmatprep.subr.mxu0 %v114
    %1406 = vmatpush1.msra.mxu0 %v113
    %1407 = vmatprep.subr.mxu0 %v118
    %1408 = vmatpush1.msra.mxu0 %v117
    %1409 = vmatprep.subr.mxu0 %v122
    %1410 = vmatpush1.msra.mxu0 %v121
    %1411 = vmatprep.subr.mxu0 %v126
    %1412 = vmatpush1.msra.mxu0 %v125
    %1413 = vmatprep.subr.mxu0 %v130
    %1414 = vmatpush1.msra.mxu0 %v129
    %1415 = vmatprep.subr.mxu0 %v134
    %1416 = vmatpush1.msra.mxu0 %v133
    %1417 = vmatprep.subr.mxu0 %v138
    %1418 = vmatpush1.msra.mxu0 %v137
    %1419 = vmatprep.subr.mxu0 %v142
    %1420 = vmatpush1.msra.mxu0 %v141
    %1421 = vmatprep.subr.mxu0 0.0
    %1422 = vmatpush1.msra.mxu0 0.0
    %1423 = vmatprep.subr.mxu0 0.0
    %1424 = vmatpush1.msra.mxu0 0.0
    %1425 = vmatprep.subr.mxu0 0.0
    %1426 = vmatpush1.msra.mxu0 0.0
    %1427 = vmatprep.subr.mxu0 0.0
    %1428 = vmatpush1.msra.mxu0 0.0
    %1429 = vmatprep.subr.mxu0 0.0
    %1430 = vmatpush1.msra.mxu0 0.0
    %1431 = vmatprep.subr.mxu0 0.0
    %1432 = vmatpush1.msra.mxu0 0.0
    %1433 = vmatprep.subr.mxu0 0.0
    %1434 = vmatpush1.msra.mxu0 0.0
    %1435 = vmatprep.subr.mxu0 0.0
    %1436 = vmatpush1.msra.mxu0 0.0
    %1437 = vmatprep.subr.mxu0 0.0
    %1438 = vmatpush1.msra.mxu0 0.0
    %1439 = vmatprep.subr.mxu0 0.0
    %1440 = vmatpush1.msra.mxu0 0.0
    %1441 = vmatprep.subr.mxu0 0.0
    %1442 = vmatpush1.msra.mxu0 0.0
    %1443 = vmatprep.subr.mxu0 0.0
    %1444 = vmatpush1.msra.mxu0 0.0
    %1445 = vmatprep.subr.mxu0 0.0
    %1446 = vmatpush1.msra.mxu0 0.0
    %1447 = vmatprep.subr.mxu0 0.0
    %1448 = vmatpush1.msra.mxu0 0.0
    %1449 = vmatprep.subr.mxu0 0.0
    %1450 = vmatpush1.msra.mxu0 0.0
    %1451 = vmatprep.subr.mxu0 0.0
    %1452 = vmatpush1.msra.mxu0 0.0
    %1453 = vmatprep.mubr.f32.mxu0 0.0
    %1454 = vmatmul.mubr.f32.gmra.mrb[0].mxu0 %v1381
    %v1455 = vpop.f32.mrb[0].mxu0
    %v1456 = vadd.f32 0.0, %v1455
    %v1457 = vpop.f32.mrb[0].mxu0
    %v1458 = vadd.f32 0.0, %v1457
    %1459 = vdwg.mxu0
    %1460 = vmatprep.subr.mxu0 %v84
    %1461 = vmatpush1.msra.mxu0 %v83
    %1462 = vmatprep.subr.mxu0 %v88
    %1463 = vmatpush1.msra.mxu0 %v87
    %1464 = vmatprep.subr.mxu0 %v92
    %1465 = vmatpush1.msra.mxu0 %v91
    %1466 = vmatprep.subr.mxu0 %v96
    %1467 = vmatpush1.msra.mxu0 %v95
    %1468 = vmatprep.subr.mxu0 %v100
    %1469 = vmatpush1.msra.mxu0 %v99
    %1470 = vmatprep.subr.mxu0 %v104
    %1471 = vmatpush1.msra.mxu0 %v103
    %1472 = vmatprep.subr.mxu0 %v108
    %1473 = vmatpush1.msra.mxu0 %v107
    %1474 = vmatprep.subr.mxu0 %v112
    %1475 = vmatpush1.msra.mxu0 %v111
    %1476 = vmatprep.subr.mxu0 %v116
    %1477 = vmatpush1.msra.mxu0 %v115
    %1478 = vmatprep.subr.mxu0 %v120
    %1479 = vmatpush1.msra.mxu0 %v119
    %1480 = vmatprep.subr.mxu0 %v124
    %1481 = vmatpush1.msra.mxu0 %v123
    %1482 = vmatprep.subr.mxu0 %v128
    %1483 = vmatpush1.msra.mxu0 %v127
    %1484 = vmatprep.subr.mxu0 %v132
    %1485 = vmatpush1.msra.mxu0 %v131
    %1486 = vmatprep.subr.mxu0 %v136
    %1487 = vmatpush1.msra.mxu0 %v135
    %1488 = vmatprep.subr.mxu0 %v140
    %1489 = vmatpush1.msra.mxu0 %v139
    %1490 = vmatprep.subr.mxu0 %v144
    %1491 = vmatpush1.msra.mxu0 %v143
    %1492 = vmatprep.subr.mxu0 0.0
    %1493 = vmatpush1.msra.mxu0 0.0
    %1494 = vmatprep.subr.mxu0 0.0
    %1495 = vmatpush1.msra.mxu0 0.0
    %1496 = vmatprep.subr.mxu0 0.0
    %1497 = vmatpush1.msra.mxu0 0.0
    %1498 = vmatprep.subr.mxu0 0.0
    %1499 = vmatpush1.msra.mxu0 0.0
    %1500 = vmatprep.subr.mxu0 0.0
    %1501 = vmatpush1.msra.mxu0 0.0
    %1502 = vmatprep.subr.mxu0 0.0
    %1503 = vmatpush1.msra.mxu0 0.0
    %1504 = vmatprep.subr.mxu0 0.0
    %1505 = vmatpush1.msra.mxu0 0.0
    %1506 = vmatprep.subr.mxu0 0.0
    %1507 = vmatpush1.msra.mxu0 0.0
    %1508 = vmatprep.subr.mxu0 0.0
    %1509 = vmatpush1.msra.mxu0 0.0
    %1510 = vmatprep.subr.mxu0 0.0
    %1511 = vmatpush1.msra.mxu0 0.0
    %1512 = vmatprep.subr.mxu0 0.0
    %1513 = vmatpush1.msra.mxu0 0.0
    %1514 = vmatprep.subr.mxu0 0.0
    %1515 = vmatpush1.msra.mxu0 0.0
    %1516 = vmatprep.subr.mxu0 0.0
    %1517 = vmatpush1.msra.mxu0 0.0
    %1518 = vmatprep.subr.mxu0 0.0
    %1519 = vmatpush1.msra.mxu0 0.0
    %1520 = vmatprep.subr.mxu0 0.0
    %1521 = vmatpush1.msra.mxu0 0.0
    %1522 = vmatprep.subr.mxu0 0.0
    %1523 = vmatpush1.msra.mxu0 0.0
    %1524 = vmatprep.mubr.f32.mxu0 0.0
    %1525 = vmatmul.mubr.f32.gmra.mrb[0].mxu0 %v1381
    %v1526 = vpop.f32.mrb[0].mxu0
    %v1527 = vadd.f32 0.0, %v1526
    %v1528 = vpop.f32.mrb[0].mxu0
    %v1529 = vadd.f32 0.0, %v1528
    %1530 = vdwg.mxu0
    %v1531 = vadd.f32 %v1385, %v1456
    %v1532 = vadd.f32 %v1386, %v1458
    %v1533 = vadd.f32 %v1387, %v1527
    %v1534 = vadd.f32 %v1388, %v1529
    %v1535 = vxor.u32 %v1531, 2147483648
    %v1536 = vmul.f32 %v1535, 1.442695
    %v1537 = vpow.pop %v1536
    %v1538 = vadd.f32 %v1537, 1.0
    %v1539 = vrcp.pop %v1538
    %v1540 = vmul.f32 1.0, %v1539
    %v1541 = vxor.u32 %v1532, 2147483648
    %v1542 = vmul.f32 %v1541, 1.442695
    %v1543 = vpow.pop %v1542
    %v1544 = vadd.f32 %v1543, 1.0
    %v1545 = vrcp.pop %v1544
    %v1546 = vmul.f32 1.0, %v1545
    %v1547 = vtanh.pop %v1533
    %v1548 = vxor.u32 %v1534, 2147483648
    %v1549 = vmul.f32 %v1548, 1.442695
    %v1550 = vpow.pop %v1549
    %v1551 = vadd.f32 %v1550, 1.0
    %v1552 = vrcp.pop %v1551
    %v1553 = vmul.f32 1.0, %v1552
    %v1554 = vmul.f32 %v1546, %v1379
    %v1555 = vmul.f32 %v1540, %v1547
    %v1556 = vadd.f32 %v1554, %v1555
    %v1557 = vtanh.pop %v1556
    %v1558 = vmul.f32 %v1553, %v1557
    %s1559 = scalar_lea.vmem [#allocation12], 56
    %1560 = vst [vmem:[%s1559] sm:$0xff] %v1558
    %s1561 = scalar_lea.vmem [#allocation4], 256
    %v1562 = vld [vmem:[%s1561] sm:$0xff]
    %v1563 = vld [vmem:[%s1561 + $0x8] sm:$0xff]
    %v1564 = vld [vmem:[%s1561 + $0x10] sm:$0xff]
    %v1565 = vld [vmem:[%s1561 + $0x18] sm:$0xff]
    %1566 = vmatprep.subr.mxu0 %v82
    %1567 = vmatpush1.msra.mxu0 %v81
    %1568 = vmatprep.subr.mxu0 %v86
    %1569 = vmatpush1.msra.mxu0 %v85
    %1570 = vmatprep.subr.mxu0 %v90
    %1571 = vmatpush1.msra.mxu0 %v89
    %1572 = vmatprep.subr.mxu0 %v94
    %1573 = vmatpush1.msra.mxu0 %v93
    %1574 = vmatprep.subr.mxu0 %v98
    %1575 = vmatpush1.msra.mxu0 %v97
    %1576 = vmatprep.subr.mxu0 %v102
    %1577 = vmatpush1.msra.mxu0 %v101
    %1578 = vmatprep.subr.mxu0 %v106
    %1579 = vmatpush1.msra.mxu0 %v105
    %1580 = vmatprep.subr.mxu0 %v110
    %1581 = vmatpush1.msra.mxu0 %v109
    %1582 = vmatprep.subr.mxu0 %v114
    %1583 = vmatpush1.msra.mxu0 %v113
    %1584 = vmatprep.subr.mxu0 %v118
    %1585 = vmatpush1.msra.mxu0 %v117
    %1586 = vmatprep.subr.mxu0 %v122
    %1587 = vmatpush1.msra.mxu0 %v121
    %1588 = vmatprep.subr.mxu0 %v126
    %1589 = vmatpush1.msra.mxu0 %v125
    %1590 = vmatprep.subr.mxu0 %v130
    %1591 = vmatpush1.msra.mxu0 %v129
    %1592 = vmatprep.subr.mxu0 %v134
    %1593 = vmatpush1.msra.mxu0 %v133
    %1594 = vmatprep.subr.mxu0 %v138
    %1595 = vmatpush1.msra.mxu0 %v137
    %1596 = vmatprep.subr.mxu0 %v142
    %1597 = vmatpush1.msra.mxu0 %v141
    %1598 = vmatprep.subr.mxu0 0.0
    %1599 = vmatpush1.msra.mxu0 0.0
    %1600 = vmatprep.subr.mxu0 0.0
    %1601 = vmatpush1.msra.mxu0 0.0
    %1602 = vmatprep.subr.mxu0 0.0
    %1603 = vmatpush1.msra.mxu0 0.0
    %1604 = vmatprep.subr.mxu0 0.0
    %1605 = vmatpush1.msra.mxu0 0.0
    %1606 = vmatprep.subr.mxu0 0.0
    %1607 = vmatpush1.msra.mxu0 0.0
    %1608 = vmatprep.subr.mxu0 0.0
    %1609 = vmatpush1.msra.mxu0 0.0
    %1610 = vmatprep.subr.mxu0 0.0
    %1611 = vmatpush1.msra.mxu0 0.0
    %1612 = vmatprep.subr.mxu0 0.0
    %1613 = vmatpush1.msra.mxu0 0.0
    %1614 = vmatprep.subr.mxu0 0.0
    %1615 = vmatpush1.msra.mxu0 0.0
    %1616 = vmatprep.subr.mxu0 0.0
    %1617 = vmatpush1.msra.mxu0 0.0
    %1618 = vmatprep.subr.mxu0 0.0
    %1619 = vmatpush1.msra.mxu0 0.0
    %1620 = vmatprep.subr.mxu0 0.0
    %1621 = vmatpush1.msra.mxu0 0.0
    %1622 = vmatprep.subr.mxu0 0.0
    %1623 = vmatpush1.msra.mxu0 0.0
    %1624 = vmatprep.subr.mxu0 0.0
    %1625 = vmatpush1.msra.mxu0 0.0
    %1626 = vmatprep.subr.mxu0 0.0
    %1627 = vmatpush1.msra.mxu0 0.0
    %1628 = vmatprep.subr.mxu0 0.0
    %1629 = vmatpush1.msra.mxu0 0.0
    %1630 = vmatprep.mubr.f32.mxu0 0.0
    %1631 = vmatmul.mubr.f32.gmra.mrb[0].mxu0 %v1558
    %v1632 = vpop.f32.mrb[0].mxu0
    %v1633 = vadd.f32 0.0, %v1632
    %v1634 = vpop.f32.mrb[0].mxu0
    %v1635 = vadd.f32 0.0, %v1634
    %1636 = vdwg.mxu0
    %1637 = vmatprep.subr.mxu0 %v84
    %1638 = vmatpush1.msra.mxu0 %v83
    %1639 = vmatprep.subr.mxu0 %v88
    %1640 = vmatpush1.msra.mxu0 %v87
    %1641 = vmatprep.subr.mxu0 %v92
    %1642 = vmatpush1.msra.mxu0 %v91
    %1643 = vmatprep.subr.mxu0 %v96
    %1644 = vmatpush1.msra.mxu0 %v95
    %1645 = vmatprep.subr.mxu0 %v100
    %1646 = vmatpush1.msra.mxu0 %v99
    %1647 = vmatprep.subr.mxu0 %v104
    %1648 = vmatpush1.msra.mxu0 %v103
    %1649 = vmatprep.subr.mxu0 %v108
    %1650 = vmatpush1.msra.mxu0 %v107
    %1651 = vmatprep.subr.mxu0 %v112
    %1652 = vmatpush1.msra.mxu0 %v111
    %1653 = vmatprep.subr.mxu0 %v116
    %1654 = vmatpush1.msra.mxu0 %v115
    %1655 = vmatprep.subr.mxu0 %v120
    %1656 = vmatpush1.msra.mxu0 %v119
    %1657 = vmatprep.subr.mxu0 %v124
    %1658 = vmatpush1.msra.mxu0 %v123
    %1659 = vmatprep.subr.mxu0 %v128
    %1660 = vmatpush1.msra.mxu0 %v127
    %1661 = vmatprep.subr.mxu0 %v132
    %1662 = vmatpush1.msra.mxu0 %v131
    %1663 = vmatprep.subr.mxu0 %v136
    %1664 = vmatpush1.msra.mxu0 %v135
    %1665 = vmatprep.subr.mxu0 %v140
    %1666 = vmatpush1.msra.mxu0 %v139
    %1667 = vmatprep.subr.mxu0 %v144
    %1668 = vmatpush1.msra.mxu0 %v143
    %1669 = vmatprep.subr.mxu0 0.0
    %1670 = vmatpush1.msra.mxu0 0.0
    %1671 = vmatprep.subr.mxu0 0.0
    %1672 = vmatpush1.msra.mxu0 0.0
    %1673 = vmatprep.subr.mxu0 0.0
    %1674 = vmatpush1.msra.mxu0 0.0
    %1675 = vmatprep.subr.mxu0 0.0
    %1676 = vmatpush1.msra.mxu0 0.0
    %1677 = vmatprep.subr.mxu0 0.0
    %1678 = vmatpush1.msra.mxu0 0.0
    %1679 = vmatprep.subr.mxu0 0.0
    %1680 = vmatpush1.msra.mxu0 0.0
    %1681 = vmatprep.subr.mxu0 0.0
    %1682 = vmatpush1.msra.mxu0 0.0
    %1683 = vmatprep.subr.mxu0 0.0
    %1684 = vmatpush1.msra.mxu0 0.0
    %1685 = vmatprep.subr.mxu0 0.0
    %1686 = vmatpush1.msra.mxu0 0.0
    %1687 = vmatprep.subr.mxu0 0.0
    %1688 = vmatpush1.msra.mxu0 0.0
    %1689 = vmatprep.subr.mxu0 0.0
    %1690 = vmatpush1.msra.mxu0 0.0
    %1691 = vmatprep.subr.mxu0 0.0
    %1692 = vmatpush1.msra.mxu0 0.0
    %1693 = vmatprep.subr.mxu0 0.0
    %1694 = vmatpush1.msra.mxu0 0.0
    %1695 = vmatprep.subr.mxu0 0.0
    %1696 = vmatpush1.msra.mxu0 0.0
    %1697 = vmatprep.subr.mxu0 0.0
    %1698 = vmatpush1.msra.mxu0 0.0
    %1699 = vmatprep.subr.mxu0 0.0
    %1700 = vmatpush1.msra.mxu0 0.0
    %1701 = vmatprep.mubr.f32.mxu0 0.0
    %1702 = vmatmul.mubr.f32.gmra.mrb[0].mxu0 %v1558
    %v1703 = vpop.f32.mrb[0].mxu0
    %v1704 = vadd.f32 0.0, %v1703
    %v1705 = vpop.f32.mrb[0].mxu0
    %v1706 = vadd.f32 0.0, %v1705
    %1707 = vdwg.mxu0
    %v1708 = vadd.f32 %v1562, %v1633
    %v1709 = vadd.f32 %v1563, %v1635
    %v1710 = vadd.f32 %v1564, %v1704
    %v1711 = vadd.f32 %v1565, %v1706
    %v1712 = vxor.u32 %v1708, 2147483648
    %v1713 = vmul.f32 %v1712, 1.442695
    %v1714 = vpow.pop %v1713
    %v1715 = vadd.f32 %v1714, 1.0
    %v1716 = vrcp.pop %v1715
    %v1717 = vmul.f32 1.0, %v1716
    %v1718 = vxor.u32 %v1709, 2147483648
    %v1719 = vmul.f32 %v1718, 1.442695
    %v1720 = vpow.pop %v1719
    %v1721 = vadd.f32 %v1720, 1.0
    %v1722 = vrcp.pop %v1721
    %v1723 = vmul.f32 1.0, %v1722
    %v1724 = vtanh.pop %v1710
    %v1725 = vxor.u32 %v1711, 2147483648
    %v1726 = vmul.f32 %v1725, 1.442695
    %v1727 = vpow.pop %v1726
    %v1728 = vadd.f32 %v1727, 1.0
    %v1729 = vrcp.pop %v1728
    %v1730 = vmul.f32 1.0, %v1729
    %v1731 = vmul.f32 %v1723, %v1556
    %v1732 = vmul.f32 %v1717, %v1724
    %v1733 = vadd.f32 %v1731, %v1732
    %v1734 = vtanh.pop %v1733
    %v1735 = vmul.f32 %v1730, %v1734
    %s1736 = scalar_lea.vmem [#allocation12], 64
    %1737 = vst [vmem:[%s1736] sm:$0xff] %v1735
    %s1738 = scalar_lea.vmem [#allocation4], 288
    %v1739 = vld [vmem:[%s1738] sm:$0xff]
    %v1740 = vld [vmem:[%s1738 + $0x8] sm:$0xff]
    %v1741 = vld [vmem:[%s1738 + $0x10] sm:$0xff]
    %v1742 = vld [vmem:[%s1738 + $0x18] sm:$0xff]
    %1743 = vmatprep.subr.mxu0 %v82
    %1744 = vmatpush1.msra.mxu0 %v81
    %1745 = vmatprep.subr.mxu0 %v86
    %1746 = vmatpush1.msra.mxu0 %v85
    %1747 = vmatprep.subr.mxu0 %v90
    %1748 = vmatpush1.msra.mxu0 %v89
    %1749 = vmatprep.subr.mxu0 %v94
    %1750 = vmatpush1.msra.mxu0 %v93
    %1751 = vmatprep.subr.mxu0 %v98
    %1752 = vmatpush1.msra.mxu0 %v97
    %1753 = vmatprep.subr.mxu0 %v102
    %1754 = vmatpush1.msra.mxu0 %v101
    %1755 = vmatprep.subr.mxu0 %v106
    %1756 = vmatpush1.msra.mxu0 %v105
    %1757 = vmatprep.subr.mxu0 %v110
    %1758 = vmatpush1.msra.mxu0 %v109
    %1759 = vmatprep.subr.mxu0 %v114
    %1760 = vmatpush1.msra.mxu0 %v113
    %1761 = vmatprep.subr.mxu0 %v118
    %1762 = vmatpush1.msra.mxu0 %v117
    %1763 = vmatprep.subr.mxu0 %v122
    %1764 = vmatpush1.msra.mxu0 %v121
    %1765 = vmatprep.subr.mxu0 %v126
    %1766 = vmatpush1.msra.mxu0 %v125
    %1767 = vmatprep.subr.mxu0 %v130
    %1768 = vmatpush1.msra.mxu0 %v129
    %1769 = vmatprep.subr.mxu0 %v134
    %1770 = vmatpush1.msra.mxu0 %v133
    %1771 = vmatprep.subr.mxu0 %v138
    %1772 = vmatpush1.msra.mxu0 %v137
    %1773 = vmatprep.subr.mxu0 %v142
    %1774 = vmatpush1.msra.mxu0 %v141
    %1775 = vmatprep.subr.mxu0 0.0
    %1776 = vmatpush1.msra.mxu0 0.0
    %1777 = vmatprep.subr.mxu0 0.0
    %1778 = vmatpush1.msra.mxu0 0.0
    %1779 = vmatprep.subr.mxu0 0.0
    %1780 = vmatpush1.msra.mxu0 0.0
    %1781 = vmatprep.subr.mxu0 0.0
    %1782 = vmatpush1.msra.mxu0 0.0
    %1783 = vmatprep.subr.mxu0 0.0
    %1784 = vmatpush1.msra.mxu0 0.0
    %1785 = vmatprep.subr.mxu0 0.0
    %1786 = vmatpush1.msra.mxu0 0.0
    %1787 = vmatprep.subr.mxu0 0.0
    %1788 = vmatpush1.msra.mxu0 0.0
    %1789 = vmatprep.subr.mxu0 0.0
    %1790 = vmatpush1.msra.mxu0 0.0
    %1791 = vmatprep.subr.mxu0 0.0
    %1792 = vmatpush1.msra.mxu0 0.0
    %1793 = vmatprep.subr.mxu0 0.0
    %1794 = vmatpush1.msra.mxu0 0.0
    %1795 = vmatprep.subr.mxu0 0.0
    %1796 = vmatpush1.msra.mxu0 0.0
    %1797 = vmatprep.subr.mxu0 0.0
    %1798 = vmatpush1.msra.mxu0 0.0
    %1799 = vmatprep.subr.mxu0 0.0
    %1800 = vmatpush1.msra.mxu0 0.0
    %1801 = vmatprep.subr.mxu0 0.0
    %1802 = vmatpush1.msra.mxu0 0.0
    %1803 = vmatprep.subr.mxu0 0.0
    %1804 = vmatpush1.msra.mxu0 0.0
    %1805 = vmatprep.subr.mxu0 0.0
    %1806 = vmatpush1.msra.mxu0 0.0
    %1807 = vmatprep.mubr.f32.mxu0 0.0
    %1808 = vmatmul.mubr.f32.gmra.mrb[0].mxu0 %v1735
    %v1809 = vpop.f32.mrb[0].mxu0
    %v1810 = vadd.f32 0.0, %v1809
    %v1811 = vpop.f32.mrb[0].mxu0
    %v1812 = vadd.f32 0.0, %v1811
    %1813 = vdwg.mxu0
    %1814 = vmatprep.subr.mxu0 %v84
    %1815 = vmatpush1.msra.mxu0 %v83
    %1816 = vmatprep.subr.mxu0 %v88
    %1817 = vmatpush1.msra.mxu0 %v87
    %1818 = vmatprep.subr.mxu0 %v92
    %1819 = vmatpush1.msra.mxu0 %v91
    %1820 = vmatprep.subr.mxu0 %v96
    %1821 = vmatpush1.msra.mxu0 %v95
    %1822 = vmatprep.subr.mxu0 %v100
    %1823 = vmatpush1.msra.mxu0 %v99
    %1824 = vmatprep.subr.mxu0 %v104
    %1825 = vmatpush1.msra.mxu0 %v103
    %1826 = vmatprep.subr.mxu0 %v108
    %1827 = vmatpush1.msra.mxu0 %v107
    %1828 = vmatprep.subr.mxu0 %v112
    %1829 = vmatpush1.msra.mxu0 %v111
    %1830 = vmatprep.subr.mxu0 %v116
    %1831 = vmatpush1.msra.mxu0 %v115
    %1832 = vmatprep.subr.mxu0 %v120
    %1833 = vmatpush1.msra.mxu0 %v119
    %1834 = vmatprep.subr.mxu0 %v124
    %1835 = vmatpush1.msra.mxu0 %v123
    %1836 = vmatprep.subr.mxu0 %v128
    %1837 = vmatpush1.msra.mxu0 %v127
    %1838 = vmatprep.subr.mxu0 %v132
    %1839 = vmatpush1.msra.mxu0 %v131
    %1840 = vmatprep.subr.mxu0 %v136
    %1841 = vmatpush1.msra.mxu0 %v135
    %1842 = vmatprep.subr.mxu0 %v140
    %1843 = vmatpush1.msra.mxu0 %v139
    %1844 = vmatprep.subr.mxu0 %v144
    %1845 = vmatpush1.msra.mxu0 %v143
    %1846 = vmatprep.subr.mxu0 0.0
    %1847 = vmatpush1.msra.mxu0 0.0
    %1848 = vmatprep.subr.mxu0 0.0
    %1849 = vmatpush1.msra.mxu0 0.0
    %1850 = vmatprep.subr.mxu0 0.0
    %1851 = vmatpush1.msra.mxu0 0.0
    %1852 = vmatprep.subr.mxu0 0.0
    %1853 = vmatpush1.msra.mxu0 0.0
    %1854 = vmatprep.subr.mxu0 0.0
    %1855 = vmatpush1.msra.mxu0 0.0
    %1856 = vmatprep.subr.mxu0 0.0
    %1857 = vmatpush1.msra.mxu0 0.0
    %1858 = vmatprep.subr.mxu0 0.0
    %1859 = vmatpush1.msra.mxu0 0.0
    %1860 = vmatprep.subr.mxu0 0.0
    %1861 = vmatpush1.msra.mxu0 0.0
    %1862 = vmatprep.subr.mxu0 0.0
    %1863 = vmatpush1.msra.mxu0 0.0
    %1864 = vmatprep.subr.mxu0 0.0
    %1865 = vmatpush1.msra.mxu0 0.0
    %1866 = vmatprep.subr.mxu0 0.0
    %1867 = vmatpush1.msra.mxu0 0.0
    %1868 = vmatprep.subr.mxu0 0.0
    %1869 = vmatpush1.msra.mxu0 0.0
    %1870 = vmatprep.subr.mxu0 0.0
    %1871 = vmatpush1.msra.mxu0 0.0
    %1872 = vmatprep.subr.mxu0 0.0
    %1873 = vmatpush1.msra.mxu0 0.0
    %1874 = vmatprep.subr.mxu0 0.0
    %1875 = vmatpush1.msra.mxu0 0.0
    %1876 = vmatprep.subr.mxu0 0.0
    %1877 = vmatpush1.msra.mxu0 0.0
    %1878 = vmatprep.mubr.f32.mxu0 0.0
    %1879 = vmatmul.mubr.f32.gmra.mrb[0].mxu0 %v1735
    %v1880 = vpop.f32.mrb[0].mxu0
    %v1881 = vadd.f32 0.0, %v1880
    %v1882 = vpop.f32.mrb[0].mxu0
    %v1883 = vadd.f32 0.0, %v1882
    %1884 = vdwg.mxu0
    %v1885 = vadd.f32 %v1739, %v1810
    %v1886 = vadd.f32 %v1740, %v1812
    %v1887 = vadd.f32 %v1741, %v1881
    %v1888 = vadd.f32 %v1742, %v1883
    %v1889 = vxor.u32 %v1885, 2147483648
    %v1890 = vmul.f32 %v1889, 1.442695
    %v1891 = vpow.pop %v1890
    %v1892 = vadd.f32 %v1891, 1.0
    %v1893 = vrcp.pop %v1892
    %v1894 = vmul.f32 1.0, %v1893
    %v1895 = vxor.u32 %v1886, 2147483648
    %v1896 = vmul.f32 %v1895, 1.442695
    %v1897 = vpow.pop %v1896
    %v1898 = vadd.f32 %v1897, 1.0
    %v1899 = vrcp.pop %v1898
    %v1900 = vmul.f32 1.0, %v1899
    %v1901 = vtanh.pop %v1887
    %v1902 = vxor.u32 %v1888, 2147483648
    %v1903 = vmul.f32 %v1902, 1.442695
    %v1904 = vpow.pop %v1903
    %v1905 = vadd.f32 %v1904, 1.0
    %v1906 = vrcp.pop %v1905
    %v1907 = vmul.f32 1.0, %v1906
    %v1908 = vmul.f32 %v1900, %v1733
    %v1909 = vmul.f32 %v1894, %v1901
    %v1910 = vadd.f32 %v1908, %v1909
    %v1911 = vtanh.pop %v1910
    %v1912 = vmul.f32 %v1907, %v1911
    %s1913 = scalar_lea.vmem [#allocation12], 72
    %1914 = vst [vmem:[%s1913] sm:$0xff] %v1912
    %s1915 = scalar_lea.vmem [#allocation4], 320
    %v1916 = vld [vmem:[%s1915] sm:$0xff]
    %v1917 = vld [vmem:[%s1915 + $0x8] sm:$0xff]
    %v1918 = vld [vmem:[%s1915 + $0x10] sm:$0xff]
    %v1919 = vld [vmem:[%s1915 + $0x18] sm:$0xff]
    %1920 = vmatprep.subr.mxu0 %v82
    %1921 = vmatpush1.msra.mxu0 %v81
    %1922 = vmatprep.subr.mxu0 %v86
    %1923 = vmatpush1.msra.mxu0 %v85
    %1924 = vmatprep.subr.mxu0 %v90
    %1925 = vmatpush1.msra.mxu0 %v89
    %1926 = vmatprep.subr.mxu0 %v94
    %1927 = vmatpush1.msra.mxu0 %v93
    %1928 = vmatprep.subr.mxu0 %v98
    %1929 = vmatpush1.msra.mxu0 %v97
    %1930 = vmatprep.subr.mxu0 %v102
    %1931 = vmatpush1.msra.mxu0 %v101
    %1932 = vmatprep.subr.mxu0 %v106
    %1933 = vmatpush1.msra.mxu0 %v105
    %1934 = vmatprep.subr.mxu0 %v110
    %1935 = vmatpush1.msra.mxu0 %v109
    %1936 = vmatprep.subr.mxu0 %v114
    %1937 = vmatpush1.msra.mxu0 %v113
    %1938 = vmatprep.subr.mxu0 %v118
    %1939 = vmatpush1.msra.mxu0 %v117
    %1940 = vmatprep.subr.mxu0 %v122
    %1941 = vmatpush1.msra.mxu0 %v121
    %1942 = vmatprep.subr.mxu0 %v126
    %1943 = vmatpush1.msra.mxu0 %v125
    %1944 = vmatprep.subr.mxu0 %v130
    %1945 = vmatpush1.msra.mxu0 %v129
    %1946 = vmatprep.subr.mxu0 %v134
    %1947 = vmatpush1.msra.mxu0 %v133
    %1948 = vmatprep.subr.mxu0 %v138
    %1949 = vmatpush1.msra.mxu0 %v137
    %1950 = vmatprep.subr.mxu0 %v142
    %1951 = vmatpush1.msra.mxu0 %v141
    %1952 = vmatprep.subr.mxu0 0.0
    %1953 = vmatpush1.msra.mxu0 0.0
    %1954 = vmatprep.subr.mxu0 0.0
    %1955 = vmatpush1.msra.mxu0 0.0
    %1956 = vmatprep.subr.mxu0 0.0
    %1957 = vmatpush1.msra.mxu0 0.0
    %1958 = vmatprep.subr.mxu0 0.0
    %1959 = vmatpush1.msra.mxu0 0.0
    %1960 = vmatprep.subr.mxu0 0.0
    %1961 = vmatpush1.msra.mxu0 0.0
    %1962 = vmatprep.subr.mxu0 0.0
    %1963 = vmatpush1.msra.mxu0 0.0
    %1964 = vmatprep.subr.mxu0 0.0
    %1965 = vmatpush1.msra.mxu0 0.0
    %1966 = vmatprep.subr.mxu0 0.0
    %1967 = vmatpush1.msra.mxu0 0.0
    %1968 = vmatprep.subr.mxu0 0.0
    %1969 = vmatpush1.msra.mxu0 0.0
    %1970 = vmatprep.subr.mxu0 0.0
    %1971 = vmatpush1.msra.mxu0 0.0
    %1972 = vmatprep.subr.mxu0 0.0
    %1973 = vmatpush1.msra.mxu0 0.0
    %1974 = vmatprep.subr.mxu0 0.0
    %1975 = vmatpush1.msra.mxu0 0.0
    %1976 = vmatprep.subr.mxu0 0.0
    %1977 = vmatpush1.msra.mxu0 0.0
    %1978 = vmatprep.subr.mxu0 0.0
    %1979 = vmatpush1.msra.mxu0 0.0
    %1980 = vmatprep.subr.mxu0 0.0
    %1981 = vmatpush1.msra.mxu0 0.0
    %1982 = vmatprep.subr.mxu0 0.0
    %1983 = vmatpush1.msra.mxu0 0.0
    %1984 = vmatprep.mubr.f32.mxu0 0.0
    %1985 = vmatmul.mubr.f32.gmra.mrb[0].mxu0 %v1912
    %v1986 = vpop.f32.mrb[0].mxu0
    %v1987 = vadd.f32 0.0, %v1986
    %v1988 = vpop.f32.mrb[0].mxu0
    %v1989 = vadd.f32 0.0, %v1988
    %1990 = vdwg.mxu0
    %1991 = vmatprep.subr.mxu0 %v84
    %1992 = vmatpush1.msra.mxu0 %v83
    %1993 = vmatprep.subr.mxu0 %v88
    %1994 = vmatpush1.msra.mxu0 %v87
    %1995 = vmatprep.subr.mxu0 %v92
    %1996 = vmatpush1.msra.mxu0 %v91
    %1997 = vmatprep.subr.mxu0 %v96
    %1998 = vmatpush1.msra.mxu0 %v95
    %1999 = vmatprep.subr.mxu0 %v100
    %2000 = vmatpush1.msra.mxu0 %v99
    %2001 = vmatprep.subr.mxu0 %v104
    %2002 = vmatpush1.msra.mxu0 %v103
    %2003 = vmatprep.subr.mxu0 %v108
    %2004 = vmatpush1.msra.mxu0 %v107
    %2005 = vmatprep.subr.mxu0 %v112
    %2006 = vmatpush1.msra.mxu0 %v111
    %2007 = vmatprep.subr.mxu0 %v116
    %2008 = vmatpush1.msra.mxu0 %v115
    %2009 = vmatprep.subr.mxu0 %v120
    %2010 = vmatpush1.msra.mxu0 %v119
    %2011 = vmatprep.subr.mxu0 %v124
    %2012 = vmatpush1.msra.mxu0 %v123
    %2013 = vmatprep.subr.mxu0 %v128
    %2014 = vmatpush1.msra.mxu0 %v127
    %2015 = vmatprep.subr.mxu0 %v132
    %2016 = vmatpush1.msra.mxu0 %v131
    %2017 = vmatprep.subr.mxu0 %v136
    %2018 = vmatpush1.msra.mxu0 %v135
    %2019 = vmatprep.subr.mxu0 %v140
    %2020 = vmatpush1.msra.mxu0 %v139
    %2021 = vmatprep.subr.mxu0 %v144
    %2022 = vmatpush1.msra.mxu0 %v143
    %2023 = vmatprep.subr.mxu0 0.0
    %2024 = vmatpush1.msra.mxu0 0.0
    %2025 = vmatprep.subr.mxu0 0.0
    %2026 = vmatpush1.msra.mxu0 0.0
    %2027 = vmatprep.subr.mxu0 0.0
    %2028 = vmatpush1.msra.mxu0 0.0
    %2029 = vmatprep.subr.mxu0 0.0
    %2030 = vmatpush1.msra.mxu0 0.0
    %2031 = vmatprep.subr.mxu0 0.0
    %2032 = vmatpush1.msra.mxu0 0.0
    %2033 = vmatprep.subr.mxu0 0.0
    %2034 = vmatpush1.msra.mxu0 0.0
    %2035 = vmatprep.subr.mxu0 0.0
    %2036 = vmatpush1.msra.mxu0 0.0
    %2037 = vmatprep.subr.mxu0 0.0
    %2038 = vmatpush1.msra.mxu0 0.0
    %2039 = vmatprep.subr.mxu0 0.0
    %2040 = vmatpush1.msra.mxu0 0.0
    %2041 = vmatprep.subr.mxu0 0.0
    %2042 = vmatpush1.msra.mxu0 0.0
    %2043 = vmatprep.subr.mxu0 0.0
    %2044 = vmatpush1.msra.mxu0 0.0
    %2045 = vmatprep.subr.mxu0 0.0
    %2046 = vmatpush1.msra.mxu0 0.0
    %2047 = vmatprep.subr.mxu0 0.0
    %2048 = vmatpush1.msra.mxu0 0.0
    %2049 = vmatprep.subr.mxu0 0.0
    %2050 = vmatpush1.msra.mxu0 0.0
    %2051 = vmatprep.subr.mxu0 0.0
    %2052 = vmatpush1.msra.mxu0 0.0
    %2053 = vmatprep.subr.mxu0 0.0
    %2054 = vmatpush1.msra.mxu0 0.0
    %2055 = vmatprep.mubr.f32.mxu0 0.0
    %2056 = vmatmul.mubr.f32.gmra.mrb[0].mxu0 %v1912
    %v2057 = vpop.f32.mrb[0].mxu0
    %v2058 = vadd.f32 0.0, %v2057
    %v2059 = vpop.f32.mrb[0].mxu0
    %v2060 = vadd.f32 0.0, %v2059
    %2061 = vdwg.mxu0
    %v2062 = vadd.f32 %v1916, %v1987
    %v2063 = vadd.f32 %v1917, %v1989
    %v2064 = vadd.f32 %v1918, %v2058
    %v2065 = vadd.f32 %v1919, %v2060
    %v2066 = vxor.u32 %v2062, 2147483648
    %v2067 = vmul.f32 %v2066, 1.442695
    %v2068 = vpow.pop %v2067
    %v2069 = vadd.f32 %v2068, 1.0
    %v2070 = vrcp.pop %v2069
    %v2071 = vmul.f32 1.0, %v2070
    %v2072 = vxor.u32 %v2063, 2147483648
    %v2073 = vmul.f32 %v2072, 1.442695
    %v2074 = vpow.pop %v2073
    %v2075 = vadd.f32 %v2074, 1.0
    %v2076 = vrcp.pop %v2075
    %v2077 = vmul.f32 1.0, %v2076
    %v2078 = vtanh.pop %v2064
    %v2079 = vxor.u32 %v2065, 2147483648
    %v2080 = vmul.f32 %v2079, 1.442695
    %v2081 = vpow.pop %v2080
    %v2082 = vadd.f32 %v2081, 1.0
    %v2083 = vrcp.pop %v2082
    %v2084 = vmul.f32 1.0, %v2083
    %v2085 = vmul.f32 %v2077, %v1910
    %v2086 = vmul.f32 %v2071, %v2078
    %v2087 = vadd.f32 %v2085, %v2086
    %v2088 = vtanh.pop %v2087
    %v2089 = vmul.f32 %v2084, %v2088
    %s2090 = scalar_lea.vmem [#allocation12], 80
    %2091 = vst [vmem:[%s2090] sm:$0xff] %v2089
    %s2092 = scalar_lea.vmem [#allocation4], 352
    %v2093 = vld [vmem:[%s2092] sm:$0xff]
    %v2094 = vld [vmem:[%s2092 + $0x8] sm:$0xff]
    %v2095 = vld [vmem:[%s2092 + $0x10] sm:$0xff]
    %v2096 = vld [vmem:[%s2092 + $0x18] sm:$0xff]
    %2097 = vmatprep.subr.mxu0 %v82
    %2098 = vmatpush1.msra.mxu0 %v81
    %2099 = vmatprep.subr.mxu0 %v86
    %2100 = vmatpush1.msra.mxu0 %v85
    %2101 = vmatprep.subr.mxu0 %v90
    %2102 = vmatpush1.msra.mxu0 %v89
    %2103 = vmatprep.subr.mxu0 %v94
    %2104 = vmatpush1.msra.mxu0 %v93
    %2105 = vmatprep.subr.mxu0 %v98
    %2106 = vmatpush1.msra.mxu0 %v97
    %2107 = vmatprep.subr.mxu0 %v102
    %2108 = vmatpush1.msra.mxu0 %v101
    %2109 = vmatprep.subr.mxu0 %v106
    %2110 = vmatpush1.msra.mxu0 %v105
    %2111 = vmatprep.subr.mxu0 %v110
    %2112 = vmatpush1.msra.mxu0 %v109
    %2113 = vmatprep.subr.mxu0 %v114
    %2114 = vmatpush1.msra.mxu0 %v113
    %2115 = vmatprep.subr.mxu0 %v118
    %2116 = vmatpush1.msra.mxu0 %v117
    %2117 = vmatprep.subr.mxu0 %v122
    %2118 = vmatpush1.msra.mxu0 %v121
    %2119 = vmatprep.subr.mxu0 %v126
    %2120 = vmatpush1.msra.mxu0 %v125
    %2121 = vmatprep.subr.mxu0 %v130
    %2122 = vmatpush1.msra.mxu0 %v129
    %2123 = vmatprep.subr.mxu0 %v134
    %2124 = vmatpush1.msra.mxu0 %v133
    %2125 = vmatprep.subr.mxu0 %v138
    %2126 = vmatpush1.msra.mxu0 %v137
    %2127 = vmatprep.subr.mxu0 %v142
    %2128 = vmatpush1.msra.mxu0 %v141
    %2129 = vmatprep.subr.mxu0 0.0
    %2130 = vmatpush1.msra.mxu0 0.0
    %2131 = vmatprep.subr.mxu0 0.0
    %2132 = vmatpush1.msra.mxu0 0.0
    %2133 = vmatprep.subr.mxu0 0.0
    %2134 = vmatpush1.msra.mxu0 0.0
    %2135 = vmatprep.subr.mxu0 0.0
    %2136 = vmatpush1.msra.mxu0 0.0
    %2137 = vmatprep.subr.mxu0 0.0
    %2138 = vmatpush1.msra.mxu0 0.0
    %2139 = vmatprep.subr.mxu0 0.0
    %2140 = vmatpush1.msra.mxu0 0.0
    %2141 = vmatprep.subr.mxu0 0.0
    %2142 = vmatpush1.msra.mxu0 0.0
    %2143 = vmatprep.subr.mxu0 0.0
    %2144 = vmatpush1.msra.mxu0 0.0
    %2145 = vmatprep.subr.mxu0 0.0
    %2146 = vmatpush1.msra.mxu0 0.0
    %2147 = vmatprep.subr.mxu0 0.0
    %2148 = vmatpush1.msra.mxu0 0.0
    %2149 = vmatprep.subr.mxu0 0.0
    %2150 = vmatpush1.msra.mxu0 0.0
    %2151 = vmatprep.subr.mxu0 0.0
    %2152 = vmatpush1.msra.mxu0 0.0
    %2153 = vmatprep.subr.mxu0 0.0
    %2154 = vmatpush1.msra.mxu0 0.0
    %2155 = vmatprep.subr.mxu0 0.0
    %2156 = vmatpush1.msra.mxu0 0.0
    %2157 = vmatprep.subr.mxu0 0.0
    %2158 = vmatpush1.msra.mxu0 0.0
    %2159 = vmatprep.subr.mxu0 0.0
    %2160 = vmatpush1.msra.mxu0 0.0
    %2161 = vmatprep.mubr.f32.mxu0 0.0
    %2162 = vmatmul.mubr.f32.gmra.mrb[0].mxu0 %v2089
    %v2163 = vpop.f32.mrb[0].mxu0
    %v2164 = vadd.f32 0.0, %v2163
    %v2165 = vpop.f32.mrb[0].mxu0
    %v2166 = vadd.f32 0.0, %v2165
    %2167 = vdwg.mxu0
    %2168 = vmatprep.subr.mxu0 %v84
    %2169 = vmatpush1.msra.mxu0 %v83
    %2170 = vmatprep.subr.mxu0 %v88
    %2171 = vmatpush1.msra.mxu0 %v87
    %2172 = vmatprep.subr.mxu0 %v92
    %2173 = vmatpush1.msra.mxu0 %v91
    %2174 = vmatprep.subr.mxu0 %v96
    %2175 = vmatpush1.msra.mxu0 %v95
    %2176 = vmatprep.subr.mxu0 %v100
    %2177 = vmatpush1.msra.mxu0 %v99
    %2178 = vmatprep.subr.mxu0 %v104
    %2179 = vmatpush1.msra.mxu0 %v103
    %2180 = vmatprep.subr.mxu0 %v108
    %2181 = vmatpush1.msra.mxu0 %v107
    %2182 = vmatprep.subr.mxu0 %v112
    %2183 = vmatpush1.msra.mxu0 %v111
    %2184 = vmatprep.subr.mxu0 %v116
    %2185 = vmatpush1.msra.mxu0 %v115
    %2186 = vmatprep.subr.mxu0 %v120
    %2187 = vmatpush1.msra.mxu0 %v119
    %2188 = vmatprep.subr.mxu0 %v124
    %2189 = vmatpush1.msra.mxu0 %v123
    %2190 = vmatprep.subr.mxu0 %v128
    %2191 = vmatpush1.msra.mxu0 %v127
    %2192 = vmatprep.subr.mxu0 %v132
    %2193 = vmatpush1.msra.mxu0 %v131
    %2194 = vmatprep.subr.mxu0 %v136
    %2195 = vmatpush1.msra.mxu0 %v135
    %2196 = vmatprep.subr.mxu0 %v140
    %2197 = vmatpush1.msra.mxu0 %v139
    %2198 = vmatprep.subr.mxu0 %v144
    %2199 = vmatpush1.msra.mxu0 %v143
    %2200 = vmatprep.subr.mxu0 0.0
    %2201 = vmatpush1.msra.mxu0 0.0
    %2202 = vmatprep.subr.mxu0 0.0
    %2203 = vmatpush1.msra.mxu0 0.0
    %2204 = vmatprep.subr.mxu0 0.0
    %2205 = vmatpush1.msra.mxu0 0.0
    %2206 = vmatprep.subr.mxu0 0.0
    %2207 = vmatpush1.msra.mxu0 0.0
    %2208 = vmatprep.subr.mxu0 0.0
    %2209 = vmatpush1.msra.mxu0 0.0
    %2210 = vmatprep.subr.mxu0 0.0
    %2211 = vmatpush1.msra.mxu0 0.0
    %2212 = vmatprep.subr.mxu0 0.0
    %2213 = vmatpush1.msra.mxu0 0.0
    %2214 = vmatprep.subr.mxu0 0.0
    %2215 = vmatpush1.msra.mxu0 0.0
    %2216 = vmatprep.subr.mxu0 0.0
    %2217 = vmatpush1.msra.mxu0 0.0
    %2218 = vmatprep.subr.mxu0 0.0
    %2219 = vmatpush1.msra.mxu0 0.0
    %2220 = vmatprep.subr.mxu0 0.0
    %2221 = vmatpush1.msra.mxu0 0.0
    %2222 = vmatprep.subr.mxu0 0.0
    %2223 = vmatpush1.msra.mxu0 0.0
    %2224 = vmatprep.subr.mxu0 0.0
    %2225 = vmatpush1.msra.mxu0 0.0
    %2226 = vmatprep.subr.mxu0 0.0
    %2227 = vmatpush1.msra.mxu0 0.0
    %2228 = vmatprep.subr.mxu0 0.0
    %2229 = vmatpush1.msra.mxu0 0.0
    %2230 = vmatprep.subr.mxu0 0.0
    %2231 = vmatpush1.msra.mxu0 0.0
    %2232 = vmatprep.mubr.f32.mxu0 0.0
    %2233 = vmatmul.mubr.f32.gmra.mrb[0].mxu0 %v2089
    %v2234 = vpop.f32.mrb[0].mxu0
    %v2235 = vadd.f32 0.0, %v2234
    %v2236 = vpop.f32.mrb[0].mxu0
    %v2237 = vadd.f32 0.0, %v2236
    %2238 = vdwg.mxu0
    %v2239 = vadd.f32 %v2093, %v2164
    %v2240 = vadd.f32 %v2094, %v2166
    %v2241 = vadd.f32 %v2095, %v2235
    %v2242 = vadd.f32 %v2096, %v2237
    %v2243 = vxor.u32 %v2239, 2147483648
    %v2244 = vmul.f32 %v2243, 1.442695
    %v2245 = vpow.pop %v2244
    %v2246 = vadd.f32 %v2245, 1.0
    %v2247 = vrcp.pop %v2246
    %v2248 = vmul.f32 1.0, %v2247
    %v2249 = vxor.u32 %v2240, 2147483648
    %v2250 = vmul.f32 %v2249, 1.442695
    %v2251 = vpow.pop %v2250
    %v2252 = vadd.f32 %v2251, 1.0
    %v2253 = vrcp.pop %v2252
    %v2254 = vmul.f32 1.0, %v2253
    %v2255 = vtanh.pop %v2241
    %v2256 = vxor.u32 %v2242, 2147483648
    %v2257 = vmul.f32 %v2256, 1.442695
    %v2258 = vpow.pop %v2257
    %v2259 = vadd.f32 %v2258, 1.0
    %v2260 = vrcp.pop %v2259
    %v2261 = vmul.f32 1.0, %v2260
    %v2262 = vmul.f32 %v2254, %v2087
    %v2263 = vmul.f32 %v2248, %v2255
    %v2264 = vadd.f32 %v2262, %v2263
    %v2265 = vtanh.pop %v2264
    %v2266 = vmul.f32 %v2261, %v2265
    %s2267 = scalar_lea.vmem [#allocation12], 88
    %2268 = vst [vmem:[%s2267] sm:$0xff] %v2266
    %s2269 = scalar_lea.vmem [#allocation4], 384
    %v2270 = vld [vmem:[%s2269] sm:$0xff]
    %v2271 = vld [vmem:[%s2269 + $0x8] sm:$0xff]
    %v2272 = vld [vmem:[%s2269 + $0x10] sm:$0xff]
    %v2273 = vld [vmem:[%s2269 + $0x18] sm:$0xff]
    %2274 = vmatprep.subr.mxu0 %v82
    %2275 = vmatpush1.msra.mxu0 %v81
    %2276 = vmatprep.subr.mxu0 %v86
    %2277 = vmatpush1.msra.mxu0 %v85
    %2278 = vmatprep.subr.mxu0 %v90
    %2279 = vmatpush1.msra.mxu0 %v89
    %2280 = vmatprep.subr.mxu0 %v94
    %2281 = vmatpush1.msra.mxu0 %v93
    %2282 = vmatprep.subr.mxu0 %v98
    %2283 = vmatpush1.msra.mxu0 %v97
    %2284 = vmatprep.subr.mxu0 %v102
    %2285 = vmatpush1.msra.mxu0 %v101
    %2286 = vmatprep.subr.mxu0 %v106
    %2287 = vmatpush1.msra.mxu0 %v105
    %2288 = vmatprep.subr.mxu0 %v110
    %2289 = vmatpush1.msra.mxu0 %v109
    %2290 = vmatprep.subr.mxu0 %v114
    %2291 = vmatpush1.msra.mxu0 %v113
    %2292 = vmatprep.subr.mxu0 %v118
    %2293 = vmatpush1.msra.mxu0 %v117
    %2294 = vmatprep.subr.mxu0 %v122
    %2295 = vmatpush1.msra.mxu0 %v121
    %2296 = vmatprep.subr.mxu0 %v126
    %2297 = vmatpush1.msra.mxu0 %v125
    %2298 = vmatprep.subr.mxu0 %v130
    %2299 = vmatpush1.msra.mxu0 %v129
    %2300 = vmatprep.subr.mxu0 %v134
    %2301 = vmatpush1.msra.mxu0 %v133
    %2302 = vmatprep.subr.mxu0 %v138
    %2303 = vmatpush1.msra.mxu0 %v137
    %2304 = vmatprep.subr.mxu0 %v142
    %2305 = vmatpush1.msra.mxu0 %v141
    %2306 = vmatprep.subr.mxu0 0.0
    %2307 = vmatpush1.msra.mxu0 0.0
    %2308 = vmatprep.subr.mxu0 0.0
    %2309 = vmatpush1.msra.mxu0 0.0
    %2310 = vmatprep.subr.mxu0 0.0
    %2311 = vmatpush1.msra.mxu0 0.0
    %2312 = vmatprep.subr.mxu0 0.0
    %2313 = vmatpush1.msra.mxu0 0.0
    %2314 = vmatprep.subr.mxu0 0.0
    %2315 = vmatpush1.msra.mxu0 0.0
    %2316 = vmatprep.subr.mxu0 0.0
    %2317 = vmatpush1.msra.mxu0 0.0
    %2318 = vmatprep.subr.mxu0 0.0
    %2319 = vmatpush1.msra.mxu0 0.0
    %2320 = vmatprep.subr.mxu0 0.0
    %2321 = vmatpush1.msra.mxu0 0.0
    %2322 = vmatprep.subr.mxu0 0.0
    %2323 = vmatpush1.msra.mxu0 0.0
    %2324 = vmatprep.subr.mxu0 0.0
    %2325 = vmatpush1.msra.mxu0 0.0
    %2326 = vmatprep.subr.mxu0 0.0
    %2327 = vmatpush1.msra.mxu0 0.0
    %2328 = vmatprep.subr.mxu0 0.0
    %2329 = vmatpush1.msra.mxu0 0.0
    %2330 = vmatprep.subr.mxu0 0.0
    %2331 = vmatpush1.msra.mxu0 0.0
    %2332 = vmatprep.subr.mxu0 0.0
    %2333 = vmatpush1.msra.mxu0 0.0
    %2334 = vmatprep.subr.mxu0 0.0
    %2335 = vmatpush1.msra.mxu0 0.0
    %2336 = vmatprep.subr.mxu0 0.0
    %2337 = vmatpush1.msra.mxu0 0.0
    %2338 = vmatprep.mubr.f32.mxu0 0.0
    %2339 = vmatmul.mubr.f32.gmra.mrb[0].mxu0 %v2266
    %v2340 = vpop.f32.mrb[0].mxu0
    %v2341 = vadd.f32 0.0, %v2340
    %v2342 = vpop.f32.mrb[0].mxu0
    %v2343 = vadd.f32 0.0, %v2342
    %2344 = vdwg.mxu0
    %2345 = vmatprep.subr.mxu0 %v84
    %2346 = vmatpush1.msra.mxu0 %v83
    %2347 = vmatprep.subr.mxu0 %v88
    %2348 = vmatpush1.msra.mxu0 %v87
    %2349 = vmatprep.subr.mxu0 %v92
    %2350 = vmatpush1.msra.mxu0 %v91
    %2351 = vmatprep.subr.mxu0 %v96
    %2352 = vmatpush1.msra.mxu0 %v95
    %2353 = vmatprep.subr.mxu0 %v100
    %2354 = vmatpush1.msra.mxu0 %v99
    %2355 = vmatprep.subr.mxu0 %v104
    %2356 = vmatpush1.msra.mxu0 %v103
    %2357 = vmatprep.subr.mxu0 %v108
    %2358 = vmatpush1.msra.mxu0 %v107
    %2359 = vmatprep.subr.mxu0 %v112
    %2360 = vmatpush1.msra.mxu0 %v111
    %2361 = vmatprep.subr.mxu0 %v116
    %2362 = vmatpush1.msra.mxu0 %v115
    %2363 = vmatprep.subr.mxu0 %v120
    %2364 = vmatpush1.msra.mxu0 %v119
    %2365 = vmatprep.subr.mxu0 %v124
    %2366 = vmatpush1.msra.mxu0 %v123
    %2367 = vmatprep.subr.mxu0 %v128
    %2368 = vmatpush1.msra.mxu0 %v127
    %2369 = vmatprep.subr.mxu0 %v132
    %2370 = vmatpush1.msra.mxu0 %v131
    %2371 = vmatprep.subr.mxu0 %v136
    %2372 = vmatpush1.msra.mxu0 %v135
    %2373 = vmatprep.subr.mxu0 %v140
    %2374 = vmatpush1.msra.mxu0 %v139
    %2375 = vmatprep.subr.mxu0 %v144
    %2376 = vmatpush1.msra.mxu0 %v143
    %2377 = vmatprep.subr.mxu0 0.0
    %2378 = vmatpush1.msra.mxu0 0.0
    %2379 = vmatprep.subr.mxu0 0.0
    %2380 = vmatpush1.msra.mxu0 0.0
    %2381 = vmatprep.subr.mxu0 0.0
    %2382 = vmatpush1.msra.mxu0 0.0
    %2383 = vmatprep.subr.mxu0 0.0
    %2384 = vmatpush1.msra.mxu0 0.0
    %2385 = vmatprep.subr.mxu0 0.0
    %2386 = vmatpush1.msra.mxu0 0.0
    %2387 = vmatprep.subr.mxu0 0.0
    %2388 = vmatpush1.msra.mxu0 0.0
    %2389 = vmatprep.subr.mxu0 0.0
    %2390 = vmatpush1.msra.mxu0 0.0
    %2391 = vmatprep.subr.mxu0 0.0
    %2392 = vmatpush1.msra.mxu0 0.0
    %2393 = vmatprep.subr.mxu0 0.0
    %2394 = vmatpush1.msra.mxu0 0.0
    %2395 = vmatprep.subr.mxu0 0.0
    %2396 = vmatpush1.msra.mxu0 0.0
    %2397 = vmatprep.subr.mxu0 0.0
    %2398 = vmatpush1.msra.mxu0 0.0
    %2399 = vmatprep.subr.mxu0 0.0
    %2400 = vmatpush1.msra.mxu0 0.0
    %2401 = vmatprep.subr.mxu0 0.0
    %2402 = vmatpush1.msra.mxu0 0.0
    %2403 = vmatprep.subr.mxu0 0.0
    %2404 = vmatpush1.msra.mxu0 0.0
    %2405 = vmatprep.subr.mxu0 0.0
    %2406 = vmatpush1.msra.mxu0 0.0
    %2407 = vmatprep.subr.mxu0 0.0
    %2408 = vmatpush1.msra.mxu0 0.0
    %2409 = vmatprep.mubr.f32.mxu0 0.0
    %2410 = vmatmul.mubr.f32.gmra.mrb[0].mxu0 %v2266
    %v2411 = vpop.f32.mrb[0].mxu0
    %v2412 = vadd.f32 0.0, %v2411
    %v2413 = vpop.f32.mrb[0].mxu0
    %v2414 = vadd.f32 0.0, %v2413
    %2415 = vdwg.mxu0
    %v2416 = vadd.f32 %v2270, %v2341
    %v2417 = vadd.f32 %v2271, %v2343
    %v2418 = vadd.f32 %v2272, %v2412
    %v2419 = vadd.f32 %v2273, %v2414
    %v2420 = vxor.u32 %v2416, 2147483648
    %v2421 = vmul.f32 %v2420, 1.442695
    %v2422 = vpow.pop %v2421
    %v2423 = vadd.f32 %v2422, 1.0
    %v2424 = vrcp.pop %v2423
    %v2425 = vmul.f32 1.0, %v2424
    %v2426 = vxor.u32 %v2417, 2147483648
    %v2427 = vmul.f32 %v2426, 1.442695
    %v2428 = vpow.pop %v2427
    %v2429 = vadd.f32 %v2428, 1.0
    %v2430 = vrcp.pop %v2429
    %v2431 = vmul.f32 1.0, %v2430
    %v2432 = vtanh.pop %v2418
    %v2433 = vxor.u32 %v2419, 2147483648
    %v2434 = vmul.f32 %v2433, 1.442695
    %v2435 = vpow.pop %v2434
    %v2436 = vadd.f32 %v2435, 1.0
    %v2437 = vrcp.pop %v2436
    %v2438 = vmul.f32 1.0, %v2437
    %v2439 = vmul.f32 %v2431, %v2264
    %v2440 = vmul.f32 %v2425, %v2432
    %v2441 = vadd.f32 %v2439, %v2440
    %v2442 = vtanh.pop %v2441
    %v2443 = vmul.f32 %v2438, %v2442
    %s2444 = scalar_lea.vmem [#allocation12], 96
    %2445 = vst [vmem:[%s2444] sm:$0xff] %v2443
    %s2446 = scalar_lea.vmem [#allocation4], 416
    %v2447 = vld [vmem:[%s2446] sm:$0xff]
    %v2448 = vld [vmem:[%s2446 + $0x8] sm:$0xff]
    %v2449 = vld [vmem:[%s2446 + $0x10] sm:$0xff]
    %v2450 = vld [vmem:[%s2446 + $0x18] sm:$0xff]
    %2451 = vmatprep.subr.mxu0 %v82
    %2452 = vmatpush1.msra.mxu0 %v81
    %2453 = vmatprep.subr.mxu0 %v86
    %2454 = vmatpush1.msra.mxu0 %v85
    %2455 = vmatprep.subr.mxu0 %v90
    %2456 = vmatpush1.msra.mxu0 %v89
    %2457 = vmatprep.subr.mxu0 %v94
    %2458 = vmatpush1.msra.mxu0 %v93
    %2459 = vmatprep.subr.mxu0 %v98
    %2460 = vmatpush1.msra.mxu0 %v97
    %2461 = vmatprep.subr.mxu0 %v102
    %2462 = vmatpush1.msra.mxu0 %v101
    %2463 = vmatprep.subr.mxu0 %v106
    %2464 = vmatpush1.msra.mxu0 %v105
    %2465 = vmatprep.subr.mxu0 %v110
    %2466 = vmatpush1.msra.mxu0 %v109
    %2467 = vmatprep.subr.mxu0 %v114
    %2468 = vmatpush1.msra.mxu0 %v113
    %2469 = vmatprep.subr.mxu0 %v118
    %2470 = vmatpush1.msra.mxu0 %v117
    %2471 = vmatprep.subr.mxu0 %v122
    %2472 = vmatpush1.msra.mxu0 %v121
    %2473 = vmatprep.subr.mxu0 %v126
    %2474 = vmatpush1.msra.mxu0 %v125
    %2475 = vmatprep.subr.mxu0 %v130
    %2476 = vmatpush1.msra.mxu0 %v129
    %2477 = vmatprep.subr.mxu0 %v134
    %2478 = vmatpush1.msra.mxu0 %v133
    %2479 = vmatprep.subr.mxu0 %v138
    %2480 = vmatpush1.msra.mxu0 %v137
    %2481 = vmatprep.subr.mxu0 %v142
    %2482 = vmatpush1.msra.mxu0 %v141
    %2483 = vmatprep.subr.mxu0 0.0
    %2484 = vmatpush1.msra.mxu0 0.0
    %2485 = vmatprep.subr.mxu0 0.0
    %2486 = vmatpush1.msra.mxu0 0.0
    %2487 = vmatprep.subr.mxu0 0.0
    %2488 = vmatpush1.msra.mxu0 0.0
    %2489 = vmatprep.subr.mxu0 0.0
    %2490 = vmatpush1.msra.mxu0 0.0
    %2491 = vmatprep.subr.mxu0 0.0
    %2492 = vmatpush1.msra.mxu0 0.0
    %2493 = vmatprep.subr.mxu0 0.0
    %2494 = vmatpush1.msra.mxu0 0.0
    %2495 = vmatprep.subr.mxu0 0.0
    %2496 = vmatpush1.msra.mxu0 0.0
    %2497 = vmatprep.subr.mxu0 0.0
    %2498 = vmatpush1.msra.mxu0 0.0
    %2499 = vmatprep.subr.mxu0 0.0
    %2500 = vmatpush1.msra.mxu0 0.0
    %2501 = vmatprep.subr.mxu0 0.0
    %2502 = vmatpush1.msra.mxu0 0.0
    %2503 = vmatprep.subr.mxu0 0.0
    %2504 = vmatpush1.msra.mxu0 0.0
    %2505 = vmatprep.subr.mxu0 0.0
    %2506 = vmatpush1.msra.mxu0 0.0
    %2507 = vmatprep.subr.mxu0 0.0
    %2508 = vmatpush1.msra.mxu0 0.0
    %2509 = vmatprep.subr.mxu0 0.0
    %2510 = vmatpush1.msra.mxu0 0.0
    %2511 = vmatprep.subr.mxu0 0.0
    %2512 = vmatpush1.msra.mxu0 0.0
    %2513 = vmatprep.subr.mxu0 0.0
    %2514 = vmatpush1.msra.mxu0 0.0
    %2515 = vmatprep.mubr.f32.mxu0 0.0
    %2516 = vmatmul.mubr.f32.gmra.mrb[0].mxu0 %v2443
    %v2517 = vpop.f32.mrb[0].mxu0
    %v2518 = vadd.f32 0.0, %v2517
    %v2519 = vpop.f32.mrb[0].mxu0
    %v2520 = vadd.f32 0.0, %v2519
    %2521 = vdwg.mxu0
    %2522 = vmatprep.subr.mxu0 %v84
    %2523 = vmatpush1.msra.mxu0 %v83
    %2524 = vmatprep.subr.mxu0 %v88
    %2525 = vmatpush1.msra.mxu0 %v87
    %2526 = vmatprep.subr.mxu0 %v92
    %2527 = vmatpush1.msra.mxu0 %v91
    %2528 = vmatprep.subr.mxu0 %v96
    %2529 = vmatpush1.msra.mxu0 %v95
    %2530 = vmatprep.subr.mxu0 %v100
    %2531 = vmatpush1.msra.mxu0 %v99
    %2532 = vmatprep.subr.mxu0 %v104
    %2533 = vmatpush1.msra.mxu0 %v103
    %2534 = vmatprep.subr.mxu0 %v108
    %2535 = vmatpush1.msra.mxu0 %v107
    %2536 = vmatprep.subr.mxu0 %v112
    %2537 = vmatpush1.msra.mxu0 %v111
    %2538 = vmatprep.subr.mxu0 %v116
    %2539 = vmatpush1.msra.mxu0 %v115
    %2540 = vmatprep.subr.mxu0 %v120
    %2541 = vmatpush1.msra.mxu0 %v119
    %2542 = vmatprep.subr.mxu0 %v124
    %2543 = vmatpush1.msra.mxu0 %v123
    %2544 = vmatprep.subr.mxu0 %v128
    %2545 = vmatpush1.msra.mxu0 %v127
    %2546 = vmatprep.subr.mxu0 %v132
    %2547 = vmatpush1.msra.mxu0 %v131
    %2548 = vmatprep.subr.mxu0 %v136
    %2549 = vmatpush1.msra.mxu0 %v135
    %2550 = vmatprep.subr.mxu0 %v140
    %2551 = vmatpush1.msra.mxu0 %v139
    %2552 = vmatprep.subr.mxu0 %v144
    %2553 = vmatpush1.msra.mxu0 %v143
    %2554 = vmatprep.subr.mxu0 0.0
    %2555 = vmatpush1.msra.mxu0 0.0
    %2556 = vmatprep.subr.mxu0 0.0
    %2557 = vmatpush1.msra.mxu0 0.0
    %2558 = vmatprep.subr.mxu0 0.0
    %2559 = vmatpush1.msra.mxu0 0.0
    %2560 = vmatprep.subr.mxu0 0.0
    %2561 = vmatpush1.msra.mxu0 0.0
    %2562 = vmatprep.subr.mxu0 0.0
    %2563 = vmatpush1.msra.mxu0 0.0
    %2564 = vmatprep.subr.mxu0 0.0
    %2565 = vmatpush1.msra.mxu0 0.0
    %2566 = vmatprep.subr.mxu0 0.0
    %2567 = vmatpush1.msra.mxu0 0.0
    %2568 = vmatprep.subr.mxu0 0.0
    %2569 = vmatpush1.msra.mxu0 0.0
    %2570 = vmatprep.subr.mxu0 0.0
    %2571 = vmatpush1.msra.mxu0 0.0
    %2572 = vmatprep.subr.mxu0 0.0
    %2573 = vmatpush1.msra.mxu0 0.0
    %2574 = vmatprep.subr.mxu0 0.0
    %2575 = vmatpush1.msra.mxu0 0.0
    %2576 = vmatprep.subr.mxu0 0.0
    %2577 = vmatpush1.msra.mxu0 0.0
    %2578 = vmatprep.subr.mxu0 0.0
    %2579 = vmatpush1.msra.mxu0 0.0
    %2580 = vmatprep.subr.mxu0 0.0
    %2581 = vmatpush1.msra.mxu0 0.0
    %2582 = vmatprep.subr.mxu0 0.0
    %2583 = vmatpush1.msra.mxu0 0.0
    %2584 = vmatprep.subr.mxu0 0.0
    %2585 = vmatpush1.msra.mxu0 0.0
    %2586 = vmatprep.mubr.f32.mxu0 0.0
    %2587 = vmatmul.mubr.f32.gmra.mrb[0].mxu0 %v2443
    %v2588 = vpop.f32.mrb[0].mxu0
    %v2589 = vadd.f32 0.0, %v2588
    %v2590 = vpop.f32.mrb[0].mxu0
    %v2591 = vadd.f32 0.0, %v2590
    %2592 = vdwg.mxu0
    %v2593 = vadd.f32 %v2447, %v2518
    %v2594 = vadd.f32 %v2448, %v2520
    %v2595 = vadd.f32 %v2449, %v2589
    %v2596 = vadd.f32 %v2450, %v2591
    %v2597 = vxor.u32 %v2593, 2147483648
    %v2598 = vmul.f32 %v2597, 1.442695
    %v2599 = vpow.pop %v2598
    %v2600 = vadd.f32 %v2599, 1.0
    %v2601 = vrcp.pop %v2600
    %v2602 = vmul.f32 1.0, %v2601
    %v2603 = vxor.u32 %v2594, 2147483648
    %v2604 = vmul.f32 %v2603, 1.442695
    %v2605 = vpow.pop %v2604
    %v2606 = vadd.f32 %v2605, 1.0
    %v2607 = vrcp.pop %v2606
    %v2608 = vmul.f32 1.0, %v2607
    %v2609 = vtanh.pop %v2595
    %v2610 = vxor.u32 %v2596, 2147483648
    %v2611 = vmul.f32 %v2610, 1.442695
    %v2612 = vpow.pop %v2611
    %v2613 = vadd.f32 %v2612, 1.0
    %v2614 = vrcp.pop %v2613
    %v2615 = vmul.f32 1.0, %v2614
    %v2616 = vmul.f32 %v2608, %v2441
    %v2617 = vmul.f32 %v2602, %v2609
    %v2618 = vadd.f32 %v2616, %v2617
    %v2619 = vtanh.pop %v2618
    %v2620 = vmul.f32 %v2615, %v2619
    %s2621 = scalar_lea.vmem [#allocation12], 104
    %2622 = vst [vmem:[%s2621] sm:$0xff] %v2620
    %s2623 = scalar_lea.vmem [#allocation4], 448
    %v2624 = vld [vmem:[%s2623] sm:$0xff]
    %v2625 = vld [vmem:[%s2623 + $0x8] sm:$0xff]
    %v2626 = vld [vmem:[%s2623 + $0x10] sm:$0xff]
    %v2627 = vld [vmem:[%s2623 + $0x18] sm:$0xff]
    %2628 = vmatprep.subr.mxu0 %v82
    %2629 = vmatpush1.msra.mxu0 %v81
    %2630 = vmatprep.subr.mxu0 %v86
    %2631 = vmatpush1.msra.mxu0 %v85
    %2632 = vmatprep.subr.mxu0 %v90
    %2633 = vmatpush1.msra.mxu0 %v89
    %2634 = vmatprep.subr.mxu0 %v94
    %2635 = vmatpush1.msra.mxu0 %v93
    %2636 = vmatprep.subr.mxu0 %v98
    %2637 = vmatpush1.msra.mxu0 %v97
    %2638 = vmatprep.subr.mxu0 %v102
    %2639 = vmatpush1.msra.mxu0 %v101
    %2640 = vmatprep.subr.mxu0 %v106
    %2641 = vmatpush1.msra.mxu0 %v105
    %2642 = vmatprep.subr.mxu0 %v110
    %2643 = vmatpush1.msra.mxu0 %v109
    %2644 = vmatprep.subr.mxu0 %v114
    %2645 = vmatpush1.msra.mxu0 %v113
    %2646 = vmatprep.subr.mxu0 %v118
    %2647 = vmatpush1.msra.mxu0 %v117
    %2648 = vmatprep.subr.mxu0 %v122
    %2649 = vmatpush1.msra.mxu0 %v121
    %2650 = vmatprep.subr.mxu0 %v126
    %2651 = vmatpush1.msra.mxu0 %v125
    %2652 = vmatprep.subr.mxu0 %v130
    %2653 = vmatpush1.msra.mxu0 %v129
    %2654 = vmatprep.subr.mxu0 %v134
    %2655 = vmatpush1.msra.mxu0 %v133
    %2656 = vmatprep.subr.mxu0 %v138
    %2657 = vmatpush1.msra.mxu0 %v137
    %2658 = vmatprep.subr.mxu0 %v142
    %2659 = vmatpush1.msra.mxu0 %v141
    %2660 = vmatprep.subr.mxu0 0.0
    %2661 = vmatpush1.msra.mxu0 0.0
    %2662 = vmatprep.subr.mxu0 0.0
    %2663 = vmatpush1.msra.mxu0 0.0
    %2664 = vmatprep.subr.mxu0 0.0
    %2665 = vmatpush1.msra.mxu0 0.0
    %2666 = vmatprep.subr.mxu0 0.0
    %2667 = vmatpush1.msra.mxu0 0.0
    %2668 = vmatprep.subr.mxu0 0.0
    %2669 = vmatpush1.msra.mxu0 0.0
    %2670 = vmatprep.subr.mxu0 0.0
    %2671 = vmatpush1.msra.mxu0 0.0
    %2672 = vmatprep.subr.mxu0 0.0
    %2673 = vmatpush1.msra.mxu0 0.0
    %2674 = vmatprep.subr.mxu0 0.0
    %2675 = vmatpush1.msra.mxu0 0.0
    %2676 = vmatprep.subr.mxu0 0.0
    %2677 = vmatpush1.msra.mxu0 0.0
    %2678 = vmatprep.subr.mxu0 0.0
    %2679 = vmatpush1.msra.mxu0 0.0
    %2680 = vmatprep.subr.mxu0 0.0
    %2681 = vmatpush1.msra.mxu0 0.0
    %2682 = vmatprep.subr.mxu0 0.0
    %2683 = vmatpush1.msra.mxu0 0.0
    %2684 = vmatprep.subr.mxu0 0.0
    %2685 = vmatpush1.msra.mxu0 0.0
    %2686 = vmatprep.subr.mxu0 0.0
    %2687 = vmatpush1.msra.mxu0 0.0
    %2688 = vmatprep.subr.mxu0 0.0
    %2689 = vmatpush1.msra.mxu0 0.0
    %2690 = vmatprep.subr.mxu0 0.0
    %2691 = vmatpush1.msra.mxu0 0.0
    %2692 = vmatprep.mubr.f32.mxu0 0.0
    %2693 = vmatmul.mubr.f32.gmra.mrb[0].mxu0 %v2620
    %v2694 = vpop.f32.mrb[0].mxu0
    %v2695 = vadd.f32 0.0, %v2694
    %v2696 = vpop.f32.mrb[0].mxu0
    %v2697 = vadd.f32 0.0, %v2696
    %2698 = vdwg.mxu0
    %2699 = vmatprep.subr.mxu0 %v84
    %2700 = vmatpush1.msra.mxu0 %v83
    %2701 = vmatprep.subr.mxu0 %v88
    %2702 = vmatpush1.msra.mxu0 %v87
    %2703 = vmatprep.subr.mxu0 %v92
    %2704 = vmatpush1.msra.mxu0 %v91
    %2705 = vmatprep.subr.mxu0 %v96
    %2706 = vmatpush1.msra.mxu0 %v95
    %2707 = vmatprep.subr.mxu0 %v100
    %2708 = vmatpush1.msra.mxu0 %v99
    %2709 = vmatprep.subr.mxu0 %v104
    %2710 = vmatpush1.msra.mxu0 %v103
    %2711 = vmatprep.subr.mxu0 %v108
    %2712 = vmatpush1.msra.mxu0 %v107
    %2713 = vmatprep.subr.mxu0 %v112
    %2714 = vmatpush1.msra.mxu0 %v111
    %2715 = vmatprep.subr.mxu0 %v116
    %2716 = vmatpush1.msra.mxu0 %v115
    %2717 = vmatprep.subr.mxu0 %v120
    %2718 = vmatpush1.msra.mxu0 %v119
    %2719 = vmatprep.subr.mxu0 %v124
    %2720 = vmatpush1.msra.mxu0 %v123
    %2721 = vmatprep.subr.mxu0 %v128
    %2722 = vmatpush1.msra.mxu0 %v127
    %2723 = vmatprep.subr.mxu0 %v132
    %2724 = vmatpush1.msra.mxu0 %v131
    %2725 = vmatprep.subr.mxu0 %v136
    %2726 = vmatpush1.msra.mxu0 %v135
    %2727 = vmatprep.subr.mxu0 %v140
    %2728 = vmatpush1.msra.mxu0 %v139
    %2729 = vmatprep.subr.mxu0 %v144
    %2730 = vmatpush1.msra.mxu0 %v143
    %2731 = vmatprep.subr.mxu0 0.0
    %2732 = vmatpush1.msra.mxu0 0.0
    %2733 = vmatprep.subr.mxu0 0.0
    %2734 = vmatpush1.msra.mxu0 0.0
    %2735 = vmatprep.subr.mxu0 0.0
    %2736 = vmatpush1.msra.mxu0 0.0
    %2737 = vmatprep.subr.mxu0 0.0
    %2738 = vmatpush1.msra.mxu0 0.0
    %2739 = vmatprep.subr.mxu0 0.0
    %2740 = vmatpush1.msra.mxu0 0.0
    %2741 = vmatprep.subr.mxu0 0.0
    %2742 = vmatpush1.msra.mxu0 0.0
    %2743 = vmatprep.subr.mxu0 0.0
    %2744 = vmatpush1.msra.mxu0 0.0
    %2745 = vmatprep.subr.mxu0 0.0
    %2746 = vmatpush1.msra.mxu0 0.0
    %2747 = vmatprep.subr.mxu0 0.0
    %2748 = vmatpush1.msra.mxu0 0.0
    %2749 = vmatprep.subr.mxu0 0.0
    %2750 = vmatpush1.msra.mxu0 0.0
    %2751 = vmatprep.subr.mxu0 0.0
    %2752 = vmatpush1.msra.mxu0 0.0
    %2753 = vmatprep.subr.mxu0 0.0
    %2754 = vmatpush1.msra.mxu0 0.0
    %2755 = vmatprep.subr.mxu0 0.0
    %2756 = vmatpush1.msra.mxu0 0.0
    %2757 = vmatprep.subr.mxu0 0.0
    %2758 = vmatpush1.msra.mxu0 0.0
    %2759 = vmatprep.subr.mxu0 0.0
    %2760 = vmatpush1.msra.mxu0 0.0
    %2761 = vmatprep.subr.mxu0 0.0
    %2762 = vmatpush1.msra.mxu0 0.0
    %2763 = vmatprep.mubr.f32.mxu0 0.0
    %2764 = vmatmul.mubr.f32.gmra.mrb[0].mxu0 %v2620
    %v2765 = vpop.f32.mrb[0].mxu0
    %v2766 = vadd.f32 0.0, %v2765
    %v2767 = vpop.f32.mrb[0].mxu0
    %v2768 = vadd.f32 0.0, %v2767
    %2769 = vdwg.mxu0
    %v2770 = vadd.f32 %v2624, %v2695
    %v2771 = vadd.f32 %v2625, %v2697
    %v2772 = vadd.f32 %v2626, %v2766
    %v2773 = vadd.f32 %v2627, %v2768
    %v2774 = vxor.u32 %v2770, 2147483648
    %v2775 = vmul.f32 %v2774, 1.442695
    %v2776 = vpow.pop %v2775
    %v2777 = vadd.f32 %v2776, 1.0
    %v2778 = vrcp.pop %v2777
    %v2779 = vmul.f32 1.0, %v2778
    %v2780 = vxor.u32 %v2771, 2147483648
    %v2781 = vmul.f32 %v2780, 1.442695
    %v2782 = vpow.pop %v2781
    %v2783 = vadd.f32 %v2782, 1.0
    %v2784 = vrcp.pop %v2783
    %v2785 = vmul.f32 1.0, %v2784
    %v2786 = vtanh.pop %v2772
    %v2787 = vxor.u32 %v2773, 2147483648
    %v2788 = vmul.f32 %v2787, 1.442695
    %v2789 = vpow.pop %v2788
    %v2790 = vadd.f32 %v2789, 1.0
    %v2791 = vrcp.pop %v2790
    %v2792 = vmul.f32 1.0, %v2791
    %v2793 = vmul.f32 %v2785, %v2618
    %v2794 = vmul.f32 %v2779, %v2786
    %v2795 = vadd.f32 %v2793, %v2794
    %v2796 = vtanh.pop %v2795
    %v2797 = vmul.f32 %v2792, %v2796
    %s2798 = scalar_lea.vmem [#allocation12], 112
    %2799 = vst [vmem:[%s2798] sm:$0xff] %v2797
    %s2800 = scalar_lea.vmem [#allocation4], 480
    %v2801 = vld [vmem:[%s2800] sm:$0xff]
    %v2802 = vld [vmem:[%s2800 + $0x8] sm:$0xff]
    %v2803 = vld [vmem:[%s2800 + $0x10] sm:$0xff]
    %v2804 = vld [vmem:[%s2800 + $0x18] sm:$0xff]
    %2805 = vmatprep.subr.mxu0 %v82
    %2806 = vmatpush1.msra.mxu0 %v81
    %2807 = vmatprep.subr.mxu0 %v86
    %2808 = vmatpush1.msra.mxu0 %v85
    %2809 = vmatprep.subr.mxu0 %v90
    %2810 = vmatpush1.msra.mxu0 %v89
    %2811 = vmatprep.subr.mxu0 %v94
    %2812 = vmatpush1.msra.mxu0 %v93
    %2813 = vmatprep.subr.mxu0 %v98
    %2814 = vmatpush1.msra.mxu0 %v97
    %2815 = vmatprep.subr.mxu0 %v102
    %2816 = vmatpush1.msra.mxu0 %v101
    %2817 = vmatprep.subr.mxu0 %v106
    %2818 = vmatpush1.msra.mxu0 %v105
    %2819 = vmatprep.subr.mxu0 %v110
    %2820 = vmatpush1.msra.mxu0 %v109
    %2821 = vmatprep.subr.mxu0 %v114
    %2822 = vmatpush1.msra.mxu0 %v113
    %2823 = vmatprep.subr.mxu0 %v118
    %2824 = vmatpush1.msra.mxu0 %v117
    %2825 = vmatprep.subr.mxu0 %v122
    %2826 = vmatpush1.msra.mxu0 %v121
    %2827 = vmatprep.subr.mxu0 %v126
    %2828 = vmatpush1.msra.mxu0 %v125
    %2829 = vmatprep.subr.mxu0 %v130
    %2830 = vmatpush1.msra.mxu0 %v129
    %2831 = vmatprep.subr.mxu0 %v134
    %2832 = vmatpush1.msra.mxu0 %v133
    %2833 = vmatprep.subr.mxu0 %v138
    %2834 = vmatpush1.msra.mxu0 %v137
    %2835 = vmatprep.subr.mxu0 %v142
    %2836 = vmatpush1.msra.mxu0 %v141
    %2837 = vmatprep.subr.mxu0 0.0
    %2838 = vmatpush1.msra.mxu0 0.0
    %2839 = vmatprep.subr.mxu0 0.0
    %2840 = vmatpush1.msra.mxu0 0.0
    %2841 = vmatprep.subr.mxu0 0.0
    %2842 = vmatpush1.msra.mxu0 0.0
    %2843 = vmatprep.subr.mxu0 0.0
    %2844 = vmatpush1.msra.mxu0 0.0
    %2845 = vmatprep.subr.mxu0 0.0
    %2846 = vmatpush1.msra.mxu0 0.0
    %2847 = vmatprep.subr.mxu0 0.0
    %2848 = vmatpush1.msra.mxu0 0.0
    %2849 = vmatprep.subr.mxu0 0.0
    %2850 = vmatpush1.msra.mxu0 0.0
    %2851 = vmatprep.subr.mxu0 0.0
    %2852 = vmatpush1.msra.mxu0 0.0
    %2853 = vmatprep.subr.mxu0 0.0
    %2854 = vmatpush1.msra.mxu0 0.0
    %2855 = vmatprep.subr.mxu0 0.0
    %2856 = vmatpush1.msra.mxu0 0.0
    %2857 = vmatprep.subr.mxu0 0.0
    %2858 = vmatpush1.msra.mxu0 0.0
    %2859 = vmatprep.subr.mxu0 0.0
    %2860 = vmatpush1.msra.mxu0 0.0
    %2861 = vmatprep.subr.mxu0 0.0
    %2862 = vmatpush1.msra.mxu0 0.0
    %2863 = vmatprep.subr.mxu0 0.0
    %2864 = vmatpush1.msra.mxu0 0.0
    %2865 = vmatprep.subr.mxu0 0.0
    %2866 = vmatpush1.msra.mxu0 0.0
    %2867 = vmatprep.subr.mxu0 0.0
    %2868 = vmatpush1.msra.mxu0 0.0
    %2869 = vmatprep.mubr.f32.mxu0 0.0
    %2870 = vmatmul.mubr.f32.gmra.mrb[0].mxu0 %v2797
    %v2871 = vpop.f32.mrb[0].mxu0
    %v2872 = vadd.f32 0.0, %v2871
    %v2873 = vpop.f32.mrb[0].mxu0
    %v2874 = vadd.f32 0.0, %v2873
    %2875 = vdwg.mxu0
    %2876 = vmatprep.subr.mxu0 %v84
    %2877 = vmatpush1.msra.mxu0 %v83
    %2878 = vmatprep.subr.mxu0 %v88
    %2879 = vmatpush1.msra.mxu0 %v87
    %2880 = vmatprep.subr.mxu0 %v92
    %2881 = vmatpush1.msra.mxu0 %v91
    %2882 = vmatprep.subr.mxu0 %v96
    %2883 = vmatpush1.msra.mxu0 %v95
    %2884 = vmatprep.subr.mxu0 %v100
    %2885 = vmatpush1.msra.mxu0 %v99
    %2886 = vmatprep.subr.mxu0 %v104
    %2887 = vmatpush1.msra.mxu0 %v103
    %2888 = vmatprep.subr.mxu0 %v108
    %2889 = vmatpush1.msra.mxu0 %v107
    %2890 = vmatprep.subr.mxu0 %v112
    %2891 = vmatpush1.msra.mxu0 %v111
    %2892 = vmatprep.subr.mxu0 %v116
    %2893 = vmatpush1.msra.mxu0 %v115
    %2894 = vmatprep.subr.mxu0 %v120
    %2895 = vmatpush1.msra.mxu0 %v119
    %2896 = vmatprep.subr.mxu0 %v124
    %2897 = vmatpush1.msra.mxu0 %v123
    %2898 = vmatprep.subr.mxu0 %v128
    %2899 = vmatpush1.msra.mxu0 %v127
    %2900 = vmatprep.subr.mxu0 %v132
    %2901 = vmatpush1.msra.mxu0 %v131
    %2902 = vmatprep.subr.mxu0 %v136
    %2903 = vmatpush1.msra.mxu0 %v135
    %2904 = vmatprep.subr.mxu0 %v140
    %2905 = vmatpush1.msra.mxu0 %v139
    %2906 = vmatprep.subr.mxu0 %v144
    %2907 = vmatpush1.msra.mxu0 %v143
    %2908 = vmatprep.subr.mxu0 0.0
    %2909 = vmatpush1.msra.mxu0 0.0
    %2910 = vmatprep.subr.mxu0 0.0
    %2911 = vmatpush1.msra.mxu0 0.0
    %2912 = vmatprep.subr.mxu0 0.0
    %2913 = vmatpush1.msra.mxu0 0.0
    %2914 = vmatprep.subr.mxu0 0.0
    %2915 = vmatpush1.msra.mxu0 0.0
    %2916 = vmatprep.subr.mxu0 0.0
    %2917 = vmatpush1.msra.mxu0 0.0
    %2918 = vmatprep.subr.mxu0 0.0
    %2919 = vmatpush1.msra.mxu0 0.0
    %2920 = vmatprep.subr.mxu0 0.0
    %2921 = vmatpush1.msra.mxu0 0.0
    %2922 = vmatprep.subr.mxu0 0.0
    %2923 = vmatpush1.msra.mxu0 0.0
    %2924 = vmatprep.subr.mxu0 0.0
    %2925 = vmatpush1.msra.mxu0 0.0
    %2926 = vmatprep.subr.mxu0 0.0
    %2927 = vmatpush1.msra.mxu0 0.0
    %2928 = vmatprep.subr.mxu0 0.0
    %2929 = vmatpush1.msra.mxu0 0.0
    %2930 = vmatprep.subr.mxu0 0.0
    %2931 = vmatpush1.msra.mxu0 0.0
    %2932 = vmatprep.subr.mxu0 0.0
    %2933 = vmatpush1.msra.mxu0 0.0
    %2934 = vmatprep.subr.mxu0 0.0
    %2935 = vmatpush1.msra.mxu0 0.0
    %2936 = vmatprep.subr.mxu0 0.0
    %2937 = vmatpush1.msra.mxu0 0.0
    %2938 = vmatprep.subr.mxu0 0.0
    %2939 = vmatpush1.msra.mxu0 0.0
    %2940 = vmatprep.mubr.f32.mxu0 0.0
    %2941 = vmatmul.mubr.f32.gmra.mrb[0].mxu0 %v2797
    %v2942 = vpop.f32.mrb[0].mxu0
    %v2943 = vadd.f32 0.0, %v2942
    %v2944 = vpop.f32.mrb[0].mxu0
    %v2945 = vadd.f32 0.0, %v2944
    %2946 = vdwg.mxu0
    %v2947 = vadd.f32 %v2801, %v2872
    %v2948 = vadd.f32 %v2802, %v2874
    %v2949 = vadd.f32 %v2803, %v2943
    %v2950 = vadd.f32 %v2804, %v2945
    %v2951 = vxor.u32 %v2947, 2147483648
    %v2952 = vmul.f32 %v2951, 1.442695
    %v2953 = vpow.pop %v2952
    %v2954 = vadd.f32 %v2953, 1.0
    %v2955 = vrcp.pop %v2954
    %v2956 = vmul.f32 1.0, %v2955
    %v2957 = vxor.u32 %v2948, 2147483648
    %v2958 = vmul.f32 %v2957, 1.442695
    %v2959 = vpow.pop %v2958
    %v2960 = vadd.f32 %v2959, 1.0
    %v2961 = vrcp.pop %v2960
    %v2962 = vmul.f32 1.0, %v2961
    %v2963 = vtanh.pop %v2949
    %v2964 = vxor.u32 %v2950, 2147483648
    %v2965 = vmul.f32 %v2964, 1.442695
    %v2966 = vpow.pop %v2965
    %v2967 = vadd.f32 %v2966, 1.0
    %v2968 = vrcp.pop %v2967
    %v2969 = vmul.f32 1.0, %v2968
    %v2970 = vmul.f32 %v2962, %v2795
    %v2971 = vmul.f32 %v2956, %v2963
    %v2972 = vadd.f32 %v2970, %v2971
    %v2973 = vtanh.pop %v2972
    %v2974 = vmul.f32 %v2969, %v2973
    %s2975 = scalar_lea.vmem [#allocation12], 120
    %2976 = vst [vmem:[%s2975] sm:$0xff] %v2974
    %2977 = vst [vmem:[#allocation2] sm:$0xff] %v2974
    %2978 = vst [vmem:[#allocation3] sm:$0xff] %v2972
    // Predicated region
    $region38: #{rnn_model_forward.6} parent=1 // pred_check
      %p2979 = pneg %p73
    $region39: #{rnn_model_forward.6} parent=1 // pred_check_branch
      %2981 = sbr.rel (%p2979) target = $region41
    $region40: #{rnn_model_forward.6} parent=1 // pred_region
      %2982 = vst [vmem:[#allocation13] sm:$0xff] %v2974
      %2983 = vst [vmem:[#allocation15] sm:$0xff] %v2972
    $region41: #{rnn_model_forward.6} parent=1 // pred_fallthru
      _
    // Predicated region
    $region42: #{rnn_model_forward.6} parent=1 // pred_check
      _
    $region43: #{rnn_model_forward.6} parent=1 // pred_check_branch
      %2985 = sbr.rel (0) target = $region45
    $region44: #{rnn_model_forward.6} parent=1 // pred_region
      %s2987 = ssub.s32 2048, 2048
      %2988 = vsyncadd [#allocation6], %s2987
      %s2989 = sshll.u32 [#allocation12], 4
      %s2990 = int_to_ptr.vmem [resolvable:$true] %s2989
      %2995 = dma.vmem_to_hbm [thread:$0]  %s2990, 2048, %s4, [#allocation6], 128, 128, 8
    $region45: #{rnn_model_forward.6} parent=1 // pred_fallthru
      _
    // Predicated region
    $region46: #{rnn_model_forward.6} parent=1 // pred_check
      _
    $region47: #{rnn_model_forward.6} parent=1 // pred_check_branch
      %2997 = sbr.rel (0) target = $region49
    $region48: #{rnn_model_forward.6} parent=1 // pred_region
      %s2999 = ssub.s32 128, 128
      %3000 = vsyncadd [#allocation14], %s2999
      %s3002 = sshll.u32 [#allocation13], 4
      %s3003 = int_to_ptr.vmem [resolvable:$true] %s3002
      %3005 = dma.vmem_to_hbm [thread:$0]  %s3003, 128, %s5, [#allocation14]
    $region49: #{rnn_model_forward.6} parent=1 // pred_fallthru
      _
    // Predicated region
    $region50: #{rnn_model_forward.6} parent=1 // pred_check
      _
    $region51: #{rnn_model_forward.6} parent=1 // pred_check_branch
      %3007 = sbr.rel (0) target = $region53
    $region52: #{rnn_model_forward.6} parent=1 // pred_region
      %s3009 = ssub.s32 128, 128
      %3010 = vsyncadd [#allocation14], %s3009
      %s3012 = sshll.u32 [#allocation15], 4
      %s3013 = int_to_ptr.vmem [resolvable:$true] %s3012
      %3015 = dma.vmem_to_hbm [thread:$0]  %s3013, 128, %s6, [#allocation14]
    $region53: #{rnn_model_forward.6} parent=1 // pred_fallthru
      _
    // Predicated region
    $region54: #{rnn_model_forward.6} parent=1 // pred_check
      _
    $region55: #{rnn_model_forward.6} parent=1 // pred_check_branch
      %3017 = sbr.rel (0) target = $region57
    $region56: #{rnn_model_forward.6} parent=1 // pred_region
      %3018 = dma.done [#allocation6], 2048
    $region57: #{rnn_model_forward.6} parent=1 // pred_fallthru
      _
    // Predicated region
    $region58: #{rnn_model_forward.6} parent=1 // pred_check
      _
    $region59: #{rnn_model_forward.6} parent=1 // pred_check_branch
      %3020 = sbr.rel (0) target = $region61
    $region60: #{rnn_model_forward.6} parent=1 // pred_region
      %3021 = dma.done [#allocation14], 128
    $region61: #{rnn_model_forward.6} parent=1 // pred_fallthru
      _
    // Predicated region
    $region62: #{rnn_model_forward.6} parent=1 // pred_check
      _
    $region63: #{rnn_model_forward.6} parent=1 // pred_check_branch
      %3023 = sbr.rel (0) target = $region65
    $region64: #{rnn_model_forward.6} parent=1 // pred_region
      %3024 = dma.done [#allocation14], 128
    $region65: #{rnn_model_forward.6} parent=1 // pred_fallthru
      _
    %3025 = vsyncpa [#allocation5], 1
    %3026 = vsyncpa [#allocation8], 1
    %3027 = vsyncpa [#allocation11], 1
    %3028 = vsyncpa [#allocation6], 1
    %3029 = vsyncpa [#allocation14], 1

</llo_original>
